<compile_context>
chip_gen: v7x
topology: tpu7x:2x2x1
jax: 0.10.0
libtpu: 0.0.40
codegen_flags: <defaults>
</compile_context>

<pallas_src>
import jax
import jax.numpy as jnp
from jax.experimental import pallas as pl
from jax.experimental.pallas import tpu as pltpu


# ------------------------------ fused kernel -------------------------------

def _netconv_kernel(pat_ref, w1_ref, b1_ref, w2_ref, b2_ref,
                    wfc1_ref, bfc1_ref, wfc2_ref, bfc2_ref,
                    out_ref, p_ref, col_ref, fc1_ref):
    f32, bf16 = jnp.float32, jnp.bfloat16
    B = out_ref.shape[0]            # samples per grid step (multiple of 16)
    r = 49 * B                      # rows per pool-partner in the conv1 im2col

    # -------- conv1 + pool1 (+ bias + relu) ---------------------------------
    # pat rows are ordered (partner p=hp*2+wp, i*7+j, b); partner q's rows are
    # a contiguous, tile-aligned slice, so pool1 is 3 bulk maxima.
    def conv1_part(p):
        return jnp.dot(pat_ref[p * r:(p + 1) * r, :], w1_ref[...],
                       preferred_element_type=f32)                  # (49B, 32)

    m1 = conv1_part(0)
    m1 = jnp.maximum(m1, conv1_part(1))
    m1 = jnp.maximum(m1, conv1_part(2))
    m1 = jnp.maximum(m1, conv1_part(3))
    p1 = jnp.maximum(m1 + b1_ref[...], 0.0)                          # (49B, 32)
    p1 = p1.reshape(7, 7, B, 32).astype(bf16)                        # (i, j, b, c)

    # -------- conv2 input: zero-padded (pad=2) pool1 output ------------------
    # Layout (h, w, b, c): every (h, w) slab is exactly one bf16 tile, so the
    # 3x3 window slices below are pure tile selections.
    p_ref[...] = jnp.zeros(p_ref.shape, bf16)
    p_ref[2:9, 2:9, :, :] = p1

    # -------- conv2: K=288 im2col block in VMEM, single matmul --------------
    for k in range(9):
        kh, kw = k // 3, k % 3
        win = p_ref[kh:kh + 8, kw:kw + 8, :, :]                      # (8,8,B,32)
        col_ref[:, k * 32:(k + 1) * 32] = win.reshape(64 * B, 32)
    y2 = jnp.dot(col_ref[...], w2_ref[...],
                 preferred_element_type=f32)                         # (64B, 64), rows (oh, ow, b)

    # -------- pool2 (+ bias + relu): rows (oh, ow, b) -> (s, t, b) -----------
    y2 = y2.reshape(32, 2 * B, 64)                                   # (oh*4+t, wq*B+b, c)
    mw = jnp.maximum(y2[:, :B, :], y2[:, B:, :])                     # max over wq
    mw = mw.reshape(4, 2, 4, B, 64)                                  # (s, hp, t, b, c)
    mh = jnp.maximum(mw[:, 0], mw[:, 1])                             # (4, 4, B, 64)
    act2 = jnp.maximum(mh + b2_ref[...], 0.0)

    # -------- fc1: gather into a (B, 1024) buffer, one K=1024 matmul ---------
    for st in range(16):
        fc1_ref[:, st * 64:(st + 1) * 64] = act2[st // 4, st % 4].astype(bf16)
    h1 = jnp.dot(fc1_ref[...], wfc1_ref[...],
                 preferred_element_type=f32) + bfc1_ref[...]         # (B, 128)
    h1 = jnp.maximum(h1, 0.0)

    # -------- fc2 (lane-padded to 128) + log_softmax (f32) -------------------
    logits = jnp.dot(h1.astype(bf16), wfc2_ref[...],
                     preferred_element_type=f32) + bfc2_ref[...]     # (B, 128)
    z = logits - jnp.max(logits, axis=-1, keepdims=True)
    lse = jnp.log(jnp.sum(jnp.exp(z), axis=-1, keepdims=True))
    out_ref[...] = z - lse


# ------------------------------ host-side glue ------------------------------

def _build_conv1_patches(x_nchw, block_b):
    """conv1 (k=3, stride=2, pad=2) im2col, only the 14x14 outputs pool1 uses.

    Rows are ordered (group, pool-partner p=hp*2+wp, i*7+j, sample-in-group),
    with the sample index innermost so pool partners are contiguous slices in
    the kernel and all reshapes stay tile-aligned.
    """
    n = x_nchw.shape[0]
    n_pad = -(-n // block_b) * block_b
    x = x_nchw[:, 0, :, :]                                   # [N, 28, 28]
    if n_pad != n:
        x = jnp.pad(x, ((0, n_pad - n), (0, 0), (0, 0)))
    xp = jnp.pad(x, ((0, 0), (2, 1), (2, 1)))                # [n_pad, 31, 31]
    wins = [xp[:, kh:kh + 27:2, kw:kw + 27:2]                # [n_pad, 14, 14]
            for kh in range(3) for kw in range(3)]
    p = jnp.stack(wins, axis=-1)                             # (n, oh, ow, k)
    p = p.reshape(n_pad, 7, 2, 7, 2, 9)                      # (n, i, hp, j, wp, k)
    p = p.transpose(0, 2, 4, 1, 3, 5)                        # (n, hp, wp, i, j, k)
    p = p.reshape(n_pad // block_b, block_b, 4, 49, 9)       # (g, b, p, ij, k)
    p = p.transpose(0, 2, 3, 1, 4)                           # (g, p, ij, b, k)
    return p.reshape(n_pad * 196, 9).astype(jnp.bfloat16), n_pad


def prepare_params(params):
    """One-time weight prep (reshape / permute / pad / cast), out of hot path."""
    f32, bf16 = jnp.float32, jnp.bfloat16
    wfc1 = params["wfc1"].reshape(64, 4, 4, 128)             # torch rows (c, h, w)
    wfc1 = wfc1.transpose(1, 2, 0, 3).reshape(1024, 128)     # rows (h*4 + w)*64 + c
    wfc2 = jnp.zeros((128, 128), f32).at[:, :10].set(params["wfc2"])
    bfc2 = jnp.full((1, 128), -1e30, f32).at[0, :10].set(params["bfc2"])
    return {
        "w1": params["w1"].reshape(9, 32).astype(bf16),      # rows kh*3+kw
        "b1": params["b1"].reshape(1, 32).astype(f32),
        "w2": params["w2"].reshape(288, 64).astype(bf16),    # rows (kh*3+kw)*32+cin
        "b2": params["b2"].reshape(1, 64).astype(f32),
        "wfc1": wfc1.astype(bf16),
        "bfc1": params["bfc1"].reshape(1, 128).astype(f32),
        "wfc2": wfc2.astype(bf16),                           # cols >= 10 are zero
        "bfc2": bfc2,                                        # cols >= 10 are -1e30
    }


def net_conv_forward(x_nchw, prepped, *, block_b=16):
    # dropout1 / dropout2: identity at inference (p=0.25 only active in training)
    n = x_nchw.shape[0]
    B = block_b
    pat, n_pad = _build_conv1_patches(x_nchw, B)

    grid_spec = pltpu.PrefetchScalarGridSpec(
        num_scalar_prefetch=0,
        grid=(n_pad // B,),
        in_specs=[
            pl.BlockSpec((B * 196, 9), lambda g: (g, 0)),    # conv1 patches
            pl.BlockSpec((9, 32), lambda g: (0, 0)),         # w1
            pl.BlockSpec((1, 32), lambda g: (0, 0)),         # b1
            pl.BlockSpec((288, 64), lambda g: (0, 0)),       # w2 (im2col layout)
            pl.BlockSpec((1, 64), lambda g: (0, 0)),         # b2
            pl.BlockSpec((1024, 128), lambda g: (0, 0)),     # wfc1 ((h,w,c) rows)
            pl.BlockSpec((1, 128), lambda g: (0, 0)),        # bfc1
            pl.BlockSpec((128, 128), lambda g: (0, 0)),      # wfc2 (padded)
            pl.BlockSpec((1, 128), lambda g: (0, 0)),        # bfc2 (padded)
        ],
        out_specs=pl.BlockSpec((B, 128), lambda g: (g, 0)),
        scratch_shapes=[
            pltpu.VMEM((10, 10, B, 32), jnp.bfloat16),       # padded conv2 input
            pltpu.VMEM((64 * B, 288), jnp.bfloat16),         # conv2 im2col block
            pltpu.VMEM((B, 1024), jnp.bfloat16),             # fc1 input buffer
        ],
    )
    out = pl.pallas_call(
        _netconv_kernel,
        out_shape=jax.ShapeDtypeStruct((n_pad, 128), jnp.float32),
        grid_spec=grid_spec,
        compiler_params=pltpu.CompilerParams(
            dimension_semantics=("parallel",),
            vmem_limit_bytes=32 * 1024 * 1024),
    )(pat, prepped["w1"], prepped["b1"], prepped["w2"], prepped["b2"],
      prepped["wfc1"], prepped["bfc1"], prepped["wfc2"], prepped["bfc2"])
    return out[:n, :10]


# ------------------------------ params / reference --------------------------

def init_params(key):
    ks = jax.random.split(key, 8)

    def nrm(k, shape, scale):
        return (scale * jax.random.normal(k, shape)).astype(jnp.float32)

    return {
        "w1": nrm(ks[0], (3, 3, 1, 32), 0.10),     # conv1 (kh, kw, cin, cout)
        "b1": nrm(ks[1], (32,), 0.01),
        "w2": nrm(ks[2], (3, 3, 32, 64), 0.05),    # conv2
        "b2": nrm(ks[3], (64,), 0.01),
        "wfc1": nrm(ks[4], (1024, 128), 0.03),     # fc1, rows in torch (c,h,w) order
        "bfc1": nrm(ks[5], (128,), 0.01),
        "wfc2": nrm(ks[6], (128, 10), 0.05),       # fc2
        "bfc2": nrm(ks[7], (10,), 0.01),
    }


def net_conv_reference(x_nchw, params):
    """Pure-JAX f32 reference matching the PyTorch module."""
    dn = ("NCHW", "OIHW", "NCHW")
    y = jax.lax.conv_general_dilated(
        x_nchw, params["w1"].transpose(3, 2, 0, 1), (2, 2), ((2, 2), (2, 2)),
        dimension_numbers=dn) + params["b1"].reshape(1, 32, 1, 1)
    y = jax.nn.relu(y)
    y = jax.lax.reduce_window(y, -jnp.inf, jax.lax.max,
                              (1, 1, 2, 2), (1, 1, 2, 2), "VALID")
    y = jax.lax.conv_general_dilated(
        y, params["w2"].transpose(3, 2, 0, 1), (1, 1), ((2, 2), (2, 2)),
        dimension_numbers=dn) + params["b2"].reshape(1, 64, 1, 1)
    y = jax.nn.relu(y)
    y = jax.lax.reduce_window(y, -jnp.inf, jax.lax.max,
                              (1, 1, 2, 2), (1, 1, 2, 2), "VALID")
    y = y.reshape(y.shape[0], -1)
    y = jax.nn.relu(y @ params["wfc1"] + params["bfc1"])
    y = y @ params["wfc2"] + params["bfc2"]
    return jax.nn.log_softmax(y, axis=1)


if __name__ == "__main__":
    key = jax.random.PRNGKey(0)
    pkey, xkey = jax.random.split(key)
    params = init_params(pkey)
    prepped = prepare_params(params)
    x = jax.random.normal(xkey, (2, 1, 28, 28), dtype=jnp.float32)  # NCHW like PyTorch

    fwd = jax.jit(net_conv_forward)
    out = jax.block_until_ready(fwd(x, prepped))

    assert out.shape == (2, 10) and out.dtype == jnp.float32
    # each log_softmax row must logsumexp to ~0 (computed exactly in f32)
    assert bool(jnp.all(jnp.abs(jax.nn.logsumexp(out, axis=1)) < 1e-3))
    # bf16-matmul / f32-accumulate kernel vs. pure-f32 reference
    ref = net_conv_reference(x, params)
    assert bool(jnp.max(jnp.abs(out - ref)) < 5e-2)

    # multi-step grid + ragged-batch (zero-padded to a multiple of 16) path
    x2 = jax.random.normal(jax.random.PRNGKey(1), (37, 1, 28, 28), dtype=jnp.float32)
    out2 = jax.block_until_ready(fwd(x2, prepped))
    ref2 = net_conv_reference(x2, params)
    assert out2.shape == (37, 10)
    assert bool(jnp.max(jnp.abs(out2 - ref2)) < 5e-2)

    print("KERNEL_OK")
</pallas_src>

<mosaic_0001>
module attributes {stable_mosaic.version = 11 : i64} {
  func.func @_netconv_kernel(%arg0: i32, %arg1: memref<3136x9xbf16, #tpu.memory_space<vmem>>, %arg2: memref<9x32xbf16, #tpu.memory_space<vmem>>, %arg3: memref<1x32xf32, #tpu.memory_space<vmem>>, %arg4: memref<288x64xbf16, #tpu.memory_space<vmem>>, %arg5: memref<1x64xf32, #tpu.memory_space<vmem>>, %arg6: memref<1024x128xbf16, #tpu.memory_space<vmem>>, %arg7: memref<1x128xf32, #tpu.memory_space<vmem>>, %arg8: memref<128x128xbf16, #tpu.memory_space<vmem>>, %arg9: memref<1x128xf32, #tpu.memory_space<vmem>>, %arg10: memref<16x128xf32, #tpu.memory_space<vmem>>, %arg11: memref<10x10x16x32xbf16, #tpu.memory_space<vmem>>, %arg12: memref<1024x288xbf16, #tpu.memory_space<vmem>>, %arg13: memref<16x1024xbf16, #tpu.memory_space<vmem>>) attributes {dimension_semantics = [#tpu.dimension_semantics<parallel>], iteration_bounds = array<i64: 1>, scalar_prefetch = 0 : i64, scratch_operands = 3 : i64, tpu.core_type = #tpu.core_type<tc>, window_params = [{transform_indices = @transform_0, window_bounds = array<i64: 3136, 9>}, {pipeline_mode = #tpu.pipeline_mode<synchronous>, transform_indices = @transform_1, window_bounds = array<i64: 9, 32>}, {pipeline_mode = #tpu.pipeline_mode<synchronous>, transform_indices = @transform_2, window_bounds = array<i64: 1, 32>}, {pipeline_mode = #tpu.pipeline_mode<synchronous>, transform_indices = @transform_3, window_bounds = array<i64: 288, 64>}, {pipeline_mode = #tpu.pipeline_mode<synchronous>, transform_indices = @transform_4, window_bounds = array<i64: 1, 64>}, {pipeline_mode = #tpu.pipeline_mode<synchronous>, transform_indices = @transform_5, window_bounds = array<i64: 1024, 128>}, {pipeline_mode = #tpu.pipeline_mode<synchronous>, transform_indices = @transform_6, window_bounds = array<i64: 1, 128>}, {pipeline_mode = #tpu.pipeline_mode<synchronous>, transform_indices = @transform_7, window_bounds = array<i64: 128, 128>}, {pipeline_mode = #tpu.pipeline_mode<synchronous>, transform_indices = @transform_8, window_bounds = array<i64: 1, 128>}, {transform_indices = @transform_9, window_bounds = array<i64: 16, 128>}]} {
    %c0 = arith.constant 0 : index
    %c0_0 = arith.constant 0 : index
    %0 = vector.load %arg1[%c0, %c0_0] : memref<3136x9xbf16, #tpu.memory_space<vmem>>, vector<784x9xbf16>
    %c0_1 = arith.constant 0 : index
    %c0_2 = arith.constant 0 : index
    %1 = vector.load %arg2[%c0_1, %c0_2] : memref<9x32xbf16, #tpu.memory_space<vmem>>, vector<9x32xbf16>
    %cst = arith.constant dense<0.000000e+00> : vector<784x32xf32>
    %2 = tpu.matmul %0, %1, %cst {dimension_numbers = #tpu.dot_dimension_numbers<[1], [0], [0], [1], [0, 0, 1, 1], [], []>} : vector<784x9xbf16>, vector<9x32xbf16>, vector<784x32xf32> -> vector<784x32xf32>
    %c784 = arith.constant 784 : index
    %c0_3 = arith.constant 0 : index
    %3 = vector.load %arg1[%c784, %c0_3] : memref<3136x9xbf16, #tpu.memory_space<vmem>>, vector<784x9xbf16>
    %c0_4 = arith.constant 0 : index
    %c0_5 = arith.constant 0 : index
    %4 = vector.load %arg2[%c0_4, %c0_5] : memref<9x32xbf16, #tpu.memory_space<vmem>>, vector<9x32xbf16>
    %cst_6 = arith.constant dense<0.000000e+00> : vector<784x32xf32>
    %5 = tpu.matmul %3, %4, %cst_6 {dimension_numbers = #tpu.dot_dimension_numbers<[1], [0], [0], [1], [0, 0, 1, 1], [], []>} : vector<784x9xbf16>, vector<9x32xbf16>, vector<784x32xf32> -> vector<784x32xf32>
    %6 = arith.maximumf %2, %5 : vector<784x32xf32>
    %c1568 = arith.constant 1568 : index
    %c0_7 = arith.constant 0 : index
    %7 = vector.load %arg1[%c1568, %c0_7] : memref<3136x9xbf16, #tpu.memory_space<vmem>>, vector<784x9xbf16>
    %c0_8 = arith.constant 0 : index
    %c0_9 = arith.constant 0 : index
    %8 = vector.load %arg2[%c0_8, %c0_9] : memref<9x32xbf16, #tpu.memory_space<vmem>>, vector<9x32xbf16>
    %cst_10 = arith.constant dense<0.000000e+00> : vector<784x32xf32>
    %9 = tpu.matmul %7, %8, %cst_10 {dimension_numbers = #tpu.dot_dimension_numbers<[1], [0], [0], [1], [0, 0, 1, 1], [], []>} : vector<784x9xbf16>, vector<9x32xbf16>, vector<784x32xf32> -> vector<784x32xf32>
    %10 = arith.maximumf %6, %9 : vector<784x32xf32>
    %c2352 = arith.constant 2352 : index
    %c0_11 = arith.constant 0 : index
    %11 = vector.load %arg1[%c2352, %c0_11] : memref<3136x9xbf16, #tpu.memory_space<vmem>>, vector<784x9xbf16>
    %c0_12 = arith.constant 0 : index
    %c0_13 = arith.constant 0 : index
    %12 = vector.load %arg2[%c0_12, %c0_13] : memref<9x32xbf16, #tpu.memory_space<vmem>>, vector<9x32xbf16>
    %cst_14 = arith.constant dense<0.000000e+00> : vector<784x32xf32>
    %13 = tpu.matmul %11, %12, %cst_14 {dimension_numbers = #tpu.dot_dimension_numbers<[1], [0], [0], [1], [0, 0, 1, 1], [], []>} : vector<784x9xbf16>, vector<9x32xbf16>, vector<784x32xf32> -> vector<784x32xf32>
    %14 = arith.maximumf %10, %13 : vector<784x32xf32>
    %c0_15 = arith.constant 0 : index
    %c0_16 = arith.constant 0 : index
    %15 = vector.load %arg3[%c0_15, %c0_16] : memref<1x32xf32, #tpu.memory_space<vmem>>, vector<1x32xf32>
    %16 = vector.broadcast %15 : vector<1x32xf32> to vector<784x32xf32>
    %17 = arith.addf %14, %16 : vector<784x32xf32>
    %cst_17 = arith.constant 0.000000e+00 : f32
    %18 = vector.broadcast %cst_17 : f32 to vector<784x32xf32>
    %19 = arith.maximumf %17, %18 : vector<784x32xf32>
    %20 = vector.shape_cast %19 : vector<784x32xf32> to vector<7x7x16x32xf32>
    %21 = arith.truncf %20 : vector<7x7x16x32xf32> to vector<7x7x16x32xbf16>
    %cst_18 = arith.constant 0.000000e+00 : bf16
    %22 = vector.broadcast %cst_18 : bf16 to vector<10x10x16x32xbf16>
    %c0_19 = arith.constant 0 : index
    %c0_20 = arith.constant 0 : index
    %c0_21 = arith.constant 0 : index
    %c0_22 = arith.constant 0 : index
    %23 = vector.load %arg11[%c0_19, %c0_20, %c0_21, %c0_22] : memref<10x10x16x32xbf16, #tpu.memory_space<vmem>>, vector<10x10x16x32xbf16>
    tpu.vector_store %arg11[%c0_19, %c0_20, %c0_21, %c0_22], %22 {strides = array<i32>} : memref<10x10x16x32xbf16, #tpu.memory_space<vmem>>, vector<10x10x16x32xbf16>,
    %c2 = arith.constant 2 : index
    %c2_23 = arith.constant 2 : index
    %c0_24 = arith.constant 0 : index
    %c0_25 = arith.constant 0 : index
    %24 = vector.load %arg11[%c2, %c2_23, %c0_24, %c0_25] : memref<10x10x16x32xbf16, #tpu.memory_space<vmem>>, vector<7x7x16x32xbf16>
    tpu.vector_store %arg11[%c2, %c2_23, %c0_24, %c0_25], %21 {strides = array<i32>} : memref<10x10x16x32xbf16, #tpu.memory_space<vmem>>, vector<7x7x16x32xbf16>,
    %c0_26 = arith.constant 0 : index
    %c0_27 = arith.constant 0 : index
    %c0_28 = arith.constant 0 : index
    %c0_29 = arith.constant 0 : index
    %25 = vector.load %arg11[%c0_26, %c0_27, %c0_28, %c0_29] : memref<10x10x16x32xbf16, #tpu.memory_space<vmem>>, vector<8x8x16x32xbf16>
    %26 = vector.shape_cast %25 : vector<8x8x16x32xbf16> to vector<1024x32xbf16>
    %c0_30 = arith.constant 0 : index
    %c0_31 = arith.constant 0 : index
    %27 = vector.load %arg12[%c0_30, %c0_31] : memref<1024x288xbf16, #tpu.memory_space<vmem>>, vector<1024x32xbf16>
    tpu.vector_store %arg12[%c0_30, %c0_31], %26 {strides = array<i32>} : memref<1024x288xbf16, #tpu.memory_space<vmem>>, vector<1024x32xbf16>,
    %c0_32 = arith.constant 0 : index
    %c1 = arith.constant 1 : index
    %c0_33 = arith.constant 0 : index
    %c0_34 = arith.constant 0 : index
    %28 = vector.load %arg11[%c0_32, %c1, %c0_33, %c0_34] : memref<10x10x16x32xbf16, #tpu.memory_space<vmem>>, vector<8x8x16x32xbf16>
    %29 = vector.shape_cast %28 : vector<8x8x16x32xbf16> to vector<1024x32xbf16>
    %c0_35 = arith.constant 0 : index
    %c32 = arith.constant 32 : index
    %30 = vector.load %arg12[%c0_35, %c32] : memref<1024x288xbf16, #tpu.memory_space<vmem>>, vector<1024x32xbf16>
    tpu.vector_store %arg12[%c0_35, %c32], %29 {strides = array<i32>} : memref<1024x288xbf16, #tpu.memory_space<vmem>>, vector<1024x32xbf16>,
    %c0_36 = arith.constant 0 : index
    %c2_37 = arith.constant 2 : index
    %c0_38 = arith.constant 0 : index
    %c0_39 = arith.constant 0 : index
    %31 = vector.load %arg11[%c0_36, %c2_37, %c0_38, %c0_39] : memref<10x10x16x32xbf16, #tpu.memory_space<vmem>>, vector<8x8x16x32xbf16>
    %32 = vector.shape_cast %31 : vector<8x8x16x32xbf16> to vector<1024x32xbf16>
    %c0_40 = arith.constant 0 : index
    %c64 = arith.constant 64 : index
    %33 = vector.load %arg12[%c0_40, %c64] : memref<1024x288xbf16, #tpu.memory_space<vmem>>, vector<1024x32xbf16>
    tpu.vector_store %arg12[%c0_40, %c64], %32 {strides = array<i32>} : memref<1024x288xbf16, #tpu.memory_space<vmem>>, vector<1024x32xbf16>,
    %c1_41 = arith.constant 1 : index
    %c0_42 = arith.constant 0 : index
    %c0_43 = arith.constant 0 : index
    %c0_44 = arith.constant 0 : index
    %34 = vector.load %arg11[%c1_41, %c0_42, %c0_43, %c0_44] : memref<10x10x16x32xbf16, #tpu.memory_space<vmem>>, vector<8x8x16x32xbf16>
    %35 = vector.shape_cast %34 : vector<8x8x16x32xbf16> to vector<1024x32xbf16>
    %c0_45 = arith.constant 0 : index
    %c96 = arith.constant 96 : index
    %36 = vector.load %arg12[%c0_45, %c96] : memref<1024x288xbf16, #tpu.memory_space<vmem>>, vector<1024x32xbf16>
    tpu.vector_store %arg12[%c0_45, %c96], %35 {strides = array<i32>} : memref<1024x288xbf16, #tpu.memory_space<vmem>>, vector<1024x32xbf16>,
    %c1_46 = arith.constant 1 : index
    %c1_47 = arith.constant 1 : index
    %c0_48 = arith.constant 0 : index
    %c0_49 = arith.constant 0 : index
    %37 = vector.load %arg11[%c1_46, %c1_47, %c0_48, %c0_49] : memref<10x10x16x32xbf16, #tpu.memory_space<vmem>>, vector<8x8x16x32xbf16>
    %38 = vector.shape_cast %37 : vector<8x8x16x32xbf16> to vector<1024x32xbf16>
    %c0_50 = arith.constant 0 : index
    %c128 = arith.constant 128 : index
    %39 = vector.load %arg12[%c0_50, %c128] : memref<1024x288xbf16, #tpu.memory_space<vmem>>, vector<1024x32xbf16>
    tpu.vector_store %arg12[%c0_50, %c128], %38 {strides = array<i32>} : memref<1024x288xbf16, #tpu.memory_space<vmem>>, vector<1024x32xbf16>,
    %c1_51 = arith.constant 1 : index
    %c2_52 = arith.constant 2 : index
    %c0_53 = arith.constant 0 : index
    %c0_54 = arith.constant 0 : index
    %40 = vector.load %arg11[%c1_51, %c2_52, %c0_53, %c0_54] : memref<10x10x16x32xbf16, #tpu.memory_space<vmem>>, vector<8x8x16x32xbf16>
    %41 = vector.shape_cast %40 : vector<8x8x16x32xbf16> to vector<1024x32xbf16>
    %c0_55 = arith.constant 0 : index
    %c160 = arith.constant 160 : index
    %42 = vector.load %arg12[%c0_55, %c160] : memref<1024x288xbf16, #tpu.memory_space<vmem>>, vector<1024x32xbf16>
    tpu.vector_store %arg12[%c0_55, %c160], %41 {strides = array<i32>} : memref<1024x288xbf16, #tpu.memory_space<vmem>>, vector<1024x32xbf16>,
    %c2_56 = arith.constant 2 : index
    %c0_57 = arith.constant 0 : index
    %c0_58 = arith.constant 0 : index
    %c0_59 = arith.constant 0 : index
    %43 = vector.load %arg11[%c2_56, %c0_57, %c0_58, %c0_59] : memref<10x10x16x32xbf16, #tpu.memory_space<vmem>>, vector<8x8x16x32xbf16>
    %44 = vector.shape_cast %43 : vector<8x8x16x32xbf16> to vector<1024x32xbf16>
    %c0_60 = arith.constant 0 : index
    %c192 = arith.constant 192 : index
    %45 = vector.load %arg12[%c0_60, %c192] : memref<1024x288xbf16, #tpu.memory_space<vmem>>, vector<1024x32xbf16>
    tpu.vector_store %arg12[%c0_60, %c192], %44 {strides = array<i32>} : memref<1024x288xbf16, #tpu.memory_space<vmem>>, vector<1024x32xbf16>,
    %c2_61 = arith.constant 2 : index
    %c1_62 = arith.constant 1 : index
    %c0_63 = arith.constant 0 : index
    %c0_64 = arith.constant 0 : index
    %46 = vector.load %arg11[%c2_61, %c1_62, %c0_63, %c0_64] : memref<10x10x16x32xbf16, #tpu.memory_space<vmem>>, vector<8x8x16x32xbf16>
    %47 = vector.shape_cast %46 : vector<8x8x16x32xbf16> to vector<1024x32xbf16>
    %c0_65 = arith.constant 0 : index
    %c224 = arith.constant 224 : index
    %48 = vector.load %arg12[%c0_65, %c224] : memref<1024x288xbf16, #tpu.memory_space<vmem>>, vector<1024x32xbf16>
    tpu.vector_store %arg12[%c0_65, %c224], %47 {strides = array<i32>} : memref<1024x288xbf16, #tpu.memory_space<vmem>>, vector<1024x32xbf16>,
    %c2_66 = arith.constant 2 : index
    %c2_67 = arith.constant 2 : index
    %c0_68 = arith.constant 0 : index
    %c0_69 = arith.constant 0 : index
    %49 = vector.load %arg11[%c2_66, %c2_67, %c0_68, %c0_69] : memref<10x10x16x32xbf16, #tpu.memory_space<vmem>>, vector<8x8x16x32xbf16>
    %50 = vector.shape_cast %49 : vector<8x8x16x32xbf16> to vector<1024x32xbf16>
    %c0_70 = arith.constant 0 : index
    %c256 = arith.constant 256 : index
    %51 = vector.load %arg12[%c0_70, %c256] : memref<1024x288xbf16, #tpu.memory_space<vmem>>, vector<1024x32xbf16>
    tpu.vector_store %arg12[%c0_70, %c256], %50 {strides = array<i32>} : memref<1024x288xbf16, #tpu.memory_space<vmem>>, vector<1024x32xbf16>,
    %c0_71 = arith.constant 0 : index
    %c0_72 = arith.constant 0 : index
    %52 = vector.load %arg12[%c0_71, %c0_72] : memref<1024x288xbf16, #tpu.memory_space<vmem>>, vector<1024x288xbf16>
    %c0_73 = arith.constant 0 : index
    %c0_74 = arith.constant 0 : index
    %53 = vector.load %arg4[%c0_73, %c0_74] : memref<288x64xbf16, #tpu.memory_space<vmem>>, vector<288x64xbf16>
    %cst_75 = arith.constant dense<0.000000e+00> : vector<1024x64xf32>
    %54 = tpu.matmul %52, %53, %cst_75 {dimension_numbers = #tpu.dot_dimension_numbers<[1], [0], [0], [1], [0, 0, 1, 1], [], []>} : vector<1024x288xbf16>, vector<288x64xbf16>, vector<1024x64xf32> -> vector<1024x64xf32>
    %55 = vector.shape_cast %54 : vector<1024x64xf32> to vector<32x32x64xf32>
    %56 = vector.extract_strided_slice %55 {offsets = [0, 0, 0], sizes = [32, 16, 64], strides = [1, 1, 1]} : vector<32x32x64xf32> to vector<32x16x64xf32>
    %57 = vector.extract_strided_slice %55 {offsets = [0, 16, 0], sizes = [32, 16, 64], strides = [1, 1, 1]} : vector<32x32x64xf32> to vector<32x16x64xf32>
    %58 = arith.maximumf %56, %57 : vector<32x16x64xf32>
    %59 = vector.shape_cast %58 : vector<32x16x64xf32> to vector<4x2x4x16x64xf32>
    %60 = vector.extract_strided_slice %59 {offsets = [0, 0, 0, 0, 0], sizes = [4, 1, 4, 16, 64], strides = [1, 1, 1, 1, 1]} : vector<4x2x4x16x64xf32> to vector<4x1x4x16x64xf32>
    %61 = vector.shape_cast %60 : vector<4x1x4x16x64xf32> to vector<4x4x16x64xf32>
    %62 = vector.extract_strided_slice %59 {offsets = [0, 1, 0, 0, 0], sizes = [4, 1, 4, 16, 64], strides = [1, 1, 1, 1, 1]} : vector<4x2x4x16x64xf32> to vector<4x1x4x16x64xf32>
    %63 = vector.shape_cast %62 : vector<4x1x4x16x64xf32> to vector<4x4x16x64xf32>
    %64 = arith.maximumf %61, %63 : vector<4x4x16x64xf32>
    %c0_76 = arith.constant 0 : index
    %c0_77 = arith.constant 0 : index
    %65 = vector.load %arg5[%c0_76, %c0_77] : memref<1x64xf32, #tpu.memory_space<vmem>>, vector<1x64xf32>
    %66 = vector.shape_cast %65 : vector<1x64xf32> to vector<1x1x1x64xf32>
    %67 = vector.broadcast %66 : vector<1x1x1x64xf32> to vector<4x4x16x64xf32>
    %68 = arith.addf %64, %67 : vector<4x4x16x64xf32>
    %cst_78 = arith.constant 0.000000e+00 : f32
    %69 = vector.broadcast %cst_78 : f32 to vector<4x4x16x64xf32>
    %70 = arith.maximumf %68, %69 : vector<4x4x16x64xf32>
    %71 = vector.extract_strided_slice %70 {offsets = [0, 0, 0, 0], sizes = [1, 1, 16, 64], strides = [1, 1, 1, 1]} : vector<4x4x16x64xf32> to vector<1x1x16x64xf32>
    %72 = vector.shape_cast %71 : vector<1x1x16x64xf32> to vector<16x64xf32>
    %73 = arith.truncf %72 : vector<16x64xf32> to vector<16x64xbf16>
    %c0_79 = arith.constant 0 : index
    %c0_80 = arith.constant 0 : index
    %74 = vector.load %arg13[%c0_79, %c0_80] : memref<16x1024xbf16, #tpu.memory_space<vmem>>, vector<16x64xbf16>
    tpu.vector_store %arg13[%c0_79, %c0_80], %73 {strides = array<i32>} : memref<16x1024xbf16, #tpu.memory_space<vmem>>, vector<16x64xbf16>,
    %75 = vector.extract_strided_slice %70 {offsets = [0, 1, 0, 0], sizes = [1, 1, 16, 64], strides = [1, 1, 1, 1]} : vector<4x4x16x64xf32> to vector<1x1x16x64xf32>
    %76 = vector.shape_cast %75 : vector<1x1x16x64xf32> to vector<16x64xf32>
    %77 = arith.truncf %76 : vector<16x64xf32> to vector<16x64xbf16>
    %c0_81 = arith.constant 0 : index
    %c64_82 = arith.constant 64 : index
    %78 = vector.load %arg13[%c0_81, %c64_82] : memref<16x1024xbf16, #tpu.memory_space<vmem>>, vector<16x64xbf16>
    tpu.vector_store %arg13[%c0_81, %c64_82], %77 {strides = array<i32>} : memref<16x1024xbf16, #tpu.memory_space<vmem>>, vector<16x64xbf16>,
    %79 = vector.extract_strided_slice %70 {offsets = [0, 2, 0, 0], sizes = [1, 1, 16, 64], strides = [1, 1, 1, 1]} : vector<4x4x16x64xf32> to vector<1x1x16x64xf32>
    %80 = vector.shape_cast %79 : vector<1x1x16x64xf32> to vector<16x64xf32>
    %81 = arith.truncf %80 : vector<16x64xf32> to vector<16x64xbf16>
    %c0_83 = arith.constant 0 : index
    %c128_84 = arith.constant 128 : index
    %82 = vector.load %arg13[%c0_83, %c128_84] : memref<16x1024xbf16, #tpu.memory_space<vmem>>, vector<16x64xbf16>
    tpu.vector_store %arg13[%c0_83, %c128_84], %81 {strides = array<i32>} : memref<16x1024xbf16, #tpu.memory_space<vmem>>, vector<16x64xbf16>,
    %83 = vector.extract_strided_slice %70 {offsets = [0, 3, 0, 0], sizes = [1, 1, 16, 64], strides = [1, 1, 1, 1]} : vector<4x4x16x64xf32> to vector<1x1x16x64xf32>
    %84 = vector.shape_cast %83 : vector<1x1x16x64xf32> to vector<16x64xf32>
    %85 = arith.truncf %84 : vector<16x64xf32> to vector<16x64xbf16>
    %c0_85 = arith.constant 0 : index
    %c192_86 = arith.constant 192 : index
    %86 = vector.load %arg13[%c0_85, %c192_86] : memref<16x1024xbf16, #tpu.memory_space<vmem>>, vector<16x64xbf16>
    tpu.vector_store %arg13[%c0_85, %c192_86], %85 {strides = array<i32>} : memref<16x1024xbf16, #tpu.memory_space<vmem>>, vector<16x64xbf16>,
    %87 = vector.extract_strided_slice %70 {offsets = [1, 0, 0, 0], sizes = [1, 1, 16, 64], strides = [1, 1, 1, 1]} : vector<4x4x16x64xf32> to vector<1x1x16x64xf32>
    %88 = vector.shape_cast %87 : vector<1x1x16x64xf32> to vector<16x64xf32>
    %89 = arith.truncf %88 : vector<16x64xf32> to vector<16x64xbf16>
    %c0_87 = arith.constant 0 : index
    %c256_88 = arith.constant 256 : index
    %90 = vector.load %arg13[%c0_87, %c256_88] : memref<16x1024xbf16, #tpu.memory_space<vmem>>, vector<16x64xbf16>
    tpu.vector_store %arg13[%c0_87, %c256_88], %89 {strides = array<i32>} : memref<16x1024xbf16, #tpu.memory_space<vmem>>, vector<16x64xbf16>,
    %91 = vector.extract_strided_slice %70 {offsets = [1, 1, 0, 0], sizes = [1, 1, 16, 64], strides = [1, 1, 1, 1]} : vector<4x4x16x64xf32> to vector<1x1x16x64xf32>
    %92 = vector.shape_cast %91 : vector<1x1x16x64xf32> to vector<16x64xf32>
    %93 = arith.truncf %92 : vector<16x64xf32> to vector<16x64xbf16>
    %c0_89 = arith.constant 0 : index
    %c320 = arith.constant 320 : index
    %94 = vector.load %arg13[%c0_89, %c320] : memref<16x1024xbf16, #tpu.memory_space<vmem>>, vector<16x64xbf16>
    tpu.vector_store %arg13[%c0_89, %c320], %93 {strides = array<i32>} : memref<16x1024xbf16, #tpu.memory_space<vmem>>, vector<16x64xbf16>,
    %95 = vector.extract_strided_slice %70 {offsets = [1, 2, 0, 0], sizes = [1, 1, 16, 64], strides = [1, 1, 1, 1]} : vector<4x4x16x64xf32> to vector<1x1x16x64xf32>
    %96 = vector.shape_cast %95 : vector<1x1x16x64xf32> to vector<16x64xf32>
    %97 = arith.truncf %96 : vector<16x64xf32> to vector<16x64xbf16>
    %c0_90 = arith.constant 0 : index
    %c384 = arith.constant 384 : index
    %98 = vector.load %arg13[%c0_90, %c384] : memref<16x1024xbf16, #tpu.memory_space<vmem>>, vector<16x64xbf16>
    tpu.vector_store %arg13[%c0_90, %c384], %97 {strides = array<i32>} : memref<16x1024xbf16, #tpu.memory_space<vmem>>, vector<16x64xbf16>,
    %99 = vector.extract_strided_slice %70 {offsets = [1, 3, 0, 0], sizes = [1, 1, 16, 64], strides = [1, 1, 1, 1]} : vector<4x4x16x64xf32> to vector<1x1x16x64xf32>
    %100 = vector.shape_cast %99 : vector<1x1x16x64xf32> to vector<16x64xf32>
    %101 = arith.truncf %100 : vector<16x64xf32> to vector<16x64xbf16>
    %c0_91 = arith.constant 0 : index
    %c448 = arith.constant 448 : index
    %102 = vector.load %arg13[%c0_91, %c448] : memref<16x1024xbf16, #tpu.memory_space<vmem>>, vector<16x64xbf16>
    tpu.vector_store %arg13[%c0_91, %c448], %101 {strides = array<i32>} : memref<16x1024xbf16, #tpu.memory_space<vmem>>, vector<16x64xbf16>,
    %103 = vector.extract_strided_slice %70 {offsets = [2, 0, 0, 0], sizes = [1, 1, 16, 64], strides = [1, 1, 1, 1]} : vector<4x4x16x64xf32> to vector<1x1x16x64xf32>
    %104 = vector.shape_cast %103 : vector<1x1x16x64xf32> to vector<16x64xf32>
    %105 = arith.truncf %104 : vector<16x64xf32> to vector<16x64xbf16>
    %c0_92 = arith.constant 0 : index
    %c512 = arith.constant 512 : index
    %106 = vector.load %arg13[%c0_92, %c512] : memref<16x1024xbf16, #tpu.memory_space<vmem>>, vector<16x64xbf16>
    tpu.vector_store %arg13[%c0_92, %c512], %105 {strides = array<i32>} : memref<16x1024xbf16, #tpu.memory_space<vmem>>, vector<16x64xbf16>,
    %107 = vector.extract_strided_slice %70 {offsets = [2, 1, 0, 0], sizes = [1, 1, 16, 64], strides = [1, 1, 1, 1]} : vector<4x4x16x64xf32> to vector<1x1x16x64xf32>
    %108 = vector.shape_cast %107 : vector<1x1x16x64xf32> to vector<16x64xf32>
    %109 = arith.truncf %108 : vector<16x64xf32> to vector<16x64xbf16>
    %c0_93 = arith.constant 0 : index
    %c576 = arith.constant 576 : index
    %110 = vector.load %arg13[%c0_93, %c576] : memref<16x1024xbf16, #tpu.memory_space<vmem>>, vector<16x64xbf16>
    tpu.vector_store %arg13[%c0_93, %c576], %109 {strides = array<i32>} : memref<16x1024xbf16, #tpu.memory_space<vmem>>, vector<16x64xbf16>,
    %111 = vector.extract_strided_slice %70 {offsets = [2, 2, 0, 0], sizes = [1, 1, 16, 64], strides = [1, 1, 1, 1]} : vector<4x4x16x64xf32> to vector<1x1x16x64xf32>
    %112 = vector.shape_cast %111 : vector<1x1x16x64xf32> to vector<16x64xf32>
    %113 = arith.truncf %112 : vector<16x64xf32> to vector<16x64xbf16>
    %c0_94 = arith.constant 0 : index
    %c640 = arith.constant 640 : index
    %114 = vector.load %arg13[%c0_94, %c640] : memref<16x1024xbf16, #tpu.memory_space<vmem>>, vector<16x64xbf16>
    tpu.vector_store %arg13[%c0_94, %c640], %113 {strides = array<i32>} : memref<16x1024xbf16, #tpu.memory_space<vmem>>, vector<16x64xbf16>,
    %115 = vector.extract_strided_slice %70 {offsets = [2, 3, 0, 0], sizes = [1, 1, 16, 64], strides = [1, 1, 1, 1]} : vector<4x4x16x64xf32> to vector<1x1x16x64xf32>
    %116 = vector.shape_cast %115 : vector<1x1x16x64xf32> to vector<16x64xf32>
    %117 = arith.truncf %116 : vector<16x64xf32> to vector<16x64xbf16>
    %c0_95 = arith.constant 0 : index
    %c704 = arith.constant 704 : index
    %118 = vector.load %arg13[%c0_95, %c704] : memref<16x1024xbf16, #tpu.memory_space<vmem>>, vector<16x64xbf16>
    tpu.vector_store %arg13[%c0_95, %c704], %117 {strides = array<i32>} : memref<16x1024xbf16, #tpu.memory_space<vmem>>, vector<16x64xbf16>,
    %119 = vector.extract_strided_slice %70 {offsets = [3, 0, 0, 0], sizes = [1, 1, 16, 64], strides = [1, 1, 1, 1]} : vector<4x4x16x64xf32> to vector<1x1x16x64xf32>
    %120 = vector.shape_cast %119 : vector<1x1x16x64xf32> to vector<16x64xf32>
    %121 = arith.truncf %120 : vector<16x64xf32> to vector<16x64xbf16>
    %c0_96 = arith.constant 0 : index
    %c768 = arith.constant 768 : index
    %122 = vector.load %arg13[%c0_96, %c768] : memref<16x1024xbf16, #tpu.memory_space<vmem>>, vector<16x64xbf16>
    tpu.vector_store %arg13[%c0_96, %c768], %121 {strides = array<i32>} : memref<16x1024xbf16, #tpu.memory_space<vmem>>, vector<16x64xbf16>,
    %123 = vector.extract_strided_slice %70 {offsets = [3, 1, 0, 0], sizes = [1, 1, 16, 64], strides = [1, 1, 1, 1]} : vector<4x4x16x64xf32> to vector<1x1x16x64xf32>
    %124 = vector.shape_cast %123 : vector<1x1x16x64xf32> to vector<16x64xf32>
    %125 = arith.truncf %124 : vector<16x64xf32> to vector<16x64xbf16>
    %c0_97 = arith.constant 0 : index
    %c832 = arith.constant 832 : index
    %126 = vector.load %arg13[%c0_97, %c832] : memref<16x1024xbf16, #tpu.memory_space<vmem>>, vector<16x64xbf16>
    tpu.vector_store %arg13[%c0_97, %c832], %125 {strides = array<i32>} : memref<16x1024xbf16, #tpu.memory_space<vmem>>, vector<16x64xbf16>,
    %127 = vector.extract_strided_slice %70 {offsets = [3, 2, 0, 0], sizes = [1, 1, 16, 64], strides = [1, 1, 1, 1]} : vector<4x4x16x64xf32> to vector<1x1x16x64xf32>
    %128 = vector.shape_cast %127 : vector<1x1x16x64xf32> to vector<16x64xf32>
    %129 = arith.truncf %128 : vector<16x64xf32> to vector<16x64xbf16>
    %c0_98 = arith.constant 0 : index
    %c896 = arith.constant 896 : index
    %130 = vector.load %arg13[%c0_98, %c896] : memref<16x1024xbf16, #tpu.memory_space<vmem>>, vector<16x64xbf16>
    tpu.vector_store %arg13[%c0_98, %c896], %129 {strides = array<i32>} : memref<16x1024xbf16, #tpu.memory_space<vmem>>, vector<16x64xbf16>,
    %131 = vector.extract_strided_slice %70 {offsets = [3, 3, 0, 0], sizes = [1, 1, 16, 64], strides = [1, 1, 1, 1]} : vector<4x4x16x64xf32> to vector<1x1x16x64xf32>
    %132 = vector.shape_cast %131 : vector<1x1x16x64xf32> to vector<16x64xf32>
    %133 = arith.truncf %132 : vector<16x64xf32> to vector<16x64xbf16>
    %c0_99 = arith.constant 0 : index
    %c960 = arith.constant 960 : index
    %134 = vector.load %arg13[%c0_99, %c960] : memref<16x1024xbf16, #tpu.memory_space<vmem>>, vector<16x64xbf16>
    tpu.vector_store %arg13[%c0_99, %c960], %133 {strides = array<i32>} : memref<16x1024xbf16, #tpu.memory_space<vmem>>, vector<16x64xbf16>,
    %c0_100 = arith.constant 0 : index
    %c0_101 = arith.constant 0 : index
    %135 = vector.load %arg13[%c0_100, %c0_101] : memref<16x1024xbf16, #tpu.memory_space<vmem>>, vector<16x1024xbf16>
    %c0_102 = arith.constant 0 : index
    %c0_103 = arith.constant 0 : index
    %136 = vector.load %arg6[%c0_102, %c0_103] : memref<1024x128xbf16, #tpu.memory_space<vmem>>, vector<1024x128xbf16>
    %cst_104 = arith.constant dense<0.000000e+00> : vector<16x128xf32>
    %137 = tpu.matmul %135, %136, %cst_104 {dimension_numbers = #tpu.dot_dimension_numbers<[1], [0], [0], [1], [0, 0, 1, 1], [], []>} : vector<16x1024xbf16>, vector<1024x128xbf16>, vector<16x128xf32> -> vector<16x128xf32>
    %c0_105 = arith.constant 0 : index
    %c0_106 = arith.constant 0 : index
    %138 = vector.load %arg7[%c0_105, %c0_106] : memref<1x128xf32, #tpu.memory_space<vmem>>, vector<1x128xf32>
    %139 = vector.broadcast %138 : vector<1x128xf32> to vector<16x128xf32>
    %140 = arith.addf %137, %139 : vector<16x128xf32>
    %cst_107 = arith.constant 0.000000e+00 : f32
    %141 = vector.broadcast %cst_107 : f32 to vector<16x128xf32>
    %142 = arith.maximumf %140, %141 : vector<16x128xf32>
    %143 = arith.truncf %142 : vector<16x128xf32> to vector<16x128xbf16>
    %c0_108 = arith.constant 0 : index
    %c0_109 = arith.constant 0 : index
    %144 = vector.load %arg8[%c0_108, %c0_109] : memref<128x128xbf16, #tpu.memory_space<vmem>>, vector<128x128xbf16>
    %cst_110 = arith.constant dense<0.000000e+00> : vector<16x128xf32>
    %145 = tpu.matmul %143, %144, %cst_110 {dimension_numbers = #tpu.dot_dimension_numbers<[1], [0], [0], [1], [0, 0, 1, 1], [], []>} : vector<16x128xbf16>, vector<128x128xbf16>, vector<16x128xf32> -> vector<16x128xf32>
    %c0_111 = arith.constant 0 : index
    %c0_112 = arith.constant 0 : index
    %146 = vector.load %arg9[%c0_111, %c0_112] : memref<1x128xf32, #tpu.memory_space<vmem>>, vector<1x128xf32>
    %147 = vector.broadcast %146 : vector<1x128xf32> to vector<16x128xf32>
    %148 = arith.addf %145, %147 : vector<16x128xf32>
    %cst_113 = arith.constant dense<0xFF800000> : vector<16xf32>
    %149 = vector.multi_reduction <maximumf>, %148, %cst_113 [1] : vector<16x128xf32> to vector<16xf32>
    %150 = vector.shape_cast %149 : vector<16xf32> to vector<16x1xf32>
    %151 = vector.broadcast %150 : vector<16x1xf32> to vector<16x128xf32>
    %152 = arith.subf %148, %151 : vector<16x128xf32>
    %153 = math.exp %152 : vector<16x128xf32>
    %cst_114 = arith.constant dense<0.000000e+00> : vector<16xf32>
    %154 = vector.multi_reduction <add>, %153, %cst_114 [1] : vector<16x128xf32> to vector<16xf32>
    %155 = vector.shape_cast %154 : vector<16xf32> to vector<16x1xf32>
    %156 = math.log %155 : vector<16x1xf32>
    %157 = vector.broadcast %156 : vector<16x1xf32> to vector<16x128xf32>
    %158 = arith.subf %152, %157 : vector<16x128xf32>
    %c0_115 = arith.constant 0 : index
    %c0_116 = arith.constant 0 : index
    %159 = vector.load %arg10[%c0_115, %c0_116] : memref<16x128xf32, #tpu.memory_space<vmem>>, vector<16x128xf32>
    tpu.vector_store %arg10[%c0_115, %c0_116], %158 {strides = array<i32>} : memref<16x128xf32, #tpu.memory_space<vmem>>, vector<16x128xf32>,
    return
  }
  func.func @transform_0(%arg0: i32) -> (i32, i32) {
    %c0_i32 = arith.constant 0 : i32
    %c0_i32_0 = arith.constant 0 : i32
    return %arg0, %c0_i32 : i32, i32
  }
  func.func @transform_1(%arg0: i32) -> (i32, i32) {
    %c0_i32 = arith.constant 0 : i32
    %c0_i32_0 = arith.constant 0 : i32
    %c0_i32_1 = arith.constant 0 : i32
    return %c0_i32, %c0_i32_0 : i32, i32
  }
  func.func @transform_2(%arg0: i32) -> (i32, i32) {
    %c0_i32 = arith.constant 0 : i32
    %c0_i32_0 = arith.constant 0 : i32
    %c0_i32_1 = arith.constant 0 : i32
    return %c0_i32, %c0_i32_0 : i32, i32
  }
  func.func @transform_3(%arg0: i32) -> (i32, i32) {
    %c0_i32 = arith.constant 0 : i32
    %c0_i32_0 = arith.constant 0 : i32
    %c0_i32_1 = arith.constant 0 : i32
    return %c0_i32, %c0_i32_0 : i32, i32
  }
  func.func @transform_4(%arg0: i32) -> (i32, i32) {
    %c0_i32 = arith.constant 0 : i32
    %c0_i32_0 = arith.constant 0 : i32
    %c0_i32_1 = arith.constant 0 : i32
    return %c0_i32, %c0_i32_0 : i32, i32
  }
  func.func @transform_5(%arg0: i32) -> (i32, i32) {
    %c0_i32 = arith.constant 0 : i32
    %c0_i32_0 = arith.constant 0 : i32
    %c0_i32_1 = arith.constant 0 : i32
    return %c0_i32, %c0_i32_0 : i32, i32
  }
  func.func @transform_6(%arg0: i32) -> (i32, i32) {
    %c0_i32 = arith.constant 0 : i32
    %c0_i32_0 = arith.constant 0 : i32
    %c0_i32_1 = arith.constant 0 : i32
    return %c0_i32, %c0_i32_0 : i32, i32
  }
  func.func @transform_7(%arg0: i32) -> (i32, i32) {
    %c0_i32 = arith.constant 0 : i32
    %c0_i32_0 = arith.constant 0 : i32
    %c0_i32_1 = arith.constant 0 : i32
    return %c0_i32, %c0_i32_0 : i32, i32
  }
  func.func @transform_8(%arg0: i32) -> (i32, i32) {
    %c0_i32 = arith.constant 0 : i32
    %c0_i32_0 = arith.constant 0 : i32
    %c0_i32_1 = arith.constant 0 : i32
    return %c0_i32, %c0_i32_0 : i32, i32
  }
  func.func @transform_9(%arg0: i32) -> (i32, i32) {
    %c0_i32 = arith.constant 0 : i32
    %c0_i32_0 = arith.constant 0 : i32
    return %arg0, %c0_i32 : i32, i32
  }
}

</mosaic_0001>

<llo_original>
// kernel: net_conv_forward.1
$region0: #{net_conv_forward.1}
  #allocation0 [shape = 'u32[]', space=smem, size = 0x4, offset = 0x4, fixed_abs, tag = 'smem constant byte address 0x4 - core index']
  #allocation1 [shape = 'u32[144,128]{1,0:T(1,128)}', space=vmem, size = 0x12000, scoped, tag = 'internal scratch']
  #allocation2 [shape = 'bf16[10,10,16,32]{3,2,1,0:T(16,128)(2,1)}', space=vmem, size = 0x64000, scoped, tag = 'scratch operand']
  #allocation3 [shape = 'bf16[1024,288]{1,0:T(16,128)(2,1)}', space=vmem, size = 0xc0000, scoped, tag = 'scratch operand']
  #allocation4 [shape = 'bf16[16,1024]{1,0:T(16,128)(2,1)}', space=vmem, size = 0x8000, scoped, tag = 'scratch operand']
  %s0 = inlined_call_operand.vmem [shape: bf16[3136,9], index: 0, kind: input, shape index: {}]
  %s1 = inlined_call_operand.vmem [shape: bf16[9,32], index: 1, kind: input, shape index: {}]
  %s2 = inlined_call_operand.vmem [shape: f32[1,32], index: 2, kind: input, shape index: {}]
  %s3 = inlined_call_operand.vmem [shape: bf16[288,64], index: 3, kind: input, shape index: {}]
  %s4 = inlined_call_operand.vmem [shape: f32[1,64], index: 4, kind: input, shape index: {}]
  %s5 = inlined_call_operand.vmem [shape: bf16[1024,128], index: 5, kind: input, shape index: {}]
  %s6 = inlined_call_operand.vmem [shape: f32[1,128], index: 6, kind: input, shape index: {}]
  %s7 = inlined_call_operand.vmem [shape: bf16[128,128], index: 7, kind: input, shape index: {}]
  %s8 = inlined_call_operand.vmem [shape: f32[1,128], index: 8, kind: input, shape index: {}]
  %s9 = inlined_call_operand.vmem [shape: f32[16,128], index: 9, kind: output, shape index: {}]
  %s10 = sld [smem:[#allocation0]]
  $region46: #{net_conv_forward.1} parent=0
    _
  %s12 = ssub.s32 1, %s10
  %s13 = scalar_select 0, %s12, %s10
  // Predicated region
  $region2: #{net_conv_forward.1} parent=0 // pred_check
    _
  $region3: #{net_conv_forward.1} parent=0 // pred_check_branch
    %15 = sbr.rel (0) target = $region5
  $region4: #{net_conv_forward.1} parent=0 // pred_region
    _
  $region5: #{net_conv_forward.1} parent=0 // pred_fallthru
    _
  // Predicated region
  $region6: #{net_conv_forward.1} parent=0 // pred_check
    _
  $region7: #{net_conv_forward.1} parent=0 // pred_check_branch
    %17 = sbr.rel (0) target = $region9
  $region8: #{net_conv_forward.1} parent=0 // pred_region
    _
  $region9: #{net_conv_forward.1} parent=0 // pred_fallthru
    _
  // Predicated region
  $region10: #{net_conv_forward.1} parent=0 // pred_check
    _
  $region11: #{net_conv_forward.1} parent=0 // pred_check_branch
    %19 = sbr.rel (0) target = $region13
  $region12: #{net_conv_forward.1} parent=0 // pred_region
    _
  $region13: #{net_conv_forward.1} parent=0 // pred_fallthru
    _
  // Predicated region
  $region14: #{net_conv_forward.1} parent=0 // pred_check
    _
  $region15: #{net_conv_forward.1} parent=0 // pred_check_branch
    %21 = sbr.rel (0) target = $region17
  $region16: #{net_conv_forward.1} parent=0 // pred_region
    _
  $region17: #{net_conv_forward.1} parent=0 // pred_fallthru
    _
  // Predicated region
  $region18: #{net_conv_forward.1} parent=0 // pred_check
    _
  $region19: #{net_conv_forward.1} parent=0 // pred_check_branch
    %23 = sbr.rel (0) target = $region21
  $region20: #{net_conv_forward.1} parent=0 // pred_region
    _
  $region21: #{net_conv_forward.1} parent=0 // pred_fallthru
    _
  // Predicated region
  $region22: #{net_conv_forward.1} parent=0 // pred_check
    _
  $region23: #{net_conv_forward.1} parent=0 // pred_check_branch
    %25 = sbr.rel (0) target = $region25
  $region24: #{net_conv_forward.1} parent=0 // pred_region
    _
  $region25: #{net_conv_forward.1} parent=0 // pred_fallthru
    _
  // Predicated region
  $region26: #{net_conv_forward.1} parent=0 // pred_check
    _
  $region27: #{net_conv_forward.1} parent=0 // pred_check_branch
    %27 = sbr.rel (0) target = $region29
  $region28: #{net_conv_forward.1} parent=0 // pred_region
    _
  $region29: #{net_conv_forward.1} parent=0 // pred_fallthru
    _
  // Predicated region
  $region30: #{net_conv_forward.1} parent=0 // pred_check
    _
  $region31: #{net_conv_forward.1} parent=0 // pred_check_branch
    %29 = sbr.rel (0) target = $region33
  $region32: #{net_conv_forward.1} parent=0 // pred_region
    _
  $region33: #{net_conv_forward.1} parent=0 // pred_fallthru
    _
  // Predicated region
  $region34: #{net_conv_forward.1} parent=0 // pred_check
    _
  $region35: #{net_conv_forward.1} parent=0 // pred_check_branch
    %31 = sbr.rel (0) target = $region37
  $region36: #{net_conv_forward.1} parent=0 // pred_region
    _
  $region37: #{net_conv_forward.1} parent=0 // pred_fallthru
    _
  %v33 = vld [vmem:[%s0] sm:$0xf]
  %v34 = vld [vmem:[%s0 + $0x4] sm:$0xf]
  %v35 = vld [vmem:[%s0 + $0x8] sm:$0xf]
  %v36 = vld [vmem:[%s0 + $0xc] sm:$0xf]
  %v37 = vld [vmem:[%s0 + $0x10] sm:$0xf]
  %v38 = vld [vmem:[%s0 + $0x14] sm:$0xf]
  %v39 = vld [vmem:[%s0 + $0x18] sm:$0xf]
  %v40 = vld [vmem:[%s0 + $0x1c] sm:$0xf]
  %v41 = vld [vmem:[%s0 + $0x20] sm:$0xf]
  %v42 = vld [vmem:[%s0 + $0x24] sm:$0xf]
  %v43 = vld [vmem:[%s0 + $0x28] sm:$0xf]
  %v44 = vld [vmem:[%s0 + $0x2c] sm:$0xf]
  %v45 = vld [vmem:[%s0 + $0x30] sm:$0xf]
  %v46 = vld [vmem:[%s0 + $0x34] sm:$0xf]
  %v47 = vld [vmem:[%s0 + $0x38] sm:$0xf]
  %v48 = vld [vmem:[%s0 + $0x3c] sm:$0xf]
  %v49 = vld [vmem:[%s0 + $0x40] sm:$0xf]
  %v50 = vld [vmem:[%s0 + $0x44] sm:$0xf]
  %v51 = vld [vmem:[%s0 + $0x48] sm:$0xf]
  %v52 = vld [vmem:[%s0 + $0x4c] sm:$0xf]
  %v53 = vld [vmem:[%s0 + $0x50] sm:$0xf]
  %v54 = vld [vmem:[%s0 + $0x54] sm:$0xf]
  %v55 = vld [vmem:[%s0 + $0x58] sm:$0xf]
  %v56 = vld [vmem:[%s0 + $0x5c] sm:$0xf]
  %v57 = vld [vmem:[%s0 + $0x60] sm:$0xf]
  %v58 = vld [vmem:[%s0 + $0x64] sm:$0xf]
  %v59 = vld [vmem:[%s0 + $0x68] sm:$0xf]
  %v60 = vld [vmem:[%s0 + $0x6c] sm:$0xf]
  %v61 = vld [vmem:[%s0 + $0x70] sm:$0xf]
  %v62 = vld [vmem:[%s0 + $0x74] sm:$0xf]
  %v63 = vld [vmem:[%s0 + $0x78] sm:$0xf]
  %v64 = vld [vmem:[%s0 + $0x7c] sm:$0xf]
  %v65 = vld [vmem:[%s0 + $0x80] sm:$0xf]
  %v66 = vld [vmem:[%s0 + $0x84] sm:$0xf]
  %v67 = vld [vmem:[%s0 + $0x88] sm:$0xf]
  %v68 = vld [vmem:[%s0 + $0x8c] sm:$0xf]
  %v69 = vld [vmem:[%s0 + $0x90] sm:$0xf]
  %v70 = vld [vmem:[%s0 + $0x94] sm:$0xf]
  %v71 = vld [vmem:[%s0 + $0x98] sm:$0xf]
  %v72 = vld [vmem:[%s0 + $0x9c] sm:$0xf]
  %v73 = vld [vmem:[%s0 + $0xa0] sm:$0xf]
  %v74 = vld [vmem:[%s0 + $0xa4] sm:$0xf]
  %v75 = vld [vmem:[%s0 + $0xa8] sm:$0xf]
  %v76 = vld [vmem:[%s0 + $0xac] sm:$0xf]
  %v77 = vld [vmem:[%s0 + $0xb0] sm:$0xf]
  %v78 = vld [vmem:[%s0 + $0xb4] sm:$0xf]
  %v79 = vld [vmem:[%s0 + $0xb8] sm:$0xf]
  %v80 = vld [vmem:[%s0 + $0xbc] sm:$0xf]
  %v81 = vld [vmem:[%s0 + $0xc0] sm:$0xf]
  %v82 = vld [vmem:[%s0 + $0xc4] sm:$0xf]
  %v83 = vld [vmem:[%s0 + $0xc8] sm:$0xf]
  %v84 = vld [vmem:[%s0 + $0xcc] sm:$0xf]
  %v85 = vld [vmem:[%s0 + $0xd0] sm:$0xf]
  %v86 = vld [vmem:[%s0 + $0xd4] sm:$0xf]
  %v87 = vld [vmem:[%s0 + $0xd8] sm:$0xf]
  %v88 = vld [vmem:[%s0 + $0xdc] sm:$0xf]
  %v89 = vld [vmem:[%s0 + $0xe0] sm:$0xf]
  %v90 = vld [vmem:[%s0 + $0xe4] sm:$0xf]
  %v91 = vld [vmem:[%s0 + $0xe8] sm:$0xf]
  %v92 = vld [vmem:[%s0 + $0xec] sm:$0xf]
  %v93 = vld [vmem:[%s0 + $0xf0] sm:$0xf]
  %v94 = vld [vmem:[%s0 + $0xf4] sm:$0xf]
  %v95 = vld [vmem:[%s0 + $0xf8] sm:$0xf]
  %v96 = vld [vmem:[%s0 + $0xfc] sm:$0xf]
  %v97 = vld [vmem:[%s0 + $0x100] sm:$0xf]
  %v98 = vld [vmem:[%s0 + $0x104] sm:$0xf]
  %v99 = vld [vmem:[%s0 + $0x108] sm:$0xf]
  %v100 = vld [vmem:[%s0 + $0x10c] sm:$0xf]
  %v101 = vld [vmem:[%s0 + $0x110] sm:$0xf]
  %v102 = vld [vmem:[%s0 + $0x114] sm:$0xf]
  %v103 = vld [vmem:[%s0 + $0x118] sm:$0xf]
  %v104 = vld [vmem:[%s0 + $0x11c] sm:$0xf]
  %v105 = vld [vmem:[%s0 + $0x120] sm:$0xf]
  %v106 = vld [vmem:[%s0 + $0x124] sm:$0xf]
  %v107 = vld [vmem:[%s0 + $0x128] sm:$0xf]
  %v108 = vld [vmem:[%s0 + $0x12c] sm:$0xf]
  %v109 = vld [vmem:[%s0 + $0x130] sm:$0xf]
  %v110 = vld [vmem:[%s0 + $0x134] sm:$0xf]
  %v111 = vld [vmem:[%s0 + $0x138] sm:$0xf]
  %v112 = vld [vmem:[%s0 + $0x13c] sm:$0xf]
  %v113 = vld [vmem:[%s0 + $0x140] sm:$0xf]
  %v114 = vld [vmem:[%s0 + $0x144] sm:$0xf]
  %v115 = vld [vmem:[%s0 + $0x148] sm:$0xf]
  %v116 = vld [vmem:[%s0 + $0x14c] sm:$0xf]
  %v117 = vld [vmem:[%s0 + $0x150] sm:$0xf]
  %v118 = vld [vmem:[%s0 + $0x154] sm:$0xf]
  %v119 = vld [vmem:[%s0 + $0x158] sm:$0xf]
  %v120 = vld [vmem:[%s0 + $0x15c] sm:$0xf]
  %v121 = vld [vmem:[%s0 + $0x160] sm:$0xf]
  %v122 = vld [vmem:[%s0 + $0x164] sm:$0xf]
  %v123 = vld [vmem:[%s0 + $0x168] sm:$0xf]
  %v124 = vld [vmem:[%s0 + $0x16c] sm:$0xf]
  %v125 = vld [vmem:[%s0 + $0x170] sm:$0xf]
  %v126 = vld [vmem:[%s0 + $0x174] sm:$0xf]
  %v127 = vld [vmem:[%s0 + $0x178] sm:$0xf]
  %v128 = vld [vmem:[%s0 + $0x17c] sm:$0xf]
  %v129 = vld [vmem:[%s0 + $0x180] sm:$0xf]
  %v130 = vld [vmem:[%s0 + $0x184] sm:$0xf]
  %v131 = vld [vmem:[%s1] sm:$0xf]
  %v132 = vld [vmem:[%s1 + $0x4] sm:$0x1]
  %v231 = vunpack.c.l.b16 %v33
  %v232 = vunpack.c.l.b16 %v34
  %v233 = vunpack.c.l.b16 %v35
  %v234 = vunpack.c.l.b16 %v36
  %v235 = vunpack.c.l.b16 %v37
  %v236 = vunpack.c.l.b16 %v38
  %v237 = vunpack.c.l.b16 %v39
  %v238 = vunpack.c.l.b16 %v40
  %v239 = vunpack.c.l.b16 %v41
  %v240 = vunpack.c.l.b16 %v42
  %v241 = vunpack.c.l.b16 %v43
  %v242 = vunpack.c.l.b16 %v44
  %v243 = vunpack.c.l.b16 %v45
  %v244 = vunpack.c.l.b16 %v46
  %v245 = vunpack.c.l.b16 %v47
  %v246 = vunpack.c.l.b16 %v48
  %v247 = vunpack.c.l.b16 %v49
  %v248 = vunpack.c.l.b16 %v50
  %v249 = vunpack.c.l.b16 %v51
  %v250 = vunpack.c.l.b16 %v52
  %v251 = vunpack.c.l.b16 %v53
  %v252 = vunpack.c.l.b16 %v54
  %v253 = vunpack.c.l.b16 %v55
  %v254 = vunpack.c.l.b16 %v56
  %v255 = vunpack.c.l.b16 %v57
  %v256 = vunpack.c.l.b16 %v58
  %v257 = vunpack.c.l.b16 %v59
  %v258 = vunpack.c.l.b16 %v60
  %v259 = vunpack.c.l.b16 %v61
  %v260 = vunpack.c.l.b16 %v62
  %v261 = vunpack.c.l.b16 %v63
  %v262 = vunpack.c.l.b16 %v64
  %v263 = vunpack.c.l.b16 %v65
  %v264 = vunpack.c.l.b16 %v66
  %v265 = vunpack.c.l.b16 %v67
  %v266 = vunpack.c.l.b16 %v68
  %v267 = vunpack.c.l.b16 %v69
  %v268 = vunpack.c.l.b16 %v70
  %v269 = vunpack.c.l.b16 %v71
  %v270 = vunpack.c.l.b16 %v72
  %v271 = vunpack.c.l.b16 %v73
  %v272 = vunpack.c.l.b16 %v74
  %v273 = vunpack.c.l.b16 %v75
  %v274 = vunpack.c.l.b16 %v76
  %v275 = vunpack.c.l.b16 %v77
  %v276 = vunpack.c.l.b16 %v78
  %v277 = vunpack.c.l.b16 %v79
  %v278 = vunpack.c.l.b16 %v80
  %v279 = vunpack.c.l.b16 %v81
  %v280 = vunpack.c.l.b16 %v82
  %v281 = vunpack.c.l.b16 %v83
  %v282 = vunpack.c.l.b16 %v84
  %v283 = vunpack.c.l.b16 %v85
  %v284 = vunpack.c.l.b16 %v86
  %v285 = vunpack.c.l.b16 %v87
  %v286 = vunpack.c.l.b16 %v88
  %v287 = vunpack.c.l.b16 %v89
  %v288 = vunpack.c.l.b16 %v90
  %v289 = vunpack.c.l.b16 %v91
  %v290 = vunpack.c.l.b16 %v92
  %v291 = vunpack.c.l.b16 %v93
  %v292 = vunpack.c.l.b16 %v94
  %v293 = vunpack.c.l.b16 %v95
  %v294 = vunpack.c.l.b16 %v96
  %v295 = vunpack.c.l.b16 %v97
  %v296 = vunpack.c.l.b16 %v98
  %v297 = vunpack.c.l.b16 %v99
  %v298 = vunpack.c.l.b16 %v100
  %v299 = vunpack.c.l.b16 %v101
  %v300 = vunpack.c.l.b16 %v102
  %v301 = vunpack.c.l.b16 %v103
  %v302 = vunpack.c.l.b16 %v104
  %v303 = vunpack.c.l.b16 %v105
  %v304 = vunpack.c.l.b16 %v106
  %v305 = vunpack.c.l.b16 %v107
  %v306 = vunpack.c.l.b16 %v108
  %v307 = vunpack.c.l.b16 %v109
  %v308 = vunpack.c.l.b16 %v110
  %v309 = vunpack.c.l.b16 %v111
  %v310 = vunpack.c.l.b16 %v112
  %v311 = vunpack.c.l.b16 %v113
  %v312 = vunpack.c.l.b16 %v114
  %v313 = vunpack.c.l.b16 %v115
  %v314 = vunpack.c.l.b16 %v116
  %v315 = vunpack.c.l.b16 %v117
  %v316 = vunpack.c.l.b16 %v118
  %v317 = vunpack.c.l.b16 %v119
  %v318 = vunpack.c.l.b16 %v120
  %v319 = vunpack.c.l.b16 %v121
  %v320 = vunpack.c.l.b16 %v122
  %v321 = vunpack.c.l.b16 %v123
  %v322 = vunpack.c.l.b16 %v124
  %v323 = vunpack.c.l.b16 %v125
  %v324 = vunpack.c.l.b16 %v126
  %v325 = vunpack.c.l.b16 %v127
  %v326 = vunpack.c.l.b16 %v128
  %v327 = vunpack.c.l.b16 %v129
  %v328 = vunpack.c.l.b16 %v130
  %v329 = vpack.c.b16 %v232, %v231
  %v330 = vpack.c.b16 %v234, %v233
  %v331 = vpack.c.b16 %v236, %v235
  %v332 = vpack.c.b16 %v238, %v237
  %v333 = vpack.c.b16 %v240, %v239
  %v334 = vpack.c.b16 %v242, %v241
  %v335 = vpack.c.b16 %v244, %v243
  %v336 = vpack.c.b16 %v246, %v245
  %v337 = vpack.c.b16 %v248, %v247
  %v338 = vpack.c.b16 %v250, %v249
  %v339 = vpack.c.b16 %v252, %v251
  %v340 = vpack.c.b16 %v254, %v253
  %v341 = vpack.c.b16 %v256, %v255
  %v342 = vpack.c.b16 %v258, %v257
  %v343 = vpack.c.b16 %v260, %v259
  %v344 = vpack.c.b16 %v262, %v261
  %v345 = vpack.c.b16 %v264, %v263
  %v346 = vpack.c.b16 %v266, %v265
  %v347 = vpack.c.b16 %v268, %v267
  %v348 = vpack.c.b16 %v270, %v269
  %v349 = vpack.c.b16 %v272, %v271
  %v350 = vpack.c.b16 %v274, %v273
  %v351 = vpack.c.b16 %v276, %v275
  %v352 = vpack.c.b16 %v278, %v277
  %v353 = vpack.c.b16 %v280, %v279
  %v354 = vpack.c.b16 %v282, %v281
  %v355 = vpack.c.b16 %v284, %v283
  %v356 = vpack.c.b16 %v286, %v285
  %v357 = vpack.c.b16 %v288, %v287
  %v358 = vpack.c.b16 %v290, %v289
  %v359 = vpack.c.b16 %v292, %v291
  %v360 = vpack.c.b16 %v294, %v293
  %v361 = vpack.c.b16 %v296, %v295
  %v362 = vpack.c.b16 %v298, %v297
  %v363 = vpack.c.b16 %v300, %v299
  %v364 = vpack.c.b16 %v302, %v301
  %v365 = vpack.c.b16 %v304, %v303
  %v366 = vpack.c.b16 %v306, %v305
  %v367 = vpack.c.b16 %v308, %v307
  %v368 = vpack.c.b16 %v310, %v309
  %v369 = vpack.c.b16 %v312, %v311
  %v370 = vpack.c.b16 %v314, %v313
  %v371 = vpack.c.b16 %v316, %v315
  %v372 = vpack.c.b16 %v318, %v317
  %v373 = vpack.c.b16 %v320, %v319
  %v374 = vpack.c.b16 %v322, %v321
  %v375 = vpack.c.b16 %v324, %v323
  %v376 = vpack.c.b16 %v326, %v325
  %v377 = vpack.c.b16 %v328, %v327
  %v380 = vunpack.c.l.b16 %v131
  %v381 = vunpack.c.l.b16 %v132
  %v382 = vpack.c.b16 %v381, %v380
  %vm383 = vcmask 72704
  %v385 = vsel %vm383, %v329, 0
  %v388 = vsel %vm383, %v330, 0
  %v391 = vsel %vm383, %v331, 0
  %v394 = vsel %vm383, %v332, 0
  %v397 = vsel %vm383, %v333, 0
  %v400 = vsel %vm383, %v334, 0
  %v403 = vsel %vm383, %v335, 0
  %v406 = vsel %vm383, %v336, 0
  %v409 = vsel %vm383, %v337, 0
  %v412 = vsel %vm383, %v338, 0
  %v415 = vsel %vm383, %v339, 0
  %v418 = vsel %vm383, %v340, 0
  %v421 = vsel %vm383, %v341, 0
  %v424 = vsel %vm383, %v342, 0
  %v427 = vsel %vm383, %v343, 0
  %v430 = vsel %vm383, %v344, 0
  %v433 = vsel %vm383, %v345, 0
  %v436 = vsel %vm383, %v346, 0
  %v439 = vsel %vm383, %v347, 0
  %v442 = vsel %vm383, %v348, 0
  %v445 = vsel %vm383, %v349, 0
  %v448 = vsel %vm383, %v350, 0
  %v451 = vsel %vm383, %v351, 0
  %v454 = vsel %vm383, %v352, 0
  %v457 = vsel %vm383, %v353, 0
  %v460 = vsel %vm383, %v354, 0
  %v463 = vsel %vm383, %v355, 0
  %v466 = vsel %vm383, %v356, 0
  %v469 = vsel %vm383, %v357, 0
  %v472 = vsel %vm383, %v358, 0
  %v475 = vsel %vm383, %v359, 0
  %v478 = vsel %vm383, %v360, 0
  %v481 = vsel %vm383, %v361, 0
  %v484 = vsel %vm383, %v362, 0
  %v487 = vsel %vm383, %v363, 0
  %v490 = vsel %vm383, %v364, 0
  %v493 = vsel %vm383, %v365, 0
  %v496 = vsel %vm383, %v366, 0
  %v499 = vsel %vm383, %v367, 0
  %v502 = vsel %vm383, %v368, 0
  %v505 = vsel %vm383, %v369, 0
  %v508 = vsel %vm383, %v370, 0
  %v511 = vsel %vm383, %v371, 0
  %v514 = vsel %vm383, %v372, 0
  %v517 = vsel %vm383, %v373, 0
  %v520 = vsel %vm383, %v374, 0
  %v523 = vsel %vm383, %v375, 0
  %v526 = vsel %vm383, %v376, 0
  %v529 = vsel %vm383, %v377, 0
  %vm531 = vcmask 1043456
  %vm532 = vcmask 1044480
  %v533 = vsel %vm531, 4294967295, 65535
  %v534 = vsel %vm532, %v533, 0
  %v536 = vand.u32 %v382, %v534
  %538 = vmatprep.subr.bf16.mxu0 0
  %539 = vmatpush1.bf16.msra.mxu0 %v536
  %540 = vmatprep.subr.bf16.mxu0 0
  %541 = vmatpush1.bf16.msra.mxu0 0
  %542 = vmatprep.subr.bf16.mxu0 0
  %543 = vmatpush1.bf16.msra.mxu0 0
  %544 = vmatprep.subr.bf16.mxu0 0
  %545 = vmatpush1.bf16.msra.mxu0 0
  %546 = vmatprep.subr.bf16.mxu0 0
  %547 = vmatpush1.bf16.msra.mxu0 0
  %548 = vmatprep.subr.bf16.mxu0 0
  %549 = vmatpush1.bf16.msra.mxu0 0
  %550 = vmatprep.subr.bf16.mxu0 0
  %551 = vmatpush1.bf16.msra.mxu0 0
  %552 = vmatprep.subr.bf16.mxu0 0
  %553 = vmatpush1.bf16.msra.mxu0 0
  %554 = vmatprep.subr.bf16.mxu0 0
  %555 = vmatpush1.bf16.msra.mxu0 0
  %556 = vmatprep.subr.bf16.mxu0 0
  %557 = vmatpush1.bf16.msra.mxu0 0
  %558 = vmatprep.subr.bf16.mxu0 0
  %559 = vmatpush1.bf16.msra.mxu0 0
  %560 = vmatprep.subr.bf16.mxu0 0
  %561 = vmatpush1.bf16.msra.mxu0 0
  %562 = vmatprep.subr.bf16.mxu0 0
  %563 = vmatpush1.bf16.msra.mxu0 0
  %564 = vmatprep.subr.bf16.mxu0 0
  %565 = vmatpush1.bf16.msra.mxu0 0
  %566 = vmatprep.subr.bf16.mxu0 0
  %567 = vmatpush1.bf16.msra.mxu0 0
  %568 = vmatprep.subr.bf16.mxu0 0
  %569 = vmatpush1.bf16.msra.mxu0 0
  %570 = vmatprep.mubr.bf16.mxu0 0
  %571 = vmatmul.mubr.bf16.gmra.mrb[0].mxu0 %v385
  %v572 = vpop.f32.mrb[0].mxu0
  %v573 = vadd.f32 0.0, %v572
  %v574 = vpop.f32.mrb[0].mxu0
  %v575 = vpop.f32.mrb[0].mxu0
  %v576 = vadd.f32 0.0, %v575
  %v577 = vpop.f32.mrb[0].mxu0
  %578 = vmatprep.mubr.bf16.mxu0 0
  %579 = vmatmul.mubr.bf16.gmra.mrb[0].mxu0 %v388
  %v580 = vpop.f32.mrb[0].mxu0
  %v581 = vadd.f32 0.0, %v580
  %v582 = vpop.f32.mrb[0].mxu0
  %v583 = vpop.f32.mrb[0].mxu0
  %v584 = vadd.f32 0.0, %v583
  %v585 = vpop.f32.mrb[0].mxu0
  %586 = vmatprep.mubr.bf16.mxu0 0
  %587 = vmatmul.mubr.bf16.gmra.mrb[0].mxu0 %v391
  %v588 = vpop.f32.mrb[0].mxu0
  %v589 = vadd.f32 0.0, %v588
  %v590 = vpop.f32.mrb[0].mxu0
  %v591 = vpop.f32.mrb[0].mxu0
  %v592 = vadd.f32 0.0, %v591
  %v593 = vpop.f32.mrb[0].mxu0
  %594 = vmatprep.mubr.bf16.mxu0 0
  %595 = vmatmul.mubr.bf16.gmra.mrb[0].mxu0 %v394
  %v596 = vpop.f32.mrb[0].mxu0
  %v597 = vadd.f32 0.0, %v596
  %v598 = vpop.f32.mrb[0].mxu0
  %v599 = vpop.f32.mrb[0].mxu0
  %v600 = vadd.f32 0.0, %v599
  %v601 = vpop.f32.mrb[0].mxu0
  %602 = vmatprep.mubr.bf16.mxu0 0
  %603 = vmatmul.mubr.bf16.gmra.mrb[0].mxu0 %v397
  %v604 = vpop.f32.mrb[0].mxu0
  %v605 = vadd.f32 0.0, %v604
  %v606 = vpop.f32.mrb[0].mxu0
  %v607 = vpop.f32.mrb[0].mxu0
  %v608 = vadd.f32 0.0, %v607
  %v609 = vpop.f32.mrb[0].mxu0
  %610 = vmatprep.mubr.bf16.mxu0 0
  %611 = vmatmul.mubr.bf16.gmra.mrb[0].mxu0 %v400
  %v612 = vpop.f32.mrb[0].mxu0
  %v613 = vadd.f32 0.0, %v612
  %v614 = vpop.f32.mrb[0].mxu0
  %v615 = vpop.f32.mrb[0].mxu0
  %v616 = vadd.f32 0.0, %v615
  %v617 = vpop.f32.mrb[0].mxu0
  %618 = vmatprep.mubr.bf16.mxu0 0
  %619 = vmatmul.mubr.bf16.gmra.mrb[0].mxu0 %v403
  %v620 = vpop.f32.mrb[0].mxu0
  %v621 = vadd.f32 0.0, %v620
  %v622 = vpop.f32.mrb[0].mxu0
  %v623 = vpop.f32.mrb[0].mxu0
  %v624 = vadd.f32 0.0, %v623
  %v625 = vpop.f32.mrb[0].mxu0
  %626 = vmatprep.mubr.bf16.mxu0 0
  %627 = vmatmul.mubr.bf16.gmra.mrb[0].mxu0 %v406
  %v628 = vpop.f32.mrb[0].mxu0
  %v629 = vadd.f32 0.0, %v628
  %v630 = vpop.f32.mrb[0].mxu0
  %v631 = vpop.f32.mrb[0].mxu0
  %v632 = vadd.f32 0.0, %v631
  %v633 = vpop.f32.mrb[0].mxu0
  %634 = vmatprep.mubr.bf16.mxu0 0
  %635 = vmatmul.mubr.bf16.gmra.mrb[0].mxu0 %v409
  %v636 = vpop.f32.mrb[0].mxu0
  %v637 = vadd.f32 0.0, %v636
  %v638 = vpop.f32.mrb[0].mxu0
  %v639 = vpop.f32.mrb[0].mxu0
  %v640 = vadd.f32 0.0, %v639
  %v641 = vpop.f32.mrb[0].mxu0
  %642 = vmatprep.mubr.bf16.mxu0 0
  %643 = vmatmul.mubr.bf16.gmra.mrb[0].mxu0 %v412
  %v644 = vpop.f32.mrb[0].mxu0
  %v645 = vadd.f32 0.0, %v644
  %v646 = vpop.f32.mrb[0].mxu0
  %v647 = vpop.f32.mrb[0].mxu0
  %v648 = vadd.f32 0.0, %v647
  %v649 = vpop.f32.mrb[0].mxu0
  %650 = vmatprep.mubr.bf16.mxu0 0
  %651 = vmatmul.mubr.bf16.gmra.mrb[0].mxu0 %v415
  %v652 = vpop.f32.mrb[0].mxu0
  %v653 = vadd.f32 0.0, %v652
  %v654 = vpop.f32.mrb[0].mxu0
  %v655 = vpop.f32.mrb[0].mxu0
  %v656 = vadd.f32 0.0, %v655
  %v657 = vpop.f32.mrb[0].mxu0
  %658 = vmatprep.mubr.bf16.mxu0 0
  %659 = vmatmul.mubr.bf16.gmra.mrb[0].mxu0 %v418
  %v660 = vpop.f32.mrb[0].mxu0
  %v661 = vadd.f32 0.0, %v660
  %v662 = vpop.f32.mrb[0].mxu0
  %v663 = vpop.f32.mrb[0].mxu0
  %v664 = vadd.f32 0.0, %v663
  %v665 = vpop.f32.mrb[0].mxu0
  %666 = vmatprep.mubr.bf16.mxu0 0
  %667 = vmatmul.mubr.bf16.gmra.mrb[0].mxu0 %v421
  %v668 = vpop.f32.mrb[0].mxu0
  %v669 = vadd.f32 0.0, %v668
  %v670 = vpop.f32.mrb[0].mxu0
  %v671 = vpop.f32.mrb[0].mxu0
  %v672 = vadd.f32 0.0, %v671
  %v673 = vpop.f32.mrb[0].mxu0
  %674 = vmatprep.mubr.bf16.mxu0 0
  %675 = vmatmul.mubr.bf16.gmra.mrb[0].mxu0 %v424
  %v676 = vpop.f32.mrb[0].mxu0
  %v677 = vadd.f32 0.0, %v676
  %v678 = vpop.f32.mrb[0].mxu0
  %v679 = vpop.f32.mrb[0].mxu0
  %v680 = vadd.f32 0.0, %v679
  %v681 = vpop.f32.mrb[0].mxu0
  %682 = vmatprep.mubr.bf16.mxu0 0
  %683 = vmatmul.mubr.bf16.gmra.mrb[0].mxu0 %v427
  %v684 = vpop.f32.mrb[0].mxu0
  %v685 = vadd.f32 0.0, %v684
  %v686 = vpop.f32.mrb[0].mxu0
  %v687 = vpop.f32.mrb[0].mxu0
  %v688 = vadd.f32 0.0, %v687
  %v689 = vpop.f32.mrb[0].mxu0
  %690 = vmatprep.mubr.bf16.mxu0 0
  %691 = vmatmul.mubr.bf16.gmra.mrb[0].mxu0 %v430
  %v692 = vpop.f32.mrb[0].mxu0
  %v693 = vadd.f32 0.0, %v692
  %v694 = vpop.f32.mrb[0].mxu0
  %v695 = vpop.f32.mrb[0].mxu0
  %v696 = vadd.f32 0.0, %v695
  %v697 = vpop.f32.mrb[0].mxu0
  %698 = vmatprep.mubr.bf16.mxu0 0
  %699 = vmatmul.mubr.bf16.gmra.mrb[0].mxu0 %v433
  %v700 = vpop.f32.mrb[0].mxu0
  %v701 = vadd.f32 0.0, %v700
  %v702 = vpop.f32.mrb[0].mxu0
  %v703 = vpop.f32.mrb[0].mxu0
  %v704 = vadd.f32 0.0, %v703
  %v705 = vpop.f32.mrb[0].mxu0
  %706 = vmatprep.mubr.bf16.mxu0 0
  %707 = vmatmul.mubr.bf16.gmra.mrb[0].mxu0 %v436
  %v708 = vpop.f32.mrb[0].mxu0
  %v709 = vadd.f32 0.0, %v708
  %v710 = vpop.f32.mrb[0].mxu0
  %v711 = vpop.f32.mrb[0].mxu0
  %v712 = vadd.f32 0.0, %v711
  %v713 = vpop.f32.mrb[0].mxu0
  %714 = vmatprep.mubr.bf16.mxu0 0
  %715 = vmatmul.mubr.bf16.gmra.mrb[0].mxu0 %v439
  %v716 = vpop.f32.mrb[0].mxu0
  %v717 = vadd.f32 0.0, %v716
  %v718 = vpop.f32.mrb[0].mxu0
  %v719 = vpop.f32.mrb[0].mxu0
  %v720 = vadd.f32 0.0, %v719
  %v721 = vpop.f32.mrb[0].mxu0
  %722 = vmatprep.mubr.bf16.mxu0 0
  %723 = vmatmul.mubr.bf16.gmra.mrb[0].mxu0 %v442
  %v724 = vpop.f32.mrb[0].mxu0
  %v725 = vadd.f32 0.0, %v724
  %v726 = vpop.f32.mrb[0].mxu0
  %v727 = vpop.f32.mrb[0].mxu0
  %v728 = vadd.f32 0.0, %v727
  %v729 = vpop.f32.mrb[0].mxu0
  %730 = vmatprep.mubr.bf16.mxu0 0
  %731 = vmatmul.mubr.bf16.gmra.mrb[0].mxu0 %v445
  %v732 = vpop.f32.mrb[0].mxu0
  %v733 = vadd.f32 0.0, %v732
  %v734 = vpop.f32.mrb[0].mxu0
  %v735 = vpop.f32.mrb[0].mxu0
  %v736 = vadd.f32 0.0, %v735
  %v737 = vpop.f32.mrb[0].mxu0
  %738 = vmatprep.mubr.bf16.mxu0 0
  %739 = vmatmul.mubr.bf16.gmra.mrb[0].mxu0 %v448
  %v740 = vpop.f32.mrb[0].mxu0
  %v741 = vadd.f32 0.0, %v740
  %v742 = vpop.f32.mrb[0].mxu0
  %v743 = vpop.f32.mrb[0].mxu0
  %v744 = vadd.f32 0.0, %v743
  %v745 = vpop.f32.mrb[0].mxu0
  %746 = vmatprep.mubr.bf16.mxu0 0
  %747 = vmatmul.mubr.bf16.gmra.mrb[0].mxu0 %v451
  %v748 = vpop.f32.mrb[0].mxu0
  %v749 = vadd.f32 0.0, %v748
  %v750 = vpop.f32.mrb[0].mxu0
  %v751 = vpop.f32.mrb[0].mxu0
  %v752 = vadd.f32 0.0, %v751
  %v753 = vpop.f32.mrb[0].mxu0
  %754 = vmatprep.mubr.bf16.mxu0 0
  %755 = vmatmul.mubr.bf16.gmra.mrb[0].mxu0 %v454
  %v756 = vpop.f32.mrb[0].mxu0
  %v757 = vadd.f32 0.0, %v756
  %v758 = vpop.f32.mrb[0].mxu0
  %v759 = vpop.f32.mrb[0].mxu0
  %v760 = vadd.f32 0.0, %v759
  %v761 = vpop.f32.mrb[0].mxu0
  %762 = vmatprep.mubr.bf16.mxu0 0
  %763 = vmatmul.mubr.bf16.gmra.mrb[0].mxu0 %v457
  %v764 = vpop.f32.mrb[0].mxu0
  %v765 = vadd.f32 0.0, %v764
  %v766 = vpop.f32.mrb[0].mxu0
  %v767 = vpop.f32.mrb[0].mxu0
  %v768 = vadd.f32 0.0, %v767
  %v769 = vpop.f32.mrb[0].mxu0
  %770 = vmatprep.mubr.bf16.mxu0 0
  %771 = vmatmul.mubr.bf16.gmra.mrb[0].mxu0 %v460
  %v772 = vpop.f32.mrb[0].mxu0
  %v773 = vadd.f32 0.0, %v772
  %v774 = vpop.f32.mrb[0].mxu0
  %v775 = vpop.f32.mrb[0].mxu0
  %v776 = vadd.f32 0.0, %v775
  %v777 = vpop.f32.mrb[0].mxu0
  %778 = vmatprep.mubr.bf16.mxu0 0
  %779 = vmatmul.mubr.bf16.gmra.mrb[0].mxu0 %v463
  %v780 = vpop.f32.mrb[0].mxu0
  %v781 = vadd.f32 0.0, %v780
  %v782 = vpop.f32.mrb[0].mxu0
  %v783 = vpop.f32.mrb[0].mxu0
  %v784 = vadd.f32 0.0, %v783
  %v785 = vpop.f32.mrb[0].mxu0
  %786 = vmatprep.mubr.bf16.mxu0 0
  %787 = vmatmul.mubr.bf16.gmra.mrb[0].mxu0 %v466
  %v788 = vpop.f32.mrb[0].mxu0
  %v789 = vadd.f32 0.0, %v788
  %v790 = vpop.f32.mrb[0].mxu0
  %v791 = vpop.f32.mrb[0].mxu0
  %v792 = vadd.f32 0.0, %v791
  %v793 = vpop.f32.mrb[0].mxu0
  %794 = vmatprep.mubr.bf16.mxu0 0
  %795 = vmatmul.mubr.bf16.gmra.mrb[0].mxu0 %v469
  %v796 = vpop.f32.mrb[0].mxu0
  %v797 = vadd.f32 0.0, %v796
  %v798 = vpop.f32.mrb[0].mxu0
  %v799 = vpop.f32.mrb[0].mxu0
  %v800 = vadd.f32 0.0, %v799
  %v801 = vpop.f32.mrb[0].mxu0
  %802 = vmatprep.mubr.bf16.mxu0 0
  %803 = vmatmul.mubr.bf16.gmra.mrb[0].mxu0 %v472
  %v804 = vpop.f32.mrb[0].mxu0
  %v805 = vadd.f32 0.0, %v804
  %v806 = vpop.f32.mrb[0].mxu0
  %v807 = vpop.f32.mrb[0].mxu0
  %v808 = vadd.f32 0.0, %v807
  %v809 = vpop.f32.mrb[0].mxu0
  %810 = vmatprep.mubr.bf16.mxu0 0
  %811 = vmatmul.mubr.bf16.gmra.mrb[0].mxu0 %v475
  %v812 = vpop.f32.mrb[0].mxu0
  %v813 = vadd.f32 0.0, %v812
  %v814 = vpop.f32.mrb[0].mxu0
  %v815 = vpop.f32.mrb[0].mxu0
  %v816 = vadd.f32 0.0, %v815
  %v817 = vpop.f32.mrb[0].mxu0
  %818 = vmatprep.mubr.bf16.mxu0 0
  %819 = vmatmul.mubr.bf16.gmra.mrb[0].mxu0 %v478
  %v820 = vpop.f32.mrb[0].mxu0
  %v821 = vadd.f32 0.0, %v820
  %v822 = vpop.f32.mrb[0].mxu0
  %v823 = vpop.f32.mrb[0].mxu0
  %v824 = vadd.f32 0.0, %v823
  %v825 = vpop.f32.mrb[0].mxu0
  %826 = vmatprep.mubr.bf16.mxu0 0
  %827 = vmatmul.mubr.bf16.gmra.mrb[0].mxu0 %v481
  %v828 = vpop.f32.mrb[0].mxu0
  %v829 = vadd.f32 0.0, %v828
  %v830 = vpop.f32.mrb[0].mxu0
  %v831 = vpop.f32.mrb[0].mxu0
  %v832 = vadd.f32 0.0, %v831
  %v833 = vpop.f32.mrb[0].mxu0
  %834 = vmatprep.mubr.bf16.mxu0 0
  %835 = vmatmul.mubr.bf16.gmra.mrb[0].mxu0 %v484
  %v836 = vpop.f32.mrb[0].mxu0
  %v837 = vadd.f32 0.0, %v836
  %v838 = vpop.f32.mrb[0].mxu0
  %v839 = vpop.f32.mrb[0].mxu0
  %v840 = vadd.f32 0.0, %v839
  %v841 = vpop.f32.mrb[0].mxu0
  %842 = vmatprep.mubr.bf16.mxu0 0
  %843 = vmatmul.mubr.bf16.gmra.mrb[0].mxu0 %v487
  %v844 = vpop.f32.mrb[0].mxu0
  %v845 = vadd.f32 0.0, %v844
  %v846 = vpop.f32.mrb[0].mxu0
  %v847 = vpop.f32.mrb[0].mxu0
  %v848 = vadd.f32 0.0, %v847
  %v849 = vpop.f32.mrb[0].mxu0
  %850 = vmatprep.mubr.bf16.mxu0 0
  %851 = vmatmul.mubr.bf16.gmra.mrb[0].mxu0 %v490
  %v852 = vpop.f32.mrb[0].mxu0
  %v853 = vadd.f32 0.0, %v852
  %v854 = vpop.f32.mrb[0].mxu0
  %v855 = vpop.f32.mrb[0].mxu0
  %v856 = vadd.f32 0.0, %v855
  %v857 = vpop.f32.mrb[0].mxu0
  %858 = vmatprep.mubr.bf16.mxu0 0
  %859 = vmatmul.mubr.bf16.gmra.mrb[0].mxu0 %v493
  %v860 = vpop.f32.mrb[0].mxu0
  %v861 = vadd.f32 0.0, %v860
  %v862 = vpop.f32.mrb[0].mxu0
  %v863 = vpop.f32.mrb[0].mxu0
  %v864 = vadd.f32 0.0, %v863
  %v865 = vpop.f32.mrb[0].mxu0
  %866 = vmatprep.mubr.bf16.mxu0 0
  %867 = vmatmul.mubr.bf16.gmra.mrb[0].mxu0 %v496
  %v868 = vpop.f32.mrb[0].mxu0
  %v869 = vadd.f32 0.0, %v868
  %v870 = vpop.f32.mrb[0].mxu0
  %v871 = vpop.f32.mrb[0].mxu0
  %v872 = vadd.f32 0.0, %v871
  %v873 = vpop.f32.mrb[0].mxu0
  %874 = vmatprep.mubr.bf16.mxu0 0
  %875 = vmatmul.mubr.bf16.gmra.mrb[0].mxu0 %v499
  %v876 = vpop.f32.mrb[0].mxu0
  %v877 = vadd.f32 0.0, %v876
  %v878 = vpop.f32.mrb[0].mxu0
  %v879 = vpop.f32.mrb[0].mxu0
  %v880 = vadd.f32 0.0, %v879
  %v881 = vpop.f32.mrb[0].mxu0
  %882 = vmatprep.mubr.bf16.mxu0 0
  %883 = vmatmul.mubr.bf16.gmra.mrb[0].mxu0 %v502
  %v884 = vpop.f32.mrb[0].mxu0
  %v885 = vadd.f32 0.0, %v884
  %v886 = vpop.f32.mrb[0].mxu0
  %v887 = vpop.f32.mrb[0].mxu0
  %v888 = vadd.f32 0.0, %v887
  %v889 = vpop.f32.mrb[0].mxu0
  %890 = vmatprep.mubr.bf16.mxu0 0
  %891 = vmatmul.mubr.bf16.gmra.mrb[0].mxu0 %v505
  %v892 = vpop.f32.mrb[0].mxu0
  %v893 = vadd.f32 0.0, %v892
  %v894 = vpop.f32.mrb[0].mxu0
  %v895 = vpop.f32.mrb[0].mxu0
  %v896 = vadd.f32 0.0, %v895
  %v897 = vpop.f32.mrb[0].mxu0
  %898 = vmatprep.mubr.bf16.mxu0 0
  %899 = vmatmul.mubr.bf16.gmra.mrb[0].mxu0 %v508
  %v900 = vpop.f32.mrb[0].mxu0
  %v901 = vadd.f32 0.0, %v900
  %v902 = vpop.f32.mrb[0].mxu0
  %v903 = vpop.f32.mrb[0].mxu0
  %v904 = vadd.f32 0.0, %v903
  %v905 = vpop.f32.mrb[0].mxu0
  %906 = vmatprep.mubr.bf16.mxu0 0
  %907 = vmatmul.mubr.bf16.gmra.mrb[0].mxu0 %v511
  %v908 = vpop.f32.mrb[0].mxu0
  %v909 = vadd.f32 0.0, %v908
  %v910 = vpop.f32.mrb[0].mxu0
  %v911 = vpop.f32.mrb[0].mxu0
  %v912 = vadd.f32 0.0, %v911
  %v913 = vpop.f32.mrb[0].mxu0
  %914 = vmatprep.mubr.bf16.mxu0 0
  %915 = vmatmul.mubr.bf16.gmra.mrb[0].mxu0 %v514
  %v916 = vpop.f32.mrb[0].mxu0
  %v917 = vadd.f32 0.0, %v916
  %v918 = vpop.f32.mrb[0].mxu0
  %v919 = vpop.f32.mrb[0].mxu0
  %v920 = vadd.f32 0.0, %v919
  %v921 = vpop.f32.mrb[0].mxu0
  %922 = vmatprep.mubr.bf16.mxu0 0
  %923 = vmatmul.mubr.bf16.gmra.mrb[0].mxu0 %v517
  %v924 = vpop.f32.mrb[0].mxu0
  %v925 = vadd.f32 0.0, %v924
  %v926 = vpop.f32.mrb[0].mxu0
  %v927 = vpop.f32.mrb[0].mxu0
  %v928 = vadd.f32 0.0, %v927
  %v929 = vpop.f32.mrb[0].mxu0
  %930 = vmatprep.mubr.bf16.mxu0 0
  %931 = vmatmul.mubr.bf16.gmra.mrb[0].mxu0 %v520
  %v932 = vpop.f32.mrb[0].mxu0
  %v933 = vadd.f32 0.0, %v932
  %v934 = vpop.f32.mrb[0].mxu0
  %v935 = vpop.f32.mrb[0].mxu0
  %v936 = vadd.f32 0.0, %v935
  %v937 = vpop.f32.mrb[0].mxu0
  %938 = vmatprep.mubr.bf16.mxu0 0
  %939 = vmatmul.mubr.bf16.gmra.mrb[0].mxu0 %v523
  %v940 = vpop.f32.mrb[0].mxu0
  %v941 = vadd.f32 0.0, %v940
  %v942 = vpop.f32.mrb[0].mxu0
  %v943 = vpop.f32.mrb[0].mxu0
  %v944 = vadd.f32 0.0, %v943
  %v945 = vpop.f32.mrb[0].mxu0
  %946 = vmatprep.mubr.bf16.mxu0 0
  %947 = vmatmul.mubr.bf16.gmra.mrb[0].mxu0 %v526
  %v948 = vpop.f32.mrb[0].mxu0
  %v949 = vadd.f32 0.0, %v948
  %v950 = vpop.f32.mrb[0].mxu0
  %v951 = vpop.f32.mrb[0].mxu0
  %v952 = vadd.f32 0.0, %v951
  %v953 = vpop.f32.mrb[0].mxu0
  %954 = vmatprep.mubr.bf16.mxu0 0
  %955 = vmatmul.mubr.bf16.gmra.mrb[0].mxu0 %v529
  %v956 = vpop.f32.mrb[0].mxu0
  %v957 = vadd.f32 0.0, %v956
  %v958 = vpop.f32.mrb[0].mxu0
  %v959 = vpop.f32.mrb[0].mxu0
  %v960 = vadd.f32 0.0, %v959
  %v961 = vpop.f32.mrb[0].mxu0
  %962 = vdwg.mxu0
  %v963 = vld [vmem:[%s0 + $0x188] sm:$0xf]
  %v964 = vld [vmem:[%s0 + $0x18c] sm:$0xf]
  %v965 = vld [vmem:[%s0 + $0x190] sm:$0xf]
  %v966 = vld [vmem:[%s0 + $0x194] sm:$0xf]
  %v967 = vld [vmem:[%s0 + $0x198] sm:$0xf]
  %v968 = vld [vmem:[%s0 + $0x19c] sm:$0xf]
  %v969 = vld [vmem:[%s0 + $0x1a0] sm:$0xf]
  %v970 = vld [vmem:[%s0 + $0x1a4] sm:$0xf]
  %v971 = vld [vmem:[%s0 + $0x1a8] sm:$0xf]
  %v972 = vld [vmem:[%s0 + $0x1ac] sm:$0xf]
  %v973 = vld [vmem:[%s0 + $0x1b0] sm:$0xf]
  %v974 = vld [vmem:[%s0 + $0x1b4] sm:$0xf]
  %v975 = vld [vmem:[%s0 + $0x1b8] sm:$0xf]
  %v976 = vld [vmem:[%s0 + $0x1bc] sm:$0xf]
  %v977 = vld [vmem:[%s0 + $0x1c0] sm:$0xf]
  %v978 = vld [vmem:[%s0 + $0x1c4] sm:$0xf]
  %v979 = vld [vmem:[%s0 + $0x1c8] sm:$0xf]
  %v980 = vld [vmem:[%s0 + $0x1cc] sm:$0xf]
  %v981 = vld [vmem:[%s0 + $0x1d0] sm:$0xf]
  %v982 = vld [vmem:[%s0 + $0x1d4] sm:$0xf]
  %v983 = vld [vmem:[%s0 + $0x1d8] sm:$0xf]
  %v984 = vld [vmem:[%s0 + $0x1dc] sm:$0xf]
  %v985 = vld [vmem:[%s0 + $0x1e0] sm:$0xf]
  %v986 = vld [vmem:[%s0 + $0x1e4] sm:$0xf]
  %v987 = vld [vmem:[%s0 + $0x1e8] sm:$0xf]
  %v988 = vld [vmem:[%s0 + $0x1ec] sm:$0xf]
  %v989 = vld [vmem:[%s0 + $0x1f0] sm:$0xf]
  %v990 = vld [vmem:[%s0 + $0x1f4] sm:$0xf]
  %v991 = vld [vmem:[%s0 + $0x1f8] sm:$0xf]
  %v992 = vld [vmem:[%s0 + $0x1fc] sm:$0xf]
  %v993 = vld [vmem:[%s0 + $0x200] sm:$0xf]
  %v994 = vld [vmem:[%s0 + $0x204] sm:$0xf]
  %v995 = vld [vmem:[%s0 + $0x208] sm:$0xf]
  %v996 = vld [vmem:[%s0 + $0x20c] sm:$0xf]
  %v997 = vld [vmem:[%s0 + $0x210] sm:$0xf]
  %v998 = vld [vmem:[%s0 + $0x214] sm:$0xf]
  %v999 = vld [vmem:[%s0 + $0x218] sm:$0xf]
  %v1000 = vld [vmem:[%s0 + $0x21c] sm:$0xf]
  %v1001 = vld [vmem:[%s0 + $0x220] sm:$0xf]
  %v1002 = vld [vmem:[%s0 + $0x224] sm:$0xf]
  %v1003 = vld [vmem:[%s0 + $0x228] sm:$0xf]
  %v1004 = vld [vmem:[%s0 + $0x22c] sm:$0xf]
  %v1005 = vld [vmem:[%s0 + $0x230] sm:$0xf]
  %v1006 = vld [vmem:[%s0 + $0x234] sm:$0xf]
  %v1007 = vld [vmem:[%s0 + $0x238] sm:$0xf]
  %v1008 = vld [vmem:[%s0 + $0x23c] sm:$0xf]
  %v1009 = vld [vmem:[%s0 + $0x240] sm:$0xf]
  %v1010 = vld [vmem:[%s0 + $0x244] sm:$0xf]
  %v1011 = vld [vmem:[%s0 + $0x248] sm:$0xf]
  %v1012 = vld [vmem:[%s0 + $0x24c] sm:$0xf]
  %v1013 = vld [vmem:[%s0 + $0x250] sm:$0xf]
  %v1014 = vld [vmem:[%s0 + $0x254] sm:$0xf]
  %v1015 = vld [vmem:[%s0 + $0x258] sm:$0xf]
  %v1016 = vld [vmem:[%s0 + $0x25c] sm:$0xf]
  %v1017 = vld [vmem:[%s0 + $0x260] sm:$0xf]
  %v1018 = vld [vmem:[%s0 + $0x264] sm:$0xf]
  %v1019 = vld [vmem:[%s0 + $0x268] sm:$0xf]
  %v1020 = vld [vmem:[%s0 + $0x26c] sm:$0xf]
  %v1021 = vld [vmem:[%s0 + $0x270] sm:$0xf]
  %v1022 = vld [vmem:[%s0 + $0x274] sm:$0xf]
  %v1023 = vld [vmem:[%s0 + $0x278] sm:$0xf]
  %v1024 = vld [vmem:[%s0 + $0x27c] sm:$0xf]
  %v1025 = vld [vmem:[%s0 + $0x280] sm:$0xf]
  %v1026 = vld [vmem:[%s0 + $0x284] sm:$0xf]
  %v1027 = vld [vmem:[%s0 + $0x288] sm:$0xf]
  %v1028 = vld [vmem:[%s0 + $0x28c] sm:$0xf]
  %v1029 = vld [vmem:[%s0 + $0x290] sm:$0xf]
  %v1030 = vld [vmem:[%s0 + $0x294] sm:$0xf]
  %v1031 = vld [vmem:[%s0 + $0x298] sm:$0xf]
  %v1032 = vld [vmem:[%s0 + $0x29c] sm:$0xf]
  %v1033 = vld [vmem:[%s0 + $0x2a0] sm:$0xf]
  %v1034 = vld [vmem:[%s0 + $0x2a4] sm:$0xf]
  %v1035 = vld [vmem:[%s0 + $0x2a8] sm:$0xf]
  %v1036 = vld [vmem:[%s0 + $0x2ac] sm:$0xf]
  %v1037 = vld [vmem:[%s0 + $0x2b0] sm:$0xf]
  %v1038 = vld [vmem:[%s0 + $0x2b4] sm:$0xf]
  %v1039 = vld [vmem:[%s0 + $0x2b8] sm:$0xf]
  %v1040 = vld [vmem:[%s0 + $0x2bc] sm:$0xf]
  %v1041 = vld [vmem:[%s0 + $0x2c0] sm:$0xf]
  %v1042 = vld [vmem:[%s0 + $0x2c4] sm:$0xf]
  %v1043 = vld [vmem:[%s0 + $0x2c8] sm:$0xf]
  %v1044 = vld [vmem:[%s0 + $0x2cc] sm:$0xf]
  %v1045 = vld [vmem:[%s0 + $0x2d0] sm:$0xf]
  %v1046 = vld [vmem:[%s0 + $0x2d4] sm:$0xf]
  %v1047 = vld [vmem:[%s0 + $0x2d8] sm:$0xf]
  %v1048 = vld [vmem:[%s0 + $0x2dc] sm:$0xf]
  %v1049 = vld [vmem:[%s0 + $0x2e0] sm:$0xf]
  %v1050 = vld [vmem:[%s0 + $0x2e4] sm:$0xf]
  %v1051 = vld [vmem:[%s0 + $0x2e8] sm:$0xf]
  %v1052 = vld [vmem:[%s0 + $0x2ec] sm:$0xf]
  %v1053 = vld [vmem:[%s0 + $0x2f0] sm:$0xf]
  %v1054 = vld [vmem:[%s0 + $0x2f4] sm:$0xf]
  %v1055 = vld [vmem:[%s0 + $0x2f8] sm:$0xf]
  %v1056 = vld [vmem:[%s0 + $0x2fc] sm:$0xf]
  %v1057 = vld [vmem:[%s0 + $0x300] sm:$0xf]
  %v1058 = vld [vmem:[%s0 + $0x304] sm:$0xf]
  %v1059 = vld [vmem:[%s0 + $0x308] sm:$0xf]
  %v1060 = vld [vmem:[%s0 + $0x30c] sm:$0xf]
  %v1159 = vunpack.c.l.b16 %v963
  %v1160 = vunpack.c.l.b16 %v964
  %v1161 = vunpack.c.l.b16 %v965
  %v1162 = vunpack.c.l.b16 %v966
  %v1163 = vunpack.c.l.b16 %v967
  %v1164 = vunpack.c.l.b16 %v968
  %v1165 = vunpack.c.l.b16 %v969
  %v1166 = vunpack.c.l.b16 %v970
  %v1167 = vunpack.c.l.b16 %v971
  %v1168 = vunpack.c.l.b16 %v972
  %v1169 = vunpack.c.l.b16 %v973
  %v1170 = vunpack.c.l.b16 %v974
  %v1171 = vunpack.c.l.b16 %v975
  %v1172 = vunpack.c.l.b16 %v976
  %v1173 = vunpack.c.l.b16 %v977
  %v1174 = vunpack.c.l.b16 %v978
  %v1175 = vunpack.c.l.b16 %v979
  %v1176 = vunpack.c.l.b16 %v980
  %v1177 = vunpack.c.l.b16 %v981
  %v1178 = vunpack.c.l.b16 %v982
  %v1179 = vunpack.c.l.b16 %v983
  %v1180 = vunpack.c.l.b16 %v984
  %v1181 = vunpack.c.l.b16 %v985
  %v1182 = vunpack.c.l.b16 %v986
  %v1183 = vunpack.c.l.b16 %v987
  %v1184 = vunpack.c.l.b16 %v988
  %v1185 = vunpack.c.l.b16 %v989
  %v1186 = vunpack.c.l.b16 %v990
  %v1187 = vunpack.c.l.b16 %v991
  %v1188 = vunpack.c.l.b16 %v992
  %v1189 = vunpack.c.l.b16 %v993
  %v1190 = vunpack.c.l.b16 %v994
  %v1191 = vunpack.c.l.b16 %v995
  %v1192 = vunpack.c.l.b16 %v996
  %v1193 = vunpack.c.l.b16 %v997
  %v1194 = vunpack.c.l.b16 %v998
  %v1195 = vunpack.c.l.b16 %v999
  %v1196 = vunpack.c.l.b16 %v1000
  %v1197 = vunpack.c.l.b16 %v1001
  %v1198 = vunpack.c.l.b16 %v1002
  %v1199 = vunpack.c.l.b16 %v1003
  %v1200 = vunpack.c.l.b16 %v1004
  %v1201 = vunpack.c.l.b16 %v1005
  %v1202 = vunpack.c.l.b16 %v1006
  %v1203 = vunpack.c.l.b16 %v1007
  %v1204 = vunpack.c.l.b16 %v1008
  %v1205 = vunpack.c.l.b16 %v1009
  %v1206 = vunpack.c.l.b16 %v1010
  %v1207 = vunpack.c.l.b16 %v1011
  %v1208 = vunpack.c.l.b16 %v1012
  %v1209 = vunpack.c.l.b16 %v1013
  %v1210 = vunpack.c.l.b16 %v1014
  %v1211 = vunpack.c.l.b16 %v1015
  %v1212 = vunpack.c.l.b16 %v1016
  %v1213 = vunpack.c.l.b16 %v1017
  %v1214 = vunpack.c.l.b16 %v1018
  %v1215 = vunpack.c.l.b16 %v1019
  %v1216 = vunpack.c.l.b16 %v1020
  %v1217 = vunpack.c.l.b16 %v1021
  %v1218 = vunpack.c.l.b16 %v1022
  %v1219 = vunpack.c.l.b16 %v1023
  %v1220 = vunpack.c.l.b16 %v1024
  %v1221 = vunpack.c.l.b16 %v1025
  %v1222 = vunpack.c.l.b16 %v1026
  %v1223 = vunpack.c.l.b16 %v1027
  %v1224 = vunpack.c.l.b16 %v1028
  %v1225 = vunpack.c.l.b16 %v1029
  %v1226 = vunpack.c.l.b16 %v1030
  %v1227 = vunpack.c.l.b16 %v1031
  %v1228 = vunpack.c.l.b16 %v1032
  %v1229 = vunpack.c.l.b16 %v1033
  %v1230 = vunpack.c.l.b16 %v1034
  %v1231 = vunpack.c.l.b16 %v1035
  %v1232 = vunpack.c.l.b16 %v1036
  %v1233 = vunpack.c.l.b16 %v1037
  %v1234 = vunpack.c.l.b16 %v1038
  %v1235 = vunpack.c.l.b16 %v1039
  %v1236 = vunpack.c.l.b16 %v1040
  %v1237 = vunpack.c.l.b16 %v1041
  %v1238 = vunpack.c.l.b16 %v1042
  %v1239 = vunpack.c.l.b16 %v1043
  %v1240 = vunpack.c.l.b16 %v1044
  %v1241 = vunpack.c.l.b16 %v1045
  %v1242 = vunpack.c.l.b16 %v1046
  %v1243 = vunpack.c.l.b16 %v1047
  %v1244 = vunpack.c.l.b16 %v1048
  %v1245 = vunpack.c.l.b16 %v1049
  %v1246 = vunpack.c.l.b16 %v1050
  %v1247 = vunpack.c.l.b16 %v1051
  %v1248 = vunpack.c.l.b16 %v1052
  %v1249 = vunpack.c.l.b16 %v1053
  %v1250 = vunpack.c.l.b16 %v1054
  %v1251 = vunpack.c.l.b16 %v1055
  %v1252 = vunpack.c.l.b16 %v1056
  %v1253 = vunpack.c.l.b16 %v1057
  %v1254 = vunpack.c.l.b16 %v1058
  %v1255 = vunpack.c.l.b16 %v1059
  %v1256 = vunpack.c.l.b16 %v1060
  %v1257 = vpack.c.b16 %v1160, %v1159
  %v1258 = vpack.c.b16 %v1162, %v1161
  %v1259 = vpack.c.b16 %v1164, %v1163
  %v1260 = vpack.c.b16 %v1166, %v1165
  %v1261 = vpack.c.b16 %v1168, %v1167
  %v1262 = vpack.c.b16 %v1170, %v1169
  %v1263 = vpack.c.b16 %v1172, %v1171
  %v1264 = vpack.c.b16 %v1174, %v1173
  %v1265 = vpack.c.b16 %v1176, %v1175
  %v1266 = vpack.c.b16 %v1178, %v1177
  %v1267 = vpack.c.b16 %v1180, %v1179
  %v1268 = vpack.c.b16 %v1182, %v1181
  %v1269 = vpack.c.b16 %v1184, %v1183
  %v1270 = vpack.c.b16 %v1186, %v1185
  %v1271 = vpack.c.b16 %v1188, %v1187
  %v1272 = vpack.c.b16 %v1190, %v1189
  %v1273 = vpack.c.b16 %v1192, %v1191
  %v1274 = vpack.c.b16 %v1194, %v1193
  %v1275 = vpack.c.b16 %v1196, %v1195
  %v1276 = vpack.c.b16 %v1198, %v1197
  %v1277 = vpack.c.b16 %v1200, %v1199
  %v1278 = vpack.c.b16 %v1202, %v1201
  %v1279 = vpack.c.b16 %v1204, %v1203
  %v1280 = vpack.c.b16 %v1206, %v1205
  %v1281 = vpack.c.b16 %v1208, %v1207
  %v1282 = vpack.c.b16 %v1210, %v1209
  %v1283 = vpack.c.b16 %v1212, %v1211
  %v1284 = vpack.c.b16 %v1214, %v1213
  %v1285 = vpack.c.b16 %v1216, %v1215
  %v1286 = vpack.c.b16 %v1218, %v1217
  %v1287 = vpack.c.b16 %v1220, %v1219
  %v1288 = vpack.c.b16 %v1222, %v1221
  %v1289 = vpack.c.b16 %v1224, %v1223
  %v1290 = vpack.c.b16 %v1226, %v1225
  %v1291 = vpack.c.b16 %v1228, %v1227
  %v1292 = vpack.c.b16 %v1230, %v1229
  %v1293 = vpack.c.b16 %v1232, %v1231
  %v1294 = vpack.c.b16 %v1234, %v1233
  %v1295 = vpack.c.b16 %v1236, %v1235
  %v1296 = vpack.c.b16 %v1238, %v1237
  %v1297 = vpack.c.b16 %v1240, %v1239
  %v1298 = vpack.c.b16 %v1242, %v1241
  %v1299 = vpack.c.b16 %v1244, %v1243
  %v1300 = vpack.c.b16 %v1246, %v1245
  %v1301 = vpack.c.b16 %v1248, %v1247
  %v1302 = vpack.c.b16 %v1250, %v1249
  %v1303 = vpack.c.b16 %v1252, %v1251
  %v1304 = vpack.c.b16 %v1254, %v1253
  %v1305 = vpack.c.b16 %v1256, %v1255
  %v1307 = vsel %vm383, %v1257, 0
  %v1310 = vsel %vm383, %v1258, 0
  %v1313 = vsel %vm383, %v1259, 0
  %v1316 = vsel %vm383, %v1260, 0
  %v1319 = vsel %vm383, %v1261, 0
  %v1322 = vsel %vm383, %v1262, 0
  %v1325 = vsel %vm383, %v1263, 0
  %v1328 = vsel %vm383, %v1264, 0
  %v1331 = vsel %vm383, %v1265, 0
  %v1334 = vsel %vm383, %v1266, 0
  %v1337 = vsel %vm383, %v1267, 0
  %v1340 = vsel %vm383, %v1268, 0
  %v1343 = vsel %vm383, %v1269, 0
  %v1346 = vsel %vm383, %v1270, 0
  %v1349 = vsel %vm383, %v1271, 0
  %v1352 = vsel %vm383, %v1272, 0
  %v1355 = vsel %vm383, %v1273, 0
  %v1358 = vsel %vm383, %v1274, 0
  %v1361 = vsel %vm383, %v1275, 0
  %v1364 = vsel %vm383, %v1276, 0
  %v1367 = vsel %vm383, %v1277, 0
  %v1370 = vsel %vm383, %v1278, 0
  %v1373 = vsel %vm383, %v1279, 0
  %v1376 = vsel %vm383, %v1280, 0
  %v1379 = vsel %vm383, %v1281, 0
  %v1382 = vsel %vm383, %v1282, 0
  %v1385 = vsel %vm383, %v1283, 0
  %v1388 = vsel %vm383, %v1284, 0
  %v1391 = vsel %vm383, %v1285, 0
  %v1394 = vsel %vm383, %v1286, 0
  %v1397 = vsel %vm383, %v1287, 0
  %v1400 = vsel %vm383, %v1288, 0
  %v1403 = vsel %vm383, %v1289, 0
  %v1406 = vsel %vm383, %v1290, 0
  %v1409 = vsel %vm383, %v1291, 0
  %v1412 = vsel %vm383, %v1292, 0
  %v1415 = vsel %vm383, %v1293, 0
  %v1418 = vsel %vm383, %v1294, 0
  %v1421 = vsel %vm383, %v1295, 0
  %v1424 = vsel %vm383, %v1296, 0
  %v1427 = vsel %vm383, %v1297, 0
  %v1430 = vsel %vm383, %v1298, 0
  %v1433 = vsel %vm383, %v1299, 0
  %v1436 = vsel %vm383, %v1300, 0
  %v1439 = vsel %vm383, %v1301, 0
  %v1442 = vsel %vm383, %v1302, 0
  %v1445 = vsel %vm383, %v1303, 0
  %v1448 = vsel %vm383, %v1304, 0
  %v1451 = vsel %vm383, %v1305, 0
  %1453 = vmatprep.subr.bf16.mxu0 0
  %1454 = vmatpush1.bf16.msra.mxu0 %v536
  %1455 = vmatprep.subr.bf16.mxu0 0
  %1456 = vmatpush1.bf16.msra.mxu0 0
  %1457 = vmatprep.subr.bf16.mxu0 0
  %1458 = vmatpush1.bf16.msra.mxu0 0
  %1459 = vmatprep.subr.bf16.mxu0 0
  %1460 = vmatpush1.bf16.msra.mxu0 0
  %1461 = vmatprep.subr.bf16.mxu0 0
  %1462 = vmatpush1.bf16.msra.mxu0 0
  %1463 = vmatprep.subr.bf16.mxu0 0
  %1464 = vmatpush1.bf16.msra.mxu0 0
  %1465 = vmatprep.subr.bf16.mxu0 0
  %1466 = vmatpush1.bf16.msra.mxu0 0
  %1467 = vmatprep.subr.bf16.mxu0 0
  %1468 = vmatpush1.bf16.msra.mxu0 0
  %1469 = vmatprep.subr.bf16.mxu0 0
  %1470 = vmatpush1.bf16.msra.mxu0 0
  %1471 = vmatprep.subr.bf16.mxu0 0
  %1472 = vmatpush1.bf16.msra.mxu0 0
  %1473 = vmatprep.subr.bf16.mxu0 0
  %1474 = vmatpush1.bf16.msra.mxu0 0
  %1475 = vmatprep.subr.bf16.mxu0 0
  %1476 = vmatpush1.bf16.msra.mxu0 0
  %1477 = vmatprep.subr.bf16.mxu0 0
  %1478 = vmatpush1.bf16.msra.mxu0 0
  %1479 = vmatprep.subr.bf16.mxu0 0
  %1480 = vmatpush1.bf16.msra.mxu0 0
  %1481 = vmatprep.subr.bf16.mxu0 0
  %1482 = vmatpush1.bf16.msra.mxu0 0
  %1483 = vmatprep.subr.bf16.mxu0 0
  %1484 = vmatpush1.bf16.msra.mxu0 0
  %1485 = vmatprep.mubr.bf16.mxu0 0
  %1486 = vmatmul.mubr.bf16.gmra.mrb[0].mxu0 %v1307
  %v1487 = vpop.f32.mrb[0].mxu0
  %v1488 = vadd.f32 0.0, %v1487
  %v1489 = vpop.f32.mrb[0].mxu0
  %v1490 = vpop.f32.mrb[0].mxu0
  %v1491 = vadd.f32 0.0, %v1490
  %v1492 = vpop.f32.mrb[0].mxu0
  %1493 = vmatprep.mubr.bf16.mxu0 0
  %1494 = vmatmul.mubr.bf16.gmra.mrb[0].mxu0 %v1310
  %v1495 = vpop.f32.mrb[0].mxu0
  %v1496 = vadd.f32 0.0, %v1495
  %v1497 = vpop.f32.mrb[0].mxu0
  %v1498 = vpop.f32.mrb[0].mxu0
  %v1499 = vadd.f32 0.0, %v1498
  %v1500 = vpop.f32.mrb[0].mxu0
  %1501 = vmatprep.mubr.bf16.mxu0 0
  %1502 = vmatmul.mubr.bf16.gmra.mrb[0].mxu0 %v1313
  %v1503 = vpop.f32.mrb[0].mxu0
  %v1504 = vadd.f32 0.0, %v1503
  %v1505 = vpop.f32.mrb[0].mxu0
  %v1506 = vpop.f32.mrb[0].mxu0
  %v1507 = vadd.f32 0.0, %v1506
  %v1508 = vpop.f32.mrb[0].mxu0
  %1509 = vmatprep.mubr.bf16.mxu0 0
  %1510 = vmatmul.mubr.bf16.gmra.mrb[0].mxu0 %v1316
  %v1511 = vpop.f32.mrb[0].mxu0
  %v1512 = vadd.f32 0.0, %v1511
  %v1513 = vpop.f32.mrb[0].mxu0
  %v1514 = vpop.f32.mrb[0].mxu0
  %v1515 = vadd.f32 0.0, %v1514
  %v1516 = vpop.f32.mrb[0].mxu0
  %1517 = vmatprep.mubr.bf16.mxu0 0
  %1518 = vmatmul.mubr.bf16.gmra.mrb[0].mxu0 %v1319
  %v1519 = vpop.f32.mrb[0].mxu0
  %v1520 = vadd.f32 0.0, %v1519
  %v1521 = vpop.f32.mrb[0].mxu0
  %v1522 = vpop.f32.mrb[0].mxu0
  %v1523 = vadd.f32 0.0, %v1522
  %v1524 = vpop.f32.mrb[0].mxu0
  %1525 = vmatprep.mubr.bf16.mxu0 0
  %1526 = vmatmul.mubr.bf16.gmra.mrb[0].mxu0 %v1322
  %v1527 = vpop.f32.mrb[0].mxu0
  %v1528 = vadd.f32 0.0, %v1527
  %v1529 = vpop.f32.mrb[0].mxu0
  %v1530 = vpop.f32.mrb[0].mxu0
  %v1531 = vadd.f32 0.0, %v1530
  %v1532 = vpop.f32.mrb[0].mxu0
  %1533 = vmatprep.mubr.bf16.mxu0 0
  %1534 = vmatmul.mubr.bf16.gmra.mrb[0].mxu0 %v1325
  %v1535 = vpop.f32.mrb[0].mxu0
  %v1536 = vadd.f32 0.0, %v1535
  %v1537 = vpop.f32.mrb[0].mxu0
  %v1538 = vpop.f32.mrb[0].mxu0
  %v1539 = vadd.f32 0.0, %v1538
  %v1540 = vpop.f32.mrb[0].mxu0
  %1541 = vmatprep.mubr.bf16.mxu0 0
  %1542 = vmatmul.mubr.bf16.gmra.mrb[0].mxu0 %v1328
  %v1543 = vpop.f32.mrb[0].mxu0
  %v1544 = vadd.f32 0.0, %v1543
  %v1545 = vpop.f32.mrb[0].mxu0
  %v1546 = vpop.f32.mrb[0].mxu0
  %v1547 = vadd.f32 0.0, %v1546
  %v1548 = vpop.f32.mrb[0].mxu0
  %1549 = vmatprep.mubr.bf16.mxu0 0
  %1550 = vmatmul.mubr.bf16.gmra.mrb[0].mxu0 %v1331
  %v1551 = vpop.f32.mrb[0].mxu0
  %v1552 = vadd.f32 0.0, %v1551
  %v1553 = vpop.f32.mrb[0].mxu0
  %v1554 = vpop.f32.mrb[0].mxu0
  %v1555 = vadd.f32 0.0, %v1554
  %v1556 = vpop.f32.mrb[0].mxu0
  %1557 = vmatprep.mubr.bf16.mxu0 0
  %1558 = vmatmul.mubr.bf16.gmra.mrb[0].mxu0 %v1334
  %v1559 = vpop.f32.mrb[0].mxu0
  %v1560 = vadd.f32 0.0, %v1559
  %v1561 = vpop.f32.mrb[0].mxu0
  %v1562 = vpop.f32.mrb[0].mxu0
  %v1563 = vadd.f32 0.0, %v1562
  %v1564 = vpop.f32.mrb[0].mxu0
  %1565 = vmatprep.mubr.bf16.mxu0 0
  %1566 = vmatmul.mubr.bf16.gmra.mrb[0].mxu0 %v1337
  %v1567 = vpop.f32.mrb[0].mxu0
  %v1568 = vadd.f32 0.0, %v1567
  %v1569 = vpop.f32.mrb[0].mxu0
  %v1570 = vpop.f32.mrb[0].mxu0
  %v1571 = vadd.f32 0.0, %v1570
  %v1572 = vpop.f32.mrb[0].mxu0
  %1573 = vmatprep.mubr.bf16.mxu0 0
  %1574 = vmatmul.mubr.bf16.gmra.mrb[0].mxu0 %v1340
  %v1575 = vpop.f32.mrb[0].mxu0
  %v1576 = vadd.f32 0.0, %v1575
  %v1577 = vpop.f32.mrb[0].mxu0
  %v1578 = vpop.f32.mrb[0].mxu0
  %v1579 = vadd.f32 0.0, %v1578
  %v1580 = vpop.f32.mrb[0].mxu0
  %1581 = vmatprep.mubr.bf16.mxu0 0
  %1582 = vmatmul.mubr.bf16.gmra.mrb[0].mxu0 %v1343
  %v1583 = vpop.f32.mrb[0].mxu0
  %v1584 = vadd.f32 0.0, %v1583
  %v1585 = vpop.f32.mrb[0].mxu0
  %v1586 = vpop.f32.mrb[0].mxu0
  %v1587 = vadd.f32 0.0, %v1586
  %v1588 = vpop.f32.mrb[0].mxu0
  %1589 = vmatprep.mubr.bf16.mxu0 0
  %1590 = vmatmul.mubr.bf16.gmra.mrb[0].mxu0 %v1346
  %v1591 = vpop.f32.mrb[0].mxu0
  %v1592 = vadd.f32 0.0, %v1591
  %v1593 = vpop.f32.mrb[0].mxu0
  %v1594 = vpop.f32.mrb[0].mxu0
  %v1595 = vadd.f32 0.0, %v1594
  %v1596 = vpop.f32.mrb[0].mxu0
  %1597 = vmatprep.mubr.bf16.mxu0 0
  %1598 = vmatmul.mubr.bf16.gmra.mrb[0].mxu0 %v1349
  %v1599 = vpop.f32.mrb[0].mxu0
  %v1600 = vadd.f32 0.0, %v1599
  %v1601 = vpop.f32.mrb[0].mxu0
  %v1602 = vpop.f32.mrb[0].mxu0
  %v1603 = vadd.f32 0.0, %v1602
  %v1604 = vpop.f32.mrb[0].mxu0
  %1605 = vmatprep.mubr.bf16.mxu0 0
  %1606 = vmatmul.mubr.bf16.gmra.mrb[0].mxu0 %v1352
  %v1607 = vpop.f32.mrb[0].mxu0
  %v1608 = vadd.f32 0.0, %v1607
  %v1609 = vpop.f32.mrb[0].mxu0
  %v1610 = vpop.f32.mrb[0].mxu0
  %v1611 = vadd.f32 0.0, %v1610
  %v1612 = vpop.f32.mrb[0].mxu0
  %1613 = vmatprep.mubr.bf16.mxu0 0
  %1614 = vmatmul.mubr.bf16.gmra.mrb[0].mxu0 %v1355
  %v1615 = vpop.f32.mrb[0].mxu0
  %v1616 = vadd.f32 0.0, %v1615
  %v1617 = vpop.f32.mrb[0].mxu0
  %v1618 = vpop.f32.mrb[0].mxu0
  %v1619 = vadd.f32 0.0, %v1618
  %v1620 = vpop.f32.mrb[0].mxu0
  %1621 = vmatprep.mubr.bf16.mxu0 0
  %1622 = vmatmul.mubr.bf16.gmra.mrb[0].mxu0 %v1358
  %v1623 = vpop.f32.mrb[0].mxu0
  %v1624 = vadd.f32 0.0, %v1623
  %v1625 = vpop.f32.mrb[0].mxu0
  %v1626 = vpop.f32.mrb[0].mxu0
  %v1627 = vadd.f32 0.0, %v1626
  %v1628 = vpop.f32.mrb[0].mxu0
  %1629 = vmatprep.mubr.bf16.mxu0 0
  %1630 = vmatmul.mubr.bf16.gmra.mrb[0].mxu0 %v1361
  %v1631 = vpop.f32.mrb[0].mxu0
  %v1632 = vadd.f32 0.0, %v1631
  %v1633 = vpop.f32.mrb[0].mxu0
  %v1634 = vpop.f32.mrb[0].mxu0
  %v1635 = vadd.f32 0.0, %v1634
  %v1636 = vpop.f32.mrb[0].mxu0
  %1637 = vmatprep.mubr.bf16.mxu0 0
  %1638 = vmatmul.mubr.bf16.gmra.mrb[0].mxu0 %v1364
  %v1639 = vpop.f32.mrb[0].mxu0
  %v1640 = vadd.f32 0.0, %v1639
  %v1641 = vpop.f32.mrb[0].mxu0
  %v1642 = vpop.f32.mrb[0].mxu0
  %v1643 = vadd.f32 0.0, %v1642
  %v1644 = vpop.f32.mrb[0].mxu0
  %1645 = vmatprep.mubr.bf16.mxu0 0
  %1646 = vmatmul.mubr.bf16.gmra.mrb[0].mxu0 %v1367
  %v1647 = vpop.f32.mrb[0].mxu0
  %v1648 = vadd.f32 0.0, %v1647
  %v1649 = vpop.f32.mrb[0].mxu0
  %v1650 = vpop.f32.mrb[0].mxu0
  %v1651 = vadd.f32 0.0, %v1650
  %v1652 = vpop.f32.mrb[0].mxu0
  %1653 = vmatprep.mubr.bf16.mxu0 0
  %1654 = vmatmul.mubr.bf16.gmra.mrb[0].mxu0 %v1370
  %v1655 = vpop.f32.mrb[0].mxu0
  %v1656 = vadd.f32 0.0, %v1655
  %v1657 = vpop.f32.mrb[0].mxu0
  %v1658 = vpop.f32.mrb[0].mxu0
  %v1659 = vadd.f32 0.0, %v1658
  %v1660 = vpop.f32.mrb[0].mxu0
  %1661 = vmatprep.mubr.bf16.mxu0 0
  %1662 = vmatmul.mubr.bf16.gmra.mrb[0].mxu0 %v1373
  %v1663 = vpop.f32.mrb[0].mxu0
  %v1664 = vadd.f32 0.0, %v1663
  %v1665 = vpop.f32.mrb[0].mxu0
  %v1666 = vpop.f32.mrb[0].mxu0
  %v1667 = vadd.f32 0.0, %v1666
  %v1668 = vpop.f32.mrb[0].mxu0
  %1669 = vmatprep.mubr.bf16.mxu0 0
  %1670 = vmatmul.mubr.bf16.gmra.mrb[0].mxu0 %v1376
  %v1671 = vpop.f32.mrb[0].mxu0
  %v1672 = vadd.f32 0.0, %v1671
  %v1673 = vpop.f32.mrb[0].mxu0
  %v1674 = vpop.f32.mrb[0].mxu0
  %v1675 = vadd.f32 0.0, %v1674
  %v1676 = vpop.f32.mrb[0].mxu0
  %1677 = vmatprep.mubr.bf16.mxu0 0
  %1678 = vmatmul.mubr.bf16.gmra.mrb[0].mxu0 %v1379
  %v1679 = vpop.f32.mrb[0].mxu0
  %v1680 = vadd.f32 0.0, %v1679
  %v1681 = vpop.f32.mrb[0].mxu0
  %v1682 = vpop.f32.mrb[0].mxu0
  %v1683 = vadd.f32 0.0, %v1682
  %v1684 = vpop.f32.mrb[0].mxu0
  %1685 = vmatprep.mubr.bf16.mxu0 0
  %1686 = vmatmul.mubr.bf16.gmra.mrb[0].mxu0 %v1382
  %v1687 = vpop.f32.mrb[0].mxu0
  %v1688 = vadd.f32 0.0, %v1687
  %v1689 = vpop.f32.mrb[0].mxu0
  %v1690 = vpop.f32.mrb[0].mxu0
  %v1691 = vadd.f32 0.0, %v1690
  %v1692 = vpop.f32.mrb[0].mxu0
  %1693 = vmatprep.mubr.bf16.mxu0 0
  %1694 = vmatmul.mubr.bf16.gmra.mrb[0].mxu0 %v1385
  %v1695 = vpop.f32.mrb[0].mxu0
  %v1696 = vadd.f32 0.0, %v1695
  %v1697 = vpop.f32.mrb[0].mxu0
  %v1698 = vpop.f32.mrb[0].mxu0
  %v1699 = vadd.f32 0.0, %v1698
  %v1700 = vpop.f32.mrb[0].mxu0
  %1701 = vmatprep.mubr.bf16.mxu0 0
  %1702 = vmatmul.mubr.bf16.gmra.mrb[0].mxu0 %v1388
  %v1703 = vpop.f32.mrb[0].mxu0
  %v1704 = vadd.f32 0.0, %v1703
  %v1705 = vpop.f32.mrb[0].mxu0
  %v1706 = vpop.f32.mrb[0].mxu0
  %v1707 = vadd.f32 0.0, %v1706
  %v1708 = vpop.f32.mrb[0].mxu0
  %1709 = vmatprep.mubr.bf16.mxu0 0
  %1710 = vmatmul.mubr.bf16.gmra.mrb[0].mxu0 %v1391
  %v1711 = vpop.f32.mrb[0].mxu0
  %v1712 = vadd.f32 0.0, %v1711
  %v1713 = vpop.f32.mrb[0].mxu0
  %v1714 = vpop.f32.mrb[0].mxu0
  %v1715 = vadd.f32 0.0, %v1714
  %v1716 = vpop.f32.mrb[0].mxu0
  %1717 = vmatprep.mubr.bf16.mxu0 0
  %1718 = vmatmul.mubr.bf16.gmra.mrb[0].mxu0 %v1394
  %v1719 = vpop.f32.mrb[0].mxu0
  %v1720 = vadd.f32 0.0, %v1719
  %v1721 = vpop.f32.mrb[0].mxu0
  %v1722 = vpop.f32.mrb[0].mxu0
  %v1723 = vadd.f32 0.0, %v1722
  %v1724 = vpop.f32.mrb[0].mxu0
  %1725 = vmatprep.mubr.bf16.mxu0 0
  %1726 = vmatmul.mubr.bf16.gmra.mrb[0].mxu0 %v1397
  %v1727 = vpop.f32.mrb[0].mxu0
  %v1728 = vadd.f32 0.0, %v1727
  %v1729 = vpop.f32.mrb[0].mxu0
  %v1730 = vpop.f32.mrb[0].mxu0
  %v1731 = vadd.f32 0.0, %v1730
  %v1732 = vpop.f32.mrb[0].mxu0
  %1733 = vmatprep.mubr.bf16.mxu0 0
  %1734 = vmatmul.mubr.bf16.gmra.mrb[0].mxu0 %v1400
  %v1735 = vpop.f32.mrb[0].mxu0
  %v1736 = vadd.f32 0.0, %v1735
  %v1737 = vpop.f32.mrb[0].mxu0
  %v1738 = vpop.f32.mrb[0].mxu0
  %v1739 = vadd.f32 0.0, %v1738
  %v1740 = vpop.f32.mrb[0].mxu0
  %1741 = vmatprep.mubr.bf16.mxu0 0
  %1742 = vmatmul.mubr.bf16.gmra.mrb[0].mxu0 %v1403
  %v1743 = vpop.f32.mrb[0].mxu0
  %v1744 = vadd.f32 0.0, %v1743
  %v1745 = vpop.f32.mrb[0].mxu0
  %v1746 = vpop.f32.mrb[0].mxu0
  %v1747 = vadd.f32 0.0, %v1746
  %v1748 = vpop.f32.mrb[0].mxu0
  %1749 = vmatprep.mubr.bf16.mxu0 0
  %1750 = vmatmul.mubr.bf16.gmra.mrb[0].mxu0 %v1406
  %v1751 = vpop.f32.mrb[0].mxu0
  %v1752 = vadd.f32 0.0, %v1751
  %v1753 = vpop.f32.mrb[0].mxu0
  %v1754 = vpop.f32.mrb[0].mxu0
  %v1755 = vadd.f32 0.0, %v1754
  %v1756 = vpop.f32.mrb[0].mxu0
  %1757 = vmatprep.mubr.bf16.mxu0 0
  %1758 = vmatmul.mubr.bf16.gmra.mrb[0].mxu0 %v1409
  %v1759 = vpop.f32.mrb[0].mxu0
  %v1760 = vadd.f32 0.0, %v1759
  %v1761 = vpop.f32.mrb[0].mxu0
  %v1762 = vpop.f32.mrb[0].mxu0
  %v1763 = vadd.f32 0.0, %v1762
  %v1764 = vpop.f32.mrb[0].mxu0
  %1765 = vmatprep.mubr.bf16.mxu0 0
  %1766 = vmatmul.mubr.bf16.gmra.mrb[0].mxu0 %v1412
  %v1767 = vpop.f32.mrb[0].mxu0
  %v1768 = vadd.f32 0.0, %v1767
  %v1769 = vpop.f32.mrb[0].mxu0
  %v1770 = vpop.f32.mrb[0].mxu0
  %v1771 = vadd.f32 0.0, %v1770
  %v1772 = vpop.f32.mrb[0].mxu0
  %1773 = vmatprep.mubr.bf16.mxu0 0
  %1774 = vmatmul.mubr.bf16.gmra.mrb[0].mxu0 %v1415
  %v1775 = vpop.f32.mrb[0].mxu0
  %v1776 = vadd.f32 0.0, %v1775
  %v1777 = vpop.f32.mrb[0].mxu0
  %v1778 = vpop.f32.mrb[0].mxu0
  %v1779 = vadd.f32 0.0, %v1778
  %v1780 = vpop.f32.mrb[0].mxu0
  %1781 = vmatprep.mubr.bf16.mxu0 0
  %1782 = vmatmul.mubr.bf16.gmra.mrb[0].mxu0 %v1418
  %v1783 = vpop.f32.mrb[0].mxu0
  %v1784 = vadd.f32 0.0, %v1783
  %v1785 = vpop.f32.mrb[0].mxu0
  %v1786 = vpop.f32.mrb[0].mxu0
  %v1787 = vadd.f32 0.0, %v1786
  %v1788 = vpop.f32.mrb[0].mxu0
  %1789 = vmatprep.mubr.bf16.mxu0 0
  %1790 = vmatmul.mubr.bf16.gmra.mrb[0].mxu0 %v1421
  %v1791 = vpop.f32.mrb[0].mxu0
  %v1792 = vadd.f32 0.0, %v1791
  %v1793 = vpop.f32.mrb[0].mxu0
  %v1794 = vpop.f32.mrb[0].mxu0
  %v1795 = vadd.f32 0.0, %v1794
  %v1796 = vpop.f32.mrb[0].mxu0
  %1797 = vmatprep.mubr.bf16.mxu0 0
  %1798 = vmatmul.mubr.bf16.gmra.mrb[0].mxu0 %v1424
  %v1799 = vpop.f32.mrb[0].mxu0
  %v1800 = vadd.f32 0.0, %v1799
  %v1801 = vpop.f32.mrb[0].mxu0
  %v1802 = vpop.f32.mrb[0].mxu0
  %v1803 = vadd.f32 0.0, %v1802
  %v1804 = vpop.f32.mrb[0].mxu0
  %1805 = vmatprep.mubr.bf16.mxu0 0
  %1806 = vmatmul.mubr.bf16.gmra.mrb[0].mxu0 %v1427
  %v1807 = vpop.f32.mrb[0].mxu0
  %v1808 = vadd.f32 0.0, %v1807
  %v1809 = vpop.f32.mrb[0].mxu0
  %v1810 = vpop.f32.mrb[0].mxu0
  %v1811 = vadd.f32 0.0, %v1810
  %v1812 = vpop.f32.mrb[0].mxu0
  %1813 = vmatprep.mubr.bf16.mxu0 0
  %1814 = vmatmul.mubr.bf16.gmra.mrb[0].mxu0 %v1430
  %v1815 = vpop.f32.mrb[0].mxu0
  %v1816 = vadd.f32 0.0, %v1815
  %v1817 = vpop.f32.mrb[0].mxu0
  %v1818 = vpop.f32.mrb[0].mxu0
  %v1819 = vadd.f32 0.0, %v1818
  %v1820 = vpop.f32.mrb[0].mxu0
  %1821 = vmatprep.mubr.bf16.mxu0 0
  %1822 = vmatmul.mubr.bf16.gmra.mrb[0].mxu0 %v1433
  %v1823 = vpop.f32.mrb[0].mxu0
  %v1824 = vadd.f32 0.0, %v1823
  %v1825 = vpop.f32.mrb[0].mxu0
  %v1826 = vpop.f32.mrb[0].mxu0
  %v1827 = vadd.f32 0.0, %v1826
  %v1828 = vpop.f32.mrb[0].mxu0
  %1829 = vmatprep.mubr.bf16.mxu0 0
  %1830 = vmatmul.mubr.bf16.gmra.mrb[0].mxu0 %v1436
  %v1831 = vpop.f32.mrb[0].mxu0
  %v1832 = vadd.f32 0.0, %v1831
  %v1833 = vpop.f32.mrb[0].mxu0
  %v1834 = vpop.f32.mrb[0].mxu0
  %v1835 = vadd.f32 0.0, %v1834
  %v1836 = vpop.f32.mrb[0].mxu0
  %1837 = vmatprep.mubr.bf16.mxu0 0
  %1838 = vmatmul.mubr.bf16.gmra.mrb[0].mxu0 %v1439
  %v1839 = vpop.f32.mrb[0].mxu0
  %v1840 = vadd.f32 0.0, %v1839
  %v1841 = vpop.f32.mrb[0].mxu0
  %v1842 = vpop.f32.mrb[0].mxu0
  %v1843 = vadd.f32 0.0, %v1842
  %v1844 = vpop.f32.mrb[0].mxu0
  %1845 = vmatprep.mubr.bf16.mxu0 0
  %1846 = vmatmul.mubr.bf16.gmra.mrb[0].mxu0 %v1442
  %v1847 = vpop.f32.mrb[0].mxu0
  %v1848 = vadd.f32 0.0, %v1847
  %v1849 = vpop.f32.mrb[0].mxu0
  %v1850 = vpop.f32.mrb[0].mxu0
  %v1851 = vadd.f32 0.0, %v1850
  %v1852 = vpop.f32.mrb[0].mxu0
  %1853 = vmatprep.mubr.bf16.mxu0 0
  %1854 = vmatmul.mubr.bf16.gmra.mrb[0].mxu0 %v1445
  %v1855 = vpop.f32.mrb[0].mxu0
  %v1856 = vadd.f32 0.0, %v1855
  %v1857 = vpop.f32.mrb[0].mxu0
  %v1858 = vpop.f32.mrb[0].mxu0
  %v1859 = vadd.f32 0.0, %v1858
  %v1860 = vpop.f32.mrb[0].mxu0
  %1861 = vmatprep.mubr.bf16.mxu0 0
  %1862 = vmatmul.mubr.bf16.gmra.mrb[0].mxu0 %v1448
  %v1863 = vpop.f32.mrb[0].mxu0
  %v1864 = vadd.f32 0.0, %v1863
  %v1865 = vpop.f32.mrb[0].mxu0
  %v1866 = vpop.f32.mrb[0].mxu0
  %v1867 = vadd.f32 0.0, %v1866
  %v1868 = vpop.f32.mrb[0].mxu0
  %1869 = vmatprep.mubr.bf16.mxu0 0
  %1870 = vmatmul.mubr.bf16.gmra.mrb[0].mxu0 %v1451
  %v1871 = vpop.f32.mrb[0].mxu0
  %v1872 = vadd.f32 0.0, %v1871
  %v1873 = vpop.f32.mrb[0].mxu0
  %v1874 = vpop.f32.mrb[0].mxu0
  %v1875 = vadd.f32 0.0, %v1874
  %v1876 = vpop.f32.mrb[0].mxu0
  %1877 = vdwg.mxu0
  %v1878 = vmax.f32 %v573, %v1488
  %v1879 = vmax.f32 %v576, %v1491
  %v1880 = vmax.f32 %v581, %v1496
  %v1881 = vmax.f32 %v584, %v1499
  %v1882 = vmax.f32 %v589, %v1504
  %v1883 = vmax.f32 %v592, %v1507
  %v1884 = vmax.f32 %v597, %v1512
  %v1885 = vmax.f32 %v600, %v1515
  %v1886 = vmax.f32 %v605, %v1520
  %v1887 = vmax.f32 %v608, %v1523
  %v1888 = vmax.f32 %v613, %v1528
  %v1889 = vmax.f32 %v616, %v1531
  %v1890 = vmax.f32 %v621, %v1536
  %v1891 = vmax.f32 %v624, %v1539
  %v1892 = vmax.f32 %v629, %v1544
  %v1893 = vmax.f32 %v632, %v1547
  %v1894 = vmax.f32 %v637, %v1552
  %v1895 = vmax.f32 %v640, %v1555
  %v1896 = vmax.f32 %v645, %v1560
  %v1897 = vmax.f32 %v648, %v1563
  %v1898 = vmax.f32 %v653, %v1568
  %v1899 = vmax.f32 %v656, %v1571
  %v1900 = vmax.f32 %v661, %v1576
  %v1901 = vmax.f32 %v664, %v1579
  %v1902 = vmax.f32 %v669, %v1584
  %v1903 = vmax.f32 %v672, %v1587
  %v1904 = vmax.f32 %v677, %v1592
  %v1905 = vmax.f32 %v680, %v1595
  %v1906 = vmax.f32 %v685, %v1600
  %v1907 = vmax.f32 %v688, %v1603
  %v1908 = vmax.f32 %v693, %v1608
  %v1909 = vmax.f32 %v696, %v1611
  %v1910 = vmax.f32 %v701, %v1616
  %v1911 = vmax.f32 %v704, %v1619
  %v1912 = vmax.f32 %v709, %v1624
  %v1913 = vmax.f32 %v712, %v1627
  %v1914 = vmax.f32 %v717, %v1632
  %v1915 = vmax.f32 %v720, %v1635
  %v1916 = vmax.f32 %v725, %v1640
  %v1917 = vmax.f32 %v728, %v1643
  %v1918 = vmax.f32 %v733, %v1648
  %v1919 = vmax.f32 %v736, %v1651
  %v1920 = vmax.f32 %v741, %v1656
  %v1921 = vmax.f32 %v744, %v1659
  %v1922 = vmax.f32 %v749, %v1664
  %v1923 = vmax.f32 %v752, %v1667
  %v1924 = vmax.f32 %v757, %v1672
  %v1925 = vmax.f32 %v760, %v1675
  %v1926 = vmax.f32 %v765, %v1680
  %v1927 = vmax.f32 %v768, %v1683
  %v1928 = vmax.f32 %v773, %v1688
  %v1929 = vmax.f32 %v776, %v1691
  %v1930 = vmax.f32 %v781, %v1696
  %v1931 = vmax.f32 %v784, %v1699
  %v1932 = vmax.f32 %v789, %v1704
  %v1933 = vmax.f32 %v792, %v1707
  %v1934 = vmax.f32 %v797, %v1712
  %v1935 = vmax.f32 %v800, %v1715
  %v1936 = vmax.f32 %v805, %v1720
  %v1937 = vmax.f32 %v808, %v1723
  %v1938 = vmax.f32 %v813, %v1728
  %v1939 = vmax.f32 %v816, %v1731
  %v1940 = vmax.f32 %v821, %v1736
  %v1941 = vmax.f32 %v824, %v1739
  %v1942 = vmax.f32 %v829, %v1744
  %v1943 = vmax.f32 %v832, %v1747
  %v1944 = vmax.f32 %v837, %v1752
  %v1945 = vmax.f32 %v840, %v1755
  %v1946 = vmax.f32 %v845, %v1760
  %v1947 = vmax.f32 %v848, %v1763
  %v1948 = vmax.f32 %v853, %v1768
  %v1949 = vmax.f32 %v856, %v1771
  %v1950 = vmax.f32 %v861, %v1776
  %v1951 = vmax.f32 %v864, %v1779
  %v1952 = vmax.f32 %v869, %v1784
  %v1953 = vmax.f32 %v872, %v1787
  %v1954 = vmax.f32 %v877, %v1792
  %v1955 = vmax.f32 %v880, %v1795
  %v1956 = vmax.f32 %v885, %v1800
  %v1957 = vmax.f32 %v888, %v1803
  %v1958 = vmax.f32 %v893, %v1808
  %v1959 = vmax.f32 %v896, %v1811
  %v1960 = vmax.f32 %v901, %v1816
  %v1961 = vmax.f32 %v904, %v1819
  %v1962 = vmax.f32 %v909, %v1824
  %v1963 = vmax.f32 %v912, %v1827
  %v1964 = vmax.f32 %v917, %v1832
  %v1965 = vmax.f32 %v920, %v1835
  %v1966 = vmax.f32 %v925, %v1840
  %v1967 = vmax.f32 %v928, %v1843
  %v1968 = vmax.f32 %v933, %v1848
  %v1969 = vmax.f32 %v936, %v1851
  %v1970 = vmax.f32 %v941, %v1856
  %v1971 = vmax.f32 %v944, %v1859
  %v1972 = vmax.f32 %v949, %v1864
  %v1973 = vmax.f32 %v952, %v1867
  %v1974 = vmax.f32 %v957, %v1872
  %v1975 = vmax.f32 %v960, %v1875
  %v1976 = vld [vmem:[%s0 + $0x310] sm:$0xf]
  %v1977 = vld [vmem:[%s0 + $0x314] sm:$0xf]
  %v1978 = vld [vmem:[%s0 + $0x318] sm:$0xf]
  %v1979 = vld [vmem:[%s0 + $0x31c] sm:$0xf]
  %v1980 = vld [vmem:[%s0 + $0x320] sm:$0xf]
  %v1981 = vld [vmem:[%s0 + $0x324] sm:$0xf]
  %v1982 = vld [vmem:[%s0 + $0x328] sm:$0xf]
  %v1983 = vld [vmem:[%s0 + $0x32c] sm:$0xf]
  %v1984 = vld [vmem:[%s0 + $0x330] sm:$0xf]
  %v1985 = vld [vmem:[%s0 + $0x334] sm:$0xf]
  %v1986 = vld [vmem:[%s0 + $0x338] sm:$0xf]
  %v1987 = vld [vmem:[%s0 + $0x33c] sm:$0xf]
  %v1988 = vld [vmem:[%s0 + $0x340] sm:$0xf]
  %v1989 = vld [vmem:[%s0 + $0x344] sm:$0xf]
  %v1990 = vld [vmem:[%s0 + $0x348] sm:$0xf]
  %v1991 = vld [vmem:[%s0 + $0x34c] sm:$0xf]
  %v1992 = vld [vmem:[%s0 + $0x350] sm:$0xf]
  %v1993 = vld [vmem:[%s0 + $0x354] sm:$0xf]
  %v1994 = vld [vmem:[%s0 + $0x358] sm:$0xf]
  %v1995 = vld [vmem:[%s0 + $0x35c] sm:$0xf]
  %v1996 = vld [vmem:[%s0 + $0x360] sm:$0xf]
  %v1997 = vld [vmem:[%s0 + $0x364] sm:$0xf]
  %v1998 = vld [vmem:[%s0 + $0x368] sm:$0xf]
  %v1999 = vld [vmem:[%s0 + $0x36c] sm:$0xf]
  %v2000 = vld [vmem:[%s0 + $0x370] sm:$0xf]
  %v2001 = vld [vmem:[%s0 + $0x374] sm:$0xf]
  %v2002 = vld [vmem:[%s0 + $0x378] sm:$0xf]
  %v2003 = vld [vmem:[%s0 + $0x37c] sm:$0xf]
  %v2004 = vld [vmem:[%s0 + $0x380] sm:$0xf]
  %v2005 = vld [vmem:[%s0 + $0x384] sm:$0xf]
  %v2006 = vld [vmem:[%s0 + $0x388] sm:$0xf]
  %v2007 = vld [vmem:[%s0 + $0x38c] sm:$0xf]
  %v2008 = vld [vmem:[%s0 + $0x390] sm:$0xf]
  %v2009 = vld [vmem:[%s0 + $0x394] sm:$0xf]
  %v2010 = vld [vmem:[%s0 + $0x398] sm:$0xf]
  %v2011 = vld [vmem:[%s0 + $0x39c] sm:$0xf]
  %v2012 = vld [vmem:[%s0 + $0x3a0] sm:$0xf]
  %v2013 = vld [vmem:[%s0 + $0x3a4] sm:$0xf]
  %v2014 = vld [vmem:[%s0 + $0x3a8] sm:$0xf]
  %v2015 = vld [vmem:[%s0 + $0x3ac] sm:$0xf]
  %v2016 = vld [vmem:[%s0 + $0x3b0] sm:$0xf]
  %v2017 = vld [vmem:[%s0 + $0x3b4] sm:$0xf]
  %v2018 = vld [vmem:[%s0 + $0x3b8] sm:$0xf]
  %v2019 = vld [vmem:[%s0 + $0x3bc] sm:$0xf]
  %v2020 = vld [vmem:[%s0 + $0x3c0] sm:$0xf]
  %v2021 = vld [vmem:[%s0 + $0x3c4] sm:$0xf]
  %v2022 = vld [vmem:[%s0 + $0x3c8] sm:$0xf]
  %v2023 = vld [vmem:[%s0 + $0x3cc] sm:$0xf]
  %v2024 = vld [vmem:[%s0 + $0x3d0] sm:$0xf]
  %v2025 = vld [vmem:[%s0 + $0x3d4] sm:$0xf]
  %v2026 = vld [vmem:[%s0 + $0x3d8] sm:$0xf]
  %v2027 = vld [vmem:[%s0 + $0x3dc] sm:$0xf]
  %v2028 = vld [vmem:[%s0 + $0x3e0] sm:$0xf]
  %v2029 = vld [vmem:[%s0 + $0x3e4] sm:$0xf]
  %v2030 = vld [vmem:[%s0 + $0x3e8] sm:$0xf]
  %v2031 = vld [vmem:[%s0 + $0x3ec] sm:$0xf]
  %v2032 = vld [vmem:[%s0 + $0x3f0] sm:$0xf]
  %v2033 = vld [vmem:[%s0 + $0x3f4] sm:$0xf]
  %v2034 = vld [vmem:[%s0 + $0x3f8] sm:$0xf]
  %v2035 = vld [vmem:[%s0 + $0x3fc] sm:$0xf]
  %v2036 = vld [vmem:[%s0 + $0x400] sm:$0xf]
  %v2037 = vld [vmem:[%s0 + $0x404] sm:$0xf]
  %v2038 = vld [vmem:[%s0 + $0x408] sm:$0xf]
  %v2039 = vld [vmem:[%s0 + $0x40c] sm:$0xf]
  %v2040 = vld [vmem:[%s0 + $0x410] sm:$0xf]
  %v2041 = vld [vmem:[%s0 + $0x414] sm:$0xf]
  %v2042 = vld [vmem:[%s0 + $0x418] sm:$0xf]
  %v2043 = vld [vmem:[%s0 + $0x41c] sm:$0xf]
  %v2044 = vld [vmem:[%s0 + $0x420] sm:$0xf]
  %v2045 = vld [vmem:[%s0 + $0x424] sm:$0xf]
  %v2046 = vld [vmem:[%s0 + $0x428] sm:$0xf]
  %v2047 = vld [vmem:[%s0 + $0x42c] sm:$0xf]
  %v2048 = vld [vmem:[%s0 + $0x430] sm:$0xf]
  %v2049 = vld [vmem:[%s0 + $0x434] sm:$0xf]
  %v2050 = vld [vmem:[%s0 + $0x438] sm:$0xf]
  %v2051 = vld [vmem:[%s0 + $0x43c] sm:$0xf]
  %v2052 = vld [vmem:[%s0 + $0x440] sm:$0xf]
  %v2053 = vld [vmem:[%s0 + $0x444] sm:$0xf]
  %v2054 = vld [vmem:[%s0 + $0x448] sm:$0xf]
  %v2055 = vld [vmem:[%s0 + $0x44c] sm:$0xf]
  %v2056 = vld [vmem:[%s0 + $0x450] sm:$0xf]
  %v2057 = vld [vmem:[%s0 + $0x454] sm:$0xf]
  %v2058 = vld [vmem:[%s0 + $0x458] sm:$0xf]
  %v2059 = vld [vmem:[%s0 + $0x45c] sm:$0xf]
  %v2060 = vld [vmem:[%s0 + $0x460] sm:$0xf]
  %v2061 = vld [vmem:[%s0 + $0x464] sm:$0xf]
  %v2062 = vld [vmem:[%s0 + $0x468] sm:$0xf]
  %v2063 = vld [vmem:[%s0 + $0x46c] sm:$0xf]
  %v2064 = vld [vmem:[%s0 + $0x470] sm:$0xf]
  %v2065 = vld [vmem:[%s0 + $0x474] sm:$0xf]
  %v2066 = vld [vmem:[%s0 + $0x478] sm:$0xf]
  %v2067 = vld [vmem:[%s0 + $0x47c] sm:$0xf]
  %v2068 = vld [vmem:[%s0 + $0x480] sm:$0xf]
  %v2069 = vld [vmem:[%s0 + $0x484] sm:$0xf]
  %v2070 = vld [vmem:[%s0 + $0x488] sm:$0xf]
  %v2071 = vld [vmem:[%s0 + $0x48c] sm:$0xf]
  %v2072 = vld [vmem:[%s0 + $0x490] sm:$0xf]
  %v2073 = vld [vmem:[%s0 + $0x494] sm:$0xf]
  %v2172 = vunpack.c.l.b16 %v1976
  %v2173 = vunpack.c.l.b16 %v1977
  %v2174 = vunpack.c.l.b16 %v1978
  %v2175 = vunpack.c.l.b16 %v1979
  %v2176 = vunpack.c.l.b16 %v1980
  %v2177 = vunpack.c.l.b16 %v1981
  %v2178 = vunpack.c.l.b16 %v1982
  %v2179 = vunpack.c.l.b16 %v1983
  %v2180 = vunpack.c.l.b16 %v1984
  %v2181 = vunpack.c.l.b16 %v1985
  %v2182 = vunpack.c.l.b16 %v1986
  %v2183 = vunpack.c.l.b16 %v1987
  %v2184 = vunpack.c.l.b16 %v1988
  %v2185 = vunpack.c.l.b16 %v1989
  %v2186 = vunpack.c.l.b16 %v1990
  %v2187 = vunpack.c.l.b16 %v1991
  %v2188 = vunpack.c.l.b16 %v1992
  %v2189 = vunpack.c.l.b16 %v1993
  %v2190 = vunpack.c.l.b16 %v1994
  %v2191 = vunpack.c.l.b16 %v1995
  %v2192 = vunpack.c.l.b16 %v1996
  %v2193 = vunpack.c.l.b16 %v1997
  %v2194 = vunpack.c.l.b16 %v1998
  %v2195 = vunpack.c.l.b16 %v1999
  %v2196 = vunpack.c.l.b16 %v2000
  %v2197 = vunpack.c.l.b16 %v2001
  %v2198 = vunpack.c.l.b16 %v2002
  %v2199 = vunpack.c.l.b16 %v2003
  %v2200 = vunpack.c.l.b16 %v2004
  %v2201 = vunpack.c.l.b16 %v2005
  %v2202 = vunpack.c.l.b16 %v2006
  %v2203 = vunpack.c.l.b16 %v2007
  %v2204 = vunpack.c.l.b16 %v2008
  %v2205 = vunpack.c.l.b16 %v2009
  %v2206 = vunpack.c.l.b16 %v2010
  %v2207 = vunpack.c.l.b16 %v2011
  %v2208 = vunpack.c.l.b16 %v2012
  %v2209 = vunpack.c.l.b16 %v2013
  %v2210 = vunpack.c.l.b16 %v2014
  %v2211 = vunpack.c.l.b16 %v2015
  %v2212 = vunpack.c.l.b16 %v2016
  %v2213 = vunpack.c.l.b16 %v2017
  %v2214 = vunpack.c.l.b16 %v2018
  %v2215 = vunpack.c.l.b16 %v2019
  %v2216 = vunpack.c.l.b16 %v2020
  %v2217 = vunpack.c.l.b16 %v2021
  %v2218 = vunpack.c.l.b16 %v2022
  %v2219 = vunpack.c.l.b16 %v2023
  %v2220 = vunpack.c.l.b16 %v2024
  %v2221 = vunpack.c.l.b16 %v2025
  %v2222 = vunpack.c.l.b16 %v2026
  %v2223 = vunpack.c.l.b16 %v2027
  %v2224 = vunpack.c.l.b16 %v2028
  %v2225 = vunpack.c.l.b16 %v2029
  %v2226 = vunpack.c.l.b16 %v2030
  %v2227 = vunpack.c.l.b16 %v2031
  %v2228 = vunpack.c.l.b16 %v2032
  %v2229 = vunpack.c.l.b16 %v2033
  %v2230 = vunpack.c.l.b16 %v2034
  %v2231 = vunpack.c.l.b16 %v2035
  %v2232 = vunpack.c.l.b16 %v2036
  %v2233 = vunpack.c.l.b16 %v2037
  %v2234 = vunpack.c.l.b16 %v2038
  %v2235 = vunpack.c.l.b16 %v2039
  %v2236 = vunpack.c.l.b16 %v2040
  %v2237 = vunpack.c.l.b16 %v2041
  %v2238 = vunpack.c.l.b16 %v2042
  %v2239 = vunpack.c.l.b16 %v2043
  %v2240 = vunpack.c.l.b16 %v2044
  %v2241 = vunpack.c.l.b16 %v2045
  %v2242 = vunpack.c.l.b16 %v2046
  %v2243 = vunpack.c.l.b16 %v2047
  %v2244 = vunpack.c.l.b16 %v2048
  %v2245 = vunpack.c.l.b16 %v2049
  %v2246 = vunpack.c.l.b16 %v2050
  %v2247 = vunpack.c.l.b16 %v2051
  %v2248 = vunpack.c.l.b16 %v2052
  %v2249 = vunpack.c.l.b16 %v2053
  %v2250 = vunpack.c.l.b16 %v2054
  %v2251 = vunpack.c.l.b16 %v2055
  %v2252 = vunpack.c.l.b16 %v2056
  %v2253 = vunpack.c.l.b16 %v2057
  %v2254 = vunpack.c.l.b16 %v2058
  %v2255 = vunpack.c.l.b16 %v2059
  %v2256 = vunpack.c.l.b16 %v2060
  %v2257 = vunpack.c.l.b16 %v2061
  %v2258 = vunpack.c.l.b16 %v2062
  %v2259 = vunpack.c.l.b16 %v2063
  %v2260 = vunpack.c.l.b16 %v2064
  %v2261 = vunpack.c.l.b16 %v2065
  %v2262 = vunpack.c.l.b16 %v2066
  %v2263 = vunpack.c.l.b16 %v2067
  %v2264 = vunpack.c.l.b16 %v2068
  %v2265 = vunpack.c.l.b16 %v2069
  %v2266 = vunpack.c.l.b16 %v2070
  %v2267 = vunpack.c.l.b16 %v2071
  %v2268 = vunpack.c.l.b16 %v2072
  %v2269 = vunpack.c.l.b16 %v2073
  %v2270 = vpack.c.b16 %v2173, %v2172
  %v2271 = vpack.c.b16 %v2175, %v2174
  %v2272 = vpack.c.b16 %v2177, %v2176
  %v2273 = vpack.c.b16 %v2179, %v2178
  %v2274 = vpack.c.b16 %v2181, %v2180
  %v2275 = vpack.c.b16 %v2183, %v2182
  %v2276 = vpack.c.b16 %v2185, %v2184
  %v2277 = vpack.c.b16 %v2187, %v2186
  %v2278 = vpack.c.b16 %v2189, %v2188
  %v2279 = vpack.c.b16 %v2191, %v2190
  %v2280 = vpack.c.b16 %v2193, %v2192
  %v2281 = vpack.c.b16 %v2195, %v2194
  %v2282 = vpack.c.b16 %v2197, %v2196
  %v2283 = vpack.c.b16 %v2199, %v2198
  %v2284 = vpack.c.b16 %v2201, %v2200
  %v2285 = vpack.c.b16 %v2203, %v2202
  %v2286 = vpack.c.b16 %v2205, %v2204
  %v2287 = vpack.c.b16 %v2207, %v2206
  %v2288 = vpack.c.b16 %v2209, %v2208
  %v2289 = vpack.c.b16 %v2211, %v2210
  %v2290 = vpack.c.b16 %v2213, %v2212
  %v2291 = vpack.c.b16 %v2215, %v2214
  %v2292 = vpack.c.b16 %v2217, %v2216
  %v2293 = vpack.c.b16 %v2219, %v2218
  %v2294 = vpack.c.b16 %v2221, %v2220
  %v2295 = vpack.c.b16 %v2223, %v2222
  %v2296 = vpack.c.b16 %v2225, %v2224
  %v2297 = vpack.c.b16 %v2227, %v2226
  %v2298 = vpack.c.b16 %v2229, %v2228
  %v2299 = vpack.c.b16 %v2231, %v2230
  %v2300 = vpack.c.b16 %v2233, %v2232
  %v2301 = vpack.c.b16 %v2235, %v2234
  %v2302 = vpack.c.b16 %v2237, %v2236
  %v2303 = vpack.c.b16 %v2239, %v2238
  %v2304 = vpack.c.b16 %v2241, %v2240
  %v2305 = vpack.c.b16 %v2243, %v2242
  %v2306 = vpack.c.b16 %v2245, %v2244
  %v2307 = vpack.c.b16 %v2247, %v2246
  %v2308 = vpack.c.b16 %v2249, %v2248
  %v2309 = vpack.c.b16 %v2251, %v2250
  %v2310 = vpack.c.b16 %v2253, %v2252
  %v2311 = vpack.c.b16 %v2255, %v2254
  %v2312 = vpack.c.b16 %v2257, %v2256
  %v2313 = vpack.c.b16 %v2259, %v2258
  %v2314 = vpack.c.b16 %v2261, %v2260
  %v2315 = vpack.c.b16 %v2263, %v2262
  %v2316 = vpack.c.b16 %v2265, %v2264
  %v2317 = vpack.c.b16 %v2267, %v2266
  %v2318 = vpack.c.b16 %v2269, %v2268
  %v2320 = vsel %vm383, %v2270, 0
  %v2323 = vsel %vm383, %v2271, 0
  %v2326 = vsel %vm383, %v2272, 0
  %v2329 = vsel %vm383, %v2273, 0
  %v2332 = vsel %vm383, %v2274, 0
  %v2335 = vsel %vm383, %v2275, 0
  %v2338 = vsel %vm383, %v2276, 0
  %v2341 = vsel %vm383, %v2277, 0
  %v2344 = vsel %vm383, %v2278, 0
  %v2347 = vsel %vm383, %v2279, 0
  %v2350 = vsel %vm383, %v2280, 0
  %v2353 = vsel %vm383, %v2281, 0
  %v2356 = vsel %vm383, %v2282, 0
  %v2359 = vsel %vm383, %v2283, 0
  %v2362 = vsel %vm383, %v2284, 0
  %v2365 = vsel %vm383, %v2285, 0
  %v2368 = vsel %vm383, %v2286, 0
  %v2371 = vsel %vm383, %v2287, 0
  %v2374 = vsel %vm383, %v2288, 0
  %v2377 = vsel %vm383, %v2289, 0
  %v2380 = vsel %vm383, %v2290, 0
  %v2383 = vsel %vm383, %v2291, 0
  %v2386 = vsel %vm383, %v2292, 0
  %v2389 = vsel %vm383, %v2293, 0
  %v2392 = vsel %vm383, %v2294, 0
  %v2395 = vsel %vm383, %v2295, 0
  %v2398 = vsel %vm383, %v2296, 0
  %v2401 = vsel %vm383, %v2297, 0
  %v2404 = vsel %vm383, %v2298, 0
  %v2407 = vsel %vm383, %v2299, 0
  %v2410 = vsel %vm383, %v2300, 0
  %v2413 = vsel %vm383, %v2301, 0
  %v2416 = vsel %vm383, %v2302, 0
  %v2419 = vsel %vm383, %v2303, 0
  %v2422 = vsel %vm383, %v2304, 0
  %v2425 = vsel %vm383, %v2305, 0
  %v2428 = vsel %vm383, %v2306, 0
  %v2431 = vsel %vm383, %v2307, 0
  %v2434 = vsel %vm383, %v2308, 0
  %v2437 = vsel %vm383, %v2309, 0
  %v2440 = vsel %vm383, %v2310, 0
  %v2443 = vsel %vm383, %v2311, 0
  %v2446 = vsel %vm383, %v2312, 0
  %v2449 = vsel %vm383, %v2313, 0
  %v2452 = vsel %vm383, %v2314, 0
  %v2455 = vsel %vm383, %v2315, 0
  %v2458 = vsel %vm383, %v2316, 0
  %v2461 = vsel %vm383, %v2317, 0
  %v2464 = vsel %vm383, %v2318, 0
  %2466 = vmatprep.subr.bf16.mxu0 0
  %2467 = vmatpush1.bf16.msra.mxu0 %v536
  %2468 = vmatprep.subr.bf16.mxu0 0
  %2469 = vmatpush1.bf16.msra.mxu0 0
  %2470 = vmatprep.subr.bf16.mxu0 0
  %2471 = vmatpush1.bf16.msra.mxu0 0
  %2472 = vmatprep.subr.bf16.mxu0 0
  %2473 = vmatpush1.bf16.msra.mxu0 0
  %2474 = vmatprep.subr.bf16.mxu0 0
  %2475 = vmatpush1.bf16.msra.mxu0 0
  %2476 = vmatprep.subr.bf16.mxu0 0
  %2477 = vmatpush1.bf16.msra.mxu0 0
  %2478 = vmatprep.subr.bf16.mxu0 0
  %2479 = vmatpush1.bf16.msra.mxu0 0
  %2480 = vmatprep.subr.bf16.mxu0 0
  %2481 = vmatpush1.bf16.msra.mxu0 0
  %2482 = vmatprep.subr.bf16.mxu0 0
  %2483 = vmatpush1.bf16.msra.mxu0 0
  %2484 = vmatprep.subr.bf16.mxu0 0
  %2485 = vmatpush1.bf16.msra.mxu0 0
  %2486 = vmatprep.subr.bf16.mxu0 0
  %2487 = vmatpush1.bf16.msra.mxu0 0
  %2488 = vmatprep.subr.bf16.mxu0 0
  %2489 = vmatpush1.bf16.msra.mxu0 0
  %2490 = vmatprep.subr.bf16.mxu0 0
  %2491 = vmatpush1.bf16.msra.mxu0 0
  %2492 = vmatprep.subr.bf16.mxu0 0
  %2493 = vmatpush1.bf16.msra.mxu0 0
  %2494 = vmatprep.subr.bf16.mxu0 0
  %2495 = vmatpush1.bf16.msra.mxu0 0
  %2496 = vmatprep.subr.bf16.mxu0 0
  %2497 = vmatpush1.bf16.msra.mxu0 0
  %2498 = vmatprep.mubr.bf16.mxu0 0
  %2499 = vmatmul.mubr.bf16.gmra.mrb[0].mxu0 %v2320
  %v2500 = vpop.f32.mrb[0].mxu0
  %v2501 = vadd.f32 0.0, %v2500
  %v2502 = vpop.f32.mrb[0].mxu0
  %v2503 = vpop.f32.mrb[0].mxu0
  %v2504 = vadd.f32 0.0, %v2503
  %v2505 = vpop.f32.mrb[0].mxu0
  %2506 = vmatprep.mubr.bf16.mxu0 0
  %2507 = vmatmul.mubr.bf16.gmra.mrb[0].mxu0 %v2323
  %v2508 = vpop.f32.mrb[0].mxu0
  %v2509 = vadd.f32 0.0, %v2508
  %v2510 = vpop.f32.mrb[0].mxu0
  %v2511 = vpop.f32.mrb[0].mxu0
  %v2512 = vadd.f32 0.0, %v2511
  %v2513 = vpop.f32.mrb[0].mxu0
  %2514 = vmatprep.mubr.bf16.mxu0 0
  %2515 = vmatmul.mubr.bf16.gmra.mrb[0].mxu0 %v2326
  %v2516 = vpop.f32.mrb[0].mxu0
  %v2517 = vadd.f32 0.0, %v2516
  %v2518 = vpop.f32.mrb[0].mxu0
  %v2519 = vpop.f32.mrb[0].mxu0
  %v2520 = vadd.f32 0.0, %v2519
  %v2521 = vpop.f32.mrb[0].mxu0
  %2522 = vmatprep.mubr.bf16.mxu0 0
  %2523 = vmatmul.mubr.bf16.gmra.mrb[0].mxu0 %v2329
  %v2524 = vpop.f32.mrb[0].mxu0
  %v2525 = vadd.f32 0.0, %v2524
  %v2526 = vpop.f32.mrb[0].mxu0
  %v2527 = vpop.f32.mrb[0].mxu0
  %v2528 = vadd.f32 0.0, %v2527
  %v2529 = vpop.f32.mrb[0].mxu0
  %2530 = vmatprep.mubr.bf16.mxu0 0
  %2531 = vmatmul.mubr.bf16.gmra.mrb[0].mxu0 %v2332
  %v2532 = vpop.f32.mrb[0].mxu0
  %v2533 = vadd.f32 0.0, %v2532
  %v2534 = vpop.f32.mrb[0].mxu0
  %v2535 = vpop.f32.mrb[0].mxu0
  %v2536 = vadd.f32 0.0, %v2535
  %v2537 = vpop.f32.mrb[0].mxu0
  %2538 = vmatprep.mubr.bf16.mxu0 0
  %2539 = vmatmul.mubr.bf16.gmra.mrb[0].mxu0 %v2335
  %v2540 = vpop.f32.mrb[0].mxu0
  %v2541 = vadd.f32 0.0, %v2540
  %v2542 = vpop.f32.mrb[0].mxu0
  %v2543 = vpop.f32.mrb[0].mxu0
  %v2544 = vadd.f32 0.0, %v2543
  %v2545 = vpop.f32.mrb[0].mxu0
  %2546 = vmatprep.mubr.bf16.mxu0 0
  %2547 = vmatmul.mubr.bf16.gmra.mrb[0].mxu0 %v2338
  %v2548 = vpop.f32.mrb[0].mxu0
  %v2549 = vadd.f32 0.0, %v2548
  %v2550 = vpop.f32.mrb[0].mxu0
  %v2551 = vpop.f32.mrb[0].mxu0
  %v2552 = vadd.f32 0.0, %v2551
  %v2553 = vpop.f32.mrb[0].mxu0
  %2554 = vmatprep.mubr.bf16.mxu0 0
  %2555 = vmatmul.mubr.bf16.gmra.mrb[0].mxu0 %v2341
  %v2556 = vpop.f32.mrb[0].mxu0
  %v2557 = vadd.f32 0.0, %v2556
  %v2558 = vpop.f32.mrb[0].mxu0
  %v2559 = vpop.f32.mrb[0].mxu0
  %v2560 = vadd.f32 0.0, %v2559
  %v2561 = vpop.f32.mrb[0].mxu0
  %2562 = vmatprep.mubr.bf16.mxu0 0
  %2563 = vmatmul.mubr.bf16.gmra.mrb[0].mxu0 %v2344
  %v2564 = vpop.f32.mrb[0].mxu0
  %v2565 = vadd.f32 0.0, %v2564
  %v2566 = vpop.f32.mrb[0].mxu0
  %v2567 = vpop.f32.mrb[0].mxu0
  %v2568 = vadd.f32 0.0, %v2567
  %v2569 = vpop.f32.mrb[0].mxu0
  %2570 = vmatprep.mubr.bf16.mxu0 0
  %2571 = vmatmul.mubr.bf16.gmra.mrb[0].mxu0 %v2347
  %v2572 = vpop.f32.mrb[0].mxu0
  %v2573 = vadd.f32 0.0, %v2572
  %v2574 = vpop.f32.mrb[0].mxu0
  %v2575 = vpop.f32.mrb[0].mxu0
  %v2576 = vadd.f32 0.0, %v2575
  %v2577 = vpop.f32.mrb[0].mxu0
  %2578 = vmatprep.mubr.bf16.mxu0 0
  %2579 = vmatmul.mubr.bf16.gmra.mrb[0].mxu0 %v2350
  %v2580 = vpop.f32.mrb[0].mxu0
  %v2581 = vadd.f32 0.0, %v2580
  %v2582 = vpop.f32.mrb[0].mxu0
  %v2583 = vpop.f32.mrb[0].mxu0
  %v2584 = vadd.f32 0.0, %v2583
  %v2585 = vpop.f32.mrb[0].mxu0
  %2586 = vmatprep.mubr.bf16.mxu0 0
  %2587 = vmatmul.mubr.bf16.gmra.mrb[0].mxu0 %v2353
  %v2588 = vpop.f32.mrb[0].mxu0
  %v2589 = vadd.f32 0.0, %v2588
  %v2590 = vpop.f32.mrb[0].mxu0
  %v2591 = vpop.f32.mrb[0].mxu0
  %v2592 = vadd.f32 0.0, %v2591
  %v2593 = vpop.f32.mrb[0].mxu0
  %2594 = vmatprep.mubr.bf16.mxu0 0
  %2595 = vmatmul.mubr.bf16.gmra.mrb[0].mxu0 %v2356
  %v2596 = vpop.f32.mrb[0].mxu0
  %v2597 = vadd.f32 0.0, %v2596
  %v2598 = vpop.f32.mrb[0].mxu0
  %v2599 = vpop.f32.mrb[0].mxu0
  %v2600 = vadd.f32 0.0, %v2599
  %v2601 = vpop.f32.mrb[0].mxu0
  %2602 = vmatprep.mubr.bf16.mxu0 0
  %2603 = vmatmul.mubr.bf16.gmra.mrb[0].mxu0 %v2359
  %v2604 = vpop.f32.mrb[0].mxu0
  %v2605 = vadd.f32 0.0, %v2604
  %v2606 = vpop.f32.mrb[0].mxu0
  %v2607 = vpop.f32.mrb[0].mxu0
  %v2608 = vadd.f32 0.0, %v2607
  %v2609 = vpop.f32.mrb[0].mxu0
  %2610 = vmatprep.mubr.bf16.mxu0 0
  %2611 = vmatmul.mubr.bf16.gmra.mrb[0].mxu0 %v2362
  %v2612 = vpop.f32.mrb[0].mxu0
  %v2613 = vadd.f32 0.0, %v2612
  %v2614 = vpop.f32.mrb[0].mxu0
  %v2615 = vpop.f32.mrb[0].mxu0
  %v2616 = vadd.f32 0.0, %v2615
  %v2617 = vpop.f32.mrb[0].mxu0
  %2618 = vmatprep.mubr.bf16.mxu0 0
  %2619 = vmatmul.mubr.bf16.gmra.mrb[0].mxu0 %v2365
  %v2620 = vpop.f32.mrb[0].mxu0
  %v2621 = vadd.f32 0.0, %v2620
  %v2622 = vpop.f32.mrb[0].mxu0
  %v2623 = vpop.f32.mrb[0].mxu0
  %v2624 = vadd.f32 0.0, %v2623
  %v2625 = vpop.f32.mrb[0].mxu0
  %2626 = vmatprep.mubr.bf16.mxu0 0
  %2627 = vmatmul.mubr.bf16.gmra.mrb[0].mxu0 %v2368
  %v2628 = vpop.f32.mrb[0].mxu0
  %v2629 = vadd.f32 0.0, %v2628
  %v2630 = vpop.f32.mrb[0].mxu0
  %v2631 = vpop.f32.mrb[0].mxu0
  %v2632 = vadd.f32 0.0, %v2631
  %v2633 = vpop.f32.mrb[0].mxu0
  %2634 = vmatprep.mubr.bf16.mxu0 0
  %2635 = vmatmul.mubr.bf16.gmra.mrb[0].mxu0 %v2371
  %v2636 = vpop.f32.mrb[0].mxu0
  %v2637 = vadd.f32 0.0, %v2636
  %v2638 = vpop.f32.mrb[0].mxu0
  %v2639 = vpop.f32.mrb[0].mxu0
  %v2640 = vadd.f32 0.0, %v2639
  %v2641 = vpop.f32.mrb[0].mxu0
  %2642 = vmatprep.mubr.bf16.mxu0 0
  %2643 = vmatmul.mubr.bf16.gmra.mrb[0].mxu0 %v2374
  %v2644 = vpop.f32.mrb[0].mxu0
  %v2645 = vadd.f32 0.0, %v2644
  %v2646 = vpop.f32.mrb[0].mxu0
  %v2647 = vpop.f32.mrb[0].mxu0
  %v2648 = vadd.f32 0.0, %v2647
  %v2649 = vpop.f32.mrb[0].mxu0
  %2650 = vmatprep.mubr.bf16.mxu0 0
  %2651 = vmatmul.mubr.bf16.gmra.mrb[0].mxu0 %v2377
  %v2652 = vpop.f32.mrb[0].mxu0
  %v2653 = vadd.f32 0.0, %v2652
  %v2654 = vpop.f32.mrb[0].mxu0
  %v2655 = vpop.f32.mrb[0].mxu0
  %v2656 = vadd.f32 0.0, %v2655
  %v2657 = vpop.f32.mrb[0].mxu0
  %2658 = vmatprep.mubr.bf16.mxu0 0
  %2659 = vmatmul.mubr.bf16.gmra.mrb[0].mxu0 %v2380
  %v2660 = vpop.f32.mrb[0].mxu0
  %v2661 = vadd.f32 0.0, %v2660
  %v2662 = vpop.f32.mrb[0].mxu0
  %v2663 = vpop.f32.mrb[0].mxu0
  %v2664 = vadd.f32 0.0, %v2663
  %v2665 = vpop.f32.mrb[0].mxu0
  %2666 = vmatprep.mubr.bf16.mxu0 0
  %2667 = vmatmul.mubr.bf16.gmra.mrb[0].mxu0 %v2383
  %v2668 = vpop.f32.mrb[0].mxu0
  %v2669 = vadd.f32 0.0, %v2668
  %v2670 = vpop.f32.mrb[0].mxu0
  %v2671 = vpop.f32.mrb[0].mxu0
  %v2672 = vadd.f32 0.0, %v2671
  %v2673 = vpop.f32.mrb[0].mxu0
  %2674 = vmatprep.mubr.bf16.mxu0 0
  %2675 = vmatmul.mubr.bf16.gmra.mrb[0].mxu0 %v2386
  %v2676 = vpop.f32.mrb[0].mxu0
  %v2677 = vadd.f32 0.0, %v2676
  %v2678 = vpop.f32.mrb[0].mxu0
  %v2679 = vpop.f32.mrb[0].mxu0
  %v2680 = vadd.f32 0.0, %v2679
  %v2681 = vpop.f32.mrb[0].mxu0
  %2682 = vmatprep.mubr.bf16.mxu0 0
  %2683 = vmatmul.mubr.bf16.gmra.mrb[0].mxu0 %v2389
  %v2684 = vpop.f32.mrb[0].mxu0
  %v2685 = vadd.f32 0.0, %v2684
  %v2686 = vpop.f32.mrb[0].mxu0
  %v2687 = vpop.f32.mrb[0].mxu0
  %v2688 = vadd.f32 0.0, %v2687
  %v2689 = vpop.f32.mrb[0].mxu0
  %2690 = vmatprep.mubr.bf16.mxu0 0
  %2691 = vmatmul.mubr.bf16.gmra.mrb[0].mxu0 %v2392
  %v2692 = vpop.f32.mrb[0].mxu0
  %v2693 = vadd.f32 0.0, %v2692
  %v2694 = vpop.f32.mrb[0].mxu0
  %v2695 = vpop.f32.mrb[0].mxu0
  %v2696 = vadd.f32 0.0, %v2695
  %v2697 = vpop.f32.mrb[0].mxu0
  %2698 = vmatprep.mubr.bf16.mxu0 0
  %2699 = vmatmul.mubr.bf16.gmra.mrb[0].mxu0 %v2395
  %v2700 = vpop.f32.mrb[0].mxu0
  %v2701 = vadd.f32 0.0, %v2700
  %v2702 = vpop.f32.mrb[0].mxu0
  %v2703 = vpop.f32.mrb[0].mxu0
  %v2704 = vadd.f32 0.0, %v2703
  %v2705 = vpop.f32.mrb[0].mxu0
  %2706 = vmatprep.mubr.bf16.mxu0 0
  %2707 = vmatmul.mubr.bf16.gmra.mrb[0].mxu0 %v2398
  %v2708 = vpop.f32.mrb[0].mxu0
  %v2709 = vadd.f32 0.0, %v2708
  %v2710 = vpop.f32.mrb[0].mxu0
  %v2711 = vpop.f32.mrb[0].mxu0
  %v2712 = vadd.f32 0.0, %v2711
  %v2713 = vpop.f32.mrb[0].mxu0
  %2714 = vmatprep.mubr.bf16.mxu0 0
  %2715 = vmatmul.mubr.bf16.gmra.mrb[0].mxu0 %v2401
  %v2716 = vpop.f32.mrb[0].mxu0
  %v2717 = vadd.f32 0.0, %v2716
  %v2718 = vpop.f32.mrb[0].mxu0
  %v2719 = vpop.f32.mrb[0].mxu0
  %v2720 = vadd.f32 0.0, %v2719
  %v2721 = vpop.f32.mrb[0].mxu0
  %2722 = vmatprep.mubr.bf16.mxu0 0
  %2723 = vmatmul.mubr.bf16.gmra.mrb[0].mxu0 %v2404
  %v2724 = vpop.f32.mrb[0].mxu0
  %v2725 = vadd.f32 0.0, %v2724
  %v2726 = vpop.f32.mrb[0].mxu0
  %v2727 = vpop.f32.mrb[0].mxu0
  %v2728 = vadd.f32 0.0, %v2727
  %v2729 = vpop.f32.mrb[0].mxu0
  %2730 = vmatprep.mubr.bf16.mxu0 0
  %2731 = vmatmul.mubr.bf16.gmra.mrb[0].mxu0 %v2407
  %v2732 = vpop.f32.mrb[0].mxu0
  %v2733 = vadd.f32 0.0, %v2732
  %v2734 = vpop.f32.mrb[0].mxu0
  %v2735 = vpop.f32.mrb[0].mxu0
  %v2736 = vadd.f32 0.0, %v2735
  %v2737 = vpop.f32.mrb[0].mxu0
  %2738 = vmatprep.mubr.bf16.mxu0 0
  %2739 = vmatmul.mubr.bf16.gmra.mrb[0].mxu0 %v2410
  %v2740 = vpop.f32.mrb[0].mxu0
  %v2741 = vadd.f32 0.0, %v2740
  %v2742 = vpop.f32.mrb[0].mxu0
  %v2743 = vpop.f32.mrb[0].mxu0
  %v2744 = vadd.f32 0.0, %v2743
  %v2745 = vpop.f32.mrb[0].mxu0
  %2746 = vmatprep.mubr.bf16.mxu0 0
  %2747 = vmatmul.mubr.bf16.gmra.mrb[0].mxu0 %v2413
  %v2748 = vpop.f32.mrb[0].mxu0
  %v2749 = vadd.f32 0.0, %v2748
  %v2750 = vpop.f32.mrb[0].mxu0
  %v2751 = vpop.f32.mrb[0].mxu0
  %v2752 = vadd.f32 0.0, %v2751
  %v2753 = vpop.f32.mrb[0].mxu0
  %2754 = vmatprep.mubr.bf16.mxu0 0
  %2755 = vmatmul.mubr.bf16.gmra.mrb[0].mxu0 %v2416
  %v2756 = vpop.f32.mrb[0].mxu0
  %v2757 = vadd.f32 0.0, %v2756
  %v2758 = vpop.f32.mrb[0].mxu0
  %v2759 = vpop.f32.mrb[0].mxu0
  %v2760 = vadd.f32 0.0, %v2759
  %v2761 = vpop.f32.mrb[0].mxu0
  %2762 = vmatprep.mubr.bf16.mxu0 0
  %2763 = vmatmul.mubr.bf16.gmra.mrb[0].mxu0 %v2419
  %v2764 = vpop.f32.mrb[0].mxu0
  %v2765 = vadd.f32 0.0, %v2764
  %v2766 = vpop.f32.mrb[0].mxu0
  %v2767 = vpop.f32.mrb[0].mxu0
  %v2768 = vadd.f32 0.0, %v2767
  %v2769 = vpop.f32.mrb[0].mxu0
  %2770 = vmatprep.mubr.bf16.mxu0 0
  %2771 = vmatmul.mubr.bf16.gmra.mrb[0].mxu0 %v2422
  %v2772 = vpop.f32.mrb[0].mxu0
  %v2773 = vadd.f32 0.0, %v2772
  %v2774 = vpop.f32.mrb[0].mxu0
  %v2775 = vpop.f32.mrb[0].mxu0
  %v2776 = vadd.f32 0.0, %v2775
  %v2777 = vpop.f32.mrb[0].mxu0
  %2778 = vmatprep.mubr.bf16.mxu0 0
  %2779 = vmatmul.mubr.bf16.gmra.mrb[0].mxu0 %v2425
  %v2780 = vpop.f32.mrb[0].mxu0
  %v2781 = vadd.f32 0.0, %v2780
  %v2782 = vpop.f32.mrb[0].mxu0
  %v2783 = vpop.f32.mrb[0].mxu0
  %v2784 = vadd.f32 0.0, %v2783
  %v2785 = vpop.f32.mrb[0].mxu0
  %2786 = vmatprep.mubr.bf16.mxu0 0
  %2787 = vmatmul.mubr.bf16.gmra.mrb[0].mxu0 %v2428
  %v2788 = vpop.f32.mrb[0].mxu0
  %v2789 = vadd.f32 0.0, %v2788
  %v2790 = vpop.f32.mrb[0].mxu0
  %v2791 = vpop.f32.mrb[0].mxu0
  %v2792 = vadd.f32 0.0, %v2791
  %v2793 = vpop.f32.mrb[0].mxu0
  %2794 = vmatprep.mubr.bf16.mxu0 0
  %2795 = vmatmul.mubr.bf16.gmra.mrb[0].mxu0 %v2431
  %v2796 = vpop.f32.mrb[0].mxu0
  %v2797 = vadd.f32 0.0, %v2796
  %v2798 = vpop.f32.mrb[0].mxu0
  %v2799 = vpop.f32.mrb[0].mxu0
  %v2800 = vadd.f32 0.0, %v2799
  %v2801 = vpop.f32.mrb[0].mxu0
  %2802 = vmatprep.mubr.bf16.mxu0 0
  %2803 = vmatmul.mubr.bf16.gmra.mrb[0].mxu0 %v2434
  %v2804 = vpop.f32.mrb[0].mxu0
  %v2805 = vadd.f32 0.0, %v2804
  %v2806 = vpop.f32.mrb[0].mxu0
  %v2807 = vpop.f32.mrb[0].mxu0
  %v2808 = vadd.f32 0.0, %v2807
  %v2809 = vpop.f32.mrb[0].mxu0
  %2810 = vmatprep.mubr.bf16.mxu0 0
  %2811 = vmatmul.mubr.bf16.gmra.mrb[0].mxu0 %v2437
  %v2812 = vpop.f32.mrb[0].mxu0
  %v2813 = vadd.f32 0.0, %v2812
  %v2814 = vpop.f32.mrb[0].mxu0
  %v2815 = vpop.f32.mrb[0].mxu0
  %v2816 = vadd.f32 0.0, %v2815
  %v2817 = vpop.f32.mrb[0].mxu0
  %2818 = vmatprep.mubr.bf16.mxu0 0
  %2819 = vmatmul.mubr.bf16.gmra.mrb[0].mxu0 %v2440
  %v2820 = vpop.f32.mrb[0].mxu0
  %v2821 = vadd.f32 0.0, %v2820
  %v2822 = vpop.f32.mrb[0].mxu0
  %v2823 = vpop.f32.mrb[0].mxu0
  %v2824 = vadd.f32 0.0, %v2823
  %v2825 = vpop.f32.mrb[0].mxu0
  %2826 = vmatprep.mubr.bf16.mxu0 0
  %2827 = vmatmul.mubr.bf16.gmra.mrb[0].mxu0 %v2443
  %v2828 = vpop.f32.mrb[0].mxu0
  %v2829 = vadd.f32 0.0, %v2828
  %v2830 = vpop.f32.mrb[0].mxu0
  %v2831 = vpop.f32.mrb[0].mxu0
  %v2832 = vadd.f32 0.0, %v2831
  %v2833 = vpop.f32.mrb[0].mxu0
  %2834 = vmatprep.mubr.bf16.mxu0 0
  %2835 = vmatmul.mubr.bf16.gmra.mrb[0].mxu0 %v2446
  %v2836 = vpop.f32.mrb[0].mxu0
  %v2837 = vadd.f32 0.0, %v2836
  %v2838 = vpop.f32.mrb[0].mxu0
  %v2839 = vpop.f32.mrb[0].mxu0
  %v2840 = vadd.f32 0.0, %v2839
  %v2841 = vpop.f32.mrb[0].mxu0
  %2842 = vmatprep.mubr.bf16.mxu0 0
  %2843 = vmatmul.mubr.bf16.gmra.mrb[0].mxu0 %v2449
  %v2844 = vpop.f32.mrb[0].mxu0
  %v2845 = vadd.f32 0.0, %v2844
  %v2846 = vpop.f32.mrb[0].mxu0
  %v2847 = vpop.f32.mrb[0].mxu0
  %v2848 = vadd.f32 0.0, %v2847
  %v2849 = vpop.f32.mrb[0].mxu0
  %2850 = vmatprep.mubr.bf16.mxu0 0
  %2851 = vmatmul.mubr.bf16.gmra.mrb[0].mxu0 %v2452
  %v2852 = vpop.f32.mrb[0].mxu0
  %v2853 = vadd.f32 0.0, %v2852
  %v2854 = vpop.f32.mrb[0].mxu0
  %v2855 = vpop.f32.mrb[0].mxu0
  %v2856 = vadd.f32 0.0, %v2855
  %v2857 = vpop.f32.mrb[0].mxu0
  %2858 = vmatprep.mubr.bf16.mxu0 0
  %2859 = vmatmul.mubr.bf16.gmra.mrb[0].mxu0 %v2455
  %v2860 = vpop.f32.mrb[0].mxu0
  %v2861 = vadd.f32 0.0, %v2860
  %v2862 = vpop.f32.mrb[0].mxu0
  %v2863 = vpop.f32.mrb[0].mxu0
  %v2864 = vadd.f32 0.0, %v2863
  %v2865 = vpop.f32.mrb[0].mxu0
  %2866 = vmatprep.mubr.bf16.mxu0 0
  %2867 = vmatmul.mubr.bf16.gmra.mrb[0].mxu0 %v2458
  %v2868 = vpop.f32.mrb[0].mxu0
  %v2869 = vadd.f32 0.0, %v2868
  %v2870 = vpop.f32.mrb[0].mxu0
  %v2871 = vpop.f32.mrb[0].mxu0
  %v2872 = vadd.f32 0.0, %v2871
  %v2873 = vpop.f32.mrb[0].mxu0
  %2874 = vmatprep.mubr.bf16.mxu0 0
  %2875 = vmatmul.mubr.bf16.gmra.mrb[0].mxu0 %v2461
  %v2876 = vpop.f32.mrb[0].mxu0
  %v2877 = vadd.f32 0.0, %v2876
  %v2878 = vpop.f32.mrb[0].mxu0
  %v2879 = vpop.f32.mrb[0].mxu0
  %v2880 = vadd.f32 0.0, %v2879
  %v2881 = vpop.f32.mrb[0].mxu0
  %2882 = vmatprep.mubr.bf16.mxu0 0
  %2883 = vmatmul.mubr.bf16.gmra.mrb[0].mxu0 %v2464
  %v2884 = vpop.f32.mrb[0].mxu0
  %v2885 = vadd.f32 0.0, %v2884
  %v2886 = vpop.f32.mrb[0].mxu0
  %v2887 = vpop.f32.mrb[0].mxu0
  %v2888 = vadd.f32 0.0, %v2887
  %v2889 = vpop.f32.mrb[0].mxu0
  %2890 = vdwg.mxu0
  %v2891 = vmax.f32 %v1878, %v2501
  %v2892 = vmax.f32 %v1879, %v2504
  %v2893 = vmax.f32 %v1880, %v2509
  %v2894 = vmax.f32 %v1881, %v2512
  %v2895 = vmax.f32 %v1882, %v2517
  %v2896 = vmax.f32 %v1883, %v2520
  %v2897 = vmax.f32 %v1884, %v2525
  %v2898 = vmax.f32 %v1885, %v2528
  %v2899 = vmax.f32 %v1886, %v2533
  %v2900 = vmax.f32 %v1887, %v2536
  %v2901 = vmax.f32 %v1888, %v2541
  %v2902 = vmax.f32 %v1889, %v2544
  %v2903 = vmax.f32 %v1890, %v2549
  %v2904 = vmax.f32 %v1891, %v2552
  %v2905 = vmax.f32 %v1892, %v2557
  %v2906 = vmax.f32 %v1893, %v2560
  %v2907 = vmax.f32 %v1894, %v2565
  %v2908 = vmax.f32 %v1895, %v2568
  %v2909 = vmax.f32 %v1896, %v2573
  %v2910 = vmax.f32 %v1897, %v2576
  %v2911 = vmax.f32 %v1898, %v2581
  %v2912 = vmax.f32 %v1899, %v2584
  %v2913 = vmax.f32 %v1900, %v2589
  %v2914 = vmax.f32 %v1901, %v2592
  %v2915 = vmax.f32 %v1902, %v2597
  %v2916 = vmax.f32 %v1903, %v2600
  %v2917 = vmax.f32 %v1904, %v2605
  %v2918 = vmax.f32 %v1905, %v2608
  %v2919 = vmax.f32 %v1906, %v2613
  %v2920 = vmax.f32 %v1907, %v2616
  %v2921 = vmax.f32 %v1908, %v2621
  %v2922 = vmax.f32 %v1909, %v2624
  %v2923 = vmax.f32 %v1910, %v2629
  %v2924 = vmax.f32 %v1911, %v2632
  %v2925 = vmax.f32 %v1912, %v2637
  %v2926 = vmax.f32 %v1913, %v2640
  %v2927 = vmax.f32 %v1914, %v2645
  %v2928 = vmax.f32 %v1915, %v2648
  %v2929 = vmax.f32 %v1916, %v2653
  %v2930 = vmax.f32 %v1917, %v2656
  %v2931 = vmax.f32 %v1918, %v2661
  %v2932 = vmax.f32 %v1919, %v2664
  %v2933 = vmax.f32 %v1920, %v2669
  %v2934 = vmax.f32 %v1921, %v2672
  %v2935 = vmax.f32 %v1922, %v2677
  %v2936 = vmax.f32 %v1923, %v2680
  %v2937 = vmax.f32 %v1924, %v2685
  %v2938 = vmax.f32 %v1925, %v2688
  %v2939 = vmax.f32 %v1926, %v2693
  %v2940 = vmax.f32 %v1927, %v2696
  %v2941 = vmax.f32 %v1928, %v2701
  %v2942 = vmax.f32 %v1929, %v2704
  %v2943 = vmax.f32 %v1930, %v2709
  %v2944 = vmax.f32 %v1931, %v2712
  %v2945 = vmax.f32 %v1932, %v2717
  %v2946 = vmax.f32 %v1933, %v2720
  %v2947 = vmax.f32 %v1934, %v2725
  %v2948 = vmax.f32 %v1935, %v2728
  %v2949 = vmax.f32 %v1936, %v2733
  %v2950 = vmax.f32 %v1937, %v2736
  %v2951 = vmax.f32 %v1938, %v2741
  %v2952 = vmax.f32 %v1939, %v2744
  %v2953 = vmax.f32 %v1940, %v2749
  %v2954 = vmax.f32 %v1941, %v2752
  %v2955 = vmax.f32 %v1942, %v2757
  %v2956 = vmax.f32 %v1943, %v2760
  %v2957 = vmax.f32 %v1944, %v2765
  %v2958 = vmax.f32 %v1945, %v2768
  %v2959 = vmax.f32 %v1946, %v2773
  %v2960 = vmax.f32 %v1947, %v2776
  %v2961 = vmax.f32 %v1948, %v2781
  %v2962 = vmax.f32 %v1949, %v2784
  %v2963 = vmax.f32 %v1950, %v2789
  %v2964 = vmax.f32 %v1951, %v2792
  %v2965 = vmax.f32 %v1952, %v2797
  %v2966 = vmax.f32 %v1953, %v2800
  %v2967 = vmax.f32 %v1954, %v2805
  %v2968 = vmax.f32 %v1955, %v2808
  %v2969 = vmax.f32 %v1956, %v2813
  %v2970 = vmax.f32 %v1957, %v2816
  %v2971 = vmax.f32 %v1958, %v2821
  %v2972 = vmax.f32 %v1959, %v2824
  %v2973 = vmax.f32 %v1960, %v2829
  %v2974 = vmax.f32 %v1961, %v2832
  %v2975 = vmax.f32 %v1962, %v2837
  %v2976 = vmax.f32 %v1963, %v2840
  %v2977 = vmax.f32 %v1964, %v2845
  %v2978 = vmax.f32 %v1965, %v2848
  %v2979 = vmax.f32 %v1966, %v2853
  %v2980 = vmax.f32 %v1967, %v2856
  %v2981 = vmax.f32 %v1968, %v2861
  %v2982 = vmax.f32 %v1969, %v2864
  %v2983 = vmax.f32 %v1970, %v2869
  %v2984 = vmax.f32 %v1971, %v2872
  %v2985 = vmax.f32 %v1972, %v2877
  %v2986 = vmax.f32 %v1973, %v2880
  %v2987 = vmax.f32 %v1974, %v2885
  %v2988 = vmax.f32 %v1975, %v2888
  %v2989 = vld [vmem:[%s0 + $0x498] sm:$0xf]
  %v2990 = vld [vmem:[%s0 + $0x49c] sm:$0xf]
  %v2991 = vld [vmem:[%s0 + $0x4a0] sm:$0xf]
  %v2992 = vld [vmem:[%s0 + $0x4a4] sm:$0xf]
  %v2993 = vld [vmem:[%s0 + $0x4a8] sm:$0xf]
  %v2994 = vld [vmem:[%s0 + $0x4ac] sm:$0xf]
  %v2995 = vld [vmem:[%s0 + $0x4b0] sm:$0xf]
  %v2996 = vld [vmem:[%s0 + $0x4b4] sm:$0xf]
  %v2997 = vld [vmem:[%s0 + $0x4b8] sm:$0xf]
  %v2998 = vld [vmem:[%s0 + $0x4bc] sm:$0xf]
  %v2999 = vld [vmem:[%s0 + $0x4c0] sm:$0xf]
  %v3000 = vld [vmem:[%s0 + $0x4c4] sm:$0xf]
  %v3001 = vld [vmem:[%s0 + $0x4c8] sm:$0xf]
  %v3002 = vld [vmem:[%s0 + $0x4cc] sm:$0xf]
  %v3003 = vld [vmem:[%s0 + $0x4d0] sm:$0xf]
  %v3004 = vld [vmem:[%s0 + $0x4d4] sm:$0xf]
  %v3005 = vld [vmem:[%s0 + $0x4d8] sm:$0xf]
  %v3006 = vld [vmem:[%s0 + $0x4dc] sm:$0xf]
  %v3007 = vld [vmem:[%s0 + $0x4e0] sm:$0xf]
  %v3008 = vld [vmem:[%s0 + $0x4e4] sm:$0xf]
  %v3009 = vld [vmem:[%s0 + $0x4e8] sm:$0xf]
  %v3010 = vld [vmem:[%s0 + $0x4ec] sm:$0xf]
  %v3011 = vld [vmem:[%s0 + $0x4f0] sm:$0xf]
  %v3012 = vld [vmem:[%s0 + $0x4f4] sm:$0xf]
  %v3013 = vld [vmem:[%s0 + $0x4f8] sm:$0xf]
  %v3014 = vld [vmem:[%s0 + $0x4fc] sm:$0xf]
  %v3015 = vld [vmem:[%s0 + $0x500] sm:$0xf]
  %v3016 = vld [vmem:[%s0 + $0x504] sm:$0xf]
  %v3017 = vld [vmem:[%s0 + $0x508] sm:$0xf]
  %v3018 = vld [vmem:[%s0 + $0x50c] sm:$0xf]
  %v3019 = vld [vmem:[%s0 + $0x510] sm:$0xf]
  %v3020 = vld [vmem:[%s0 + $0x514] sm:$0xf]
  %v3021 = vld [vmem:[%s0 + $0x518] sm:$0xf]
  %v3022 = vld [vmem:[%s0 + $0x51c] sm:$0xf]
  %v3023 = vld [vmem:[%s0 + $0x520] sm:$0xf]
  %v3024 = vld [vmem:[%s0 + $0x524] sm:$0xf]
  %v3025 = vld [vmem:[%s0 + $0x528] sm:$0xf]
  %v3026 = vld [vmem:[%s0 + $0x52c] sm:$0xf]
  %v3027 = vld [vmem:[%s0 + $0x530] sm:$0xf]
  %v3028 = vld [vmem:[%s0 + $0x534] sm:$0xf]
  %v3029 = vld [vmem:[%s0 + $0x538] sm:$0xf]
  %v3030 = vld [vmem:[%s0 + $0x53c] sm:$0xf]
  %v3031 = vld [vmem:[%s0 + $0x540] sm:$0xf]
  %v3032 = vld [vmem:[%s0 + $0x544] sm:$0xf]
  %v3033 = vld [vmem:[%s0 + $0x548] sm:$0xf]
  %v3034 = vld [vmem:[%s0 + $0x54c] sm:$0xf]
  %v3035 = vld [vmem:[%s0 + $0x550] sm:$0xf]
  %v3036 = vld [vmem:[%s0 + $0x554] sm:$0xf]
  %v3037 = vld [vmem:[%s0 + $0x558] sm:$0xf]
  %v3038 = vld [vmem:[%s0 + $0x55c] sm:$0xf]
  %v3039 = vld [vmem:[%s0 + $0x560] sm:$0xf]
  %v3040 = vld [vmem:[%s0 + $0x564] sm:$0xf]
  %v3041 = vld [vmem:[%s0 + $0x568] sm:$0xf]
  %v3042 = vld [vmem:[%s0 + $0x56c] sm:$0xf]
  %v3043 = vld [vmem:[%s0 + $0x570] sm:$0xf]
  %v3044 = vld [vmem:[%s0 + $0x574] sm:$0xf]
  %v3045 = vld [vmem:[%s0 + $0x578] sm:$0xf]
  %v3046 = vld [vmem:[%s0 + $0x57c] sm:$0xf]
  %v3047 = vld [vmem:[%s0 + $0x580] sm:$0xf]
  %v3048 = vld [vmem:[%s0 + $0x584] sm:$0xf]
  %v3049 = vld [vmem:[%s0 + $0x588] sm:$0xf]
  %v3050 = vld [vmem:[%s0 + $0x58c] sm:$0xf]
  %v3051 = vld [vmem:[%s0 + $0x590] sm:$0xf]
  %v3052 = vld [vmem:[%s0 + $0x594] sm:$0xf]
  %v3053 = vld [vmem:[%s0 + $0x598] sm:$0xf]
  %v3054 = vld [vmem:[%s0 + $0x59c] sm:$0xf]
  %v3055 = vld [vmem:[%s0 + $0x5a0] sm:$0xf]
  %v3056 = vld [vmem:[%s0 + $0x5a4] sm:$0xf]
  %v3057 = vld [vmem:[%s0 + $0x5a8] sm:$0xf]
  %v3058 = vld [vmem:[%s0 + $0x5ac] sm:$0xf]
  %v3059 = vld [vmem:[%s0 + $0x5b0] sm:$0xf]
  %v3060 = vld [vmem:[%s0 + $0x5b4] sm:$0xf]
  %v3061 = vld [vmem:[%s0 + $0x5b8] sm:$0xf]
  %v3062 = vld [vmem:[%s0 + $0x5bc] sm:$0xf]
  %v3063 = vld [vmem:[%s0 + $0x5c0] sm:$0xf]
  %v3064 = vld [vmem:[%s0 + $0x5c4] sm:$0xf]
  %v3065 = vld [vmem:[%s0 + $0x5c8] sm:$0xf]
  %v3066 = vld [vmem:[%s0 + $0x5cc] sm:$0xf]
  %v3067 = vld [vmem:[%s0 + $0x5d0] sm:$0xf]
  %v3068 = vld [vmem:[%s0 + $0x5d4] sm:$0xf]
  %v3069 = vld [vmem:[%s0 + $0x5d8] sm:$0xf]
  %v3070 = vld [vmem:[%s0 + $0x5dc] sm:$0xf]
  %v3071 = vld [vmem:[%s0 + $0x5e0] sm:$0xf]
  %v3072 = vld [vmem:[%s0 + $0x5e4] sm:$0xf]
  %v3073 = vld [vmem:[%s0 + $0x5e8] sm:$0xf]
  %v3074 = vld [vmem:[%s0 + $0x5ec] sm:$0xf]
  %v3075 = vld [vmem:[%s0 + $0x5f0] sm:$0xf]
  %v3076 = vld [vmem:[%s0 + $0x5f4] sm:$0xf]
  %v3077 = vld [vmem:[%s0 + $0x5f8] sm:$0xf]
  %v3078 = vld [vmem:[%s0 + $0x5fc] sm:$0xf]
  %v3079 = vld [vmem:[%s0 + $0x600] sm:$0xf]
  %v3080 = vld [vmem:[%s0 + $0x604] sm:$0xf]
  %v3081 = vld [vmem:[%s0 + $0x608] sm:$0xf]
  %v3082 = vld [vmem:[%s0 + $0x60c] sm:$0xf]
  %v3083 = vld [vmem:[%s0 + $0x610] sm:$0xf]
  %v3084 = vld [vmem:[%s0 + $0x614] sm:$0xf]
  %v3085 = vld [vmem:[%s0 + $0x618] sm:$0xf]
  %v3086 = vld [vmem:[%s0 + $0x61c] sm:$0xf]
  %v3185 = vunpack.c.l.b16 %v2989
  %v3186 = vunpack.c.l.b16 %v2990
  %v3187 = vunpack.c.l.b16 %v2991
  %v3188 = vunpack.c.l.b16 %v2992
  %v3189 = vunpack.c.l.b16 %v2993
  %v3190 = vunpack.c.l.b16 %v2994
  %v3191 = vunpack.c.l.b16 %v2995
  %v3192 = vunpack.c.l.b16 %v2996
  %v3193 = vunpack.c.l.b16 %v2997
  %v3194 = vunpack.c.l.b16 %v2998
  %v3195 = vunpack.c.l.b16 %v2999
  %v3196 = vunpack.c.l.b16 %v3000
  %v3197 = vunpack.c.l.b16 %v3001
  %v3198 = vunpack.c.l.b16 %v3002
  %v3199 = vunpack.c.l.b16 %v3003
  %v3200 = vunpack.c.l.b16 %v3004
  %v3201 = vunpack.c.l.b16 %v3005
  %v3202 = vunpack.c.l.b16 %v3006
  %v3203 = vunpack.c.l.b16 %v3007
  %v3204 = vunpack.c.l.b16 %v3008
  %v3205 = vunpack.c.l.b16 %v3009
  %v3206 = vunpack.c.l.b16 %v3010
  %v3207 = vunpack.c.l.b16 %v3011
  %v3208 = vunpack.c.l.b16 %v3012
  %v3209 = vunpack.c.l.b16 %v3013
  %v3210 = vunpack.c.l.b16 %v3014
  %v3211 = vunpack.c.l.b16 %v3015
  %v3212 = vunpack.c.l.b16 %v3016
  %v3213 = vunpack.c.l.b16 %v3017
  %v3214 = vunpack.c.l.b16 %v3018
  %v3215 = vunpack.c.l.b16 %v3019
  %v3216 = vunpack.c.l.b16 %v3020
  %v3217 = vunpack.c.l.b16 %v3021
  %v3218 = vunpack.c.l.b16 %v3022
  %v3219 = vunpack.c.l.b16 %v3023
  %v3220 = vunpack.c.l.b16 %v3024
  %v3221 = vunpack.c.l.b16 %v3025
  %v3222 = vunpack.c.l.b16 %v3026
  %v3223 = vunpack.c.l.b16 %v3027
  %v3224 = vunpack.c.l.b16 %v3028
  %v3225 = vunpack.c.l.b16 %v3029
  %v3226 = vunpack.c.l.b16 %v3030
  %v3227 = vunpack.c.l.b16 %v3031
  %v3228 = vunpack.c.l.b16 %v3032
  %v3229 = vunpack.c.l.b16 %v3033
  %v3230 = vunpack.c.l.b16 %v3034
  %v3231 = vunpack.c.l.b16 %v3035
  %v3232 = vunpack.c.l.b16 %v3036
  %v3233 = vunpack.c.l.b16 %v3037
  %v3234 = vunpack.c.l.b16 %v3038
  %v3235 = vunpack.c.l.b16 %v3039
  %v3236 = vunpack.c.l.b16 %v3040
  %v3237 = vunpack.c.l.b16 %v3041
  %v3238 = vunpack.c.l.b16 %v3042
  %v3239 = vunpack.c.l.b16 %v3043
  %v3240 = vunpack.c.l.b16 %v3044
  %v3241 = vunpack.c.l.b16 %v3045
  %v3242 = vunpack.c.l.b16 %v3046
  %v3243 = vunpack.c.l.b16 %v3047
  %v3244 = vunpack.c.l.b16 %v3048
  %v3245 = vunpack.c.l.b16 %v3049
  %v3246 = vunpack.c.l.b16 %v3050
  %v3247 = vunpack.c.l.b16 %v3051
  %v3248 = vunpack.c.l.b16 %v3052
  %v3249 = vunpack.c.l.b16 %v3053
  %v3250 = vunpack.c.l.b16 %v3054
  %v3251 = vunpack.c.l.b16 %v3055
  %v3252 = vunpack.c.l.b16 %v3056
  %v3253 = vunpack.c.l.b16 %v3057
  %v3254 = vunpack.c.l.b16 %v3058
  %v3255 = vunpack.c.l.b16 %v3059
  %v3256 = vunpack.c.l.b16 %v3060
  %v3257 = vunpack.c.l.b16 %v3061
  %v3258 = vunpack.c.l.b16 %v3062
  %v3259 = vunpack.c.l.b16 %v3063
  %v3260 = vunpack.c.l.b16 %v3064
  %v3261 = vunpack.c.l.b16 %v3065
  %v3262 = vunpack.c.l.b16 %v3066
  %v3263 = vunpack.c.l.b16 %v3067
  %v3264 = vunpack.c.l.b16 %v3068
  %v3265 = vunpack.c.l.b16 %v3069
  %v3266 = vunpack.c.l.b16 %v3070
  %v3267 = vunpack.c.l.b16 %v3071
  %v3268 = vunpack.c.l.b16 %v3072
  %v3269 = vunpack.c.l.b16 %v3073
  %v3270 = vunpack.c.l.b16 %v3074
  %v3271 = vunpack.c.l.b16 %v3075
  %v3272 = vunpack.c.l.b16 %v3076
  %v3273 = vunpack.c.l.b16 %v3077
  %v3274 = vunpack.c.l.b16 %v3078
  %v3275 = vunpack.c.l.b16 %v3079
  %v3276 = vunpack.c.l.b16 %v3080
  %v3277 = vunpack.c.l.b16 %v3081
  %v3278 = vunpack.c.l.b16 %v3082
  %v3279 = vunpack.c.l.b16 %v3083
  %v3280 = vunpack.c.l.b16 %v3084
  %v3281 = vunpack.c.l.b16 %v3085
  %v3282 = vunpack.c.l.b16 %v3086
  %v3283 = vpack.c.b16 %v3186, %v3185
  %v3284 = vpack.c.b16 %v3188, %v3187
  %v3285 = vpack.c.b16 %v3190, %v3189
  %v3286 = vpack.c.b16 %v3192, %v3191
  %v3287 = vpack.c.b16 %v3194, %v3193
  %v3288 = vpack.c.b16 %v3196, %v3195
  %v3289 = vpack.c.b16 %v3198, %v3197
  %v3290 = vpack.c.b16 %v3200, %v3199
  %v3291 = vpack.c.b16 %v3202, %v3201
  %v3292 = vpack.c.b16 %v3204, %v3203
  %v3293 = vpack.c.b16 %v3206, %v3205
  %v3294 = vpack.c.b16 %v3208, %v3207
  %v3295 = vpack.c.b16 %v3210, %v3209
  %v3296 = vpack.c.b16 %v3212, %v3211
  %v3297 = vpack.c.b16 %v3214, %v3213
  %v3298 = vpack.c.b16 %v3216, %v3215
  %v3299 = vpack.c.b16 %v3218, %v3217
  %v3300 = vpack.c.b16 %v3220, %v3219
  %v3301 = vpack.c.b16 %v3222, %v3221
  %v3302 = vpack.c.b16 %v3224, %v3223
  %v3303 = vpack.c.b16 %v3226, %v3225
  %v3304 = vpack.c.b16 %v3228, %v3227
  %v3305 = vpack.c.b16 %v3230, %v3229
  %v3306 = vpack.c.b16 %v3232, %v3231
  %v3307 = vpack.c.b16 %v3234, %v3233
  %v3308 = vpack.c.b16 %v3236, %v3235
  %v3309 = vpack.c.b16 %v3238, %v3237
  %v3310 = vpack.c.b16 %v3240, %v3239
  %v3311 = vpack.c.b16 %v3242, %v3241
  %v3312 = vpack.c.b16 %v3244, %v3243
  %v3313 = vpack.c.b16 %v3246, %v3245
  %v3314 = vpack.c.b16 %v3248, %v3247
  %v3315 = vpack.c.b16 %v3250, %v3249
  %v3316 = vpack.c.b16 %v3252, %v3251
  %v3317 = vpack.c.b16 %v3254, %v3253
  %v3318 = vpack.c.b16 %v3256, %v3255
  %v3319 = vpack.c.b16 %v3258, %v3257
  %v3320 = vpack.c.b16 %v3260, %v3259
  %v3321 = vpack.c.b16 %v3262, %v3261
  %v3322 = vpack.c.b16 %v3264, %v3263
  %v3323 = vpack.c.b16 %v3266, %v3265
  %v3324 = vpack.c.b16 %v3268, %v3267
  %v3325 = vpack.c.b16 %v3270, %v3269
  %v3326 = vpack.c.b16 %v3272, %v3271
  %v3327 = vpack.c.b16 %v3274, %v3273
  %v3328 = vpack.c.b16 %v3276, %v3275
  %v3329 = vpack.c.b16 %v3278, %v3277
  %v3330 = vpack.c.b16 %v3280, %v3279
  %v3331 = vpack.c.b16 %v3282, %v3281
  %v3333 = vsel %vm383, %v3283, 0
  %v3336 = vsel %vm383, %v3284, 0
  %v3339 = vsel %vm383, %v3285, 0
  %v3342 = vsel %vm383, %v3286, 0
  %v3345 = vsel %vm383, %v3287, 0
  %v3348 = vsel %vm383, %v3288, 0
  %v3351 = vsel %vm383, %v3289, 0
  %v3354 = vsel %vm383, %v3290, 0
  %v3357 = vsel %vm383, %v3291, 0
  %v3360 = vsel %vm383, %v3292, 0
  %v3363 = vsel %vm383, %v3293, 0
  %v3366 = vsel %vm383, %v3294, 0
  %v3369 = vsel %vm383, %v3295, 0
  %v3372 = vsel %vm383, %v3296, 0
  %v3375 = vsel %vm383, %v3297, 0
  %v3378 = vsel %vm383, %v3298, 0
  %v3381 = vsel %vm383, %v3299, 0
  %v3384 = vsel %vm383, %v3300, 0
  %v3387 = vsel %vm383, %v3301, 0
  %v3390 = vsel %vm383, %v3302, 0
  %v3393 = vsel %vm383, %v3303, 0
  %v3396 = vsel %vm383, %v3304, 0
  %v3399 = vsel %vm383, %v3305, 0
  %v3402 = vsel %vm383, %v3306, 0
  %v3405 = vsel %vm383, %v3307, 0
  %v3408 = vsel %vm383, %v3308, 0
  %v3411 = vsel %vm383, %v3309, 0
  %v3414 = vsel %vm383, %v3310, 0
  %v3417 = vsel %vm383, %v3311, 0
  %v3420 = vsel %vm383, %v3312, 0
  %v3423 = vsel %vm383, %v3313, 0
  %v3426 = vsel %vm383, %v3314, 0
  %v3429 = vsel %vm383, %v3315, 0
  %v3432 = vsel %vm383, %v3316, 0
  %v3435 = vsel %vm383, %v3317, 0
  %v3438 = vsel %vm383, %v3318, 0
  %v3441 = vsel %vm383, %v3319, 0
  %v3444 = vsel %vm383, %v3320, 0
  %v3447 = vsel %vm383, %v3321, 0
  %v3450 = vsel %vm383, %v3322, 0
  %v3453 = vsel %vm383, %v3323, 0
  %v3456 = vsel %vm383, %v3324, 0
  %v3459 = vsel %vm383, %v3325, 0
  %v3462 = vsel %vm383, %v3326, 0
  %v3465 = vsel %vm383, %v3327, 0
  %v3468 = vsel %vm383, %v3328, 0
  %v3471 = vsel %vm383, %v3329, 0
  %v3474 = vsel %vm383, %v3330, 0
  %v3477 = vsel %vm383, %v3331, 0
  %3479 = vmatprep.subr.bf16.mxu0 0
  %3480 = vmatpush1.bf16.msra.mxu0 %v536
  %3481 = vmatprep.subr.bf16.mxu0 0
  %3482 = vmatpush1.bf16.msra.mxu0 0
  %3483 = vmatprep.subr.bf16.mxu0 0
  %3484 = vmatpush1.bf16.msra.mxu0 0
  %3485 = vmatprep.subr.bf16.mxu0 0
  %3486 = vmatpush1.bf16.msra.mxu0 0
  %3487 = vmatprep.subr.bf16.mxu0 0
  %3488 = vmatpush1.bf16.msra.mxu0 0
  %3489 = vmatprep.subr.bf16.mxu0 0
  %3490 = vmatpush1.bf16.msra.mxu0 0
  %3491 = vmatprep.subr.bf16.mxu0 0
  %3492 = vmatpush1.bf16.msra.mxu0 0
  %3493 = vmatprep.subr.bf16.mxu0 0
  %3494 = vmatpush1.bf16.msra.mxu0 0
  %3495 = vmatprep.subr.bf16.mxu0 0
  %3496 = vmatpush1.bf16.msra.mxu0 0
  %3497 = vmatprep.subr.bf16.mxu0 0
  %3498 = vmatpush1.bf16.msra.mxu0 0
  %3499 = vmatprep.subr.bf16.mxu0 0
  %3500 = vmatpush1.bf16.msra.mxu0 0
  %3501 = vmatprep.subr.bf16.mxu0 0
  %3502 = vmatpush1.bf16.msra.mxu0 0
  %3503 = vmatprep.subr.bf16.mxu0 0
  %3504 = vmatpush1.bf16.msra.mxu0 0
  %3505 = vmatprep.subr.bf16.mxu0 0
  %3506 = vmatpush1.bf16.msra.mxu0 0
  %3507 = vmatprep.subr.bf16.mxu0 0
  %3508 = vmatpush1.bf16.msra.mxu0 0
  %3509 = vmatprep.subr.bf16.mxu0 0
  %3510 = vmatpush1.bf16.msra.mxu0 0
  %3511 = vmatprep.mubr.bf16.mxu0 0
  %3512 = vmatmul.mubr.bf16.gmra.mrb[0].mxu0 %v3333
  %v3513 = vpop.f32.mrb[0].mxu0
  %v3514 = vadd.f32 0.0, %v3513
  %v3515 = vpop.f32.mrb[0].mxu0
  %v3516 = vpop.f32.mrb[0].mxu0
  %v3517 = vadd.f32 0.0, %v3516
  %v3518 = vpop.f32.mrb[0].mxu0
  %3519 = vmatprep.mubr.bf16.mxu0 0
  %3520 = vmatmul.mubr.bf16.gmra.mrb[0].mxu0 %v3336
  %v3521 = vpop.f32.mrb[0].mxu0
  %v3522 = vadd.f32 0.0, %v3521
  %v3523 = vpop.f32.mrb[0].mxu0
  %v3524 = vpop.f32.mrb[0].mxu0
  %v3525 = vadd.f32 0.0, %v3524
  %v3526 = vpop.f32.mrb[0].mxu0
  %3527 = vmatprep.mubr.bf16.mxu0 0
  %3528 = vmatmul.mubr.bf16.gmra.mrb[0].mxu0 %v3339
  %v3529 = vpop.f32.mrb[0].mxu0
  %v3530 = vadd.f32 0.0, %v3529
  %v3531 = vpop.f32.mrb[0].mxu0
  %v3532 = vpop.f32.mrb[0].mxu0
  %v3533 = vadd.f32 0.0, %v3532
  %v3534 = vpop.f32.mrb[0].mxu0
  %3535 = vmatprep.mubr.bf16.mxu0 0
  %3536 = vmatmul.mubr.bf16.gmra.mrb[0].mxu0 %v3342
  %v3537 = vpop.f32.mrb[0].mxu0
  %v3538 = vadd.f32 0.0, %v3537
  %v3539 = vpop.f32.mrb[0].mxu0
  %v3540 = vpop.f32.mrb[0].mxu0
  %v3541 = vadd.f32 0.0, %v3540
  %v3542 = vpop.f32.mrb[0].mxu0
  %3543 = vmatprep.mubr.bf16.mxu0 0
  %3544 = vmatmul.mubr.bf16.gmra.mrb[0].mxu0 %v3345
  %v3545 = vpop.f32.mrb[0].mxu0
  %v3546 = vadd.f32 0.0, %v3545
  %v3547 = vpop.f32.mrb[0].mxu0
  %v3548 = vpop.f32.mrb[0].mxu0
  %v3549 = vadd.f32 0.0, %v3548
  %v3550 = vpop.f32.mrb[0].mxu0
  %3551 = vmatprep.mubr.bf16.mxu0 0
  %3552 = vmatmul.mubr.bf16.gmra.mrb[0].mxu0 %v3348
  %v3553 = vpop.f32.mrb[0].mxu0
  %v3554 = vadd.f32 0.0, %v3553
  %v3555 = vpop.f32.mrb[0].mxu0
  %v3556 = vpop.f32.mrb[0].mxu0
  %v3557 = vadd.f32 0.0, %v3556
  %v3558 = vpop.f32.mrb[0].mxu0
  %3559 = vmatprep.mubr.bf16.mxu0 0
  %3560 = vmatmul.mubr.bf16.gmra.mrb[0].mxu0 %v3351
  %v3561 = vpop.f32.mrb[0].mxu0
  %v3562 = vadd.f32 0.0, %v3561
  %v3563 = vpop.f32.mrb[0].mxu0
  %v3564 = vpop.f32.mrb[0].mxu0
  %v3565 = vadd.f32 0.0, %v3564
  %v3566 = vpop.f32.mrb[0].mxu0
  %3567 = vmatprep.mubr.bf16.mxu0 0
  %3568 = vmatmul.mubr.bf16.gmra.mrb[0].mxu0 %v3354
  %v3569 = vpop.f32.mrb[0].mxu0
  %v3570 = vadd.f32 0.0, %v3569
  %v3571 = vpop.f32.mrb[0].mxu0
  %v3572 = vpop.f32.mrb[0].mxu0
  %v3573 = vadd.f32 0.0, %v3572
  %v3574 = vpop.f32.mrb[0].mxu0
  %3575 = vmatprep.mubr.bf16.mxu0 0
  %3576 = vmatmul.mubr.bf16.gmra.mrb[0].mxu0 %v3357
  %v3577 = vpop.f32.mrb[0].mxu0
  %v3578 = vadd.f32 0.0, %v3577
  %v3579 = vpop.f32.mrb[0].mxu0
  %v3580 = vpop.f32.mrb[0].mxu0
  %v3581 = vadd.f32 0.0, %v3580
  %v3582 = vpop.f32.mrb[0].mxu0
  %3583 = vmatprep.mubr.bf16.mxu0 0
  %3584 = vmatmul.mubr.bf16.gmra.mrb[0].mxu0 %v3360
  %v3585 = vpop.f32.mrb[0].mxu0
  %v3586 = vadd.f32 0.0, %v3585
  %v3587 = vpop.f32.mrb[0].mxu0
  %v3588 = vpop.f32.mrb[0].mxu0
  %v3589 = vadd.f32 0.0, %v3588
  %v3590 = vpop.f32.mrb[0].mxu0
  %3591 = vmatprep.mubr.bf16.mxu0 0
  %3592 = vmatmul.mubr.bf16.gmra.mrb[0].mxu0 %v3363
  %v3593 = vpop.f32.mrb[0].mxu0
  %v3594 = vadd.f32 0.0, %v3593
  %v3595 = vpop.f32.mrb[0].mxu0
  %v3596 = vpop.f32.mrb[0].mxu0
  %v3597 = vadd.f32 0.0, %v3596
  %v3598 = vpop.f32.mrb[0].mxu0
  %3599 = vmatprep.mubr.bf16.mxu0 0
  %3600 = vmatmul.mubr.bf16.gmra.mrb[0].mxu0 %v3366
  %v3601 = vpop.f32.mrb[0].mxu0
  %v3602 = vadd.f32 0.0, %v3601
  %v3603 = vpop.f32.mrb[0].mxu0
  %v3604 = vpop.f32.mrb[0].mxu0
  %v3605 = vadd.f32 0.0, %v3604
  %v3606 = vpop.f32.mrb[0].mxu0
  %3607 = vmatprep.mubr.bf16.mxu0 0
  %3608 = vmatmul.mubr.bf16.gmra.mrb[0].mxu0 %v3369
  %v3609 = vpop.f32.mrb[0].mxu0
  %v3610 = vadd.f32 0.0, %v3609
  %v3611 = vpop.f32.mrb[0].mxu0
  %v3612 = vpop.f32.mrb[0].mxu0
  %v3613 = vadd.f32 0.0, %v3612
  %v3614 = vpop.f32.mrb[0].mxu0
  %3615 = vmatprep.mubr.bf16.mxu0 0
  %3616 = vmatmul.mubr.bf16.gmra.mrb[0].mxu0 %v3372
  %v3617 = vpop.f32.mrb[0].mxu0
  %v3618 = vadd.f32 0.0, %v3617
  %v3619 = vpop.f32.mrb[0].mxu0
  %v3620 = vpop.f32.mrb[0].mxu0
  %v3621 = vadd.f32 0.0, %v3620
  %v3622 = vpop.f32.mrb[0].mxu0
  %3623 = vmatprep.mubr.bf16.mxu0 0
  %3624 = vmatmul.mubr.bf16.gmra.mrb[0].mxu0 %v3375
  %v3625 = vpop.f32.mrb[0].mxu0
  %v3626 = vadd.f32 0.0, %v3625
  %v3627 = vpop.f32.mrb[0].mxu0
  %v3628 = vpop.f32.mrb[0].mxu0
  %v3629 = vadd.f32 0.0, %v3628
  %v3630 = vpop.f32.mrb[0].mxu0
  %3631 = vmatprep.mubr.bf16.mxu0 0
  %3632 = vmatmul.mubr.bf16.gmra.mrb[0].mxu0 %v3378
  %v3633 = vpop.f32.mrb[0].mxu0
  %v3634 = vadd.f32 0.0, %v3633
  %v3635 = vpop.f32.mrb[0].mxu0
  %v3636 = vpop.f32.mrb[0].mxu0
  %v3637 = vadd.f32 0.0, %v3636
  %v3638 = vpop.f32.mrb[0].mxu0
  %3639 = vmatprep.mubr.bf16.mxu0 0
  %3640 = vmatmul.mubr.bf16.gmra.mrb[0].mxu0 %v3381
  %v3641 = vpop.f32.mrb[0].mxu0
  %v3642 = vadd.f32 0.0, %v3641
  %v3643 = vpop.f32.mrb[0].mxu0
  %v3644 = vpop.f32.mrb[0].mxu0
  %v3645 = vadd.f32 0.0, %v3644
  %v3646 = vpop.f32.mrb[0].mxu0
  %3647 = vmatprep.mubr.bf16.mxu0 0
  %3648 = vmatmul.mubr.bf16.gmra.mrb[0].mxu0 %v3384
  %v3649 = vpop.f32.mrb[0].mxu0
  %v3650 = vadd.f32 0.0, %v3649
  %v3651 = vpop.f32.mrb[0].mxu0
  %v3652 = vpop.f32.mrb[0].mxu0
  %v3653 = vadd.f32 0.0, %v3652
  %v3654 = vpop.f32.mrb[0].mxu0
  %3655 = vmatprep.mubr.bf16.mxu0 0
  %3656 = vmatmul.mubr.bf16.gmra.mrb[0].mxu0 %v3387
  %v3657 = vpop.f32.mrb[0].mxu0
  %v3658 = vadd.f32 0.0, %v3657
  %v3659 = vpop.f32.mrb[0].mxu0
  %v3660 = vpop.f32.mrb[0].mxu0
  %v3661 = vadd.f32 0.0, %v3660
  %v3662 = vpop.f32.mrb[0].mxu0
  %3663 = vmatprep.mubr.bf16.mxu0 0
  %3664 = vmatmul.mubr.bf16.gmra.mrb[0].mxu0 %v3390
  %v3665 = vpop.f32.mrb[0].mxu0
  %v3666 = vadd.f32 0.0, %v3665
  %v3667 = vpop.f32.mrb[0].mxu0
  %v3668 = vpop.f32.mrb[0].mxu0
  %v3669 = vadd.f32 0.0, %v3668
  %v3670 = vpop.f32.mrb[0].mxu0
  %3671 = vmatprep.mubr.bf16.mxu0 0
  %3672 = vmatmul.mubr.bf16.gmra.mrb[0].mxu0 %v3393
  %v3673 = vpop.f32.mrb[0].mxu0
  %v3674 = vadd.f32 0.0, %v3673
  %v3675 = vpop.f32.mrb[0].mxu0
  %v3676 = vpop.f32.mrb[0].mxu0
  %v3677 = vadd.f32 0.0, %v3676
  %v3678 = vpop.f32.mrb[0].mxu0
  %3679 = vmatprep.mubr.bf16.mxu0 0
  %3680 = vmatmul.mubr.bf16.gmra.mrb[0].mxu0 %v3396
  %v3681 = vpop.f32.mrb[0].mxu0
  %v3682 = vadd.f32 0.0, %v3681
  %v3683 = vpop.f32.mrb[0].mxu0
  %v3684 = vpop.f32.mrb[0].mxu0
  %v3685 = vadd.f32 0.0, %v3684
  %v3686 = vpop.f32.mrb[0].mxu0
  %3687 = vmatprep.mubr.bf16.mxu0 0
  %3688 = vmatmul.mubr.bf16.gmra.mrb[0].mxu0 %v3399
  %v3689 = vpop.f32.mrb[0].mxu0
  %v3690 = vadd.f32 0.0, %v3689
  %v3691 = vpop.f32.mrb[0].mxu0
  %v3692 = vpop.f32.mrb[0].mxu0
  %v3693 = vadd.f32 0.0, %v3692
  %v3694 = vpop.f32.mrb[0].mxu0
  %3695 = vmatprep.mubr.bf16.mxu0 0
  %3696 = vmatmul.mubr.bf16.gmra.mrb[0].mxu0 %v3402
  %v3697 = vpop.f32.mrb[0].mxu0
  %v3698 = vadd.f32 0.0, %v3697
  %v3699 = vpop.f32.mrb[0].mxu0
  %v3700 = vpop.f32.mrb[0].mxu0
  %v3701 = vadd.f32 0.0, %v3700
  %v3702 = vpop.f32.mrb[0].mxu0
  %3703 = vmatprep.mubr.bf16.mxu0 0
  %3704 = vmatmul.mubr.bf16.gmra.mrb[0].mxu0 %v3405
  %v3705 = vpop.f32.mrb[0].mxu0
  %v3706 = vadd.f32 0.0, %v3705
  %v3707 = vpop.f32.mrb[0].mxu0
  %v3708 = vpop.f32.mrb[0].mxu0
  %v3709 = vadd.f32 0.0, %v3708
  %v3710 = vpop.f32.mrb[0].mxu0
  %3711 = vmatprep.mubr.bf16.mxu0 0
  %3712 = vmatmul.mubr.bf16.gmra.mrb[0].mxu0 %v3408
  %v3713 = vpop.f32.mrb[0].mxu0
  %v3714 = vadd.f32 0.0, %v3713
  %v3715 = vpop.f32.mrb[0].mxu0
  %v3716 = vpop.f32.mrb[0].mxu0
  %v3717 = vadd.f32 0.0, %v3716
  %v3718 = vpop.f32.mrb[0].mxu0
  %3719 = vmatprep.mubr.bf16.mxu0 0
  %3720 = vmatmul.mubr.bf16.gmra.mrb[0].mxu0 %v3411
  %v3721 = vpop.f32.mrb[0].mxu0
  %v3722 = vadd.f32 0.0, %v3721
  %v3723 = vpop.f32.mrb[0].mxu0
  %v3724 = vpop.f32.mrb[0].mxu0
  %v3725 = vadd.f32 0.0, %v3724
  %v3726 = vpop.f32.mrb[0].mxu0
  %3727 = vmatprep.mubr.bf16.mxu0 0
  %3728 = vmatmul.mubr.bf16.gmra.mrb[0].mxu0 %v3414
  %v3729 = vpop.f32.mrb[0].mxu0
  %v3730 = vadd.f32 0.0, %v3729
  %v3731 = vpop.f32.mrb[0].mxu0
  %v3732 = vpop.f32.mrb[0].mxu0
  %v3733 = vadd.f32 0.0, %v3732
  %v3734 = vpop.f32.mrb[0].mxu0
  %3735 = vmatprep.mubr.bf16.mxu0 0
  %3736 = vmatmul.mubr.bf16.gmra.mrb[0].mxu0 %v3417
  %v3737 = vpop.f32.mrb[0].mxu0
  %v3738 = vadd.f32 0.0, %v3737
  %v3739 = vpop.f32.mrb[0].mxu0
  %v3740 = vpop.f32.mrb[0].mxu0
  %v3741 = vadd.f32 0.0, %v3740
  %v3742 = vpop.f32.mrb[0].mxu0
  %3743 = vmatprep.mubr.bf16.mxu0 0
  %3744 = vmatmul.mubr.bf16.gmra.mrb[0].mxu0 %v3420
  %v3745 = vpop.f32.mrb[0].mxu0
  %v3746 = vadd.f32 0.0, %v3745
  %v3747 = vpop.f32.mrb[0].mxu0
  %v3748 = vpop.f32.mrb[0].mxu0
  %v3749 = vadd.f32 0.0, %v3748
  %v3750 = vpop.f32.mrb[0].mxu0
  %3751 = vmatprep.mubr.bf16.mxu0 0
  %3752 = vmatmul.mubr.bf16.gmra.mrb[0].mxu0 %v3423
  %v3753 = vpop.f32.mrb[0].mxu0
  %v3754 = vadd.f32 0.0, %v3753
  %v3755 = vpop.f32.mrb[0].mxu0
  %v3756 = vpop.f32.mrb[0].mxu0
  %v3757 = vadd.f32 0.0, %v3756
  %v3758 = vpop.f32.mrb[0].mxu0
  %3759 = vmatprep.mubr.bf16.mxu0 0
  %3760 = vmatmul.mubr.bf16.gmra.mrb[0].mxu0 %v3426
  %v3761 = vpop.f32.mrb[0].mxu0
  %v3762 = vadd.f32 0.0, %v3761
  %v3763 = vpop.f32.mrb[0].mxu0
  %v3764 = vpop.f32.mrb[0].mxu0
  %v3765 = vadd.f32 0.0, %v3764
  %v3766 = vpop.f32.mrb[0].mxu0
  %3767 = vmatprep.mubr.bf16.mxu0 0
  %3768 = vmatmul.mubr.bf16.gmra.mrb[0].mxu0 %v3429
  %v3769 = vpop.f32.mrb[0].mxu0
  %v3770 = vadd.f32 0.0, %v3769
  %v3771 = vpop.f32.mrb[0].mxu0
  %v3772 = vpop.f32.mrb[0].mxu0
  %v3773 = vadd.f32 0.0, %v3772
  %v3774 = vpop.f32.mrb[0].mxu0
  %3775 = vmatprep.mubr.bf16.mxu0 0
  %3776 = vmatmul.mubr.bf16.gmra.mrb[0].mxu0 %v3432
  %v3777 = vpop.f32.mrb[0].mxu0
  %v3778 = vadd.f32 0.0, %v3777
  %v3779 = vpop.f32.mrb[0].mxu0
  %v3780 = vpop.f32.mrb[0].mxu0
  %v3781 = vadd.f32 0.0, %v3780
  %v3782 = vpop.f32.mrb[0].mxu0
  %3783 = vmatprep.mubr.bf16.mxu0 0
  %3784 = vmatmul.mubr.bf16.gmra.mrb[0].mxu0 %v3435
  %v3785 = vpop.f32.mrb[0].mxu0
  %v3786 = vadd.f32 0.0, %v3785
  %v3787 = vpop.f32.mrb[0].mxu0
  %v3788 = vpop.f32.mrb[0].mxu0
  %v3789 = vadd.f32 0.0, %v3788
  %v3790 = vpop.f32.mrb[0].mxu0
  %3791 = vmatprep.mubr.bf16.mxu0 0
  %3792 = vmatmul.mubr.bf16.gmra.mrb[0].mxu0 %v3438
  %v3793 = vpop.f32.mrb[0].mxu0
  %v3794 = vadd.f32 0.0, %v3793
  %v3795 = vpop.f32.mrb[0].mxu0
  %v3796 = vpop.f32.mrb[0].mxu0
  %v3797 = vadd.f32 0.0, %v3796
  %v3798 = vpop.f32.mrb[0].mxu0
  %3799 = vmatprep.mubr.bf16.mxu0 0
  %3800 = vmatmul.mubr.bf16.gmra.mrb[0].mxu0 %v3441
  %v3801 = vpop.f32.mrb[0].mxu0
  %v3802 = vadd.f32 0.0, %v3801
  %v3803 = vpop.f32.mrb[0].mxu0
  %v3804 = vpop.f32.mrb[0].mxu0
  %v3805 = vadd.f32 0.0, %v3804
  %v3806 = vpop.f32.mrb[0].mxu0
  %3807 = vmatprep.mubr.bf16.mxu0 0
  %3808 = vmatmul.mubr.bf16.gmra.mrb[0].mxu0 %v3444
  %v3809 = vpop.f32.mrb[0].mxu0
  %v3810 = vadd.f32 0.0, %v3809
  %v3811 = vpop.f32.mrb[0].mxu0
  %v3812 = vpop.f32.mrb[0].mxu0
  %v3813 = vadd.f32 0.0, %v3812
  %v3814 = vpop.f32.mrb[0].mxu0
  %3815 = vmatprep.mubr.bf16.mxu0 0
  %3816 = vmatmul.mubr.bf16.gmra.mrb[0].mxu0 %v3447
  %v3817 = vpop.f32.mrb[0].mxu0
  %v3818 = vadd.f32 0.0, %v3817
  %v3819 = vpop.f32.mrb[0].mxu0
  %v3820 = vpop.f32.mrb[0].mxu0
  %v3821 = vadd.f32 0.0, %v3820
  %v3822 = vpop.f32.mrb[0].mxu0
  %3823 = vmatprep.mubr.bf16.mxu0 0
  %3824 = vmatmul.mubr.bf16.gmra.mrb[0].mxu0 %v3450
  %v3825 = vpop.f32.mrb[0].mxu0
  %v3826 = vadd.f32 0.0, %v3825
  %v3827 = vpop.f32.mrb[0].mxu0
  %v3828 = vpop.f32.mrb[0].mxu0
  %v3829 = vadd.f32 0.0, %v3828
  %v3830 = vpop.f32.mrb[0].mxu0
  %3831 = vmatprep.mubr.bf16.mxu0 0
  %3832 = vmatmul.mubr.bf16.gmra.mrb[0].mxu0 %v3453
  %v3833 = vpop.f32.mrb[0].mxu0
  %v3834 = vadd.f32 0.0, %v3833
  %v3835 = vpop.f32.mrb[0].mxu0
  %v3836 = vpop.f32.mrb[0].mxu0
  %v3837 = vadd.f32 0.0, %v3836
  %v3838 = vpop.f32.mrb[0].mxu0
  %3839 = vmatprep.mubr.bf16.mxu0 0
  %3840 = vmatmul.mubr.bf16.gmra.mrb[0].mxu0 %v3456
  %v3841 = vpop.f32.mrb[0].mxu0
  %v3842 = vadd.f32 0.0, %v3841
  %v3843 = vpop.f32.mrb[0].mxu0
  %v3844 = vpop.f32.mrb[0].mxu0
  %v3845 = vadd.f32 0.0, %v3844
  %v3846 = vpop.f32.mrb[0].mxu0
  %3847 = vmatprep.mubr.bf16.mxu0 0
  %3848 = vmatmul.mubr.bf16.gmra.mrb[0].mxu0 %v3459
  %v3849 = vpop.f32.mrb[0].mxu0
  %v3850 = vadd.f32 0.0, %v3849
  %v3851 = vpop.f32.mrb[0].mxu0
  %v3852 = vpop.f32.mrb[0].mxu0
  %v3853 = vadd.f32 0.0, %v3852
  %v3854 = vpop.f32.mrb[0].mxu0
  %3855 = vmatprep.mubr.bf16.mxu0 0
  %3856 = vmatmul.mubr.bf16.gmra.mrb[0].mxu0 %v3462
  %v3857 = vpop.f32.mrb[0].mxu0
  %v3858 = vadd.f32 0.0, %v3857
  %v3859 = vpop.f32.mrb[0].mxu0
  %v3860 = vpop.f32.mrb[0].mxu0
  %v3861 = vadd.f32 0.0, %v3860
  %v3862 = vpop.f32.mrb[0].mxu0
  %3863 = vmatprep.mubr.bf16.mxu0 0
  %3864 = vmatmul.mubr.bf16.gmra.mrb[0].mxu0 %v3465
  %v3865 = vpop.f32.mrb[0].mxu0
  %v3866 = vadd.f32 0.0, %v3865
  %v3867 = vpop.f32.mrb[0].mxu0
  %v3868 = vpop.f32.mrb[0].mxu0
  %v3869 = vadd.f32 0.0, %v3868
  %v3870 = vpop.f32.mrb[0].mxu0
  %3871 = vmatprep.mubr.bf16.mxu0 0
  %3872 = vmatmul.mubr.bf16.gmra.mrb[0].mxu0 %v3468
  %v3873 = vpop.f32.mrb[0].mxu0
  %v3874 = vadd.f32 0.0, %v3873
  %v3875 = vpop.f32.mrb[0].mxu0
  %v3876 = vpop.f32.mrb[0].mxu0
  %v3877 = vadd.f32 0.0, %v3876
  %v3878 = vpop.f32.mrb[0].mxu0
  %3879 = vmatprep.mubr.bf16.mxu0 0
  %3880 = vmatmul.mubr.bf16.gmra.mrb[0].mxu0 %v3471
  %v3881 = vpop.f32.mrb[0].mxu0
  %v3882 = vadd.f32 0.0, %v3881
  %v3883 = vpop.f32.mrb[0].mxu0
  %v3884 = vpop.f32.mrb[0].mxu0
  %v3885 = vadd.f32 0.0, %v3884
  %v3886 = vpop.f32.mrb[0].mxu0
  %3887 = vmatprep.mubr.bf16.mxu0 0
  %3888 = vmatmul.mubr.bf16.gmra.mrb[0].mxu0 %v3474
  %v3889 = vpop.f32.mrb[0].mxu0
  %v3890 = vadd.f32 0.0, %v3889
  %v3891 = vpop.f32.mrb[0].mxu0
  %v3892 = vpop.f32.mrb[0].mxu0
  %v3893 = vadd.f32 0.0, %v3892
  %v3894 = vpop.f32.mrb[0].mxu0
  %3895 = vmatprep.mubr.bf16.mxu0 0
  %3896 = vmatmul.mubr.bf16.gmra.mrb[0].mxu0 %v3477
  %v3897 = vpop.f32.mrb[0].mxu0
  %v3898 = vadd.f32 0.0, %v3897
  %v3899 = vpop.f32.mrb[0].mxu0
  %v3900 = vpop.f32.mrb[0].mxu0
  %v3901 = vadd.f32 0.0, %v3900
  %v3902 = vpop.f32.mrb[0].mxu0
  %3903 = vdwg.mxu0
  %v3904 = vmax.f32 %v2891, %v3514
  %v3905 = vmax.f32 %v2892, %v3517
  %v3906 = vmax.f32 %v2893, %v3522
  %v3907 = vmax.f32 %v2894, %v3525
  %v3908 = vmax.f32 %v2895, %v3530
  %v3909 = vmax.f32 %v2896, %v3533
  %v3910 = vmax.f32 %v2897, %v3538
  %v3911 = vmax.f32 %v2898, %v3541
  %v3912 = vmax.f32 %v2899, %v3546
  %v3913 = vmax.f32 %v2900, %v3549
  %v3914 = vmax.f32 %v2901, %v3554
  %v3915 = vmax.f32 %v2902, %v3557
  %v3916 = vmax.f32 %v2903, %v3562
  %v3917 = vmax.f32 %v2904, %v3565
  %v3918 = vmax.f32 %v2905, %v3570
  %v3919 = vmax.f32 %v2906, %v3573
  %v3920 = vmax.f32 %v2907, %v3578
  %v3921 = vmax.f32 %v2908, %v3581
  %v3922 = vmax.f32 %v2909, %v3586
  %v3923 = vmax.f32 %v2910, %v3589
  %v3924 = vmax.f32 %v2911, %v3594
  %v3925 = vmax.f32 %v2912, %v3597
  %v3926 = vmax.f32 %v2913, %v3602
  %v3927 = vmax.f32 %v2914, %v3605
  %v3928 = vmax.f32 %v2915, %v3610
  %v3929 = vmax.f32 %v2916, %v3613
  %v3930 = vmax.f32 %v2917, %v3618
  %v3931 = vmax.f32 %v2918, %v3621
  %v3932 = vmax.f32 %v2919, %v3626
  %v3933 = vmax.f32 %v2920, %v3629
  %v3934 = vmax.f32 %v2921, %v3634
  %v3935 = vmax.f32 %v2922, %v3637
  %v3936 = vmax.f32 %v2923, %v3642
  %v3937 = vmax.f32 %v2924, %v3645
  %v3938 = vmax.f32 %v2925, %v3650
  %v3939 = vmax.f32 %v2926, %v3653
  %v3940 = vmax.f32 %v2927, %v3658
  %v3941 = vmax.f32 %v2928, %v3661
  %v3942 = vmax.f32 %v2929, %v3666
  %v3943 = vmax.f32 %v2930, %v3669
  %v3944 = vmax.f32 %v2931, %v3674
  %v3945 = vmax.f32 %v2932, %v3677
  %v3946 = vmax.f32 %v2933, %v3682
  %v3947 = vmax.f32 %v2934, %v3685
  %v3948 = vmax.f32 %v2935, %v3690
  %v3949 = vmax.f32 %v2936, %v3693
  %v3950 = vmax.f32 %v2937, %v3698
  %v3951 = vmax.f32 %v2938, %v3701
  %v3952 = vmax.f32 %v2939, %v3706
  %v3953 = vmax.f32 %v2940, %v3709
  %v3954 = vmax.f32 %v2941, %v3714
  %v3955 = vmax.f32 %v2942, %v3717
  %v3956 = vmax.f32 %v2943, %v3722
  %v3957 = vmax.f32 %v2944, %v3725
  %v3958 = vmax.f32 %v2945, %v3730
  %v3959 = vmax.f32 %v2946, %v3733
  %v3960 = vmax.f32 %v2947, %v3738
  %v3961 = vmax.f32 %v2948, %v3741
  %v3962 = vmax.f32 %v2949, %v3746
  %v3963 = vmax.f32 %v2950, %v3749
  %v3964 = vmax.f32 %v2951, %v3754
  %v3965 = vmax.f32 %v2952, %v3757
  %v3966 = vmax.f32 %v2953, %v3762
  %v3967 = vmax.f32 %v2954, %v3765
  %v3968 = vmax.f32 %v2955, %v3770
  %v3969 = vmax.f32 %v2956, %v3773
  %v3970 = vmax.f32 %v2957, %v3778
  %v3971 = vmax.f32 %v2958, %v3781
  %v3972 = vmax.f32 %v2959, %v3786
  %v3973 = vmax.f32 %v2960, %v3789
  %v3974 = vmax.f32 %v2961, %v3794
  %v3975 = vmax.f32 %v2962, %v3797
  %v3976 = vmax.f32 %v2963, %v3802
  %v3977 = vmax.f32 %v2964, %v3805
  %v3978 = vmax.f32 %v2965, %v3810
  %v3979 = vmax.f32 %v2966, %v3813
  %v3980 = vmax.f32 %v2967, %v3818
  %v3981 = vmax.f32 %v2968, %v3821
  %v3982 = vmax.f32 %v2969, %v3826
  %v3983 = vmax.f32 %v2970, %v3829
  %v3984 = vmax.f32 %v2971, %v3834
  %v3985 = vmax.f32 %v2972, %v3837
  %v3986 = vmax.f32 %v2973, %v3842
  %v3987 = vmax.f32 %v2974, %v3845
  %v3988 = vmax.f32 %v2975, %v3850
  %v3989 = vmax.f32 %v2976, %v3853
  %v3990 = vmax.f32 %v2977, %v3858
  %v3991 = vmax.f32 %v2978, %v3861
  %v3992 = vmax.f32 %v2979, %v3866
  %v3993 = vmax.f32 %v2980, %v3869
  %v3994 = vmax.f32 %v2981, %v3874
  %v3995 = vmax.f32 %v2982, %v3877
  %v3996 = vmax.f32 %v2983, %v3882
  %v3997 = vmax.f32 %v2984, %v3885
  %v3998 = vmax.f32 %v2985, %v3890
  %v3999 = vmax.f32 %v2986, %v3893
  %v4000 = vmax.f32 %v2987, %v3898
  %v4001 = vmax.f32 %v2988, %v3901
  %v4002 = vld [vmem:[%s2] sm:$0x1]
  %v4004 = vlaneseq
  %v4005 = vshrl.u32 %v4004, 7
  %v4006 = vsub.s32 0, %v4005
  %v4007 = vrot.slane %v4002, %v4006
  %v4009 = vadd.f32 %v3904, %v4007
  %v4010 = vadd.f32 %v3905, %v4007
  %v4011 = vadd.f32 %v3906, %v4007
  %v4012 = vadd.f32 %v3907, %v4007
  %v4013 = vadd.f32 %v3908, %v4007
  %v4014 = vadd.f32 %v3909, %v4007
  %v4015 = vadd.f32 %v3910, %v4007
  %v4016 = vadd.f32 %v3911, %v4007
  %v4017 = vadd.f32 %v3912, %v4007
  %v4018 = vadd.f32 %v3913, %v4007
  %v4019 = vadd.f32 %v3914, %v4007
  %v4020 = vadd.f32 %v3915, %v4007
  %v4021 = vadd.f32 %v3916, %v4007
  %v4022 = vadd.f32 %v3917, %v4007
  %v4023 = vadd.f32 %v3918, %v4007
  %v4024 = vadd.f32 %v3919, %v4007
  %v4025 = vadd.f32 %v3920, %v4007
  %v4026 = vadd.f32 %v3921, %v4007
  %v4027 = vadd.f32 %v3922, %v4007
  %v4028 = vadd.f32 %v3923, %v4007
  %v4029 = vadd.f32 %v3924, %v4007
  %v4030 = vadd.f32 %v3925, %v4007
  %v4031 = vadd.f32 %v3926, %v4007
  %v4032 = vadd.f32 %v3927, %v4007
  %v4033 = vadd.f32 %v3928, %v4007
  %v4034 = vadd.f32 %v3929, %v4007
  %v4035 = vadd.f32 %v3930, %v4007
  %v4036 = vadd.f32 %v3931, %v4007
  %v4037 = vadd.f32 %v3932, %v4007
  %v4038 = vadd.f32 %v3933, %v4007
  %v4039 = vadd.f32 %v3934, %v4007
  %v4040 = vadd.f32 %v3935, %v4007
  %v4041 = vadd.f32 %v3936, %v4007
  %v4042 = vadd.f32 %v3937, %v4007
  %v4043 = vadd.f32 %v3938, %v4007
  %v4044 = vadd.f32 %v3939, %v4007
  %v4045 = vadd.f32 %v3940, %v4007
  %v4046 = vadd.f32 %v3941, %v4007
  %v4047 = vadd.f32 %v3942, %v4007
  %v4048 = vadd.f32 %v3943, %v4007
  %v4049 = vadd.f32 %v3944, %v4007
  %v4050 = vadd.f32 %v3945, %v4007
  %v4051 = vadd.f32 %v3946, %v4007
  %v4052 = vadd.f32 %v3947, %v4007
  %v4053 = vadd.f32 %v3948, %v4007
  %v4054 = vadd.f32 %v3949, %v4007
  %v4055 = vadd.f32 %v3950, %v4007
  %v4056 = vadd.f32 %v3951, %v4007
  %v4057 = vadd.f32 %v3952, %v4007
  %v4058 = vadd.f32 %v3953, %v4007
  %v4059 = vadd.f32 %v3954, %v4007
  %v4060 = vadd.f32 %v3955, %v4007
  %v4061 = vadd.f32 %v3956, %v4007
  %v4062 = vadd.f32 %v3957, %v4007
  %v4063 = vadd.f32 %v3958, %v4007
  %v4064 = vadd.f32 %v3959, %v4007
  %v4065 = vadd.f32 %v3960, %v4007
  %v4066 = vadd.f32 %v3961, %v4007
  %v4067 = vadd.f32 %v3962, %v4007
  %v4068 = vadd.f32 %v3963, %v4007
  %v4069 = vadd.f32 %v3964, %v4007
  %v4070 = vadd.f32 %v3965, %v4007
  %v4071 = vadd.f32 %v3966, %v4007
  %v4072 = vadd.f32 %v3967, %v4007
  %v4073 = vadd.f32 %v3968, %v4007
  %v4074 = vadd.f32 %v3969, %v4007
  %v4075 = vadd.f32 %v3970, %v4007
  %v4076 = vadd.f32 %v3971, %v4007
  %v4077 = vadd.f32 %v3972, %v4007
  %v4078 = vadd.f32 %v3973, %v4007
  %v4079 = vadd.f32 %v3974, %v4007
  %v4080 = vadd.f32 %v3975, %v4007
  %v4081 = vadd.f32 %v3976, %v4007
  %v4082 = vadd.f32 %v3977, %v4007
  %v4083 = vadd.f32 %v3978, %v4007
  %v4084 = vadd.f32 %v3979, %v4007
  %v4085 = vadd.f32 %v3980, %v4007
  %v4086 = vadd.f32 %v3981, %v4007
  %v4087 = vadd.f32 %v3982, %v4007
  %v4088 = vadd.f32 %v3983, %v4007
  %v4089 = vadd.f32 %v3984, %v4007
  %v4090 = vadd.f32 %v3985, %v4007
  %v4091 = vadd.f32 %v3986, %v4007
  %v4092 = vadd.f32 %v3987, %v4007
  %v4093 = vadd.f32 %v3988, %v4007
  %v4094 = vadd.f32 %v3989, %v4007
  %v4095 = vadd.f32 %v3990, %v4007
  %v4096 = vadd.f32 %v3991, %v4007
  %v4097 = vadd.f32 %v3992, %v4007
  %v4098 = vadd.f32 %v3993, %v4007
  %v4099 = vadd.f32 %v3994, %v4007
  %v4100 = vadd.f32 %v3995, %v4007
  %v4101 = vadd.f32 %v3996, %v4007
  %v4102 = vadd.f32 %v3997, %v4007
  %v4103 = vadd.f32 %v3998, %v4007
  %v4104 = vadd.f32 %v3999, %v4007
  %v4105 = vadd.f32 %v4000, %v4007
  %v4106 = vadd.f32 %v4001, %v4007
  %v4107 = vmax.f32 %v4009, 0.0
  %v4108 = vmax.f32 %v4010, 0.0
  %v4109 = vmax.f32 %v4011, 0.0
  %v4110 = vmax.f32 %v4012, 0.0
  %v4111 = vmax.f32 %v4013, 0.0
  %v4112 = vmax.f32 %v4014, 0.0
  %v4113 = vmax.f32 %v4015, 0.0
  %v4114 = vmax.f32 %v4016, 0.0
  %v4115 = vmax.f32 %v4017, 0.0
  %v4116 = vmax.f32 %v4018, 0.0
  %v4117 = vmax.f32 %v4019, 0.0
  %v4118 = vmax.f32 %v4020, 0.0
  %v4119 = vmax.f32 %v4021, 0.0
  %v4120 = vmax.f32 %v4022, 0.0
  %v4121 = vmax.f32 %v4023, 0.0
  %v4122 = vmax.f32 %v4024, 0.0
  %v4123 = vmax.f32 %v4025, 0.0
  %v4124 = vmax.f32 %v4026, 0.0
  %v4125 = vmax.f32 %v4027, 0.0
  %v4126 = vmax.f32 %v4028, 0.0
  %v4127 = vmax.f32 %v4029, 0.0
  %v4128 = vmax.f32 %v4030, 0.0
  %v4129 = vmax.f32 %v4031, 0.0
  %v4130 = vmax.f32 %v4032, 0.0
  %v4131 = vmax.f32 %v4033, 0.0
  %v4132 = vmax.f32 %v4034, 0.0
  %v4133 = vmax.f32 %v4035, 0.0
  %v4134 = vmax.f32 %v4036, 0.0
  %v4135 = vmax.f32 %v4037, 0.0
  %v4136 = vmax.f32 %v4038, 0.0
  %v4137 = vmax.f32 %v4039, 0.0
  %v4138 = vmax.f32 %v4040, 0.0
  %v4139 = vmax.f32 %v4041, 0.0
  %v4140 = vmax.f32 %v4042, 0.0
  %v4141 = vmax.f32 %v4043, 0.0
  %v4142 = vmax.f32 %v4044, 0.0
  %v4143 = vmax.f32 %v4045, 0.0
  %v4144 = vmax.f32 %v4046, 0.0
  %v4145 = vmax.f32 %v4047, 0.0
  %v4146 = vmax.f32 %v4048, 0.0
  %v4147 = vmax.f32 %v4049, 0.0
  %v4148 = vmax.f32 %v4050, 0.0
  %v4149 = vmax.f32 %v4051, 0.0
  %v4150 = vmax.f32 %v4052, 0.0
  %v4151 = vmax.f32 %v4053, 0.0
  %v4152 = vmax.f32 %v4054, 0.0
  %v4153 = vmax.f32 %v4055, 0.0
  %v4154 = vmax.f32 %v4056, 0.0
  %v4155 = vmax.f32 %v4057, 0.0
  %v4156 = vmax.f32 %v4058, 0.0
  %v4157 = vmax.f32 %v4059, 0.0
  %v4158 = vmax.f32 %v4060, 0.0
  %v4159 = vmax.f32 %v4061, 0.0
  %v4160 = vmax.f32 %v4062, 0.0
  %v4161 = vmax.f32 %v4063, 0.0
  %v4162 = vmax.f32 %v4064, 0.0
  %v4163 = vmax.f32 %v4065, 0.0
  %v4164 = vmax.f32 %v4066, 0.0
  %v4165 = vmax.f32 %v4067, 0.0
  %v4166 = vmax.f32 %v4068, 0.0
  %v4167 = vmax.f32 %v4069, 0.0
  %v4168 = vmax.f32 %v4070, 0.0
  %v4169 = vmax.f32 %v4071, 0.0
  %v4170 = vmax.f32 %v4072, 0.0
  %v4171 = vmax.f32 %v4073, 0.0
  %v4172 = vmax.f32 %v4074, 0.0
  %v4173 = vmax.f32 %v4075, 0.0
  %v4174 = vmax.f32 %v4076, 0.0
  %v4175 = vmax.f32 %v4077, 0.0
  %v4176 = vmax.f32 %v4078, 0.0
  %v4177 = vmax.f32 %v4079, 0.0
  %v4178 = vmax.f32 %v4080, 0.0
  %v4179 = vmax.f32 %v4081, 0.0
  %v4180 = vmax.f32 %v4082, 0.0
  %v4181 = vmax.f32 %v4083, 0.0
  %v4182 = vmax.f32 %v4084, 0.0
  %v4183 = vmax.f32 %v4085, 0.0
  %v4184 = vmax.f32 %v4086, 0.0
  %v4185 = vmax.f32 %v4087, 0.0
  %v4186 = vmax.f32 %v4088, 0.0
  %v4187 = vmax.f32 %v4089, 0.0
  %v4188 = vmax.f32 %v4090, 0.0
  %v4189 = vmax.f32 %v4091, 0.0
  %v4190 = vmax.f32 %v4092, 0.0
  %v4191 = vmax.f32 %v4093, 0.0
  %v4192 = vmax.f32 %v4094, 0.0
  %v4193 = vmax.f32 %v4095, 0.0
  %v4194 = vmax.f32 %v4096, 0.0
  %v4195 = vmax.f32 %v4097, 0.0
  %v4196 = vmax.f32 %v4098, 0.0
  %v4197 = vmax.f32 %v4099, 0.0
  %v4198 = vmax.f32 %v4100, 0.0
  %v4199 = vmax.f32 %v4101, 0.0
  %v4200 = vmax.f32 %v4102, 0.0
  %v4201 = vmax.f32 %v4103, 0.0
  %v4202 = vmax.f32 %v4104, 0.0
  %v4203 = vmax.f32 %v4105, 0.0
  %v4204 = vmax.f32 %v4106, 0.0
  %v4205 = vpack.c.bf16 %v4108, %v4107
  %v4206 = vpack.c.bf16 %v4110, %v4109
  %v4207 = vpack.c.bf16 %v4112, %v4111
  %v4208 = vpack.c.bf16 %v4114, %v4113
  %v4209 = vpack.c.bf16 %v4116, %v4115
  %v4210 = vpack.c.bf16 %v4118, %v4117
  %v4211 = vpack.c.bf16 %v4120, %v4119
  %v4212 = vpack.c.bf16 %v4122, %v4121
  %v4213 = vpack.c.bf16 %v4124, %v4123
  %v4214 = vpack.c.bf16 %v4126, %v4125
  %v4215 = vpack.c.bf16 %v4128, %v4127
  %v4216 = vpack.c.bf16 %v4130, %v4129
  %v4217 = vpack.c.bf16 %v4132, %v4131
  %v4218 = vpack.c.bf16 %v4134, %v4133
  %v4219 = vpack.c.bf16 %v4136, %v4135
  %v4220 = vpack.c.bf16 %v4138, %v4137
  %v4221 = vpack.c.bf16 %v4140, %v4139
  %v4222 = vpack.c.bf16 %v4142, %v4141
  %v4223 = vpack.c.bf16 %v4144, %v4143
  %v4224 = vpack.c.bf16 %v4146, %v4145
  %v4225 = vpack.c.bf16 %v4148, %v4147
  %v4226 = vpack.c.bf16 %v4150, %v4149
  %v4227 = vpack.c.bf16 %v4152, %v4151
  %v4228 = vpack.c.bf16 %v4154, %v4153
  %v4229 = vpack.c.bf16 %v4156, %v4155
  %v4230 = vpack.c.bf16 %v4158, %v4157
  %v4231 = vpack.c.bf16 %v4160, %v4159
  %v4232 = vpack.c.bf16 %v4162, %v4161
  %v4233 = vpack.c.bf16 %v4164, %v4163
  %v4234 = vpack.c.bf16 %v4166, %v4165
  %v4235 = vpack.c.bf16 %v4168, %v4167
  %v4236 = vpack.c.bf16 %v4170, %v4169
  %v4237 = vpack.c.bf16 %v4172, %v4171
  %v4238 = vpack.c.bf16 %v4174, %v4173
  %v4239 = vpack.c.bf16 %v4176, %v4175
  %v4240 = vpack.c.bf16 %v4178, %v4177
  %v4241 = vpack.c.bf16 %v4180, %v4179
  %v4242 = vpack.c.bf16 %v4182, %v4181
  %v4243 = vpack.c.bf16 %v4184, %v4183
  %v4244 = vpack.c.bf16 %v4186, %v4185
  %v4245 = vpack.c.bf16 %v4188, %v4187
  %v4246 = vpack.c.bf16 %v4190, %v4189
  %v4247 = vpack.c.bf16 %v4192, %v4191
  %v4248 = vpack.c.bf16 %v4194, %v4193
  %v4249 = vpack.c.bf16 %v4196, %v4195
  %v4250 = vpack.c.bf16 %v4198, %v4197
  %v4251 = vpack.c.bf16 %v4200, %v4199
  %v4252 = vpack.c.bf16 %v4202, %v4201
  %v4253 = vpack.c.bf16 %v4204, %v4203
  %vm4254 = vcmask 261120
  %4255 = vst.msk [vmem:[#allocation2] sm:$0xff] %vm4254, 0
  %4256 = vst.msk [vmem:[#allocation2 + $0x8] sm:$0xff] %vm4254, 0
  %4257 = vst.msk [vmem:[#allocation2 + $0x10] sm:$0xff] %vm4254, 0
  %4258 = vst.msk [vmem:[#allocation2 + $0x18] sm:$0xff] %vm4254, 0
  %4259 = vst.msk [vmem:[#allocation2 + $0x20] sm:$0xff] %vm4254, 0
  %4260 = vst.msk [vmem:[#allocation2 + $0x28] sm:$0xff] %vm4254, 0
  %4261 = vst.msk [vmem:[#allocation2 + $0x30] sm:$0xff] %vm4254, 0
  %4262 = vst.msk [vmem:[#allocation2 + $0x38] sm:$0xff] %vm4254, 0
  %4263 = vst.msk [vmem:[#allocation2 + $0x40] sm:$0xff] %vm4254, 0
  %4264 = vst.msk [vmem:[#allocation2 + $0x48] sm:$0xff] %vm4254, 0
  %4265 = vst.msk [vmem:[#allocation2 + $0x50] sm:$0xff] %vm4254, 0
  %4266 = vst.msk [vmem:[#allocation2 + $0x58] sm:$0xff] %vm4254, 0
  %4267 = vst.msk [vmem:[#allocation2 + $0x60] sm:$0xff] %vm4254, 0
  %4268 = vst.msk [vmem:[#allocation2 + $0x68] sm:$0xff] %vm4254, 0
  %4269 = vst.msk [vmem:[#allocation2 + $0x70] sm:$0xff] %vm4254, 0
  %4270 = vst.msk [vmem:[#allocation2 + $0x78] sm:$0xff] %vm4254, 0
  %4271 = vst.msk [vmem:[#allocation2 + $0x80] sm:$0xff] %vm4254, 0
  %4272 = vst.msk [vmem:[#allocation2 + $0x88] sm:$0xff] %vm4254, 0
  %4273 = vst.msk [vmem:[#allocation2 + $0x90] sm:$0xff] %vm4254, 0
  %4274 = vst.msk [vmem:[#allocation2 + $0x98] sm:$0xff] %vm4254, 0
  %4275 = vst.msk [vmem:[#allocation2 + $0xa0] sm:$0xff] %vm4254, 0
  %4276 = vst.msk [vmem:[#allocation2 + $0xa8] sm:$0xff] %vm4254, 0
  %4277 = vst.msk [vmem:[#allocation2 + $0xb0] sm:$0xff] %vm4254, 0
  %4278 = vst.msk [vmem:[#allocation2 + $0xb8] sm:$0xff] %vm4254, 0
  %4279 = vst.msk [vmem:[#allocation2 + $0xc0] sm:$0xff] %vm4254, 0
  %4280 = vst.msk [vmem:[#allocation2 + $0xc8] sm:$0xff] %vm4254, 0
  %4281 = vst.msk [vmem:[#allocation2 + $0xd0] sm:$0xff] %vm4254, 0
  %4282 = vst.msk [vmem:[#allocation2 + $0xd8] sm:$0xff] %vm4254, 0
  %4283 = vst.msk [vmem:[#allocation2 + $0xe0] sm:$0xff] %vm4254, 0
  %4284 = vst.msk [vmem:[#allocation2 + $0xe8] sm:$0xff] %vm4254, 0
  %4285 = vst.msk [vmem:[#allocation2 + $0xf0] sm:$0xff] %vm4254, 0
  %4286 = vst.msk [vmem:[#allocation2 + $0xf8] sm:$0xff] %vm4254, 0
  %4287 = vst.msk [vmem:[#allocation2 + $0x100] sm:$0xff] %vm4254, 0
  %4288 = vst.msk [vmem:[#allocation2 + $0x108] sm:$0xff] %vm4254, 0
  %4289 = vst.msk [vmem:[#allocation2 + $0x110] sm:$0xff] %vm4254, 0
  %4290 = vst.msk [vmem:[#allocation2 + $0x118] sm:$0xff] %vm4254, 0
  %4291 = vst.msk [vmem:[#allocation2 + $0x120] sm:$0xff] %vm4254, 0
  %4292 = vst.msk [vmem:[#allocation2 + $0x128] sm:$0xff] %vm4254, 0
  %4293 = vst.msk [vmem:[#allocation2 + $0x130] sm:$0xff] %vm4254, 0
  %4294 = vst.msk [vmem:[#allocation2 + $0x138] sm:$0xff] %vm4254, 0
  %4295 = vst.msk [vmem:[#allocation2 + $0x140] sm:$0xff] %vm4254, 0
  %4296 = vst.msk [vmem:[#allocation2 + $0x148] sm:$0xff] %vm4254, 0
  %4297 = vst.msk [vmem:[#allocation2 + $0x150] sm:$0xff] %vm4254, 0
  %4298 = vst.msk [vmem:[#allocation2 + $0x158] sm:$0xff] %vm4254, 0
  %4299 = vst.msk [vmem:[#allocation2 + $0x160] sm:$0xff] %vm4254, 0
  %4300 = vst.msk [vmem:[#allocation2 + $0x168] sm:$0xff] %vm4254, 0
  %4301 = vst.msk [vmem:[#allocation2 + $0x170] sm:$0xff] %vm4254, 0
  %4302 = vst.msk [vmem:[#allocation2 + $0x178] sm:$0xff] %vm4254, 0
  %4303 = vst.msk [vmem:[#allocation2 + $0x180] sm:$0xff] %vm4254, 0
  %4304 = vst.msk [vmem:[#allocation2 + $0x188] sm:$0xff] %vm4254, 0
  %4305 = vst.msk [vmem:[#allocation2 + $0x190] sm:$0xff] %vm4254, 0
  %4306 = vst.msk [vmem:[#allocation2 + $0x198] sm:$0xff] %vm4254, 0
  %4307 = vst.msk [vmem:[#allocation2 + $0x1a0] sm:$0xff] %vm4254, 0
  %4308 = vst.msk [vmem:[#allocation2 + $0x1a8] sm:$0xff] %vm4254, 0
  %4309 = vst.msk [vmem:[#allocation2 + $0x1b0] sm:$0xff] %vm4254, 0
  %4310 = vst.msk [vmem:[#allocation2 + $0x1b8] sm:$0xff] %vm4254, 0
  %4311 = vst.msk [vmem:[#allocation2 + $0x1c0] sm:$0xff] %vm4254, 0
  %4312 = vst.msk [vmem:[#allocation2 + $0x1c8] sm:$0xff] %vm4254, 0
  %4313 = vst.msk [vmem:[#allocation2 + $0x1d0] sm:$0xff] %vm4254, 0
  %4314 = vst.msk [vmem:[#allocation2 + $0x1d8] sm:$0xff] %vm4254, 0
  %4315 = vst.msk [vmem:[#allocation2 + $0x1e0] sm:$0xff] %vm4254, 0
  %4316 = vst.msk [vmem:[#allocation2 + $0x1e8] sm:$0xff] %vm4254, 0
  %4317 = vst.msk [vmem:[#allocation2 + $0x1f0] sm:$0xff] %vm4254, 0
  %4318 = vst.msk [vmem:[#allocation2 + $0x1f8] sm:$0xff] %vm4254, 0
  %4319 = vst.msk [vmem:[#allocation2 + $0x200] sm:$0xff] %vm4254, 0
  %4320 = vst.msk [vmem:[#allocation2 + $0x208] sm:$0xff] %vm4254, 0
  %4321 = vst.msk [vmem:[#allocation2 + $0x210] sm:$0xff] %vm4254, 0
  %4322 = vst.msk [vmem:[#allocation2 + $0x218] sm:$0xff] %vm4254, 0
  %4323 = vst.msk [vmem:[#allocation2 + $0x220] sm:$0xff] %vm4254, 0
  %4324 = vst.msk [vmem:[#allocation2 + $0x228] sm:$0xff] %vm4254, 0
  %4325 = vst.msk [vmem:[#allocation2 + $0x230] sm:$0xff] %vm4254, 0
  %4326 = vst.msk [vmem:[#allocation2 + $0x238] sm:$0xff] %vm4254, 0
  %4327 = vst.msk [vmem:[#allocation2 + $0x240] sm:$0xff] %vm4254, 0
  %4328 = vst.msk [vmem:[#allocation2 + $0x248] sm:$0xff] %vm4254, 0
  %4329 = vst.msk [vmem:[#allocation2 + $0x250] sm:$0xff] %vm4254, 0
  %4330 = vst.msk [vmem:[#allocation2 + $0x258] sm:$0xff] %vm4254, 0
  %4331 = vst.msk [vmem:[#allocation2 + $0x260] sm:$0xff] %vm4254, 0
  %4332 = vst.msk [vmem:[#allocation2 + $0x268] sm:$0xff] %vm4254, 0
  %4333 = vst.msk [vmem:[#allocation2 + $0x270] sm:$0xff] %vm4254, 0
  %4334 = vst.msk [vmem:[#allocation2 + $0x278] sm:$0xff] %vm4254, 0
  %4335 = vst.msk [vmem:[#allocation2 + $0x280] sm:$0xff] %vm4254, 0
  %4336 = vst.msk [vmem:[#allocation2 + $0x288] sm:$0xff] %vm4254, 0
  %4337 = vst.msk [vmem:[#allocation2 + $0x290] sm:$0xff] %vm4254, 0
  %4338 = vst.msk [vmem:[#allocation2 + $0x298] sm:$0xff] %vm4254, 0
  %4339 = vst.msk [vmem:[#allocation2 + $0x2a0] sm:$0xff] %vm4254, 0
  %4340 = vst.msk [vmem:[#allocation2 + $0x2a8] sm:$0xff] %vm4254, 0
  %4341 = vst.msk [vmem:[#allocation2 + $0x2b0] sm:$0xff] %vm4254, 0
  %4342 = vst.msk [vmem:[#allocation2 + $0x2b8] sm:$0xff] %vm4254, 0
  %4343 = vst.msk [vmem:[#allocation2 + $0x2c0] sm:$0xff] %vm4254, 0
  %4344 = vst.msk [vmem:[#allocation2 + $0x2c8] sm:$0xff] %vm4254, 0
  %4345 = vst.msk [vmem:[#allocation2 + $0x2d0] sm:$0xff] %vm4254, 0
  %4346 = vst.msk [vmem:[#allocation2 + $0x2d8] sm:$0xff] %vm4254, 0
  %4347 = vst.msk [vmem:[#allocation2 + $0x2e0] sm:$0xff] %vm4254, 0
  %4348 = vst.msk [vmem:[#allocation2 + $0x2e8] sm:$0xff] %vm4254, 0
  %4349 = vst.msk [vmem:[#allocation2 + $0x2f0] sm:$0xff] %vm4254, 0
  %4350 = vst.msk [vmem:[#allocation2 + $0x2f8] sm:$0xff] %vm4254, 0
  %4351 = vst.msk [vmem:[#allocation2 + $0x300] sm:$0xff] %vm4254, 0
  %4352 = vst.msk [vmem:[#allocation2 + $0x308] sm:$0xff] %vm4254, 0
  %4353 = vst.msk [vmem:[#allocation2 + $0x310] sm:$0xff] %vm4254, 0
  %4354 = vst.msk [vmem:[#allocation2 + $0x318] sm:$0xff] %vm4254, 0
  %s4355 = scalar_lea.vmem [#allocation2], 176
  %4356 = vst.msk [vmem:[%s4355] sm:$0xff] %vm4254, %v4205
  %4357 = vst.msk [vmem:[%s4355 + $0x8] sm:$0xff] %vm4254, %v4206
  %4358 = vst.msk [vmem:[%s4355 + $0x10] sm:$0xff] %vm4254, %v4207
  %4359 = vst.msk [vmem:[%s4355 + $0x18] sm:$0xff] %vm4254, %v4208
  %4360 = vst.msk [vmem:[%s4355 + $0x20] sm:$0xff] %vm4254, %v4209
  %4361 = vst.msk [vmem:[%s4355 + $0x28] sm:$0xff] %vm4254, %v4210
  %4362 = vst.msk [vmem:[%s4355 + $0x30] sm:$0xff] %vm4254, %v4211
  %4363 = vst.msk [vmem:[%s4355 + $0x50] sm:$0xff] %vm4254, %v4212
  %4364 = vst.msk [vmem:[%s4355 + $0x58] sm:$0xff] %vm4254, %v4213
  %4365 = vst.msk [vmem:[%s4355 + $0x60] sm:$0xff] %vm4254, %v4214
  %4366 = vst.msk [vmem:[%s4355 + $0x68] sm:$0xff] %vm4254, %v4215
  %4367 = vst.msk [vmem:[%s4355 + $0x70] sm:$0xff] %vm4254, %v4216
  %4368 = vst.msk [vmem:[%s4355 + $0x78] sm:$0xff] %vm4254, %v4217
  %4369 = vst.msk [vmem:[%s4355 + $0x80] sm:$0xff] %vm4254, %v4218
  %4370 = vst.msk [vmem:[%s4355 + $0xa0] sm:$0xff] %vm4254, %v4219
  %4371 = vst.msk [vmem:[%s4355 + $0xa8] sm:$0xff] %vm4254, %v4220
  %4372 = vst.msk [vmem:[%s4355 + $0xb0] sm:$0xff] %vm4254, %v4221
  %4373 = vst.msk [vmem:[%s4355 + $0xb8] sm:$0xff] %vm4254, %v4222
  %4374 = vst.msk [vmem:[%s4355 + $0xc0] sm:$0xff] %vm4254, %v4223
  %4375 = vst.msk [vmem:[%s4355 + $0xc8] sm:$0xff] %vm4254, %v4224
  %4376 = vst.msk [vmem:[%s4355 + $0xd0] sm:$0xff] %vm4254, %v4225
  %4377 = vst.msk [vmem:[%s4355 + $0xf0] sm:$0xff] %vm4254, %v4226
  %4378 = vst.msk [vmem:[%s4355 + $0xf8] sm:$0xff] %vm4254, %v4227
  %4379 = vst.msk [vmem:[%s4355 + $0x100] sm:$0xff] %vm4254, %v4228
  %4380 = vst.msk [vmem:[%s4355 + $0x108] sm:$0xff] %vm4254, %v4229
  %4381 = vst.msk [vmem:[%s4355 + $0x110] sm:$0xff] %vm4254, %v4230
  %4382 = vst.msk [vmem:[%s4355 + $0x118] sm:$0xff] %vm4254, %v4231
  %4383 = vst.msk [vmem:[%s4355 + $0x120] sm:$0xff] %vm4254, %v4232
  %4384 = vst.msk [vmem:[%s4355 + $0x140] sm:$0xff] %vm4254, %v4233
  %4385 = vst.msk [vmem:[%s4355 + $0x148] sm:$0xff] %vm4254, %v4234
  %4386 = vst.msk [vmem:[%s4355 + $0x150] sm:$0xff] %vm4254, %v4235
  %4387 = vst.msk [vmem:[%s4355 + $0x158] sm:$0xff] %vm4254, %v4236
  %4388 = vst.msk [vmem:[%s4355 + $0x160] sm:$0xff] %vm4254, %v4237
  %4389 = vst.msk [vmem:[%s4355 + $0x168] sm:$0xff] %vm4254, %v4238
  %4390 = vst.msk [vmem:[%s4355 + $0x170] sm:$0xff] %vm4254, %v4239
  %4391 = vst.msk [vmem:[%s4355 + $0x190] sm:$0xff] %vm4254, %v4240
  %4392 = vst.msk [vmem:[%s4355 + $0x198] sm:$0xff] %vm4254, %v4241
  %4393 = vst.msk [vmem:[%s4355 + $0x1a0] sm:$0xff] %vm4254, %v4242
  %4394 = vst.msk [vmem:[%s4355 + $0x1a8] sm:$0xff] %vm4254, %v4243
  %4395 = vst.msk [vmem:[%s4355 + $0x1b0] sm:$0xff] %vm4254, %v4244
  %4396 = vst.msk [vmem:[%s4355 + $0x1b8] sm:$0xff] %vm4254, %v4245
  %4397 = vst.msk [vmem:[%s4355 + $0x1c0] sm:$0xff] %vm4254, %v4246
  %4398 = vst.msk [vmem:[%s4355 + $0x1e0] sm:$0xff] %vm4254, %v4247
  %4399 = vst.msk [vmem:[%s4355 + $0x1e8] sm:$0xff] %vm4254, %v4248
  %4400 = vst.msk [vmem:[%s4355 + $0x1f0] sm:$0xff] %vm4254, %v4249
  %4401 = vst.msk [vmem:[%s4355 + $0x1f8] sm:$0xff] %vm4254, %v4250
  %4402 = vst.msk [vmem:[%s4355 + $0x200] sm:$0xff] %vm4254, %v4251
  %4403 = vst.msk [vmem:[%s4355 + $0x208] sm:$0xff] %vm4254, %v4252
  %4404 = vst.msk [vmem:[%s4355 + $0x210] sm:$0xff] %vm4254, %v4253
  %v4405 = vld [vmem:[#allocation2] sm:$0xff]
  %v4406 = vld [vmem:[#allocation2 + $0x8] sm:$0xff]
  %v4407 = vld [vmem:[#allocation2 + $0x10] sm:$0xff]
  %v4408 = vld [vmem:[#allocation2 + $0x18] sm:$0xff]
  %v4409 = vld [vmem:[#allocation2 + $0x20] sm:$0xff]
  %v4410 = vld [vmem:[#allocation2 + $0x28] sm:$0xff]
  %v4411 = vld [vmem:[#allocation2 + $0x30] sm:$0xff]
  %v4412 = vld [vmem:[#allocation2 + $0x38] sm:$0xff]
  %v4413 = vld [vmem:[#allocation2 + $0x50] sm:$0xff]
  %v4414 = vld [vmem:[#allocation2 + $0x58] sm:$0xff]
  %v4415 = vld [vmem:[#allocation2 + $0x60] sm:$0xff]
  %v4416 = vld [vmem:[#allocation2 + $0x68] sm:$0xff]
  %v4417 = vld [vmem:[#allocation2 + $0x70] sm:$0xff]
  %v4418 = vld [vmem:[#allocation2 + $0x78] sm:$0xff]
  %v4419 = vld [vmem:[#allocation2 + $0x80] sm:$0xff]
  %v4420 = vld [vmem:[#allocation2 + $0x88] sm:$0xff]
  %v4421 = vld [vmem:[#allocation2 + $0xa0] sm:$0xff]
  %v4422 = vld [vmem:[#allocation2 + $0xa8] sm:$0xff]
  %v4423 = vld [vmem:[#allocation2 + $0xb0] sm:$0xff]
  %v4424 = vld [vmem:[#allocation2 + $0xb8] sm:$0xff]
  %v4425 = vld [vmem:[#allocation2 + $0xc0] sm:$0xff]
  %v4426 = vld [vmem:[#allocation2 + $0xc8] sm:$0xff]
  %v4427 = vld [vmem:[#allocation2 + $0xd0] sm:$0xff]
  %v4428 = vld [vmem:[#allocation2 + $0xd8] sm:$0xff]
  %v4429 = vld [vmem:[#allocation2 + $0xf0] sm:$0xff]
  %v4430 = vld [vmem:[#allocation2 + $0xf8] sm:$0xff]
  %v4431 = vld [vmem:[#allocation2 + $0x100] sm:$0xff]
  %v4432 = vld [vmem:[#allocation2 + $0x108] sm:$0xff]
  %v4433 = vld [vmem:[#allocation2 + $0x110] sm:$0xff]
  %v4434 = vld [vmem:[#allocation2 + $0x118] sm:$0xff]
  %v4435 = vld [vmem:[#allocation2 + $0x120] sm:$0xff]
  %v4436 = vld [vmem:[#allocation2 + $0x128] sm:$0xff]
  %v4437 = vld [vmem:[#allocation2 + $0x140] sm:$0xff]
  %v4438 = vld [vmem:[#allocation2 + $0x148] sm:$0xff]
  %v4439 = vld [vmem:[#allocation2 + $0x150] sm:$0xff]
  %v4440 = vld [vmem:[#allocation2 + $0x158] sm:$0xff]
  %v4441 = vld [vmem:[#allocation2 + $0x160] sm:$0xff]
  %v4442 = vld [vmem:[#allocation2 + $0x168] sm:$0xff]
  %v4443 = vld [vmem:[#allocation2 + $0x170] sm:$0xff]
  %v4444 = vld [vmem:[#allocation2 + $0x178] sm:$0xff]
  %v4445 = vld [vmem:[#allocation2 + $0x190] sm:$0xff]
  %v4446 = vld [vmem:[#allocation2 + $0x198] sm:$0xff]
  %v4447 = vld [vmem:[#allocation2 + $0x1a0] sm:$0xff]
  %v4448 = vld [vmem:[#allocation2 + $0x1a8] sm:$0xff]
  %v4449 = vld [vmem:[#allocation2 + $0x1b0] sm:$0xff]
  %v4450 = vld [vmem:[#allocation2 + $0x1b8] sm:$0xff]
  %v4451 = vld [vmem:[#allocation2 + $0x1c0] sm:$0xff]
  %v4452 = vld [vmem:[#allocation2 + $0x1c8] sm:$0xff]
  %v4453 = vld [vmem:[#allocation2 + $0x1e0] sm:$0xff]
  %v4454 = vld [vmem:[#allocation2 + $0x1e8] sm:$0xff]
  %v4455 = vld [vmem:[#allocation2 + $0x1f0] sm:$0xff]
  %v4456 = vld [vmem:[#allocation2 + $0x1f8] sm:$0xff]
  %v4457 = vld [vmem:[#allocation2 + $0x200] sm:$0xff]
  %v4458 = vld [vmem:[#allocation2 + $0x208] sm:$0xff]
  %v4459 = vld [vmem:[#allocation2 + $0x210] sm:$0xff]
  %v4460 = vld [vmem:[#allocation2 + $0x218] sm:$0xff]
  %v4461 = vld [vmem:[#allocation2 + $0x230] sm:$0xff]
  %v4462 = vld [vmem:[#allocation2 + $0x238] sm:$0xff]
  %v4463 = vld [vmem:[#allocation2 + $0x240] sm:$0xff]
  %v4464 = vld [vmem:[#allocation2 + $0x248] sm:$0xff]
  %v4465 = vld [vmem:[#allocation2 + $0x250] sm:$0xff]
  %v4466 = vld [vmem:[#allocation2 + $0x258] sm:$0xff]
  %v4467 = vld [vmem:[#allocation2 + $0x260] sm:$0xff]
  %v4468 = vld [vmem:[#allocation2 + $0x268] sm:$0xff]
  %4469 = vst.msk [vmem:[#allocation3] sm:$0xff] %vm4254, %v4405
  %4470 = vst.msk [vmem:[#allocation3 + $0x18] sm:$0xff] %vm4254, %v4406
  %4471 = vst.msk [vmem:[#allocation3 + $0x30] sm:$0xff] %vm4254, %v4407
  %4472 = vst.msk [vmem:[#allocation3 + $0x48] sm:$0xff] %vm4254, %v4408
  %4473 = vst.msk [vmem:[#allocation3 + $0x60] sm:$0xff] %vm4254, %v4409
  %4474 = vst.msk [vmem:[#allocation3 + $0x78] sm:$0xff] %vm4254, %v4410
  %4475 = vst.msk [vmem:[#allocation3 + $0x90] sm:$0xff] %vm4254, %v4411
  %4476 = vst.msk [vmem:[#allocation3 + $0xa8] sm:$0xff] %vm4254, %v4412
  %4477 = vst.msk [vmem:[#allocation3 + $0xc0] sm:$0xff] %vm4254, %v4413
  %4478 = vst.msk [vmem:[#allocation3 + $0xd8] sm:$0xff] %vm4254, %v4414
  %4479 = vst.msk [vmem:[#allocation3 + $0xf0] sm:$0xff] %vm4254, %v4415
  %4480 = vst.msk [vmem:[#allocation3 + $0x108] sm:$0xff] %vm4254, %v4416
  %4481 = vst.msk [vmem:[#allocation3 + $0x120] sm:$0xff] %vm4254, %v4417
  %4482 = vst.msk [vmem:[#allocation3 + $0x138] sm:$0xff] %vm4254, %v4418
  %4483 = vst.msk [vmem:[#allocation3 + $0x150] sm:$0xff] %vm4254, %v4419
  %4484 = vst.msk [vmem:[#allocation3 + $0x168] sm:$0xff] %vm4254, %v4420
  %4485 = vst.msk [vmem:[#allocation3 + $0x180] sm:$0xff] %vm4254, %v4421
  %4486 = vst.msk [vmem:[#allocation3 + $0x198] sm:$0xff] %vm4254, %v4422
  %4487 = vst.msk [vmem:[#allocation3 + $0x1b0] sm:$0xff] %vm4254, %v4423
  %4488 = vst.msk [vmem:[#allocation3 + $0x1c8] sm:$0xff] %vm4254, %v4424
  %4489 = vst.msk [vmem:[#allocation3 + $0x1e0] sm:$0xff] %vm4254, %v4425
  %4490 = vst.msk [vmem:[#allocation3 + $0x1f8] sm:$0xff] %vm4254, %v4426
  %4491 = vst.msk [vmem:[#allocation3 + $0x210] sm:$0xff] %vm4254, %v4427
  %4492 = vst.msk [vmem:[#allocation3 + $0x228] sm:$0xff] %vm4254, %v4428
  %4493 = vst.msk [vmem:[#allocation3 + $0x240] sm:$0xff] %vm4254, %v4429
  %4494 = vst.msk [vmem:[#allocation3 + $0x258] sm:$0xff] %vm4254, %v4430
  %4495 = vst.msk [vmem:[#allocation3 + $0x270] sm:$0xff] %vm4254, %v4431
  %4496 = vst.msk [vmem:[#allocation3 + $0x288] sm:$0xff] %vm4254, %v4432
  %4497 = vst.msk [vmem:[#allocation3 + $0x2a0] sm:$0xff] %vm4254, %v4433
  %4498 = vst.msk [vmem:[#allocation3 + $0x2b8] sm:$0xff] %vm4254, %v4434
  %4499 = vst.msk [vmem:[#allocation3 + $0x2d0] sm:$0xff] %vm4254, %v4435
  %4500 = vst.msk [vmem:[#allocation3 + $0x2e8] sm:$0xff] %vm4254, %v4436
  %4501 = vst.msk [vmem:[#allocation3 + $0x300] sm:$0xff] %vm4254, %v4437
  %4502 = vst.msk [vmem:[#allocation3 + $0x318] sm:$0xff] %vm4254, %v4438
  %4503 = vst.msk [vmem:[#allocation3 + $0x330] sm:$0xff] %vm4254, %v4439
  %4504 = vst.msk [vmem:[#allocation3 + $0x348] sm:$0xff] %vm4254, %v4440
  %4505 = vst.msk [vmem:[#allocation3 + $0x360] sm:$0xff] %vm4254, %v4441
  %4506 = vst.msk [vmem:[#allocation3 + $0x378] sm:$0xff] %vm4254, %v4442
  %4507 = vst.msk [vmem:[#allocation3 + $0x390] sm:$0xff] %vm4254, %v4443
  %4508 = vst.msk [vmem:[#allocation3 + $0x3a8] sm:$0xff] %vm4254, %v4444
  %4509 = vst.msk [vmem:[#allocation3 + $0x3c0] sm:$0xff] %vm4254, %v4445
  %4510 = vst.msk [vmem:[#allocation3 + $0x3d8] sm:$0xff] %vm4254, %v4446
  %4511 = vst.msk [vmem:[#allocation3 + $0x3f0] sm:$0xff] %vm4254, %v4447
  %4512 = vst.msk [vmem:[#allocation3 + $0x408] sm:$0xff] %vm4254, %v4448
  %4513 = vst.msk [vmem:[#allocation3 + $0x420] sm:$0xff] %vm4254, %v4449
  %4514 = vst.msk [vmem:[#allocation3 + $0x438] sm:$0xff] %vm4254, %v4450
  %4515 = vst.msk [vmem:[#allocation3 + $0x450] sm:$0xff] %vm4254, %v4451
  %4516 = vst.msk [vmem:[#allocation3 + $0x468] sm:$0xff] %vm4254, %v4452
  %4517 = vst.msk [vmem:[#allocation3 + $0x480] sm:$0xff] %vm4254, %v4453
  %4518 = vst.msk [vmem:[#allocation3 + $0x498] sm:$0xff] %vm4254, %v4454
  %4519 = vst.msk [vmem:[#allocation3 + $0x4b0] sm:$0xff] %vm4254, %v4455
  %4520 = vst.msk [vmem:[#allocation3 + $0x4c8] sm:$0xff] %vm4254, %v4456
  %4521 = vst.msk [vmem:[#allocation3 + $0x4e0] sm:$0xff] %vm4254, %v4457
  %4522 = vst.msk [vmem:[#allocation3 + $0x4f8] sm:$0xff] %vm4254, %v4458
  %4523 = vst.msk [vmem:[#allocation3 + $0x510] sm:$0xff] %vm4254, %v4459
  %4524 = vst.msk [vmem:[#allocation3 + $0x528] sm:$0xff] %vm4254, %v4460
  %4525 = vst.msk [vmem:[#allocation3 + $0x540] sm:$0xff] %vm4254, %v4461
  %4526 = vst.msk [vmem:[#allocation3 + $0x558] sm:$0xff] %vm4254, %v4462
  %4527 = vst.msk [vmem:[#allocation3 + $0x570] sm:$0xff] %vm4254, %v4463
  %4528 = vst.msk [vmem:[#allocation3 + $0x588] sm:$0xff] %vm4254, %v4464
  %4529 = vst.msk [vmem:[#allocation3 + $0x5a0] sm:$0xff] %vm4254, %v4465
  %4530 = vst.msk [vmem:[#allocation3 + $0x5b8] sm:$0xff] %vm4254, %v4466
  %4531 = vst.msk [vmem:[#allocation3 + $0x5d0] sm:$0xff] %vm4254, %v4467
  %4532 = vst.msk [vmem:[#allocation3 + $0x5e8] sm:$0xff] %vm4254, %v4468
  %s4533 = scalar_lea.vmem [#allocation2], 8
  %v4534 = vld [vmem:[%s4533] sm:$0xff]
  %v4535 = vld [vmem:[%s4533 + $0x8] sm:$0xff]
  %v4536 = vld [vmem:[%s4533 + $0x10] sm:$0xff]
  %v4537 = vld [vmem:[%s4533 + $0x18] sm:$0xff]
  %v4538 = vld [vmem:[%s4533 + $0x20] sm:$0xff]
  %v4539 = vld [vmem:[%s4533 + $0x28] sm:$0xff]
  %v4540 = vld [vmem:[%s4533 + $0x30] sm:$0xff]
  %v4541 = vld [vmem:[%s4533 + $0x38] sm:$0xff]
  %v4542 = vld [vmem:[%s4533 + $0x50] sm:$0xff]
  %v4543 = vld [vmem:[%s4533 + $0x58] sm:$0xff]
  %v4544 = vld [vmem:[%s4533 + $0x60] sm:$0xff]
  %v4545 = vld [vmem:[%s4533 + $0x68] sm:$0xff]
  %v4546 = vld [vmem:[%s4533 + $0x70] sm:$0xff]
  %v4547 = vld [vmem:[%s4533 + $0x78] sm:$0xff]
  %v4548 = vld [vmem:[%s4533 + $0x80] sm:$0xff]
  %v4549 = vld [vmem:[%s4533 + $0x88] sm:$0xff]
  %v4550 = vld [vmem:[%s4533 + $0xa0] sm:$0xff]
  %v4551 = vld [vmem:[%s4533 + $0xa8] sm:$0xff]
  %v4552 = vld [vmem:[%s4533 + $0xb0] sm:$0xff]
  %v4553 = vld [vmem:[%s4533 + $0xb8] sm:$0xff]
  %v4554 = vld [vmem:[%s4533 + $0xc0] sm:$0xff]
  %v4555 = vld [vmem:[%s4533 + $0xc8] sm:$0xff]
  %v4556 = vld [vmem:[%s4533 + $0xd0] sm:$0xff]
  %v4557 = vld [vmem:[%s4533 + $0xd8] sm:$0xff]
  %v4558 = vld [vmem:[%s4533 + $0xf0] sm:$0xff]
  %v4559 = vld [vmem:[%s4533 + $0xf8] sm:$0xff]
  %v4560 = vld [vmem:[%s4533 + $0x100] sm:$0xff]
  %v4561 = vld [vmem:[%s4533 + $0x108] sm:$0xff]
  %v4562 = vld [vmem:[%s4533 + $0x110] sm:$0xff]
  %v4563 = vld [vmem:[%s4533 + $0x118] sm:$0xff]
  %v4564 = vld [vmem:[%s4533 + $0x120] sm:$0xff]
  %v4565 = vld [vmem:[%s4533 + $0x128] sm:$0xff]
  %v4566 = vld [vmem:[%s4533 + $0x140] sm:$0xff]
  %v4567 = vld [vmem:[%s4533 + $0x148] sm:$0xff]
  %v4568 = vld [vmem:[%s4533 + $0x150] sm:$0xff]
  %v4569 = vld [vmem:[%s4533 + $0x158] sm:$0xff]
  %v4570 = vld [vmem:[%s4533 + $0x160] sm:$0xff]
  %v4571 = vld [vmem:[%s4533 + $0x168] sm:$0xff]
  %v4572 = vld [vmem:[%s4533 + $0x170] sm:$0xff]
  %v4573 = vld [vmem:[%s4533 + $0x178] sm:$0xff]
  %v4574 = vld [vmem:[%s4533 + $0x190] sm:$0xff]
  %v4575 = vld [vmem:[%s4533 + $0x198] sm:$0xff]
  %v4576 = vld [vmem:[%s4533 + $0x1a0] sm:$0xff]
  %v4577 = vld [vmem:[%s4533 + $0x1a8] sm:$0xff]
  %v4578 = vld [vmem:[%s4533 + $0x1b0] sm:$0xff]
  %v4579 = vld [vmem:[%s4533 + $0x1b8] sm:$0xff]
  %v4580 = vld [vmem:[%s4533 + $0x1c0] sm:$0xff]
  %v4581 = vld [vmem:[%s4533 + $0x1c8] sm:$0xff]
  %v4582 = vld [vmem:[%s4533 + $0x1e0] sm:$0xff]
  %v4583 = vld [vmem:[%s4533 + $0x1e8] sm:$0xff]
  %v4584 = vld [vmem:[%s4533 + $0x1f0] sm:$0xff]
  %v4585 = vld [vmem:[%s4533 + $0x1f8] sm:$0xff]
  %v4586 = vld [vmem:[%s4533 + $0x200] sm:$0xff]
  %v4587 = vld [vmem:[%s4533 + $0x208] sm:$0xff]
  %v4588 = vld [vmem:[%s4533 + $0x210] sm:$0xff]
  %v4589 = vld [vmem:[%s4533 + $0x218] sm:$0xff]
  %v4590 = vld [vmem:[%s4533 + $0x230] sm:$0xff]
  %v4591 = vld [vmem:[%s4533 + $0x238] sm:$0xff]
  %v4592 = vld [vmem:[%s4533 + $0x240] sm:$0xff]
  %v4593 = vld [vmem:[%s4533 + $0x248] sm:$0xff]
  %v4594 = vld [vmem:[%s4533 + $0x250] sm:$0xff]
  %v4595 = vld [vmem:[%s4533 + $0x258] sm:$0xff]
  %v4596 = vld [vmem:[%s4533 + $0x260] sm:$0xff]
  %v4597 = vld [vmem:[%s4533 + $0x268] sm:$0xff]
  %4662 = vrot.lane.b32.xlu0 %v4534, 32
  %v4663 = vpop.permute.xlu0 %4662
  %4664 = vrot.lane.b32.xlu0 %v4535, 32
  %v4665 = vpop.permute.xlu0 %4664
  %4666 = vrot.lane.b32.xlu0 %v4536, 32
  %v4667 = vpop.permute.xlu0 %4666
  %4668 = vrot.lane.b32.xlu0 %v4537, 32
  %v4669 = vpop.permute.xlu0 %4668
  %4670 = vrot.lane.b32.xlu0 %v4538, 32
  %v4671 = vpop.permute.xlu0 %4670
  %4672 = vrot.lane.b32.xlu0 %v4539, 32
  %v4673 = vpop.permute.xlu0 %4672
  %4674 = vrot.lane.b32.xlu0 %v4540, 32
  %v4675 = vpop.permute.xlu0 %4674
  %4676 = vrot.lane.b32.xlu0 %v4541, 32
  %v4677 = vpop.permute.xlu0 %4676
  %4678 = vrot.lane.b32.xlu0 %v4542, 32
  %v4679 = vpop.permute.xlu0 %4678
  %4680 = vrot.lane.b32.xlu0 %v4543, 32
  %v4681 = vpop.permute.xlu0 %4680
  %4682 = vrot.lane.b32.xlu0 %v4544, 32
  %v4683 = vpop.permute.xlu0 %4682
  %4684 = vrot.lane.b32.xlu0 %v4545, 32
  %v4685 = vpop.permute.xlu0 %4684
  %4686 = vrot.lane.b32.xlu0 %v4546, 32
  %v4687 = vpop.permute.xlu0 %4686
  %4688 = vrot.lane.b32.xlu0 %v4547, 32
  %v4689 = vpop.permute.xlu0 %4688
  %4690 = vrot.lane.b32.xlu0 %v4548, 32
  %v4691 = vpop.permute.xlu0 %4690
  %4692 = vrot.lane.b32.xlu0 %v4549, 32
  %v4693 = vpop.permute.xlu0 %4692
  %4694 = vrot.lane.b32.xlu0 %v4550, 32
  %v4695 = vpop.permute.xlu0 %4694
  %4696 = vrot.lane.b32.xlu0 %v4551, 32
  %v4697 = vpop.permute.xlu0 %4696
  %4698 = vrot.lane.b32.xlu0 %v4552, 32
  %v4699 = vpop.permute.xlu0 %4698
  %4700 = vrot.lane.b32.xlu0 %v4553, 32
  %v4701 = vpop.permute.xlu0 %4700
  %4702 = vrot.lane.b32.xlu0 %v4554, 32
  %v4703 = vpop.permute.xlu0 %4702
  %4704 = vrot.lane.b32.xlu0 %v4555, 32
  %v4705 = vpop.permute.xlu0 %4704
  %4706 = vrot.lane.b32.xlu0 %v4556, 32
  %v4707 = vpop.permute.xlu0 %4706
  %4708 = vrot.lane.b32.xlu0 %v4557, 32
  %v4709 = vpop.permute.xlu0 %4708
  %4710 = vrot.lane.b32.xlu0 %v4558, 32
  %v4711 = vpop.permute.xlu0 %4710
  %4712 = vrot.lane.b32.xlu0 %v4559, 32
  %v4713 = vpop.permute.xlu0 %4712
  %4714 = vrot.lane.b32.xlu0 %v4560, 32
  %v4715 = vpop.permute.xlu0 %4714
  %4716 = vrot.lane.b32.xlu0 %v4561, 32
  %v4717 = vpop.permute.xlu0 %4716
  %4718 = vrot.lane.b32.xlu0 %v4562, 32
  %v4719 = vpop.permute.xlu0 %4718
  %4720 = vrot.lane.b32.xlu0 %v4563, 32
  %v4721 = vpop.permute.xlu0 %4720
  %4722 = vrot.lane.b32.xlu0 %v4564, 32
  %v4723 = vpop.permute.xlu0 %4722
  %4724 = vrot.lane.b32.xlu0 %v4565, 32
  %v4725 = vpop.permute.xlu0 %4724
  %4726 = vrot.lane.b32.xlu0 %v4566, 32
  %v4727 = vpop.permute.xlu0 %4726
  %4728 = vrot.lane.b32.xlu0 %v4567, 32
  %v4729 = vpop.permute.xlu0 %4728
  %4730 = vrot.lane.b32.xlu0 %v4568, 32
  %v4731 = vpop.permute.xlu0 %4730
  %4732 = vrot.lane.b32.xlu0 %v4569, 32
  %v4733 = vpop.permute.xlu0 %4732
  %4734 = vrot.lane.b32.xlu0 %v4570, 32
  %v4735 = vpop.permute.xlu0 %4734
  %4736 = vrot.lane.b32.xlu0 %v4571, 32
  %v4737 = vpop.permute.xlu0 %4736
  %4738 = vrot.lane.b32.xlu0 %v4572, 32
  %v4739 = vpop.permute.xlu0 %4738
  %4740 = vrot.lane.b32.xlu0 %v4573, 32
  %v4741 = vpop.permute.xlu0 %4740
  %4742 = vrot.lane.b32.xlu0 %v4574, 32
  %v4743 = vpop.permute.xlu0 %4742
  %4744 = vrot.lane.b32.xlu0 %v4575, 32
  %v4745 = vpop.permute.xlu0 %4744
  %4746 = vrot.lane.b32.xlu0 %v4576, 32
  %v4747 = vpop.permute.xlu0 %4746
  %4748 = vrot.lane.b32.xlu0 %v4577, 32
  %v4749 = vpop.permute.xlu0 %4748
  %4750 = vrot.lane.b32.xlu0 %v4578, 32
  %v4751 = vpop.permute.xlu0 %4750
  %4752 = vrot.lane.b32.xlu0 %v4579, 32
  %v4753 = vpop.permute.xlu0 %4752
  %4754 = vrot.lane.b32.xlu0 %v4580, 32
  %v4755 = vpop.permute.xlu0 %4754
  %4756 = vrot.lane.b32.xlu0 %v4581, 32
  %v4757 = vpop.permute.xlu0 %4756
  %4758 = vrot.lane.b32.xlu0 %v4582, 32
  %v4759 = vpop.permute.xlu0 %4758
  %4760 = vrot.lane.b32.xlu0 %v4583, 32
  %v4761 = vpop.permute.xlu0 %4760
  %4762 = vrot.lane.b32.xlu0 %v4584, 32
  %v4763 = vpop.permute.xlu0 %4762
  %4764 = vrot.lane.b32.xlu0 %v4585, 32
  %v4765 = vpop.permute.xlu0 %4764
  %4766 = vrot.lane.b32.xlu0 %v4586, 32
  %v4767 = vpop.permute.xlu0 %4766
  %4768 = vrot.lane.b32.xlu0 %v4587, 32
  %v4769 = vpop.permute.xlu0 %4768
  %4770 = vrot.lane.b32.xlu0 %v4588, 32
  %v4771 = vpop.permute.xlu0 %4770
  %4772 = vrot.lane.b32.xlu0 %v4589, 32
  %v4773 = vpop.permute.xlu0 %4772
  %4774 = vrot.lane.b32.xlu0 %v4590, 32
  %v4775 = vpop.permute.xlu0 %4774
  %4776 = vrot.lane.b32.xlu0 %v4591, 32
  %v4777 = vpop.permute.xlu0 %4776
  %4778 = vrot.lane.b32.xlu0 %v4592, 32
  %v4779 = vpop.permute.xlu0 %4778
  %4780 = vrot.lane.b32.xlu0 %v4593, 32
  %v4781 = vpop.permute.xlu0 %4780
  %4782 = vrot.lane.b32.xlu0 %v4594, 32
  %v4783 = vpop.permute.xlu0 %4782
  %4784 = vrot.lane.b32.xlu0 %v4595, 32
  %v4785 = vpop.permute.xlu0 %4784
  %4786 = vrot.lane.b32.xlu0 %v4596, 32
  %v4787 = vpop.permute.xlu0 %4786
  %4788 = vrot.lane.b32.xlu0 %v4597, 32
  %v4789 = vpop.permute.xlu0 %4788
  %vm4854 = vcmask 523520
  %4855 = vst.msk [vmem:[#allocation3] sm:$0xff] %vm4854, %v4663
  %4856 = vst.msk [vmem:[#allocation3 + $0x18] sm:$0xff] %vm4854, %v4665
  %4857 = vst.msk [vmem:[#allocation3 + $0x30] sm:$0xff] %vm4854, %v4667
  %4858 = vst.msk [vmem:[#allocation3 + $0x48] sm:$0xff] %vm4854, %v4669
  %4859 = vst.msk [vmem:[#allocation3 + $0x60] sm:$0xff] %vm4854, %v4671
  %4860 = vst.msk [vmem:[#allocation3 + $0x78] sm:$0xff] %vm4854, %v4673
  %4861 = vst.msk [vmem:[#allocation3 + $0x90] sm:$0xff] %vm4854, %v4675
  %4862 = vst.msk [vmem:[#allocation3 + $0xa8] sm:$0xff] %vm4854, %v4677
  %4863 = vst.msk [vmem:[#allocation3 + $0xc0] sm:$0xff] %vm4854, %v4679
  %4864 = vst.msk [vmem:[#allocation3 + $0xd8] sm:$0xff] %vm4854, %v4681
  %4865 = vst.msk [vmem:[#allocation3 + $0xf0] sm:$0xff] %vm4854, %v4683
  %4866 = vst.msk [vmem:[#allocation3 + $0x108] sm:$0xff] %vm4854, %v4685
  %4867 = vst.msk [vmem:[#allocation3 + $0x120] sm:$0xff] %vm4854, %v4687
  %4868 = vst.msk [vmem:[#allocation3 + $0x138] sm:$0xff] %vm4854, %v4689
  %4869 = vst.msk [vmem:[#allocation3 + $0x150] sm:$0xff] %vm4854, %v4691
  %4870 = vst.msk [vmem:[#allocation3 + $0x168] sm:$0xff] %vm4854, %v4693
  %4871 = vst.msk [vmem:[#allocation3 + $0x180] sm:$0xff] %vm4854, %v4695
  %4872 = vst.msk [vmem:[#allocation3 + $0x198] sm:$0xff] %vm4854, %v4697
  %4873 = vst.msk [vmem:[#allocation3 + $0x1b0] sm:$0xff] %vm4854, %v4699
  %4874 = vst.msk [vmem:[#allocation3 + $0x1c8] sm:$0xff] %vm4854, %v4701
  %4875 = vst.msk [vmem:[#allocation3 + $0x1e0] sm:$0xff] %vm4854, %v4703
  %4876 = vst.msk [vmem:[#allocation3 + $0x1f8] sm:$0xff] %vm4854, %v4705
  %4877 = vst.msk [vmem:[#allocation3 + $0x210] sm:$0xff] %vm4854, %v4707
  %4878 = vst.msk [vmem:[#allocation3 + $0x228] sm:$0xff] %vm4854, %v4709
  %4879 = vst.msk [vmem:[#allocation3 + $0x240] sm:$0xff] %vm4854, %v4711
  %4880 = vst.msk [vmem:[#allocation3 + $0x258] sm:$0xff] %vm4854, %v4713
  %4881 = vst.msk [vmem:[#allocation3 + $0x270] sm:$0xff] %vm4854, %v4715
  %4882 = vst.msk [vmem:[#allocation3 + $0x288] sm:$0xff] %vm4854, %v4717
  %4883 = vst.msk [vmem:[#allocation3 + $0x2a0] sm:$0xff] %vm4854, %v4719
  %4884 = vst.msk [vmem:[#allocation3 + $0x2b8] sm:$0xff] %vm4854, %v4721
  %4885 = vst.msk [vmem:[#allocation3 + $0x2d0] sm:$0xff] %vm4854, %v4723
  %4886 = vst.msk [vmem:[#allocation3 + $0x2e8] sm:$0xff] %vm4854, %v4725
  %4887 = vst.msk [vmem:[#allocation3 + $0x300] sm:$0xff] %vm4854, %v4727
  %4888 = vst.msk [vmem:[#allocation3 + $0x318] sm:$0xff] %vm4854, %v4729
  %4889 = vst.msk [vmem:[#allocation3 + $0x330] sm:$0xff] %vm4854, %v4731
  %4890 = vst.msk [vmem:[#allocation3 + $0x348] sm:$0xff] %vm4854, %v4733
  %4891 = vst.msk [vmem:[#allocation3 + $0x360] sm:$0xff] %vm4854, %v4735
  %4892 = vst.msk [vmem:[#allocation3 + $0x378] sm:$0xff] %vm4854, %v4737
  %4893 = vst.msk [vmem:[#allocation3 + $0x390] sm:$0xff] %vm4854, %v4739
  %4894 = vst.msk [vmem:[#allocation3 + $0x3a8] sm:$0xff] %vm4854, %v4741
  %4895 = vst.msk [vmem:[#allocation3 + $0x3c0] sm:$0xff] %vm4854, %v4743
  %4896 = vst.msk [vmem:[#allocation3 + $0x3d8] sm:$0xff] %vm4854, %v4745
  %4897 = vst.msk [vmem:[#allocation3 + $0x3f0] sm:$0xff] %vm4854, %v4747
  %4898 = vst.msk [vmem:[#allocation3 + $0x408] sm:$0xff] %vm4854, %v4749
  %4899 = vst.msk [vmem:[#allocation3 + $0x420] sm:$0xff] %vm4854, %v4751
  %4900 = vst.msk [vmem:[#allocation3 + $0x438] sm:$0xff] %vm4854, %v4753
  %4901 = vst.msk [vmem:[#allocation3 + $0x450] sm:$0xff] %vm4854, %v4755
  %4902 = vst.msk [vmem:[#allocation3 + $0x468] sm:$0xff] %vm4854, %v4757
  %4903 = vst.msk [vmem:[#allocation3 + $0x480] sm:$0xff] %vm4854, %v4759
  %4904 = vst.msk [vmem:[#allocation3 + $0x498] sm:$0xff] %vm4854, %v4761
  %4905 = vst.msk [vmem:[#allocation3 + $0x4b0] sm:$0xff] %vm4854, %v4763
  %4906 = vst.msk [vmem:[#allocation3 + $0x4c8] sm:$0xff] %vm4854, %v4765
  %4907 = vst.msk [vmem:[#allocation3 + $0x4e0] sm:$0xff] %vm4854, %v4767
  %4908 = vst.msk [vmem:[#allocation3 + $0x4f8] sm:$0xff] %vm4854, %v4769
  %4909 = vst.msk [vmem:[#allocation3 + $0x510] sm:$0xff] %vm4854, %v4771
  %4910 = vst.msk [vmem:[#allocation3 + $0x528] sm:$0xff] %vm4854, %v4773
  %4911 = vst.msk [vmem:[#allocation3 + $0x540] sm:$0xff] %vm4854, %v4775
  %4912 = vst.msk [vmem:[#allocation3 + $0x558] sm:$0xff] %vm4854, %v4777
  %4913 = vst.msk [vmem:[#allocation3 + $0x570] sm:$0xff] %vm4854, %v4779
  %4914 = vst.msk [vmem:[#allocation3 + $0x588] sm:$0xff] %vm4854, %v4781
  %4915 = vst.msk [vmem:[#allocation3 + $0x5a0] sm:$0xff] %vm4854, %v4783
  %4916 = vst.msk [vmem:[#allocation3 + $0x5b8] sm:$0xff] %vm4854, %v4785
  %4917 = vst.msk [vmem:[#allocation3 + $0x5d0] sm:$0xff] %vm4854, %v4787
  %4918 = vst.msk [vmem:[#allocation3 + $0x5e8] sm:$0xff] %vm4854, %v4789
  %s4919 = scalar_lea.vmem [#allocation2], 16
  %v4920 = vld [vmem:[%s4919] sm:$0xff]
  %v4921 = vld [vmem:[%s4919 + $0x8] sm:$0xff]
  %v4922 = vld [vmem:[%s4919 + $0x10] sm:$0xff]
  %v4923 = vld [vmem:[%s4919 + $0x18] sm:$0xff]
  %v4924 = vld [vmem:[%s4919 + $0x20] sm:$0xff]
  %v4925 = vld [vmem:[%s4919 + $0x28] sm:$0xff]
  %v4926 = vld [vmem:[%s4919 + $0x30] sm:$0xff]
  %v4927 = vld [vmem:[%s4919 + $0x38] sm:$0xff]
  %v4928 = vld [vmem:[%s4919 + $0x50] sm:$0xff]
  %v4929 = vld [vmem:[%s4919 + $0x58] sm:$0xff]
  %v4930 = vld [vmem:[%s4919 + $0x60] sm:$0xff]
  %v4931 = vld [vmem:[%s4919 + $0x68] sm:$0xff]
  %v4932 = vld [vmem:[%s4919 + $0x70] sm:$0xff]
  %v4933 = vld [vmem:[%s4919 + $0x78] sm:$0xff]
  %v4934 = vld [vmem:[%s4919 + $0x80] sm:$0xff]
  %v4935 = vld [vmem:[%s4919 + $0x88] sm:$0xff]
  %v4936 = vld [vmem:[%s4919 + $0xa0] sm:$0xff]
  %v4937 = vld [vmem:[%s4919 + $0xa8] sm:$0xff]
  %v4938 = vld [vmem:[%s4919 + $0xb0] sm:$0xff]
  %v4939 = vld [vmem:[%s4919 + $0xb8] sm:$0xff]
  %v4940 = vld [vmem:[%s4919 + $0xc0] sm:$0xff]
  %v4941 = vld [vmem:[%s4919 + $0xc8] sm:$0xff]
  %v4942 = vld [vmem:[%s4919 + $0xd0] sm:$0xff]
  %v4943 = vld [vmem:[%s4919 + $0xd8] sm:$0xff]
  %v4944 = vld [vmem:[%s4919 + $0xf0] sm:$0xff]
  %v4945 = vld [vmem:[%s4919 + $0xf8] sm:$0xff]
  %v4946 = vld [vmem:[%s4919 + $0x100] sm:$0xff]
  %v4947 = vld [vmem:[%s4919 + $0x108] sm:$0xff]
  %v4948 = vld [vmem:[%s4919 + $0x110] sm:$0xff]
  %v4949 = vld [vmem:[%s4919 + $0x118] sm:$0xff]
  %v4950 = vld [vmem:[%s4919 + $0x120] sm:$0xff]
  %v4951 = vld [vmem:[%s4919 + $0x128] sm:$0xff]
  %v4952 = vld [vmem:[%s4919 + $0x140] sm:$0xff]
  %v4953 = vld [vmem:[%s4919 + $0x148] sm:$0xff]
  %v4954 = vld [vmem:[%s4919 + $0x150] sm:$0xff]
  %v4955 = vld [vmem:[%s4919 + $0x158] sm:$0xff]
  %v4956 = vld [vmem:[%s4919 + $0x160] sm:$0xff]
  %v4957 = vld [vmem:[%s4919 + $0x168] sm:$0xff]
  %v4958 = vld [vmem:[%s4919 + $0x170] sm:$0xff]
  %v4959 = vld [vmem:[%s4919 + $0x178] sm:$0xff]
  %v4960 = vld [vmem:[%s4919 + $0x190] sm:$0xff]
  %v4961 = vld [vmem:[%s4919 + $0x198] sm:$0xff]
  %v4962 = vld [vmem:[%s4919 + $0x1a0] sm:$0xff]
  %v4963 = vld [vmem:[%s4919 + $0x1a8] sm:$0xff]
  %v4964 = vld [vmem:[%s4919 + $0x1b0] sm:$0xff]
  %v4965 = vld [vmem:[%s4919 + $0x1b8] sm:$0xff]
  %v4966 = vld [vmem:[%s4919 + $0x1c0] sm:$0xff]
  %v4967 = vld [vmem:[%s4919 + $0x1c8] sm:$0xff]
  %v4968 = vld [vmem:[%s4919 + $0x1e0] sm:$0xff]
  %v4969 = vld [vmem:[%s4919 + $0x1e8] sm:$0xff]
  %v4970 = vld [vmem:[%s4919 + $0x1f0] sm:$0xff]
  %v4971 = vld [vmem:[%s4919 + $0x1f8] sm:$0xff]
  %v4972 = vld [vmem:[%s4919 + $0x200] sm:$0xff]
  %v4973 = vld [vmem:[%s4919 + $0x208] sm:$0xff]
  %v4974 = vld [vmem:[%s4919 + $0x210] sm:$0xff]
  %v4975 = vld [vmem:[%s4919 + $0x218] sm:$0xff]
  %v4976 = vld [vmem:[%s4919 + $0x230] sm:$0xff]
  %v4977 = vld [vmem:[%s4919 + $0x238] sm:$0xff]
  %v4978 = vld [vmem:[%s4919 + $0x240] sm:$0xff]
  %v4979 = vld [vmem:[%s4919 + $0x248] sm:$0xff]
  %v4980 = vld [vmem:[%s4919 + $0x250] sm:$0xff]
  %v4981 = vld [vmem:[%s4919 + $0x258] sm:$0xff]
  %v4982 = vld [vmem:[%s4919 + $0x260] sm:$0xff]
  %v4983 = vld [vmem:[%s4919 + $0x268] sm:$0xff]
  %5048 = vrot.lane.b32.xlu0 %v4920, 64
  %v5049 = vpop.permute.xlu0 %5048
  %5050 = vrot.lane.b32.xlu0 %v4921, 64
  %v5051 = vpop.permute.xlu0 %5050
  %5052 = vrot.lane.b32.xlu0 %v4922, 64
  %v5053 = vpop.permute.xlu0 %5052
  %5054 = vrot.lane.b32.xlu0 %v4923, 64
  %v5055 = vpop.permute.xlu0 %5054
  %5056 = vrot.lane.b32.xlu0 %v4924, 64
  %v5057 = vpop.permute.xlu0 %5056
  %5058 = vrot.lane.b32.xlu0 %v4925, 64
  %v5059 = vpop.permute.xlu0 %5058
  %5060 = vrot.lane.b32.xlu0 %v4926, 64
  %v5061 = vpop.permute.xlu0 %5060
  %5062 = vrot.lane.b32.xlu0 %v4927, 64
  %v5063 = vpop.permute.xlu0 %5062
  %5064 = vrot.lane.b32.xlu0 %v4928, 64
  %v5065 = vpop.permute.xlu0 %5064
  %5066 = vrot.lane.b32.xlu0 %v4929, 64
  %v5067 = vpop.permute.xlu0 %5066
  %5068 = vrot.lane.b32.xlu0 %v4930, 64
  %v5069 = vpop.permute.xlu0 %5068
  %5070 = vrot.lane.b32.xlu0 %v4931, 64
  %v5071 = vpop.permute.xlu0 %5070
  %5072 = vrot.lane.b32.xlu0 %v4932, 64
  %v5073 = vpop.permute.xlu0 %5072
  %5074 = vrot.lane.b32.xlu0 %v4933, 64
  %v5075 = vpop.permute.xlu0 %5074
  %5076 = vrot.lane.b32.xlu0 %v4934, 64
  %v5077 = vpop.permute.xlu0 %5076
  %5078 = vrot.lane.b32.xlu0 %v4935, 64
  %v5079 = vpop.permute.xlu0 %5078
  %5080 = vrot.lane.b32.xlu0 %v4936, 64
  %v5081 = vpop.permute.xlu0 %5080
  %5082 = vrot.lane.b32.xlu0 %v4937, 64
  %v5083 = vpop.permute.xlu0 %5082
  %5084 = vrot.lane.b32.xlu0 %v4938, 64
  %v5085 = vpop.permute.xlu0 %5084
  %5086 = vrot.lane.b32.xlu0 %v4939, 64
  %v5087 = vpop.permute.xlu0 %5086
  %5088 = vrot.lane.b32.xlu0 %v4940, 64
  %v5089 = vpop.permute.xlu0 %5088
  %5090 = vrot.lane.b32.xlu0 %v4941, 64
  %v5091 = vpop.permute.xlu0 %5090
  %5092 = vrot.lane.b32.xlu0 %v4942, 64
  %v5093 = vpop.permute.xlu0 %5092
  %5094 = vrot.lane.b32.xlu0 %v4943, 64
  %v5095 = vpop.permute.xlu0 %5094
  %5096 = vrot.lane.b32.xlu0 %v4944, 64
  %v5097 = vpop.permute.xlu0 %5096
  %5098 = vrot.lane.b32.xlu0 %v4945, 64
  %v5099 = vpop.permute.xlu0 %5098
  %5100 = vrot.lane.b32.xlu0 %v4946, 64
  %v5101 = vpop.permute.xlu0 %5100
  %5102 = vrot.lane.b32.xlu0 %v4947, 64
  %v5103 = vpop.permute.xlu0 %5102
  %5104 = vrot.lane.b32.xlu0 %v4948, 64
  %v5105 = vpop.permute.xlu0 %5104
  %5106 = vrot.lane.b32.xlu0 %v4949, 64
  %v5107 = vpop.permute.xlu0 %5106
  %5108 = vrot.lane.b32.xlu0 %v4950, 64
  %v5109 = vpop.permute.xlu0 %5108
  %5110 = vrot.lane.b32.xlu0 %v4951, 64
  %v5111 = vpop.permute.xlu0 %5110
  %5112 = vrot.lane.b32.xlu0 %v4952, 64
  %v5113 = vpop.permute.xlu0 %5112
  %5114 = vrot.lane.b32.xlu0 %v4953, 64
  %v5115 = vpop.permute.xlu0 %5114
  %5116 = vrot.lane.b32.xlu0 %v4954, 64
  %v5117 = vpop.permute.xlu0 %5116
  %5118 = vrot.lane.b32.xlu0 %v4955, 64
  %v5119 = vpop.permute.xlu0 %5118
  %5120 = vrot.lane.b32.xlu0 %v4956, 64
  %v5121 = vpop.permute.xlu0 %5120
  %5122 = vrot.lane.b32.xlu0 %v4957, 64
  %v5123 = vpop.permute.xlu0 %5122
  %5124 = vrot.lane.b32.xlu0 %v4958, 64
  %v5125 = vpop.permute.xlu0 %5124
  %5126 = vrot.lane.b32.xlu0 %v4959, 64
  %v5127 = vpop.permute.xlu0 %5126
  %5128 = vrot.lane.b32.xlu0 %v4960, 64
  %v5129 = vpop.permute.xlu0 %5128
  %5130 = vrot.lane.b32.xlu0 %v4961, 64
  %v5131 = vpop.permute.xlu0 %5130
  %5132 = vrot.lane.b32.xlu0 %v4962, 64
  %v5133 = vpop.permute.xlu0 %5132
  %5134 = vrot.lane.b32.xlu0 %v4963, 64
  %v5135 = vpop.permute.xlu0 %5134
  %5136 = vrot.lane.b32.xlu0 %v4964, 64
  %v5137 = vpop.permute.xlu0 %5136
  %5138 = vrot.lane.b32.xlu0 %v4965, 64
  %v5139 = vpop.permute.xlu0 %5138
  %5140 = vrot.lane.b32.xlu0 %v4966, 64
  %v5141 = vpop.permute.xlu0 %5140
  %5142 = vrot.lane.b32.xlu0 %v4967, 64
  %v5143 = vpop.permute.xlu0 %5142
  %5144 = vrot.lane.b32.xlu0 %v4968, 64
  %v5145 = vpop.permute.xlu0 %5144
  %5146 = vrot.lane.b32.xlu0 %v4969, 64
  %v5147 = vpop.permute.xlu0 %5146
  %5148 = vrot.lane.b32.xlu0 %v4970, 64
  %v5149 = vpop.permute.xlu0 %5148
  %5150 = vrot.lane.b32.xlu0 %v4971, 64
  %v5151 = vpop.permute.xlu0 %5150
  %5152 = vrot.lane.b32.xlu0 %v4972, 64
  %v5153 = vpop.permute.xlu0 %5152
  %5154 = vrot.lane.b32.xlu0 %v4973, 64
  %v5155 = vpop.permute.xlu0 %5154
  %5156 = vrot.lane.b32.xlu0 %v4974, 64
  %v5157 = vpop.permute.xlu0 %5156
  %5158 = vrot.lane.b32.xlu0 %v4975, 64
  %v5159 = vpop.permute.xlu0 %5158
  %5160 = vrot.lane.b32.xlu0 %v4976, 64
  %v5161 = vpop.permute.xlu0 %5160
  %5162 = vrot.lane.b32.xlu0 %v4977, 64
  %v5163 = vpop.permute.xlu0 %5162
  %5164 = vrot.lane.b32.xlu0 %v4978, 64
  %v5165 = vpop.permute.xlu0 %5164
  %5166 = vrot.lane.b32.xlu0 %v4979, 64
  %v5167 = vpop.permute.xlu0 %5166
  %5168 = vrot.lane.b32.xlu0 %v4980, 64
  %v5169 = vpop.permute.xlu0 %5168
  %5170 = vrot.lane.b32.xlu0 %v4981, 64
  %v5171 = vpop.permute.xlu0 %5170
  %5172 = vrot.lane.b32.xlu0 %v4982, 64
  %v5173 = vpop.permute.xlu0 %5172
  %5174 = vrot.lane.b32.xlu0 %v4983, 64
  %v5175 = vpop.permute.xlu0 %5174
  %vm5240 = vcmask 785920
  %5241 = vst.msk [vmem:[#allocation3] sm:$0xff] %vm5240, %v5049
  %5242 = vst.msk [vmem:[#allocation3 + $0x18] sm:$0xff] %vm5240, %v5051
  %5243 = vst.msk [vmem:[#allocation3 + $0x30] sm:$0xff] %vm5240, %v5053
  %5244 = vst.msk [vmem:[#allocation3 + $0x48] sm:$0xff] %vm5240, %v5055
  %5245 = vst.msk [vmem:[#allocation3 + $0x60] sm:$0xff] %vm5240, %v5057
  %5246 = vst.msk [vmem:[#allocation3 + $0x78] sm:$0xff] %vm5240, %v5059
  %5247 = vst.msk [vmem:[#allocation3 + $0x90] sm:$0xff] %vm5240, %v5061
  %5248 = vst.msk [vmem:[#allocation3 + $0xa8] sm:$0xff] %vm5240, %v5063
  %5249 = vst.msk [vmem:[#allocation3 + $0xc0] sm:$0xff] %vm5240, %v5065
  %5250 = vst.msk [vmem:[#allocation3 + $0xd8] sm:$0xff] %vm5240, %v5067
  %5251 = vst.msk [vmem:[#allocation3 + $0xf0] sm:$0xff] %vm5240, %v5069
  %5252 = vst.msk [vmem:[#allocation3 + $0x108] sm:$0xff] %vm5240, %v5071
  %5253 = vst.msk [vmem:[#allocation3 + $0x120] sm:$0xff] %vm5240, %v5073
  %5254 = vst.msk [vmem:[#allocation3 + $0x138] sm:$0xff] %vm5240, %v5075
  %5255 = vst.msk [vmem:[#allocation3 + $0x150] sm:$0xff] %vm5240, %v5077
  %5256 = vst.msk [vmem:[#allocation3 + $0x168] sm:$0xff] %vm5240, %v5079
  %5257 = vst.msk [vmem:[#allocation3 + $0x180] sm:$0xff] %vm5240, %v5081
  %5258 = vst.msk [vmem:[#allocation3 + $0x198] sm:$0xff] %vm5240, %v5083
  %5259 = vst.msk [vmem:[#allocation3 + $0x1b0] sm:$0xff] %vm5240, %v5085
  %5260 = vst.msk [vmem:[#allocation3 + $0x1c8] sm:$0xff] %vm5240, %v5087
  %5261 = vst.msk [vmem:[#allocation3 + $0x1e0] sm:$0xff] %vm5240, %v5089
  %5262 = vst.msk [vmem:[#allocation3 + $0x1f8] sm:$0xff] %vm5240, %v5091
  %5263 = vst.msk [vmem:[#allocation3 + $0x210] sm:$0xff] %vm5240, %v5093
  %5264 = vst.msk [vmem:[#allocation3 + $0x228] sm:$0xff] %vm5240, %v5095
  %5265 = vst.msk [vmem:[#allocation3 + $0x240] sm:$0xff] %vm5240, %v5097
  %5266 = vst.msk [vmem:[#allocation3 + $0x258] sm:$0xff] %vm5240, %v5099
  %5267 = vst.msk [vmem:[#allocation3 + $0x270] sm:$0xff] %vm5240, %v5101
  %5268 = vst.msk [vmem:[#allocation3 + $0x288] sm:$0xff] %vm5240, %v5103
  %5269 = vst.msk [vmem:[#allocation3 + $0x2a0] sm:$0xff] %vm5240, %v5105
  %5270 = vst.msk [vmem:[#allocation3 + $0x2b8] sm:$0xff] %vm5240, %v5107
  %5271 = vst.msk [vmem:[#allocation3 + $0x2d0] sm:$0xff] %vm5240, %v5109
  %5272 = vst.msk [vmem:[#allocation3 + $0x2e8] sm:$0xff] %vm5240, %v5111
  %5273 = vst.msk [vmem:[#allocation3 + $0x300] sm:$0xff] %vm5240, %v5113
  %5274 = vst.msk [vmem:[#allocation3 + $0x318] sm:$0xff] %vm5240, %v5115
  %5275 = vst.msk [vmem:[#allocation3 + $0x330] sm:$0xff] %vm5240, %v5117
  %5276 = vst.msk [vmem:[#allocation3 + $0x348] sm:$0xff] %vm5240, %v5119
  %5277 = vst.msk [vmem:[#allocation3 + $0x360] sm:$0xff] %vm5240, %v5121
  %5278 = vst.msk [vmem:[#allocation3 + $0x378] sm:$0xff] %vm5240, %v5123
  %5279 = vst.msk [vmem:[#allocation3 + $0x390] sm:$0xff] %vm5240, %v5125
  %5280 = vst.msk [vmem:[#allocation3 + $0x3a8] sm:$0xff] %vm5240, %v5127
  %5281 = vst.msk [vmem:[#allocation3 + $0x3c0] sm:$0xff] %vm5240, %v5129
  %5282 = vst.msk [vmem:[#allocation3 + $0x3d8] sm:$0xff] %vm5240, %v5131
  %5283 = vst.msk [vmem:[#allocation3 + $0x3f0] sm:$0xff] %vm5240, %v5133
  %5284 = vst.msk [vmem:[#allocation3 + $0x408] sm:$0xff] %vm5240, %v5135
  %5285 = vst.msk [vmem:[#allocation3 + $0x420] sm:$0xff] %vm5240, %v5137
  %5286 = vst.msk [vmem:[#allocation3 + $0x438] sm:$0xff] %vm5240, %v5139
  %5287 = vst.msk [vmem:[#allocation3 + $0x450] sm:$0xff] %vm5240, %v5141
  %5288 = vst.msk [vmem:[#allocation3 + $0x468] sm:$0xff] %vm5240, %v5143
  %5289 = vst.msk [vmem:[#allocation3 + $0x480] sm:$0xff] %vm5240, %v5145
  %5290 = vst.msk [vmem:[#allocation3 + $0x498] sm:$0xff] %vm5240, %v5147
  %5291 = vst.msk [vmem:[#allocation3 + $0x4b0] sm:$0xff] %vm5240, %v5149
  %5292 = vst.msk [vmem:[#allocation3 + $0x4c8] sm:$0xff] %vm5240, %v5151
  %5293 = vst.msk [vmem:[#allocation3 + $0x4e0] sm:$0xff] %vm5240, %v5153
  %5294 = vst.msk [vmem:[#allocation3 + $0x4f8] sm:$0xff] %vm5240, %v5155
  %5295 = vst.msk [vmem:[#allocation3 + $0x510] sm:$0xff] %vm5240, %v5157
  %5296 = vst.msk [vmem:[#allocation3 + $0x528] sm:$0xff] %vm5240, %v5159
  %5297 = vst.msk [vmem:[#allocation3 + $0x540] sm:$0xff] %vm5240, %v5161
  %5298 = vst.msk [vmem:[#allocation3 + $0x558] sm:$0xff] %vm5240, %v5163
  %5299 = vst.msk [vmem:[#allocation3 + $0x570] sm:$0xff] %vm5240, %v5165
  %5300 = vst.msk [vmem:[#allocation3 + $0x588] sm:$0xff] %vm5240, %v5167
  %5301 = vst.msk [vmem:[#allocation3 + $0x5a0] sm:$0xff] %vm5240, %v5169
  %5302 = vst.msk [vmem:[#allocation3 + $0x5b8] sm:$0xff] %vm5240, %v5171
  %5303 = vst.msk [vmem:[#allocation3 + $0x5d0] sm:$0xff] %vm5240, %v5173
  %5304 = vst.msk [vmem:[#allocation3 + $0x5e8] sm:$0xff] %vm5240, %v5175
  %s5305 = scalar_lea.vmem [#allocation2], 80
  %v5306 = vld [vmem:[%s5305] sm:$0xff]
  %v5307 = vld [vmem:[%s5305 + $0x8] sm:$0xff]
  %v5308 = vld [vmem:[%s5305 + $0x10] sm:$0xff]
  %v5309 = vld [vmem:[%s5305 + $0x18] sm:$0xff]
  %v5310 = vld [vmem:[%s5305 + $0x20] sm:$0xff]
  %v5311 = vld [vmem:[%s5305 + $0x28] sm:$0xff]
  %v5312 = vld [vmem:[%s5305 + $0x30] sm:$0xff]
  %v5313 = vld [vmem:[%s5305 + $0x38] sm:$0xff]
  %v5314 = vld [vmem:[%s5305 + $0x50] sm:$0xff]
  %v5315 = vld [vmem:[%s5305 + $0x58] sm:$0xff]
  %v5316 = vld [vmem:[%s5305 + $0x60] sm:$0xff]
  %v5317 = vld [vmem:[%s5305 + $0x68] sm:$0xff]
  %v5318 = vld [vmem:[%s5305 + $0x70] sm:$0xff]
  %v5319 = vld [vmem:[%s5305 + $0x78] sm:$0xff]
  %v5320 = vld [vmem:[%s5305 + $0x80] sm:$0xff]
  %v5321 = vld [vmem:[%s5305 + $0x88] sm:$0xff]
  %v5322 = vld [vmem:[%s5305 + $0xa0] sm:$0xff]
  %v5323 = vld [vmem:[%s5305 + $0xa8] sm:$0xff]
  %v5324 = vld [vmem:[%s5305 + $0xb0] sm:$0xff]
  %v5325 = vld [vmem:[%s5305 + $0xb8] sm:$0xff]
  %v5326 = vld [vmem:[%s5305 + $0xc0] sm:$0xff]
  %v5327 = vld [vmem:[%s5305 + $0xc8] sm:$0xff]
  %v5328 = vld [vmem:[%s5305 + $0xd0] sm:$0xff]
  %v5329 = vld [vmem:[%s5305 + $0xd8] sm:$0xff]
  %v5330 = vld [vmem:[%s5305 + $0xf0] sm:$0xff]
  %v5331 = vld [vmem:[%s5305 + $0xf8] sm:$0xff]
  %v5332 = vld [vmem:[%s5305 + $0x100] sm:$0xff]
  %v5333 = vld [vmem:[%s5305 + $0x108] sm:$0xff]
  %v5334 = vld [vmem:[%s5305 + $0x110] sm:$0xff]
  %v5335 = vld [vmem:[%s5305 + $0x118] sm:$0xff]
  %v5336 = vld [vmem:[%s5305 + $0x120] sm:$0xff]
  %v5337 = vld [vmem:[%s5305 + $0x128] sm:$0xff]
  %v5338 = vld [vmem:[%s5305 + $0x140] sm:$0xff]
  %v5339 = vld [vmem:[%s5305 + $0x148] sm:$0xff]
  %v5340 = vld [vmem:[%s5305 + $0x150] sm:$0xff]
  %v5341 = vld [vmem:[%s5305 + $0x158] sm:$0xff]
  %v5342 = vld [vmem:[%s5305 + $0x160] sm:$0xff]
  %v5343 = vld [vmem:[%s5305 + $0x168] sm:$0xff]
  %v5344 = vld [vmem:[%s5305 + $0x170] sm:$0xff]
  %v5345 = vld [vmem:[%s5305 + $0x178] sm:$0xff]
  %v5346 = vld [vmem:[%s5305 + $0x190] sm:$0xff]
  %v5347 = vld [vmem:[%s5305 + $0x198] sm:$0xff]
  %v5348 = vld [vmem:[%s5305 + $0x1a0] sm:$0xff]
  %v5349 = vld [vmem:[%s5305 + $0x1a8] sm:$0xff]
  %v5350 = vld [vmem:[%s5305 + $0x1b0] sm:$0xff]
  %v5351 = vld [vmem:[%s5305 + $0x1b8] sm:$0xff]
  %v5352 = vld [vmem:[%s5305 + $0x1c0] sm:$0xff]
  %v5353 = vld [vmem:[%s5305 + $0x1c8] sm:$0xff]
  %v5354 = vld [vmem:[%s5305 + $0x1e0] sm:$0xff]
  %v5355 = vld [vmem:[%s5305 + $0x1e8] sm:$0xff]
  %v5356 = vld [vmem:[%s5305 + $0x1f0] sm:$0xff]
  %v5357 = vld [vmem:[%s5305 + $0x1f8] sm:$0xff]
  %v5358 = vld [vmem:[%s5305 + $0x200] sm:$0xff]
  %v5359 = vld [vmem:[%s5305 + $0x208] sm:$0xff]
  %v5360 = vld [vmem:[%s5305 + $0x210] sm:$0xff]
  %v5361 = vld [vmem:[%s5305 + $0x218] sm:$0xff]
  %v5362 = vld [vmem:[%s5305 + $0x230] sm:$0xff]
  %v5363 = vld [vmem:[%s5305 + $0x238] sm:$0xff]
  %v5364 = vld [vmem:[%s5305 + $0x240] sm:$0xff]
  %v5365 = vld [vmem:[%s5305 + $0x248] sm:$0xff]
  %v5366 = vld [vmem:[%s5305 + $0x250] sm:$0xff]
  %v5367 = vld [vmem:[%s5305 + $0x258] sm:$0xff]
  %v5368 = vld [vmem:[%s5305 + $0x260] sm:$0xff]
  %v5369 = vld [vmem:[%s5305 + $0x268] sm:$0xff]
  %5434 = vrot.lane.b32.xlu0 %v5306, 96
  %v5435 = vpop.permute.xlu0 %5434
  %5436 = vrot.lane.b32.xlu0 %v5307, 96
  %v5437 = vpop.permute.xlu0 %5436
  %5438 = vrot.lane.b32.xlu0 %v5308, 96
  %v5439 = vpop.permute.xlu0 %5438
  %5440 = vrot.lane.b32.xlu0 %v5309, 96
  %v5441 = vpop.permute.xlu0 %5440
  %5442 = vrot.lane.b32.xlu0 %v5310, 96
  %v5443 = vpop.permute.xlu0 %5442
  %5444 = vrot.lane.b32.xlu0 %v5311, 96
  %v5445 = vpop.permute.xlu0 %5444
  %5446 = vrot.lane.b32.xlu0 %v5312, 96
  %v5447 = vpop.permute.xlu0 %5446
  %5448 = vrot.lane.b32.xlu0 %v5313, 96
  %v5449 = vpop.permute.xlu0 %5448
  %5450 = vrot.lane.b32.xlu0 %v5314, 96
  %v5451 = vpop.permute.xlu0 %5450
  %5452 = vrot.lane.b32.xlu0 %v5315, 96
  %v5453 = vpop.permute.xlu0 %5452
  %5454 = vrot.lane.b32.xlu0 %v5316, 96
  %v5455 = vpop.permute.xlu0 %5454
  %5456 = vrot.lane.b32.xlu0 %v5317, 96
  %v5457 = vpop.permute.xlu0 %5456
  %5458 = vrot.lane.b32.xlu0 %v5318, 96
  %v5459 = vpop.permute.xlu0 %5458
  %5460 = vrot.lane.b32.xlu0 %v5319, 96
  %v5461 = vpop.permute.xlu0 %5460
  %5462 = vrot.lane.b32.xlu0 %v5320, 96
  %v5463 = vpop.permute.xlu0 %5462
  %5464 = vrot.lane.b32.xlu0 %v5321, 96
  %v5465 = vpop.permute.xlu0 %5464
  %5466 = vrot.lane.b32.xlu0 %v5322, 96
  %v5467 = vpop.permute.xlu0 %5466
  %5468 = vrot.lane.b32.xlu0 %v5323, 96
  %v5469 = vpop.permute.xlu0 %5468
  %5470 = vrot.lane.b32.xlu0 %v5324, 96
  %v5471 = vpop.permute.xlu0 %5470
  %5472 = vrot.lane.b32.xlu0 %v5325, 96
  %v5473 = vpop.permute.xlu0 %5472
  %5474 = vrot.lane.b32.xlu0 %v5326, 96
  %v5475 = vpop.permute.xlu0 %5474
  %5476 = vrot.lane.b32.xlu0 %v5327, 96
  %v5477 = vpop.permute.xlu0 %5476
  %5478 = vrot.lane.b32.xlu0 %v5328, 96
  %v5479 = vpop.permute.xlu0 %5478
  %5480 = vrot.lane.b32.xlu0 %v5329, 96
  %v5481 = vpop.permute.xlu0 %5480
  %5482 = vrot.lane.b32.xlu0 %v5330, 96
  %v5483 = vpop.permute.xlu0 %5482
  %5484 = vrot.lane.b32.xlu0 %v5331, 96
  %v5485 = vpop.permute.xlu0 %5484
  %5486 = vrot.lane.b32.xlu0 %v5332, 96
  %v5487 = vpop.permute.xlu0 %5486
  %5488 = vrot.lane.b32.xlu0 %v5333, 96
  %v5489 = vpop.permute.xlu0 %5488
  %5490 = vrot.lane.b32.xlu0 %v5334, 96
  %v5491 = vpop.permute.xlu0 %5490
  %5492 = vrot.lane.b32.xlu0 %v5335, 96
  %v5493 = vpop.permute.xlu0 %5492
  %5494 = vrot.lane.b32.xlu0 %v5336, 96
  %v5495 = vpop.permute.xlu0 %5494
  %5496 = vrot.lane.b32.xlu0 %v5337, 96
  %v5497 = vpop.permute.xlu0 %5496
  %5498 = vrot.lane.b32.xlu0 %v5338, 96
  %v5499 = vpop.permute.xlu0 %5498
  %5500 = vrot.lane.b32.xlu0 %v5339, 96
  %v5501 = vpop.permute.xlu0 %5500
  %5502 = vrot.lane.b32.xlu0 %v5340, 96
  %v5503 = vpop.permute.xlu0 %5502
  %5504 = vrot.lane.b32.xlu0 %v5341, 96
  %v5505 = vpop.permute.xlu0 %5504
  %5506 = vrot.lane.b32.xlu0 %v5342, 96
  %v5507 = vpop.permute.xlu0 %5506
  %5508 = vrot.lane.b32.xlu0 %v5343, 96
  %v5509 = vpop.permute.xlu0 %5508
  %5510 = vrot.lane.b32.xlu0 %v5344, 96
  %v5511 = vpop.permute.xlu0 %5510
  %5512 = vrot.lane.b32.xlu0 %v5345, 96
  %v5513 = vpop.permute.xlu0 %5512
  %5514 = vrot.lane.b32.xlu0 %v5346, 96
  %v5515 = vpop.permute.xlu0 %5514
  %5516 = vrot.lane.b32.xlu0 %v5347, 96
  %v5517 = vpop.permute.xlu0 %5516
  %5518 = vrot.lane.b32.xlu0 %v5348, 96
  %v5519 = vpop.permute.xlu0 %5518
  %5520 = vrot.lane.b32.xlu0 %v5349, 96
  %v5521 = vpop.permute.xlu0 %5520
  %5522 = vrot.lane.b32.xlu0 %v5350, 96
  %v5523 = vpop.permute.xlu0 %5522
  %5524 = vrot.lane.b32.xlu0 %v5351, 96
  %v5525 = vpop.permute.xlu0 %5524
  %5526 = vrot.lane.b32.xlu0 %v5352, 96
  %v5527 = vpop.permute.xlu0 %5526
  %5528 = vrot.lane.b32.xlu0 %v5353, 96
  %v5529 = vpop.permute.xlu0 %5528
  %5530 = vrot.lane.b32.xlu0 %v5354, 96
  %v5531 = vpop.permute.xlu0 %5530
  %5532 = vrot.lane.b32.xlu0 %v5355, 96
  %v5533 = vpop.permute.xlu0 %5532
  %5534 = vrot.lane.b32.xlu0 %v5356, 96
  %v5535 = vpop.permute.xlu0 %5534
  %5536 = vrot.lane.b32.xlu0 %v5357, 96
  %v5537 = vpop.permute.xlu0 %5536
  %5538 = vrot.lane.b32.xlu0 %v5358, 96
  %v5539 = vpop.permute.xlu0 %5538
  %5540 = vrot.lane.b32.xlu0 %v5359, 96
  %v5541 = vpop.permute.xlu0 %5540
  %5542 = vrot.lane.b32.xlu0 %v5360, 96
  %v5543 = vpop.permute.xlu0 %5542
  %5544 = vrot.lane.b32.xlu0 %v5361, 96
  %v5545 = vpop.permute.xlu0 %5544
  %5546 = vrot.lane.b32.xlu0 %v5362, 96
  %v5547 = vpop.permute.xlu0 %5546
  %5548 = vrot.lane.b32.xlu0 %v5363, 96
  %v5549 = vpop.permute.xlu0 %5548
  %5550 = vrot.lane.b32.xlu0 %v5364, 96
  %v5551 = vpop.permute.xlu0 %5550
  %5552 = vrot.lane.b32.xlu0 %v5365, 96
  %v5553 = vpop.permute.xlu0 %5552
  %5554 = vrot.lane.b32.xlu0 %v5366, 96
  %v5555 = vpop.permute.xlu0 %5554
  %5556 = vrot.lane.b32.xlu0 %v5367, 96
  %v5557 = vpop.permute.xlu0 %5556
  %5558 = vrot.lane.b32.xlu0 %v5368, 96
  %v5559 = vpop.permute.xlu0 %5558
  %5560 = vrot.lane.b32.xlu0 %v5369, 96
  %v5561 = vpop.permute.xlu0 %5560
  %vm5626 = vcmask 1048320
  %5627 = vst.msk [vmem:[#allocation3] sm:$0xff] %vm5626, %v5435
  %5628 = vst.msk [vmem:[#allocation3 + $0x18] sm:$0xff] %vm5626, %v5437
  %5629 = vst.msk [vmem:[#allocation3 + $0x30] sm:$0xff] %vm5626, %v5439
  %5630 = vst.msk [vmem:[#allocation3 + $0x48] sm:$0xff] %vm5626, %v5441
  %5631 = vst.msk [vmem:[#allocation3 + $0x60] sm:$0xff] %vm5626, %v5443
  %5632 = vst.msk [vmem:[#allocation3 + $0x78] sm:$0xff] %vm5626, %v5445
  %5633 = vst.msk [vmem:[#allocation3 + $0x90] sm:$0xff] %vm5626, %v5447
  %5634 = vst.msk [vmem:[#allocation3 + $0xa8] sm:$0xff] %vm5626, %v5449
  %5635 = vst.msk [vmem:[#allocation3 + $0xc0] sm:$0xff] %vm5626, %v5451
  %5636 = vst.msk [vmem:[#allocation3 + $0xd8] sm:$0xff] %vm5626, %v5453
  %5637 = vst.msk [vmem:[#allocation3 + $0xf0] sm:$0xff] %vm5626, %v5455
  %5638 = vst.msk [vmem:[#allocation3 + $0x108] sm:$0xff] %vm5626, %v5457
  %5639 = vst.msk [vmem:[#allocation3 + $0x120] sm:$0xff] %vm5626, %v5459
  %5640 = vst.msk [vmem:[#allocation3 + $0x138] sm:$0xff] %vm5626, %v5461
  %5641 = vst.msk [vmem:[#allocation3 + $0x150] sm:$0xff] %vm5626, %v5463
  %5642 = vst.msk [vmem:[#allocation3 + $0x168] sm:$0xff] %vm5626, %v5465
  %5643 = vst.msk [vmem:[#allocation3 + $0x180] sm:$0xff] %vm5626, %v5467
  %5644 = vst.msk [vmem:[#allocation3 + $0x198] sm:$0xff] %vm5626, %v5469
  %5645 = vst.msk [vmem:[#allocation3 + $0x1b0] sm:$0xff] %vm5626, %v5471
  %5646 = vst.msk [vmem:[#allocation3 + $0x1c8] sm:$0xff] %vm5626, %v5473
  %5647 = vst.msk [vmem:[#allocation3 + $0x1e0] sm:$0xff] %vm5626, %v5475
  %5648 = vst.msk [vmem:[#allocation3 + $0x1f8] sm:$0xff] %vm5626, %v5477
  %5649 = vst.msk [vmem:[#allocation3 + $0x210] sm:$0xff] %vm5626, %v5479
  %5650 = vst.msk [vmem:[#allocation3 + $0x228] sm:$0xff] %vm5626, %v5481
  %5651 = vst.msk [vmem:[#allocation3 + $0x240] sm:$0xff] %vm5626, %v5483
  %5652 = vst.msk [vmem:[#allocation3 + $0x258] sm:$0xff] %vm5626, %v5485
  %5653 = vst.msk [vmem:[#allocation3 + $0x270] sm:$0xff] %vm5626, %v5487
  %5654 = vst.msk [vmem:[#allocation3 + $0x288] sm:$0xff] %vm5626, %v5489
  %5655 = vst.msk [vmem:[#allocation3 + $0x2a0] sm:$0xff] %vm5626, %v5491
  %5656 = vst.msk [vmem:[#allocation3 + $0x2b8] sm:$0xff] %vm5626, %v5493
  %5657 = vst.msk [vmem:[#allocation3 + $0x2d0] sm:$0xff] %vm5626, %v5495
  %5658 = vst.msk [vmem:[#allocation3 + $0x2e8] sm:$0xff] %vm5626, %v5497
  %5659 = vst.msk [vmem:[#allocation3 + $0x300] sm:$0xff] %vm5626, %v5499
  %5660 = vst.msk [vmem:[#allocation3 + $0x318] sm:$0xff] %vm5626, %v5501
  %5661 = vst.msk [vmem:[#allocation3 + $0x330] sm:$0xff] %vm5626, %v5503
  %5662 = vst.msk [vmem:[#allocation3 + $0x348] sm:$0xff] %vm5626, %v5505
  %5663 = vst.msk [vmem:[#allocation3 + $0x360] sm:$0xff] %vm5626, %v5507
  %5664 = vst.msk [vmem:[#allocation3 + $0x378] sm:$0xff] %vm5626, %v5509
  %5665 = vst.msk [vmem:[#allocation3 + $0x390] sm:$0xff] %vm5626, %v5511
  %5666 = vst.msk [vmem:[#allocation3 + $0x3a8] sm:$0xff] %vm5626, %v5513
  %5667 = vst.msk [vmem:[#allocation3 + $0x3c0] sm:$0xff] %vm5626, %v5515
  %5668 = vst.msk [vmem:[#allocation3 + $0x3d8] sm:$0xff] %vm5626, %v5517
  %5669 = vst.msk [vmem:[#allocation3 + $0x3f0] sm:$0xff] %vm5626, %v5519
  %5670 = vst.msk [vmem:[#allocation3 + $0x408] sm:$0xff] %vm5626, %v5521
  %5671 = vst.msk [vmem:[#allocation3 + $0x420] sm:$0xff] %vm5626, %v5523
  %5672 = vst.msk [vmem:[#allocation3 + $0x438] sm:$0xff] %vm5626, %v5525
  %5673 = vst.msk [vmem:[#allocation3 + $0x450] sm:$0xff] %vm5626, %v5527
  %5674 = vst.msk [vmem:[#allocation3 + $0x468] sm:$0xff] %vm5626, %v5529
  %5675 = vst.msk [vmem:[#allocation3 + $0x480] sm:$0xff] %vm5626, %v5531
  %5676 = vst.msk [vmem:[#allocation3 + $0x498] sm:$0xff] %vm5626, %v5533
  %5677 = vst.msk [vmem:[#allocation3 + $0x4b0] sm:$0xff] %vm5626, %v5535
  %5678 = vst.msk [vmem:[#allocation3 + $0x4c8] sm:$0xff] %vm5626, %v5537
  %5679 = vst.msk [vmem:[#allocation3 + $0x4e0] sm:$0xff] %vm5626, %v5539
  %5680 = vst.msk [vmem:[#allocation3 + $0x4f8] sm:$0xff] %vm5626, %v5541
  %5681 = vst.msk [vmem:[#allocation3 + $0x510] sm:$0xff] %vm5626, %v5543
  %5682 = vst.msk [vmem:[#allocation3 + $0x528] sm:$0xff] %vm5626, %v5545
  %5683 = vst.msk [vmem:[#allocation3 + $0x540] sm:$0xff] %vm5626, %v5547
  %5684 = vst.msk [vmem:[#allocation3 + $0x558] sm:$0xff] %vm5626, %v5549
  %5685 = vst.msk [vmem:[#allocation3 + $0x570] sm:$0xff] %vm5626, %v5551
  %5686 = vst.msk [vmem:[#allocation3 + $0x588] sm:$0xff] %vm5626, %v5553
  %5687 = vst.msk [vmem:[#allocation3 + $0x5a0] sm:$0xff] %vm5626, %v5555
  %5688 = vst.msk [vmem:[#allocation3 + $0x5b8] sm:$0xff] %vm5626, %v5557
  %5689 = vst.msk [vmem:[#allocation3 + $0x5d0] sm:$0xff] %vm5626, %v5559
  %5690 = vst.msk [vmem:[#allocation3 + $0x5e8] sm:$0xff] %vm5626, %v5561
  %s5691 = scalar_lea.vmem [#allocation2], 88
  %v5692 = vld [vmem:[%s5691] sm:$0xff]
  %v5693 = vld [vmem:[%s5691 + $0x8] sm:$0xff]
  %v5694 = vld [vmem:[%s5691 + $0x10] sm:$0xff]
  %v5695 = vld [vmem:[%s5691 + $0x18] sm:$0xff]
  %v5696 = vld [vmem:[%s5691 + $0x20] sm:$0xff]
  %v5697 = vld [vmem:[%s5691 + $0x28] sm:$0xff]
  %v5698 = vld [vmem:[%s5691 + $0x30] sm:$0xff]
  %v5699 = vld [vmem:[%s5691 + $0x38] sm:$0xff]
  %v5700 = vld [vmem:[%s5691 + $0x50] sm:$0xff]
  %v5701 = vld [vmem:[%s5691 + $0x58] sm:$0xff]
  %v5702 = vld [vmem:[%s5691 + $0x60] sm:$0xff]
  %v5703 = vld [vmem:[%s5691 + $0x68] sm:$0xff]
  %v5704 = vld [vmem:[%s5691 + $0x70] sm:$0xff]
  %v5705 = vld [vmem:[%s5691 + $0x78] sm:$0xff]
  %v5706 = vld [vmem:[%s5691 + $0x80] sm:$0xff]
  %v5707 = vld [vmem:[%s5691 + $0x88] sm:$0xff]
  %v5708 = vld [vmem:[%s5691 + $0xa0] sm:$0xff]
  %v5709 = vld [vmem:[%s5691 + $0xa8] sm:$0xff]
  %v5710 = vld [vmem:[%s5691 + $0xb0] sm:$0xff]
  %v5711 = vld [vmem:[%s5691 + $0xb8] sm:$0xff]
  %v5712 = vld [vmem:[%s5691 + $0xc0] sm:$0xff]
  %v5713 = vld [vmem:[%s5691 + $0xc8] sm:$0xff]
  %v5714 = vld [vmem:[%s5691 + $0xd0] sm:$0xff]
  %v5715 = vld [vmem:[%s5691 + $0xd8] sm:$0xff]
  %v5716 = vld [vmem:[%s5691 + $0xf0] sm:$0xff]
  %v5717 = vld [vmem:[%s5691 + $0xf8] sm:$0xff]
  %v5718 = vld [vmem:[%s5691 + $0x100] sm:$0xff]
  %v5719 = vld [vmem:[%s5691 + $0x108] sm:$0xff]
  %v5720 = vld [vmem:[%s5691 + $0x110] sm:$0xff]
  %v5721 = vld [vmem:[%s5691 + $0x118] sm:$0xff]
  %v5722 = vld [vmem:[%s5691 + $0x120] sm:$0xff]
  %v5723 = vld [vmem:[%s5691 + $0x128] sm:$0xff]
  %v5724 = vld [vmem:[%s5691 + $0x140] sm:$0xff]
  %v5725 = vld [vmem:[%s5691 + $0x148] sm:$0xff]
  %v5726 = vld [vmem:[%s5691 + $0x150] sm:$0xff]
  %v5727 = vld [vmem:[%s5691 + $0x158] sm:$0xff]
  %v5728 = vld [vmem:[%s5691 + $0x160] sm:$0xff]
  %v5729 = vld [vmem:[%s5691 + $0x168] sm:$0xff]
  %v5730 = vld [vmem:[%s5691 + $0x170] sm:$0xff]
  %v5731 = vld [vmem:[%s5691 + $0x178] sm:$0xff]
  %v5732 = vld [vmem:[%s5691 + $0x190] sm:$0xff]
  %v5733 = vld [vmem:[%s5691 + $0x198] sm:$0xff]
  %v5734 = vld [vmem:[%s5691 + $0x1a0] sm:$0xff]
  %v5735 = vld [vmem:[%s5691 + $0x1a8] sm:$0xff]
  %v5736 = vld [vmem:[%s5691 + $0x1b0] sm:$0xff]
  %v5737 = vld [vmem:[%s5691 + $0x1b8] sm:$0xff]
  %v5738 = vld [vmem:[%s5691 + $0x1c0] sm:$0xff]
  %v5739 = vld [vmem:[%s5691 + $0x1c8] sm:$0xff]
  %v5740 = vld [vmem:[%s5691 + $0x1e0] sm:$0xff]
  %v5741 = vld [vmem:[%s5691 + $0x1e8] sm:$0xff]
  %v5742 = vld [vmem:[%s5691 + $0x1f0] sm:$0xff]
  %v5743 = vld [vmem:[%s5691 + $0x1f8] sm:$0xff]
  %v5744 = vld [vmem:[%s5691 + $0x200] sm:$0xff]
  %v5745 = vld [vmem:[%s5691 + $0x208] sm:$0xff]
  %v5746 = vld [vmem:[%s5691 + $0x210] sm:$0xff]
  %v5747 = vld [vmem:[%s5691 + $0x218] sm:$0xff]
  %v5748 = vld [vmem:[%s5691 + $0x230] sm:$0xff]
  %v5749 = vld [vmem:[%s5691 + $0x238] sm:$0xff]
  %v5750 = vld [vmem:[%s5691 + $0x240] sm:$0xff]
  %v5751 = vld [vmem:[%s5691 + $0x248] sm:$0xff]
  %v5752 = vld [vmem:[%s5691 + $0x250] sm:$0xff]
  %v5753 = vld [vmem:[%s5691 + $0x258] sm:$0xff]
  %v5754 = vld [vmem:[%s5691 + $0x260] sm:$0xff]
  %v5755 = vld [vmem:[%s5691 + $0x268] sm:$0xff]
  %5756 = vst.msk [vmem:[#allocation3 + $0x8] sm:$0xff] %vm4254, %v5692
  %5757 = vst.msk [vmem:[#allocation3 + $0x20] sm:$0xff] %vm4254, %v5693
  %5758 = vst.msk [vmem:[#allocation3 + $0x38] sm:$0xff] %vm4254, %v5694
  %5759 = vst.msk [vmem:[#allocation3 + $0x50] sm:$0xff] %vm4254, %v5695
  %5760 = vst.msk [vmem:[#allocation3 + $0x68] sm:$0xff] %vm4254, %v5696
  %5761 = vst.msk [vmem:[#allocation3 + $0x80] sm:$0xff] %vm4254, %v5697
  %5762 = vst.msk [vmem:[#allocation3 + $0x98] sm:$0xff] %vm4254, %v5698
  %5763 = vst.msk [vmem:[#allocation3 + $0xb0] sm:$0xff] %vm4254, %v5699
  %5764 = vst.msk [vmem:[#allocation3 + $0xc8] sm:$0xff] %vm4254, %v5700
  %5765 = vst.msk [vmem:[#allocation3 + $0xe0] sm:$0xff] %vm4254, %v5701
  %5766 = vst.msk [vmem:[#allocation3 + $0xf8] sm:$0xff] %vm4254, %v5702
  %5767 = vst.msk [vmem:[#allocation3 + $0x110] sm:$0xff] %vm4254, %v5703
  %5768 = vst.msk [vmem:[#allocation3 + $0x128] sm:$0xff] %vm4254, %v5704
  %5769 = vst.msk [vmem:[#allocation3 + $0x140] sm:$0xff] %vm4254, %v5705
  %5770 = vst.msk [vmem:[#allocation3 + $0x158] sm:$0xff] %vm4254, %v5706
  %5771 = vst.msk [vmem:[#allocation3 + $0x170] sm:$0xff] %vm4254, %v5707
  %5772 = vst.msk [vmem:[#allocation3 + $0x188] sm:$0xff] %vm4254, %v5708
  %5773 = vst.msk [vmem:[#allocation3 + $0x1a0] sm:$0xff] %vm4254, %v5709
  %5774 = vst.msk [vmem:[#allocation3 + $0x1b8] sm:$0xff] %vm4254, %v5710
  %5775 = vst.msk [vmem:[#allocation3 + $0x1d0] sm:$0xff] %vm4254, %v5711
  %5776 = vst.msk [vmem:[#allocation3 + $0x1e8] sm:$0xff] %vm4254, %v5712
  %5777 = vst.msk [vmem:[#allocation3 + $0x200] sm:$0xff] %vm4254, %v5713
  %5778 = vst.msk [vmem:[#allocation3 + $0x218] sm:$0xff] %vm4254, %v5714
  %5779 = vst.msk [vmem:[#allocation3 + $0x230] sm:$0xff] %vm4254, %v5715
  %5780 = vst.msk [vmem:[#allocation3 + $0x248] sm:$0xff] %vm4254, %v5716
  %5781 = vst.msk [vmem:[#allocation3 + $0x260] sm:$0xff] %vm4254, %v5717
  %5782 = vst.msk [vmem:[#allocation3 + $0x278] sm:$0xff] %vm4254, %v5718
  %5783 = vst.msk [vmem:[#allocation3 + $0x290] sm:$0xff] %vm4254, %v5719
  %5784 = vst.msk [vmem:[#allocation3 + $0x2a8] sm:$0xff] %vm4254, %v5720
  %5785 = vst.msk [vmem:[#allocation3 + $0x2c0] sm:$0xff] %vm4254, %v5721
  %5786 = vst.msk [vmem:[#allocation3 + $0x2d8] sm:$0xff] %vm4254, %v5722
  %5787 = vst.msk [vmem:[#allocation3 + $0x2f0] sm:$0xff] %vm4254, %v5723
  %5788 = vst.msk [vmem:[#allocation3 + $0x308] sm:$0xff] %vm4254, %v5724
  %5789 = vst.msk [vmem:[#allocation3 + $0x320] sm:$0xff] %vm4254, %v5725
  %5790 = vst.msk [vmem:[#allocation3 + $0x338] sm:$0xff] %vm4254, %v5726
  %5791 = vst.msk [vmem:[#allocation3 + $0x350] sm:$0xff] %vm4254, %v5727
  %5792 = vst.msk [vmem:[#allocation3 + $0x368] sm:$0xff] %vm4254, %v5728
  %5793 = vst.msk [vmem:[#allocation3 + $0x380] sm:$0xff] %vm4254, %v5729
  %5794 = vst.msk [vmem:[#allocation3 + $0x398] sm:$0xff] %vm4254, %v5730
  %5795 = vst.msk [vmem:[#allocation3 + $0x3b0] sm:$0xff] %vm4254, %v5731
  %5796 = vst.msk [vmem:[#allocation3 + $0x3c8] sm:$0xff] %vm4254, %v5732
  %5797 = vst.msk [vmem:[#allocation3 + $0x3e0] sm:$0xff] %vm4254, %v5733
  %5798 = vst.msk [vmem:[#allocation3 + $0x3f8] sm:$0xff] %vm4254, %v5734
  %5799 = vst.msk [vmem:[#allocation3 + $0x410] sm:$0xff] %vm4254, %v5735
  %5800 = vst.msk [vmem:[#allocation3 + $0x428] sm:$0xff] %vm4254, %v5736
  %5801 = vst.msk [vmem:[#allocation3 + $0x440] sm:$0xff] %vm4254, %v5737
  %5802 = vst.msk [vmem:[#allocation3 + $0x458] sm:$0xff] %vm4254, %v5738
  %5803 = vst.msk [vmem:[#allocation3 + $0x470] sm:$0xff] %vm4254, %v5739
  %5804 = vst.msk [vmem:[#allocation3 + $0x488] sm:$0xff] %vm4254, %v5740
  %5805 = vst.msk [vmem:[#allocation3 + $0x4a0] sm:$0xff] %vm4254, %v5741
  %5806 = vst.msk [vmem:[#allocation3 + $0x4b8] sm:$0xff] %vm4254, %v5742
  %5807 = vst.msk [vmem:[#allocation3 + $0x4d0] sm:$0xff] %vm4254, %v5743
  %5808 = vst.msk [vmem:[#allocation3 + $0x4e8] sm:$0xff] %vm4254, %v5744
  %5809 = vst.msk [vmem:[#allocation3 + $0x500] sm:$0xff] %vm4254, %v5745
  %5810 = vst.msk [vmem:[#allocation3 + $0x518] sm:$0xff] %vm4254, %v5746
  %5811 = vst.msk [vmem:[#allocation3 + $0x530] sm:$0xff] %vm4254, %v5747
  %5812 = vst.msk [vmem:[#allocation3 + $0x548] sm:$0xff] %vm4254, %v5748
  %5813 = vst.msk [vmem:[#allocation3 + $0x560] sm:$0xff] %vm4254, %v5749
  %5814 = vst.msk [vmem:[#allocation3 + $0x578] sm:$0xff] %vm4254, %v5750
  %5815 = vst.msk [vmem:[#allocation3 + $0x590] sm:$0xff] %vm4254, %v5751
  %5816 = vst.msk [vmem:[#allocation3 + $0x5a8] sm:$0xff] %vm4254, %v5752
  %5817 = vst.msk [vmem:[#allocation3 + $0x5c0] sm:$0xff] %vm4254, %v5753
  %5818 = vst.msk [vmem:[#allocation3 + $0x5d8] sm:$0xff] %vm4254, %v5754
  %5819 = vst.msk [vmem:[#allocation3 + $0x5f0] sm:$0xff] %vm4254, %v5755
  %s5820 = scalar_lea.vmem [#allocation2], 96
  %v5821 = vld [vmem:[%s5820] sm:$0xff]
  %v5822 = vld [vmem:[%s5820 + $0x8] sm:$0xff]
  %v5823 = vld [vmem:[%s5820 + $0x10] sm:$0xff]
  %v5824 = vld [vmem:[%s5820 + $0x18] sm:$0xff]
  %v5825 = vld [vmem:[%s5820 + $0x20] sm:$0xff]
  %v5826 = vld [vmem:[%s5820 + $0x28] sm:$0xff]
  %v5827 = vld [vmem:[%s5820 + $0x30] sm:$0xff]
  %v5828 = vld [vmem:[%s5820 + $0x38] sm:$0xff]
  %v5829 = vld [vmem:[%s5820 + $0x50] sm:$0xff]
  %v5830 = vld [vmem:[%s5820 + $0x58] sm:$0xff]
  %v5831 = vld [vmem:[%s5820 + $0x60] sm:$0xff]
  %v5832 = vld [vmem:[%s5820 + $0x68] sm:$0xff]
  %v5833 = vld [vmem:[%s5820 + $0x70] sm:$0xff]
  %v5834 = vld [vmem:[%s5820 + $0x78] sm:$0xff]
  %v5835 = vld [vmem:[%s5820 + $0x80] sm:$0xff]
  %v5836 = vld [vmem:[%s5820 + $0x88] sm:$0xff]
  %v5837 = vld [vmem:[%s5820 + $0xa0] sm:$0xff]
  %v5838 = vld [vmem:[%s5820 + $0xa8] sm:$0xff]
  %v5839 = vld [vmem:[%s5820 + $0xb0] sm:$0xff]
  %v5840 = vld [vmem:[%s5820 + $0xb8] sm:$0xff]
  %v5841 = vld [vmem:[%s5820 + $0xc0] sm:$0xff]
  %v5842 = vld [vmem:[%s5820 + $0xc8] sm:$0xff]
  %v5843 = vld [vmem:[%s5820 + $0xd0] sm:$0xff]
  %v5844 = vld [vmem:[%s5820 + $0xd8] sm:$0xff]
  %v5845 = vld [vmem:[%s5820 + $0xf0] sm:$0xff]
  %v5846 = vld [vmem:[%s5820 + $0xf8] sm:$0xff]
  %v5847 = vld [vmem:[%s5820 + $0x100] sm:$0xff]
  %v5848 = vld [vmem:[%s5820 + $0x108] sm:$0xff]
  %v5849 = vld [vmem:[%s5820 + $0x110] sm:$0xff]
  %v5850 = vld [vmem:[%s5820 + $0x118] sm:$0xff]
  %v5851 = vld [vmem:[%s5820 + $0x120] sm:$0xff]
  %v5852 = vld [vmem:[%s5820 + $0x128] sm:$0xff]
  %v5853 = vld [vmem:[%s5820 + $0x140] sm:$0xff]
  %v5854 = vld [vmem:[%s5820 + $0x148] sm:$0xff]
  %v5855 = vld [vmem:[%s5820 + $0x150] sm:$0xff]
  %v5856 = vld [vmem:[%s5820 + $0x158] sm:$0xff]
  %v5857 = vld [vmem:[%s5820 + $0x160] sm:$0xff]
  %v5858 = vld [vmem:[%s5820 + $0x168] sm:$0xff]
  %v5859 = vld [vmem:[%s5820 + $0x170] sm:$0xff]
  %v5860 = vld [vmem:[%s5820 + $0x178] sm:$0xff]
  %v5861 = vld [vmem:[%s5820 + $0x190] sm:$0xff]
  %v5862 = vld [vmem:[%s5820 + $0x198] sm:$0xff]
  %v5863 = vld [vmem:[%s5820 + $0x1a0] sm:$0xff]
  %v5864 = vld [vmem:[%s5820 + $0x1a8] sm:$0xff]
  %v5865 = vld [vmem:[%s5820 + $0x1b0] sm:$0xff]
  %v5866 = vld [vmem:[%s5820 + $0x1b8] sm:$0xff]
  %v5867 = vld [vmem:[%s5820 + $0x1c0] sm:$0xff]
  %v5868 = vld [vmem:[%s5820 + $0x1c8] sm:$0xff]
  %v5869 = vld [vmem:[%s5820 + $0x1e0] sm:$0xff]
  %v5870 = vld [vmem:[%s5820 + $0x1e8] sm:$0xff]
  %v5871 = vld [vmem:[%s5820 + $0x1f0] sm:$0xff]
  %v5872 = vld [vmem:[%s5820 + $0x1f8] sm:$0xff]
  %v5873 = vld [vmem:[%s5820 + $0x200] sm:$0xff]
  %v5874 = vld [vmem:[%s5820 + $0x208] sm:$0xff]
  %v5875 = vld [vmem:[%s5820 + $0x210] sm:$0xff]
  %v5876 = vld [vmem:[%s5820 + $0x218] sm:$0xff]
  %v5877 = vld [vmem:[%s5820 + $0x230] sm:$0xff]
  %v5878 = vld [vmem:[%s5820 + $0x238] sm:$0xff]
  %v5879 = vld [vmem:[%s5820 + $0x240] sm:$0xff]
  %v5880 = vld [vmem:[%s5820 + $0x248] sm:$0xff]
  %v5881 = vld [vmem:[%s5820 + $0x250] sm:$0xff]
  %v5882 = vld [vmem:[%s5820 + $0x258] sm:$0xff]
  %v5883 = vld [vmem:[%s5820 + $0x260] sm:$0xff]
  %v5884 = vld [vmem:[%s5820 + $0x268] sm:$0xff]
  %5949 = vrot.lane.b32.xlu0 %v5821, 32
  %v5950 = vpop.permute.xlu0 %5949
  %5951 = vrot.lane.b32.xlu0 %v5822, 32
  %v5952 = vpop.permute.xlu0 %5951
  %5953 = vrot.lane.b32.xlu0 %v5823, 32
  %v5954 = vpop.permute.xlu0 %5953
  %5955 = vrot.lane.b32.xlu0 %v5824, 32
  %v5956 = vpop.permute.xlu0 %5955
  %5957 = vrot.lane.b32.xlu0 %v5825, 32
  %v5958 = vpop.permute.xlu0 %5957
  %5959 = vrot.lane.b32.xlu0 %v5826, 32
  %v5960 = vpop.permute.xlu0 %5959
  %5961 = vrot.lane.b32.xlu0 %v5827, 32
  %v5962 = vpop.permute.xlu0 %5961
  %5963 = vrot.lane.b32.xlu0 %v5828, 32
  %v5964 = vpop.permute.xlu0 %5963
  %5965 = vrot.lane.b32.xlu0 %v5829, 32
  %v5966 = vpop.permute.xlu0 %5965
  %5967 = vrot.lane.b32.xlu0 %v5830, 32
  %v5968 = vpop.permute.xlu0 %5967
  %5969 = vrot.lane.b32.xlu0 %v5831, 32
  %v5970 = vpop.permute.xlu0 %5969
  %5971 = vrot.lane.b32.xlu0 %v5832, 32
  %v5972 = vpop.permute.xlu0 %5971
  %5973 = vrot.lane.b32.xlu0 %v5833, 32
  %v5974 = vpop.permute.xlu0 %5973
  %5975 = vrot.lane.b32.xlu0 %v5834, 32
  %v5976 = vpop.permute.xlu0 %5975
  %5977 = vrot.lane.b32.xlu0 %v5835, 32
  %v5978 = vpop.permute.xlu0 %5977
  %5979 = vrot.lane.b32.xlu0 %v5836, 32
  %v5980 = vpop.permute.xlu0 %5979
  %5981 = vrot.lane.b32.xlu0 %v5837, 32
  %v5982 = vpop.permute.xlu0 %5981
  %5983 = vrot.lane.b32.xlu0 %v5838, 32
  %v5984 = vpop.permute.xlu0 %5983
  %5985 = vrot.lane.b32.xlu0 %v5839, 32
  %v5986 = vpop.permute.xlu0 %5985
  %5987 = vrot.lane.b32.xlu0 %v5840, 32
  %v5988 = vpop.permute.xlu0 %5987
  %5989 = vrot.lane.b32.xlu0 %v5841, 32
  %v5990 = vpop.permute.xlu0 %5989
  %5991 = vrot.lane.b32.xlu0 %v5842, 32
  %v5992 = vpop.permute.xlu0 %5991
  %5993 = vrot.lane.b32.xlu0 %v5843, 32
  %v5994 = vpop.permute.xlu0 %5993
  %5995 = vrot.lane.b32.xlu0 %v5844, 32
  %v5996 = vpop.permute.xlu0 %5995
  %5997 = vrot.lane.b32.xlu0 %v5845, 32
  %v5998 = vpop.permute.xlu0 %5997
  %5999 = vrot.lane.b32.xlu0 %v5846, 32
  %v6000 = vpop.permute.xlu0 %5999
  %6001 = vrot.lane.b32.xlu0 %v5847, 32
  %v6002 = vpop.permute.xlu0 %6001
  %6003 = vrot.lane.b32.xlu0 %v5848, 32
  %v6004 = vpop.permute.xlu0 %6003
  %6005 = vrot.lane.b32.xlu0 %v5849, 32
  %v6006 = vpop.permute.xlu0 %6005
  %6007 = vrot.lane.b32.xlu0 %v5850, 32
  %v6008 = vpop.permute.xlu0 %6007
  %6009 = vrot.lane.b32.xlu0 %v5851, 32
  %v6010 = vpop.permute.xlu0 %6009
  %6011 = vrot.lane.b32.xlu0 %v5852, 32
  %v6012 = vpop.permute.xlu0 %6011
  %6013 = vrot.lane.b32.xlu0 %v5853, 32
  %v6014 = vpop.permute.xlu0 %6013
  %6015 = vrot.lane.b32.xlu0 %v5854, 32
  %v6016 = vpop.permute.xlu0 %6015
  %6017 = vrot.lane.b32.xlu0 %v5855, 32
  %v6018 = vpop.permute.xlu0 %6017
  %6019 = vrot.lane.b32.xlu0 %v5856, 32
  %v6020 = vpop.permute.xlu0 %6019
  %6021 = vrot.lane.b32.xlu0 %v5857, 32
  %v6022 = vpop.permute.xlu0 %6021
  %6023 = vrot.lane.b32.xlu0 %v5858, 32
  %v6024 = vpop.permute.xlu0 %6023
  %6025 = vrot.lane.b32.xlu0 %v5859, 32
  %v6026 = vpop.permute.xlu0 %6025
  %6027 = vrot.lane.b32.xlu0 %v5860, 32
  %v6028 = vpop.permute.xlu0 %6027
  %6029 = vrot.lane.b32.xlu0 %v5861, 32
  %v6030 = vpop.permute.xlu0 %6029
  %6031 = vrot.lane.b32.xlu0 %v5862, 32
  %v6032 = vpop.permute.xlu0 %6031
  %6033 = vrot.lane.b32.xlu0 %v5863, 32
  %v6034 = vpop.permute.xlu0 %6033
  %6035 = vrot.lane.b32.xlu0 %v5864, 32
  %v6036 = vpop.permute.xlu0 %6035
  %6037 = vrot.lane.b32.xlu0 %v5865, 32
  %v6038 = vpop.permute.xlu0 %6037
  %6039 = vrot.lane.b32.xlu0 %v5866, 32
  %v6040 = vpop.permute.xlu0 %6039
  %6041 = vrot.lane.b32.xlu0 %v5867, 32
  %v6042 = vpop.permute.xlu0 %6041
  %6043 = vrot.lane.b32.xlu0 %v5868, 32
  %v6044 = vpop.permute.xlu0 %6043
  %6045 = vrot.lane.b32.xlu0 %v5869, 32
  %v6046 = vpop.permute.xlu0 %6045
  %6047 = vrot.lane.b32.xlu0 %v5870, 32
  %v6048 = vpop.permute.xlu0 %6047
  %6049 = vrot.lane.b32.xlu0 %v5871, 32
  %v6050 = vpop.permute.xlu0 %6049
  %6051 = vrot.lane.b32.xlu0 %v5872, 32
  %v6052 = vpop.permute.xlu0 %6051
  %6053 = vrot.lane.b32.xlu0 %v5873, 32
  %v6054 = vpop.permute.xlu0 %6053
  %6055 = vrot.lane.b32.xlu0 %v5874, 32
  %v6056 = vpop.permute.xlu0 %6055
  %6057 = vrot.lane.b32.xlu0 %v5875, 32
  %v6058 = vpop.permute.xlu0 %6057
  %6059 = vrot.lane.b32.xlu0 %v5876, 32
  %v6060 = vpop.permute.xlu0 %6059
  %6061 = vrot.lane.b32.xlu0 %v5877, 32
  %v6062 = vpop.permute.xlu0 %6061
  %6063 = vrot.lane.b32.xlu0 %v5878, 32
  %v6064 = vpop.permute.xlu0 %6063
  %6065 = vrot.lane.b32.xlu0 %v5879, 32
  %v6066 = vpop.permute.xlu0 %6065
  %6067 = vrot.lane.b32.xlu0 %v5880, 32
  %v6068 = vpop.permute.xlu0 %6067
  %6069 = vrot.lane.b32.xlu0 %v5881, 32
  %v6070 = vpop.permute.xlu0 %6069
  %6071 = vrot.lane.b32.xlu0 %v5882, 32
  %v6072 = vpop.permute.xlu0 %6071
  %6073 = vrot.lane.b32.xlu0 %v5883, 32
  %v6074 = vpop.permute.xlu0 %6073
  %6075 = vrot.lane.b32.xlu0 %v5884, 32
  %v6076 = vpop.permute.xlu0 %6075
  %6141 = vst.msk [vmem:[#allocation3 + $0x8] sm:$0xff] %vm4854, %v5950
  %6142 = vst.msk [vmem:[#allocation3 + $0x20] sm:$0xff] %vm4854, %v5952
  %6143 = vst.msk [vmem:[#allocation3 + $0x38] sm:$0xff] %vm4854, %v5954
  %6144 = vst.msk [vmem:[#allocation3 + $0x50] sm:$0xff] %vm4854, %v5956
  %6145 = vst.msk [vmem:[#allocation3 + $0x68] sm:$0xff] %vm4854, %v5958
  %6146 = vst.msk [vmem:[#allocation3 + $0x80] sm:$0xff] %vm4854, %v5960
  %6147 = vst.msk [vmem:[#allocation3 + $0x98] sm:$0xff] %vm4854, %v5962
  %6148 = vst.msk [vmem:[#allocation3 + $0xb0] sm:$0xff] %vm4854, %v5964
  %6149 = vst.msk [vmem:[#allocation3 + $0xc8] sm:$0xff] %vm4854, %v5966
  %6150 = vst.msk [vmem:[#allocation3 + $0xe0] sm:$0xff] %vm4854, %v5968
  %6151 = vst.msk [vmem:[#allocation3 + $0xf8] sm:$0xff] %vm4854, %v5970
  %6152 = vst.msk [vmem:[#allocation3 + $0x110] sm:$0xff] %vm4854, %v5972
  %6153 = vst.msk [vmem:[#allocation3 + $0x128] sm:$0xff] %vm4854, %v5974
  %6154 = vst.msk [vmem:[#allocation3 + $0x140] sm:$0xff] %vm4854, %v5976
  %6155 = vst.msk [vmem:[#allocation3 + $0x158] sm:$0xff] %vm4854, %v5978
  %6156 = vst.msk [vmem:[#allocation3 + $0x170] sm:$0xff] %vm4854, %v5980
  %6157 = vst.msk [vmem:[#allocation3 + $0x188] sm:$0xff] %vm4854, %v5982
  %6158 = vst.msk [vmem:[#allocation3 + $0x1a0] sm:$0xff] %vm4854, %v5984
  %6159 = vst.msk [vmem:[#allocation3 + $0x1b8] sm:$0xff] %vm4854, %v5986
  %6160 = vst.msk [vmem:[#allocation3 + $0x1d0] sm:$0xff] %vm4854, %v5988
  %6161 = vst.msk [vmem:[#allocation3 + $0x1e8] sm:$0xff] %vm4854, %v5990
  %6162 = vst.msk [vmem:[#allocation3 + $0x200] sm:$0xff] %vm4854, %v5992
  %6163 = vst.msk [vmem:[#allocation3 + $0x218] sm:$0xff] %vm4854, %v5994
  %6164 = vst.msk [vmem:[#allocation3 + $0x230] sm:$0xff] %vm4854, %v5996
  %6165 = vst.msk [vmem:[#allocation3 + $0x248] sm:$0xff] %vm4854, %v5998
  %6166 = vst.msk [vmem:[#allocation3 + $0x260] sm:$0xff] %vm4854, %v6000
  %6167 = vst.msk [vmem:[#allocation3 + $0x278] sm:$0xff] %vm4854, %v6002
  %6168 = vst.msk [vmem:[#allocation3 + $0x290] sm:$0xff] %vm4854, %v6004
  %6169 = vst.msk [vmem:[#allocation3 + $0x2a8] sm:$0xff] %vm4854, %v6006
  %6170 = vst.msk [vmem:[#allocation3 + $0x2c0] sm:$0xff] %vm4854, %v6008
  %6171 = vst.msk [vmem:[#allocation3 + $0x2d8] sm:$0xff] %vm4854, %v6010
  %6172 = vst.msk [vmem:[#allocation3 + $0x2f0] sm:$0xff] %vm4854, %v6012
  %6173 = vst.msk [vmem:[#allocation3 + $0x308] sm:$0xff] %vm4854, %v6014
  %6174 = vst.msk [vmem:[#allocation3 + $0x320] sm:$0xff] %vm4854, %v6016
  %6175 = vst.msk [vmem:[#allocation3 + $0x338] sm:$0xff] %vm4854, %v6018
  %6176 = vst.msk [vmem:[#allocation3 + $0x350] sm:$0xff] %vm4854, %v6020
  %6177 = vst.msk [vmem:[#allocation3 + $0x368] sm:$0xff] %vm4854, %v6022
  %6178 = vst.msk [vmem:[#allocation3 + $0x380] sm:$0xff] %vm4854, %v6024
  %6179 = vst.msk [vmem:[#allocation3 + $0x398] sm:$0xff] %vm4854, %v6026
  %6180 = vst.msk [vmem:[#allocation3 + $0x3b0] sm:$0xff] %vm4854, %v6028
  %6181 = vst.msk [vmem:[#allocation3 + $0x3c8] sm:$0xff] %vm4854, %v6030
  %6182 = vst.msk [vmem:[#allocation3 + $0x3e0] sm:$0xff] %vm4854, %v6032
  %6183 = vst.msk [vmem:[#allocation3 + $0x3f8] sm:$0xff] %vm4854, %v6034
  %6184 = vst.msk [vmem:[#allocation3 + $0x410] sm:$0xff] %vm4854, %v6036
  %6185 = vst.msk [vmem:[#allocation3 + $0x428] sm:$0xff] %vm4854, %v6038
  %6186 = vst.msk [vmem:[#allocation3 + $0x440] sm:$0xff] %vm4854, %v6040
  %6187 = vst.msk [vmem:[#allocation3 + $0x458] sm:$0xff] %vm4854, %v6042
  %6188 = vst.msk [vmem:[#allocation3 + $0x470] sm:$0xff] %vm4854, %v6044
  %6189 = vst.msk [vmem:[#allocation3 + $0x488] sm:$0xff] %vm4854, %v6046
  %6190 = vst.msk [vmem:[#allocation3 + $0x4a0] sm:$0xff] %vm4854, %v6048
  %6191 = vst.msk [vmem:[#allocation3 + $0x4b8] sm:$0xff] %vm4854, %v6050
  %6192 = vst.msk [vmem:[#allocation3 + $0x4d0] sm:$0xff] %vm4854, %v6052
  %6193 = vst.msk [vmem:[#allocation3 + $0x4e8] sm:$0xff] %vm4854, %v6054
  %6194 = vst.msk [vmem:[#allocation3 + $0x500] sm:$0xff] %vm4854, %v6056
  %6195 = vst.msk [vmem:[#allocation3 + $0x518] sm:$0xff] %vm4854, %v6058
  %6196 = vst.msk [vmem:[#allocation3 + $0x530] sm:$0xff] %vm4854, %v6060
  %6197 = vst.msk [vmem:[#allocation3 + $0x548] sm:$0xff] %vm4854, %v6062
  %6198 = vst.msk [vmem:[#allocation3 + $0x560] sm:$0xff] %vm4854, %v6064
  %6199 = vst.msk [vmem:[#allocation3 + $0x578] sm:$0xff] %vm4854, %v6066
  %6200 = vst.msk [vmem:[#allocation3 + $0x590] sm:$0xff] %vm4854, %v6068
  %6201 = vst.msk [vmem:[#allocation3 + $0x5a8] sm:$0xff] %vm4854, %v6070
  %6202 = vst.msk [vmem:[#allocation3 + $0x5c0] sm:$0xff] %vm4854, %v6072
  %6203 = vst.msk [vmem:[#allocation3 + $0x5d8] sm:$0xff] %vm4854, %v6074
  %6204 = vst.msk [vmem:[#allocation3 + $0x5f0] sm:$0xff] %vm4854, %v6076
  %s6205 = scalar_lea.vmem [#allocation2], 160
  %v6206 = vld [vmem:[%s6205] sm:$0xff]
  %v6207 = vld [vmem:[%s6205 + $0x8] sm:$0xff]
  %v6208 = vld [vmem:[%s6205 + $0x10] sm:$0xff]
  %v6209 = vld [vmem:[%s6205 + $0x18] sm:$0xff]
  %v6210 = vld [vmem:[%s6205 + $0x20] sm:$0xff]
  %v6211 = vld [vmem:[%s6205 + $0x28] sm:$0xff]
  %v6212 = vld [vmem:[%s6205 + $0x30] sm:$0xff]
  %v6213 = vld [vmem:[%s6205 + $0x38] sm:$0xff]
  %v6214 = vld [vmem:[%s6205 + $0x50] sm:$0xff]
  %v6215 = vld [vmem:[%s6205 + $0x58] sm:$0xff]
  %v6216 = vld [vmem:[%s6205 + $0x60] sm:$0xff]
  %v6217 = vld [vmem:[%s6205 + $0x68] sm:$0xff]
  %v6218 = vld [vmem:[%s6205 + $0x70] sm:$0xff]
  %v6219 = vld [vmem:[%s6205 + $0x78] sm:$0xff]
  %v6220 = vld [vmem:[%s6205 + $0x80] sm:$0xff]
  %v6221 = vld [vmem:[%s6205 + $0x88] sm:$0xff]
  %v6222 = vld [vmem:[%s6205 + $0xa0] sm:$0xff]
  %v6223 = vld [vmem:[%s6205 + $0xa8] sm:$0xff]
  %v6224 = vld [vmem:[%s6205 + $0xb0] sm:$0xff]
  %v6225 = vld [vmem:[%s6205 + $0xb8] sm:$0xff]
  %v6226 = vld [vmem:[%s6205 + $0xc0] sm:$0xff]
  %v6227 = vld [vmem:[%s6205 + $0xc8] sm:$0xff]
  %v6228 = vld [vmem:[%s6205 + $0xd0] sm:$0xff]
  %v6229 = vld [vmem:[%s6205 + $0xd8] sm:$0xff]
  %v6230 = vld [vmem:[%s6205 + $0xf0] sm:$0xff]
  %v6231 = vld [vmem:[%s6205 + $0xf8] sm:$0xff]
  %v6232 = vld [vmem:[%s6205 + $0x100] sm:$0xff]
  %v6233 = vld [vmem:[%s6205 + $0x108] sm:$0xff]
  %v6234 = vld [vmem:[%s6205 + $0x110] sm:$0xff]
  %v6235 = vld [vmem:[%s6205 + $0x118] sm:$0xff]
  %v6236 = vld [vmem:[%s6205 + $0x120] sm:$0xff]
  %v6237 = vld [vmem:[%s6205 + $0x128] sm:$0xff]
  %v6238 = vld [vmem:[%s6205 + $0x140] sm:$0xff]
  %v6239 = vld [vmem:[%s6205 + $0x148] sm:$0xff]
  %v6240 = vld [vmem:[%s6205 + $0x150] sm:$0xff]
  %v6241 = vld [vmem:[%s6205 + $0x158] sm:$0xff]
  %v6242 = vld [vmem:[%s6205 + $0x160] sm:$0xff]
  %v6243 = vld [vmem:[%s6205 + $0x168] sm:$0xff]
  %v6244 = vld [vmem:[%s6205 + $0x170] sm:$0xff]
  %v6245 = vld [vmem:[%s6205 + $0x178] sm:$0xff]
  %v6246 = vld [vmem:[%s6205 + $0x190] sm:$0xff]
  %v6247 = vld [vmem:[%s6205 + $0x198] sm:$0xff]
  %v6248 = vld [vmem:[%s6205 + $0x1a0] sm:$0xff]
  %v6249 = vld [vmem:[%s6205 + $0x1a8] sm:$0xff]
  %v6250 = vld [vmem:[%s6205 + $0x1b0] sm:$0xff]
  %v6251 = vld [vmem:[%s6205 + $0x1b8] sm:$0xff]
  %v6252 = vld [vmem:[%s6205 + $0x1c0] sm:$0xff]
  %v6253 = vld [vmem:[%s6205 + $0x1c8] sm:$0xff]
  %v6254 = vld [vmem:[%s6205 + $0x1e0] sm:$0xff]
  %v6255 = vld [vmem:[%s6205 + $0x1e8] sm:$0xff]
  %v6256 = vld [vmem:[%s6205 + $0x1f0] sm:$0xff]
  %v6257 = vld [vmem:[%s6205 + $0x1f8] sm:$0xff]
  %v6258 = vld [vmem:[%s6205 + $0x200] sm:$0xff]
  %v6259 = vld [vmem:[%s6205 + $0x208] sm:$0xff]
  %v6260 = vld [vmem:[%s6205 + $0x210] sm:$0xff]
  %v6261 = vld [vmem:[%s6205 + $0x218] sm:$0xff]
  %v6262 = vld [vmem:[%s6205 + $0x230] sm:$0xff]
  %v6263 = vld [vmem:[%s6205 + $0x238] sm:$0xff]
  %v6264 = vld [vmem:[%s6205 + $0x240] sm:$0xff]
  %v6265 = vld [vmem:[%s6205 + $0x248] sm:$0xff]
  %v6266 = vld [vmem:[%s6205 + $0x250] sm:$0xff]
  %v6267 = vld [vmem:[%s6205 + $0x258] sm:$0xff]
  %v6268 = vld [vmem:[%s6205 + $0x260] sm:$0xff]
  %v6269 = vld [vmem:[%s6205 + $0x268] sm:$0xff]
  %6334 = vrot.lane.b32.xlu0 %v6206, 64
  %v6335 = vpop.permute.xlu0 %6334
  %6336 = vrot.lane.b32.xlu0 %v6207, 64
  %v6337 = vpop.permute.xlu0 %6336
  %6338 = vrot.lane.b32.xlu0 %v6208, 64
  %v6339 = vpop.permute.xlu0 %6338
  %6340 = vrot.lane.b32.xlu0 %v6209, 64
  %v6341 = vpop.permute.xlu0 %6340
  %6342 = vrot.lane.b32.xlu0 %v6210, 64
  %v6343 = vpop.permute.xlu0 %6342
  %6344 = vrot.lane.b32.xlu0 %v6211, 64
  %v6345 = vpop.permute.xlu0 %6344
  %6346 = vrot.lane.b32.xlu0 %v6212, 64
  %v6347 = vpop.permute.xlu0 %6346
  %6348 = vrot.lane.b32.xlu0 %v6213, 64
  %v6349 = vpop.permute.xlu0 %6348
  %6350 = vrot.lane.b32.xlu0 %v6214, 64
  %v6351 = vpop.permute.xlu0 %6350
  %6352 = vrot.lane.b32.xlu0 %v6215, 64
  %v6353 = vpop.permute.xlu0 %6352
  %6354 = vrot.lane.b32.xlu0 %v6216, 64
  %v6355 = vpop.permute.xlu0 %6354
  %6356 = vrot.lane.b32.xlu0 %v6217, 64
  %v6357 = vpop.permute.xlu0 %6356
  %6358 = vrot.lane.b32.xlu0 %v6218, 64
  %v6359 = vpop.permute.xlu0 %6358
  %6360 = vrot.lane.b32.xlu0 %v6219, 64
  %v6361 = vpop.permute.xlu0 %6360
  %6362 = vrot.lane.b32.xlu0 %v6220, 64
  %v6363 = vpop.permute.xlu0 %6362
  %6364 = vrot.lane.b32.xlu0 %v6221, 64
  %v6365 = vpop.permute.xlu0 %6364
  %6366 = vrot.lane.b32.xlu0 %v6222, 64
  %v6367 = vpop.permute.xlu0 %6366
  %6368 = vrot.lane.b32.xlu0 %v6223, 64
  %v6369 = vpop.permute.xlu0 %6368
  %6370 = vrot.lane.b32.xlu0 %v6224, 64
  %v6371 = vpop.permute.xlu0 %6370
  %6372 = vrot.lane.b32.xlu0 %v6225, 64
  %v6373 = vpop.permute.xlu0 %6372
  %6374 = vrot.lane.b32.xlu0 %v6226, 64
  %v6375 = vpop.permute.xlu0 %6374
  %6376 = vrot.lane.b32.xlu0 %v6227, 64
  %v6377 = vpop.permute.xlu0 %6376
  %6378 = vrot.lane.b32.xlu0 %v6228, 64
  %v6379 = vpop.permute.xlu0 %6378
  %6380 = vrot.lane.b32.xlu0 %v6229, 64
  %v6381 = vpop.permute.xlu0 %6380
  %6382 = vrot.lane.b32.xlu0 %v6230, 64
  %v6383 = vpop.permute.xlu0 %6382
  %6384 = vrot.lane.b32.xlu0 %v6231, 64
  %v6385 = vpop.permute.xlu0 %6384
  %6386 = vrot.lane.b32.xlu0 %v6232, 64
  %v6387 = vpop.permute.xlu0 %6386
  %6388 = vrot.lane.b32.xlu0 %v6233, 64
  %v6389 = vpop.permute.xlu0 %6388
  %6390 = vrot.lane.b32.xlu0 %v6234, 64
  %v6391 = vpop.permute.xlu0 %6390
  %6392 = vrot.lane.b32.xlu0 %v6235, 64
  %v6393 = vpop.permute.xlu0 %6392
  %6394 = vrot.lane.b32.xlu0 %v6236, 64
  %v6395 = vpop.permute.xlu0 %6394
  %6396 = vrot.lane.b32.xlu0 %v6237, 64
  %v6397 = vpop.permute.xlu0 %6396
  %6398 = vrot.lane.b32.xlu0 %v6238, 64
  %v6399 = vpop.permute.xlu0 %6398
  %6400 = vrot.lane.b32.xlu0 %v6239, 64
  %v6401 = vpop.permute.xlu0 %6400
  %6402 = vrot.lane.b32.xlu0 %v6240, 64
  %v6403 = vpop.permute.xlu0 %6402
  %6404 = vrot.lane.b32.xlu0 %v6241, 64
  %v6405 = vpop.permute.xlu0 %6404
  %6406 = vrot.lane.b32.xlu0 %v6242, 64
  %v6407 = vpop.permute.xlu0 %6406
  %6408 = vrot.lane.b32.xlu0 %v6243, 64
  %v6409 = vpop.permute.xlu0 %6408
  %6410 = vrot.lane.b32.xlu0 %v6244, 64
  %v6411 = vpop.permute.xlu0 %6410
  %6412 = vrot.lane.b32.xlu0 %v6245, 64
  %v6413 = vpop.permute.xlu0 %6412
  %6414 = vrot.lane.b32.xlu0 %v6246, 64
  %v6415 = vpop.permute.xlu0 %6414
  %6416 = vrot.lane.b32.xlu0 %v6247, 64
  %v6417 = vpop.permute.xlu0 %6416
  %6418 = vrot.lane.b32.xlu0 %v6248, 64
  %v6419 = vpop.permute.xlu0 %6418
  %6420 = vrot.lane.b32.xlu0 %v6249, 64
  %v6421 = vpop.permute.xlu0 %6420
  %6422 = vrot.lane.b32.xlu0 %v6250, 64
  %v6423 = vpop.permute.xlu0 %6422
  %6424 = vrot.lane.b32.xlu0 %v6251, 64
  %v6425 = vpop.permute.xlu0 %6424
  %6426 = vrot.lane.b32.xlu0 %v6252, 64
  %v6427 = vpop.permute.xlu0 %6426
  %6428 = vrot.lane.b32.xlu0 %v6253, 64
  %v6429 = vpop.permute.xlu0 %6428
  %6430 = vrot.lane.b32.xlu0 %v6254, 64
  %v6431 = vpop.permute.xlu0 %6430
  %6432 = vrot.lane.b32.xlu0 %v6255, 64
  %v6433 = vpop.permute.xlu0 %6432
  %6434 = vrot.lane.b32.xlu0 %v6256, 64
  %v6435 = vpop.permute.xlu0 %6434
  %6436 = vrot.lane.b32.xlu0 %v6257, 64
  %v6437 = vpop.permute.xlu0 %6436
  %6438 = vrot.lane.b32.xlu0 %v6258, 64
  %v6439 = vpop.permute.xlu0 %6438
  %6440 = vrot.lane.b32.xlu0 %v6259, 64
  %v6441 = vpop.permute.xlu0 %6440
  %6442 = vrot.lane.b32.xlu0 %v6260, 64
  %v6443 = vpop.permute.xlu0 %6442
  %6444 = vrot.lane.b32.xlu0 %v6261, 64
  %v6445 = vpop.permute.xlu0 %6444
  %6446 = vrot.lane.b32.xlu0 %v6262, 64
  %v6447 = vpop.permute.xlu0 %6446
  %6448 = vrot.lane.b32.xlu0 %v6263, 64
  %v6449 = vpop.permute.xlu0 %6448
  %6450 = vrot.lane.b32.xlu0 %v6264, 64
  %v6451 = vpop.permute.xlu0 %6450
  %6452 = vrot.lane.b32.xlu0 %v6265, 64
  %v6453 = vpop.permute.xlu0 %6452
  %6454 = vrot.lane.b32.xlu0 %v6266, 64
  %v6455 = vpop.permute.xlu0 %6454
  %6456 = vrot.lane.b32.xlu0 %v6267, 64
  %v6457 = vpop.permute.xlu0 %6456
  %6458 = vrot.lane.b32.xlu0 %v6268, 64
  %v6459 = vpop.permute.xlu0 %6458
  %6460 = vrot.lane.b32.xlu0 %v6269, 64
  %v6461 = vpop.permute.xlu0 %6460
  %6526 = vst.msk [vmem:[#allocation3 + $0x8] sm:$0xff] %vm5240, %v6335
  %6527 = vst.msk [vmem:[#allocation3 + $0x20] sm:$0xff] %vm5240, %v6337
  %6528 = vst.msk [vmem:[#allocation3 + $0x38] sm:$0xff] %vm5240, %v6339
  %6529 = vst.msk [vmem:[#allocation3 + $0x50] sm:$0xff] %vm5240, %v6341
  %6530 = vst.msk [vmem:[#allocation3 + $0x68] sm:$0xff] %vm5240, %v6343
  %6531 = vst.msk [vmem:[#allocation3 + $0x80] sm:$0xff] %vm5240, %v6345
  %6532 = vst.msk [vmem:[#allocation3 + $0x98] sm:$0xff] %vm5240, %v6347
  %6533 = vst.msk [vmem:[#allocation3 + $0xb0] sm:$0xff] %vm5240, %v6349
  %6534 = vst.msk [vmem:[#allocation3 + $0xc8] sm:$0xff] %vm5240, %v6351
  %6535 = vst.msk [vmem:[#allocation3 + $0xe0] sm:$0xff] %vm5240, %v6353
  %6536 = vst.msk [vmem:[#allocation3 + $0xf8] sm:$0xff] %vm5240, %v6355
  %6537 = vst.msk [vmem:[#allocation3 + $0x110] sm:$0xff] %vm5240, %v6357
  %6538 = vst.msk [vmem:[#allocation3 + $0x128] sm:$0xff] %vm5240, %v6359
  %6539 = vst.msk [vmem:[#allocation3 + $0x140] sm:$0xff] %vm5240, %v6361
  %6540 = vst.msk [vmem:[#allocation3 + $0x158] sm:$0xff] %vm5240, %v6363
  %6541 = vst.msk [vmem:[#allocation3 + $0x170] sm:$0xff] %vm5240, %v6365
  %6542 = vst.msk [vmem:[#allocation3 + $0x188] sm:$0xff] %vm5240, %v6367
  %6543 = vst.msk [vmem:[#allocation3 + $0x1a0] sm:$0xff] %vm5240, %v6369
  %6544 = vst.msk [vmem:[#allocation3 + $0x1b8] sm:$0xff] %vm5240, %v6371
  %6545 = vst.msk [vmem:[#allocation3 + $0x1d0] sm:$0xff] %vm5240, %v6373
  %6546 = vst.msk [vmem:[#allocation3 + $0x1e8] sm:$0xff] %vm5240, %v6375
  %6547 = vst.msk [vmem:[#allocation3 + $0x200] sm:$0xff] %vm5240, %v6377
  %6548 = vst.msk [vmem:[#allocation3 + $0x218] sm:$0xff] %vm5240, %v6379
  %6549 = vst.msk [vmem:[#allocation3 + $0x230] sm:$0xff] %vm5240, %v6381
  %6550 = vst.msk [vmem:[#allocation3 + $0x248] sm:$0xff] %vm5240, %v6383
  %6551 = vst.msk [vmem:[#allocation3 + $0x260] sm:$0xff] %vm5240, %v6385
  %6552 = vst.msk [vmem:[#allocation3 + $0x278] sm:$0xff] %vm5240, %v6387
  %6553 = vst.msk [vmem:[#allocation3 + $0x290] sm:$0xff] %vm5240, %v6389
  %6554 = vst.msk [vmem:[#allocation3 + $0x2a8] sm:$0xff] %vm5240, %v6391
  %6555 = vst.msk [vmem:[#allocation3 + $0x2c0] sm:$0xff] %vm5240, %v6393
  %6556 = vst.msk [vmem:[#allocation3 + $0x2d8] sm:$0xff] %vm5240, %v6395
  %6557 = vst.msk [vmem:[#allocation3 + $0x2f0] sm:$0xff] %vm5240, %v6397
  %6558 = vst.msk [vmem:[#allocation3 + $0x308] sm:$0xff] %vm5240, %v6399
  %6559 = vst.msk [vmem:[#allocation3 + $0x320] sm:$0xff] %vm5240, %v6401
  %6560 = vst.msk [vmem:[#allocation3 + $0x338] sm:$0xff] %vm5240, %v6403
  %6561 = vst.msk [vmem:[#allocation3 + $0x350] sm:$0xff] %vm5240, %v6405
  %6562 = vst.msk [vmem:[#allocation3 + $0x368] sm:$0xff] %vm5240, %v6407
  %6563 = vst.msk [vmem:[#allocation3 + $0x380] sm:$0xff] %vm5240, %v6409
  %6564 = vst.msk [vmem:[#allocation3 + $0x398] sm:$0xff] %vm5240, %v6411
  %6565 = vst.msk [vmem:[#allocation3 + $0x3b0] sm:$0xff] %vm5240, %v6413
  %6566 = vst.msk [vmem:[#allocation3 + $0x3c8] sm:$0xff] %vm5240, %v6415
  %6567 = vst.msk [vmem:[#allocation3 + $0x3e0] sm:$0xff] %vm5240, %v6417
  %6568 = vst.msk [vmem:[#allocation3 + $0x3f8] sm:$0xff] %vm5240, %v6419
  %6569 = vst.msk [vmem:[#allocation3 + $0x410] sm:$0xff] %vm5240, %v6421
  %6570 = vst.msk [vmem:[#allocation3 + $0x428] sm:$0xff] %vm5240, %v6423
  %6571 = vst.msk [vmem:[#allocation3 + $0x440] sm:$0xff] %vm5240, %v6425
  %6572 = vst.msk [vmem:[#allocation3 + $0x458] sm:$0xff] %vm5240, %v6427
  %6573 = vst.msk [vmem:[#allocation3 + $0x470] sm:$0xff] %vm5240, %v6429
  %6574 = vst.msk [vmem:[#allocation3 + $0x488] sm:$0xff] %vm5240, %v6431
  %6575 = vst.msk [vmem:[#allocation3 + $0x4a0] sm:$0xff] %vm5240, %v6433
  %6576 = vst.msk [vmem:[#allocation3 + $0x4b8] sm:$0xff] %vm5240, %v6435
  %6577 = vst.msk [vmem:[#allocation3 + $0x4d0] sm:$0xff] %vm5240, %v6437
  %6578 = vst.msk [vmem:[#allocation3 + $0x4e8] sm:$0xff] %vm5240, %v6439
  %6579 = vst.msk [vmem:[#allocation3 + $0x500] sm:$0xff] %vm5240, %v6441
  %6580 = vst.msk [vmem:[#allocation3 + $0x518] sm:$0xff] %vm5240, %v6443
  %6581 = vst.msk [vmem:[#allocation3 + $0x530] sm:$0xff] %vm5240, %v6445
  %6582 = vst.msk [vmem:[#allocation3 + $0x548] sm:$0xff] %vm5240, %v6447
  %6583 = vst.msk [vmem:[#allocation3 + $0x560] sm:$0xff] %vm5240, %v6449
  %6584 = vst.msk [vmem:[#allocation3 + $0x578] sm:$0xff] %vm5240, %v6451
  %6585 = vst.msk [vmem:[#allocation3 + $0x590] sm:$0xff] %vm5240, %v6453
  %6586 = vst.msk [vmem:[#allocation3 + $0x5a8] sm:$0xff] %vm5240, %v6455
  %6587 = vst.msk [vmem:[#allocation3 + $0x5c0] sm:$0xff] %vm5240, %v6457
  %6588 = vst.msk [vmem:[#allocation3 + $0x5d8] sm:$0xff] %vm5240, %v6459
  %6589 = vst.msk [vmem:[#allocation3 + $0x5f0] sm:$0xff] %vm5240, %v6461
  %s6590 = scalar_lea.vmem [#allocation2], 168
  %v6591 = vld [vmem:[%s6590] sm:$0xff]
  %v6592 = vld [vmem:[%s6590 + $0x8] sm:$0xff]
  %v6593 = vld [vmem:[%s6590 + $0x10] sm:$0xff]
  %v6594 = vld [vmem:[%s6590 + $0x18] sm:$0xff]
  %v6595 = vld [vmem:[%s6590 + $0x20] sm:$0xff]
  %v6596 = vld [vmem:[%s6590 + $0x28] sm:$0xff]
  %v6597 = vld [vmem:[%s6590 + $0x30] sm:$0xff]
  %v6598 = vld [vmem:[%s6590 + $0x38] sm:$0xff]
  %v6599 = vld [vmem:[%s6590 + $0x50] sm:$0xff]
  %v6600 = vld [vmem:[%s6590 + $0x58] sm:$0xff]
  %v6601 = vld [vmem:[%s6590 + $0x60] sm:$0xff]
  %v6602 = vld [vmem:[%s6590 + $0x68] sm:$0xff]
  %v6603 = vld [vmem:[%s6590 + $0x70] sm:$0xff]
  %v6604 = vld [vmem:[%s6590 + $0x78] sm:$0xff]
  %v6605 = vld [vmem:[%s6590 + $0x80] sm:$0xff]
  %v6606 = vld [vmem:[%s6590 + $0x88] sm:$0xff]
  %v6607 = vld [vmem:[%s6590 + $0xa0] sm:$0xff]
  %v6608 = vld [vmem:[%s6590 + $0xa8] sm:$0xff]
  %v6609 = vld [vmem:[%s6590 + $0xb0] sm:$0xff]
  %v6610 = vld [vmem:[%s6590 + $0xb8] sm:$0xff]
  %v6611 = vld [vmem:[%s6590 + $0xc0] sm:$0xff]
  %v6612 = vld [vmem:[%s6590 + $0xc8] sm:$0xff]
  %v6613 = vld [vmem:[%s6590 + $0xd0] sm:$0xff]
  %v6614 = vld [vmem:[%s6590 + $0xd8] sm:$0xff]
  %v6615 = vld [vmem:[%s6590 + $0xf0] sm:$0xff]
  %v6616 = vld [vmem:[%s6590 + $0xf8] sm:$0xff]
  %v6617 = vld [vmem:[%s6590 + $0x100] sm:$0xff]
  %v6618 = vld [vmem:[%s6590 + $0x108] sm:$0xff]
  %v6619 = vld [vmem:[%s6590 + $0x110] sm:$0xff]
  %v6620 = vld [vmem:[%s6590 + $0x118] sm:$0xff]
  %v6621 = vld [vmem:[%s6590 + $0x120] sm:$0xff]
  %v6622 = vld [vmem:[%s6590 + $0x128] sm:$0xff]
  %v6623 = vld [vmem:[%s6590 + $0x140] sm:$0xff]
  %v6624 = vld [vmem:[%s6590 + $0x148] sm:$0xff]
  %v6625 = vld [vmem:[%s6590 + $0x150] sm:$0xff]
  %v6626 = vld [vmem:[%s6590 + $0x158] sm:$0xff]
  %v6627 = vld [vmem:[%s6590 + $0x160] sm:$0xff]
  %v6628 = vld [vmem:[%s6590 + $0x168] sm:$0xff]
  %v6629 = vld [vmem:[%s6590 + $0x170] sm:$0xff]
  %v6630 = vld [vmem:[%s6590 + $0x178] sm:$0xff]
  %v6631 = vld [vmem:[%s6590 + $0x190] sm:$0xff]
  %v6632 = vld [vmem:[%s6590 + $0x198] sm:$0xff]
  %v6633 = vld [vmem:[%s6590 + $0x1a0] sm:$0xff]
  %v6634 = vld [vmem:[%s6590 + $0x1a8] sm:$0xff]
  %v6635 = vld [vmem:[%s6590 + $0x1b0] sm:$0xff]
  %v6636 = vld [vmem:[%s6590 + $0x1b8] sm:$0xff]
  %v6637 = vld [vmem:[%s6590 + $0x1c0] sm:$0xff]
  %v6638 = vld [vmem:[%s6590 + $0x1c8] sm:$0xff]
  %v6639 = vld [vmem:[%s6590 + $0x1e0] sm:$0xff]
  %v6640 = vld [vmem:[%s6590 + $0x1e8] sm:$0xff]
  %v6641 = vld [vmem:[%s6590 + $0x1f0] sm:$0xff]
  %v6642 = vld [vmem:[%s6590 + $0x1f8] sm:$0xff]
  %v6643 = vld [vmem:[%s6590 + $0x200] sm:$0xff]
  %v6644 = vld [vmem:[%s6590 + $0x208] sm:$0xff]
  %v6645 = vld [vmem:[%s6590 + $0x210] sm:$0xff]
  %v6646 = vld [vmem:[%s6590 + $0x218] sm:$0xff]
  %v6647 = vld [vmem:[%s6590 + $0x230] sm:$0xff]
  %v6648 = vld [vmem:[%s6590 + $0x238] sm:$0xff]
  %v6649 = vld [vmem:[%s6590 + $0x240] sm:$0xff]
  %v6650 = vld [vmem:[%s6590 + $0x248] sm:$0xff]
  %v6651 = vld [vmem:[%s6590 + $0x250] sm:$0xff]
  %v6652 = vld [vmem:[%s6590 + $0x258] sm:$0xff]
  %v6653 = vld [vmem:[%s6590 + $0x260] sm:$0xff]
  %v6654 = vld [vmem:[%s6590 + $0x268] sm:$0xff]
  %6719 = vrot.lane.b32.xlu0 %v6591, 96
  %v6720 = vpop.permute.xlu0 %6719
  %6721 = vrot.lane.b32.xlu0 %v6592, 96
  %v6722 = vpop.permute.xlu0 %6721
  %6723 = vrot.lane.b32.xlu0 %v6593, 96
  %v6724 = vpop.permute.xlu0 %6723
  %6725 = vrot.lane.b32.xlu0 %v6594, 96
  %v6726 = vpop.permute.xlu0 %6725
  %6727 = vrot.lane.b32.xlu0 %v6595, 96
  %v6728 = vpop.permute.xlu0 %6727
  %6729 = vrot.lane.b32.xlu0 %v6596, 96
  %v6730 = vpop.permute.xlu0 %6729
  %6731 = vrot.lane.b32.xlu0 %v6597, 96
  %v6732 = vpop.permute.xlu0 %6731
  %6733 = vrot.lane.b32.xlu0 %v6598, 96
  %v6734 = vpop.permute.xlu0 %6733
  %6735 = vrot.lane.b32.xlu0 %v6599, 96
  %v6736 = vpop.permute.xlu0 %6735
  %6737 = vrot.lane.b32.xlu0 %v6600, 96
  %v6738 = vpop.permute.xlu0 %6737
  %6739 = vrot.lane.b32.xlu0 %v6601, 96
  %v6740 = vpop.permute.xlu0 %6739
  %6741 = vrot.lane.b32.xlu0 %v6602, 96
  %v6742 = vpop.permute.xlu0 %6741
  %6743 = vrot.lane.b32.xlu0 %v6603, 96
  %v6744 = vpop.permute.xlu0 %6743
  %6745 = vrot.lane.b32.xlu0 %v6604, 96
  %v6746 = vpop.permute.xlu0 %6745
  %6747 = vrot.lane.b32.xlu0 %v6605, 96
  %v6748 = vpop.permute.xlu0 %6747
  %6749 = vrot.lane.b32.xlu0 %v6606, 96
  %v6750 = vpop.permute.xlu0 %6749
  %6751 = vrot.lane.b32.xlu0 %v6607, 96
  %v6752 = vpop.permute.xlu0 %6751
  %6753 = vrot.lane.b32.xlu0 %v6608, 96
  %v6754 = vpop.permute.xlu0 %6753
  %6755 = vrot.lane.b32.xlu0 %v6609, 96
  %v6756 = vpop.permute.xlu0 %6755
  %6757 = vrot.lane.b32.xlu0 %v6610, 96
  %v6758 = vpop.permute.xlu0 %6757
  %6759 = vrot.lane.b32.xlu0 %v6611, 96
  %v6760 = vpop.permute.xlu0 %6759
  %6761 = vrot.lane.b32.xlu0 %v6612, 96
  %v6762 = vpop.permute.xlu0 %6761
  %6763 = vrot.lane.b32.xlu0 %v6613, 96
  %v6764 = vpop.permute.xlu0 %6763
  %6765 = vrot.lane.b32.xlu0 %v6614, 96
  %v6766 = vpop.permute.xlu0 %6765
  %6767 = vrot.lane.b32.xlu0 %v6615, 96
  %v6768 = vpop.permute.xlu0 %6767
  %6769 = vrot.lane.b32.xlu0 %v6616, 96
  %v6770 = vpop.permute.xlu0 %6769
  %6771 = vrot.lane.b32.xlu0 %v6617, 96
  %v6772 = vpop.permute.xlu0 %6771
  %6773 = vrot.lane.b32.xlu0 %v6618, 96
  %v6774 = vpop.permute.xlu0 %6773
  %6775 = vrot.lane.b32.xlu0 %v6619, 96
  %v6776 = vpop.permute.xlu0 %6775
  %6777 = vrot.lane.b32.xlu0 %v6620, 96
  %v6778 = vpop.permute.xlu0 %6777
  %6779 = vrot.lane.b32.xlu0 %v6621, 96
  %v6780 = vpop.permute.xlu0 %6779
  %6781 = vrot.lane.b32.xlu0 %v6622, 96
  %v6782 = vpop.permute.xlu0 %6781
  %6783 = vrot.lane.b32.xlu0 %v6623, 96
  %v6784 = vpop.permute.xlu0 %6783
  %6785 = vrot.lane.b32.xlu0 %v6624, 96
  %v6786 = vpop.permute.xlu0 %6785
  %6787 = vrot.lane.b32.xlu0 %v6625, 96
  %v6788 = vpop.permute.xlu0 %6787
  %6789 = vrot.lane.b32.xlu0 %v6626, 96
  %v6790 = vpop.permute.xlu0 %6789
  %6791 = vrot.lane.b32.xlu0 %v6627, 96
  %v6792 = vpop.permute.xlu0 %6791
  %6793 = vrot.lane.b32.xlu0 %v6628, 96
  %v6794 = vpop.permute.xlu0 %6793
  %6795 = vrot.lane.b32.xlu0 %v6629, 96
  %v6796 = vpop.permute.xlu0 %6795
  %6797 = vrot.lane.b32.xlu0 %v6630, 96
  %v6798 = vpop.permute.xlu0 %6797
  %6799 = vrot.lane.b32.xlu0 %v6631, 96
  %v6800 = vpop.permute.xlu0 %6799
  %6801 = vrot.lane.b32.xlu0 %v6632, 96
  %v6802 = vpop.permute.xlu0 %6801
  %6803 = vrot.lane.b32.xlu0 %v6633, 96
  %v6804 = vpop.permute.xlu0 %6803
  %6805 = vrot.lane.b32.xlu0 %v6634, 96
  %v6806 = vpop.permute.xlu0 %6805
  %6807 = vrot.lane.b32.xlu0 %v6635, 96
  %v6808 = vpop.permute.xlu0 %6807
  %6809 = vrot.lane.b32.xlu0 %v6636, 96
  %v6810 = vpop.permute.xlu0 %6809
  %6811 = vrot.lane.b32.xlu0 %v6637, 96
  %v6812 = vpop.permute.xlu0 %6811
  %6813 = vrot.lane.b32.xlu0 %v6638, 96
  %v6814 = vpop.permute.xlu0 %6813
  %6815 = vrot.lane.b32.xlu0 %v6639, 96
  %v6816 = vpop.permute.xlu0 %6815
  %6817 = vrot.lane.b32.xlu0 %v6640, 96
  %v6818 = vpop.permute.xlu0 %6817
  %6819 = vrot.lane.b32.xlu0 %v6641, 96
  %v6820 = vpop.permute.xlu0 %6819
  %6821 = vrot.lane.b32.xlu0 %v6642, 96
  %v6822 = vpop.permute.xlu0 %6821
  %6823 = vrot.lane.b32.xlu0 %v6643, 96
  %v6824 = vpop.permute.xlu0 %6823
  %6825 = vrot.lane.b32.xlu0 %v6644, 96
  %v6826 = vpop.permute.xlu0 %6825
  %6827 = vrot.lane.b32.xlu0 %v6645, 96
  %v6828 = vpop.permute.xlu0 %6827
  %6829 = vrot.lane.b32.xlu0 %v6646, 96
  %v6830 = vpop.permute.xlu0 %6829
  %6831 = vrot.lane.b32.xlu0 %v6647, 96
  %v6832 = vpop.permute.xlu0 %6831
  %6833 = vrot.lane.b32.xlu0 %v6648, 96
  %v6834 = vpop.permute.xlu0 %6833
  %6835 = vrot.lane.b32.xlu0 %v6649, 96
  %v6836 = vpop.permute.xlu0 %6835
  %6837 = vrot.lane.b32.xlu0 %v6650, 96
  %v6838 = vpop.permute.xlu0 %6837
  %6839 = vrot.lane.b32.xlu0 %v6651, 96
  %v6840 = vpop.permute.xlu0 %6839
  %6841 = vrot.lane.b32.xlu0 %v6652, 96
  %v6842 = vpop.permute.xlu0 %6841
  %6843 = vrot.lane.b32.xlu0 %v6653, 96
  %v6844 = vpop.permute.xlu0 %6843
  %6845 = vrot.lane.b32.xlu0 %v6654, 96
  %v6846 = vpop.permute.xlu0 %6845
  %6911 = vst.msk [vmem:[#allocation3 + $0x8] sm:$0xff] %vm5626, %v6720
  %6912 = vst.msk [vmem:[#allocation3 + $0x20] sm:$0xff] %vm5626, %v6722
  %6913 = vst.msk [vmem:[#allocation3 + $0x38] sm:$0xff] %vm5626, %v6724
  %6914 = vst.msk [vmem:[#allocation3 + $0x50] sm:$0xff] %vm5626, %v6726
  %6915 = vst.msk [vmem:[#allocation3 + $0x68] sm:$0xff] %vm5626, %v6728
  %6916 = vst.msk [vmem:[#allocation3 + $0x80] sm:$0xff] %vm5626, %v6730
  %6917 = vst.msk [vmem:[#allocation3 + $0x98] sm:$0xff] %vm5626, %v6732
  %6918 = vst.msk [vmem:[#allocation3 + $0xb0] sm:$0xff] %vm5626, %v6734
  %6919 = vst.msk [vmem:[#allocation3 + $0xc8] sm:$0xff] %vm5626, %v6736
  %6920 = vst.msk [vmem:[#allocation3 + $0xe0] sm:$0xff] %vm5626, %v6738
  %6921 = vst.msk [vmem:[#allocation3 + $0xf8] sm:$0xff] %vm5626, %v6740
  %6922 = vst.msk [vmem:[#allocation3 + $0x110] sm:$0xff] %vm5626, %v6742
  %6923 = vst.msk [vmem:[#allocation3 + $0x128] sm:$0xff] %vm5626, %v6744
  %6924 = vst.msk [vmem:[#allocation3 + $0x140] sm:$0xff] %vm5626, %v6746
  %6925 = vst.msk [vmem:[#allocation3 + $0x158] sm:$0xff] %vm5626, %v6748
  %6926 = vst.msk [vmem:[#allocation3 + $0x170] sm:$0xff] %vm5626, %v6750
  %6927 = vst.msk [vmem:[#allocation3 + $0x188] sm:$0xff] %vm5626, %v6752
  %6928 = vst.msk [vmem:[#allocation3 + $0x1a0] sm:$0xff] %vm5626, %v6754
  %6929 = vst.msk [vmem:[#allocation3 + $0x1b8] sm:$0xff] %vm5626, %v6756
  %6930 = vst.msk [vmem:[#allocation3 + $0x1d0] sm:$0xff] %vm5626, %v6758
  %6931 = vst.msk [vmem:[#allocation3 + $0x1e8] sm:$0xff] %vm5626, %v6760
  %6932 = vst.msk [vmem:[#allocation3 + $0x200] sm:$0xff] %vm5626, %v6762
  %6933 = vst.msk [vmem:[#allocation3 + $0x218] sm:$0xff] %vm5626, %v6764
  %6934 = vst.msk [vmem:[#allocation3 + $0x230] sm:$0xff] %vm5626, %v6766
  %6935 = vst.msk [vmem:[#allocation3 + $0x248] sm:$0xff] %vm5626, %v6768
  %6936 = vst.msk [vmem:[#allocation3 + $0x260] sm:$0xff] %vm5626, %v6770
  %6937 = vst.msk [vmem:[#allocation3 + $0x278] sm:$0xff] %vm5626, %v6772
  %6938 = vst.msk [vmem:[#allocation3 + $0x290] sm:$0xff] %vm5626, %v6774
  %6939 = vst.msk [vmem:[#allocation3 + $0x2a8] sm:$0xff] %vm5626, %v6776
  %6940 = vst.msk [vmem:[#allocation3 + $0x2c0] sm:$0xff] %vm5626, %v6778
  %6941 = vst.msk [vmem:[#allocation3 + $0x2d8] sm:$0xff] %vm5626, %v6780
  %6942 = vst.msk [vmem:[#allocation3 + $0x2f0] sm:$0xff] %vm5626, %v6782
  %6943 = vst.msk [vmem:[#allocation3 + $0x308] sm:$0xff] %vm5626, %v6784
  %6944 = vst.msk [vmem:[#allocation3 + $0x320] sm:$0xff] %vm5626, %v6786
  %6945 = vst.msk [vmem:[#allocation3 + $0x338] sm:$0xff] %vm5626, %v6788
  %6946 = vst.msk [vmem:[#allocation3 + $0x350] sm:$0xff] %vm5626, %v6790
  %6947 = vst.msk [vmem:[#allocation3 + $0x368] sm:$0xff] %vm5626, %v6792
  %6948 = vst.msk [vmem:[#allocation3 + $0x380] sm:$0xff] %vm5626, %v6794
  %6949 = vst.msk [vmem:[#allocation3 + $0x398] sm:$0xff] %vm5626, %v6796
  %6950 = vst.msk [vmem:[#allocation3 + $0x3b0] sm:$0xff] %vm5626, %v6798
  %6951 = vst.msk [vmem:[#allocation3 + $0x3c8] sm:$0xff] %vm5626, %v6800
  %6952 = vst.msk [vmem:[#allocation3 + $0x3e0] sm:$0xff] %vm5626, %v6802
  %6953 = vst.msk [vmem:[#allocation3 + $0x3f8] sm:$0xff] %vm5626, %v6804
  %6954 = vst.msk [vmem:[#allocation3 + $0x410] sm:$0xff] %vm5626, %v6806
  %6955 = vst.msk [vmem:[#allocation3 + $0x428] sm:$0xff] %vm5626, %v6808
  %6956 = vst.msk [vmem:[#allocation3 + $0x440] sm:$0xff] %vm5626, %v6810
  %6957 = vst.msk [vmem:[#allocation3 + $0x458] sm:$0xff] %vm5626, %v6812
  %6958 = vst.msk [vmem:[#allocation3 + $0x470] sm:$0xff] %vm5626, %v6814
  %6959 = vst.msk [vmem:[#allocation3 + $0x488] sm:$0xff] %vm5626, %v6816
  %6960 = vst.msk [vmem:[#allocation3 + $0x4a0] sm:$0xff] %vm5626, %v6818
  %6961 = vst.msk [vmem:[#allocation3 + $0x4b8] sm:$0xff] %vm5626, %v6820
  %6962 = vst.msk [vmem:[#allocation3 + $0x4d0] sm:$0xff] %vm5626, %v6822
  %6963 = vst.msk [vmem:[#allocation3 + $0x4e8] sm:$0xff] %vm5626, %v6824
  %6964 = vst.msk [vmem:[#allocation3 + $0x500] sm:$0xff] %vm5626, %v6826
  %6965 = vst.msk [vmem:[#allocation3 + $0x518] sm:$0xff] %vm5626, %v6828
  %6966 = vst.msk [vmem:[#allocation3 + $0x530] sm:$0xff] %vm5626, %v6830
  %6967 = vst.msk [vmem:[#allocation3 + $0x548] sm:$0xff] %vm5626, %v6832
  %6968 = vst.msk [vmem:[#allocation3 + $0x560] sm:$0xff] %vm5626, %v6834
  %6969 = vst.msk [vmem:[#allocation3 + $0x578] sm:$0xff] %vm5626, %v6836
  %6970 = vst.msk [vmem:[#allocation3 + $0x590] sm:$0xff] %vm5626, %v6838
  %6971 = vst.msk [vmem:[#allocation3 + $0x5a8] sm:$0xff] %vm5626, %v6840
  %6972 = vst.msk [vmem:[#allocation3 + $0x5c0] sm:$0xff] %vm5626, %v6842
  %6973 = vst.msk [vmem:[#allocation3 + $0x5d8] sm:$0xff] %vm5626, %v6844
  %6974 = vst.msk [vmem:[#allocation3 + $0x5f0] sm:$0xff] %vm5626, %v6846
  %v6975 = vld [vmem:[%s4355] sm:$0xff]
  %v6976 = vld [vmem:[%s4355 + $0x8] sm:$0xff]
  %v6977 = vld [vmem:[%s4355 + $0x10] sm:$0xff]
  %v6978 = vld [vmem:[%s4355 + $0x18] sm:$0xff]
  %v6979 = vld [vmem:[%s4355 + $0x20] sm:$0xff]
  %v6980 = vld [vmem:[%s4355 + $0x28] sm:$0xff]
  %v6981 = vld [vmem:[%s4355 + $0x30] sm:$0xff]
  %v6982 = vld [vmem:[%s4355 + $0x38] sm:$0xff]
  %v6983 = vld [vmem:[%s4355 + $0x50] sm:$0xff]
  %v6984 = vld [vmem:[%s4355 + $0x58] sm:$0xff]
  %v6985 = vld [vmem:[%s4355 + $0x60] sm:$0xff]
  %v6986 = vld [vmem:[%s4355 + $0x68] sm:$0xff]
  %v6987 = vld [vmem:[%s4355 + $0x70] sm:$0xff]
  %v6988 = vld [vmem:[%s4355 + $0x78] sm:$0xff]
  %v6989 = vld [vmem:[%s4355 + $0x80] sm:$0xff]
  %v6990 = vld [vmem:[%s4355 + $0x88] sm:$0xff]
  %v6991 = vld [vmem:[%s4355 + $0xa0] sm:$0xff]
  %v6992 = vld [vmem:[%s4355 + $0xa8] sm:$0xff]
  %v6993 = vld [vmem:[%s4355 + $0xb0] sm:$0xff]
  %v6994 = vld [vmem:[%s4355 + $0xb8] sm:$0xff]
  %v6995 = vld [vmem:[%s4355 + $0xc0] sm:$0xff]
  %v6996 = vld [vmem:[%s4355 + $0xc8] sm:$0xff]
  %v6997 = vld [vmem:[%s4355 + $0xd0] sm:$0xff]
  %v6998 = vld [vmem:[%s4355 + $0xd8] sm:$0xff]
  %v6999 = vld [vmem:[%s4355 + $0xf0] sm:$0xff]
  %v7000 = vld [vmem:[%s4355 + $0xf8] sm:$0xff]
  %v7001 = vld [vmem:[%s4355 + $0x100] sm:$0xff]
  %v7002 = vld [vmem:[%s4355 + $0x108] sm:$0xff]
  %v7003 = vld [vmem:[%s4355 + $0x110] sm:$0xff]
  %v7004 = vld [vmem:[%s4355 + $0x118] sm:$0xff]
  %v7005 = vld [vmem:[%s4355 + $0x120] sm:$0xff]
  %v7006 = vld [vmem:[%s4355 + $0x128] sm:$0xff]
  %v7007 = vld [vmem:[%s4355 + $0x140] sm:$0xff]
  %v7008 = vld [vmem:[%s4355 + $0x148] sm:$0xff]
  %v7009 = vld [vmem:[%s4355 + $0x150] sm:$0xff]
  %v7010 = vld [vmem:[%s4355 + $0x158] sm:$0xff]
  %v7011 = vld [vmem:[%s4355 + $0x160] sm:$0xff]
  %v7012 = vld [vmem:[%s4355 + $0x168] sm:$0xff]
  %v7013 = vld [vmem:[%s4355 + $0x170] sm:$0xff]
  %v7014 = vld [vmem:[%s4355 + $0x178] sm:$0xff]
  %v7015 = vld [vmem:[%s4355 + $0x190] sm:$0xff]
  %v7016 = vld [vmem:[%s4355 + $0x198] sm:$0xff]
  %v7017 = vld [vmem:[%s4355 + $0x1a0] sm:$0xff]
  %v7018 = vld [vmem:[%s4355 + $0x1a8] sm:$0xff]
  %v7019 = vld [vmem:[%s4355 + $0x1b0] sm:$0xff]
  %v7020 = vld [vmem:[%s4355 + $0x1b8] sm:$0xff]
  %v7021 = vld [vmem:[%s4355 + $0x1c0] sm:$0xff]
  %v7022 = vld [vmem:[%s4355 + $0x1c8] sm:$0xff]
  %v7023 = vld [vmem:[%s4355 + $0x1e0] sm:$0xff]
  %v7024 = vld [vmem:[%s4355 + $0x1e8] sm:$0xff]
  %v7025 = vld [vmem:[%s4355 + $0x1f0] sm:$0xff]
  %v7026 = vld [vmem:[%s4355 + $0x1f8] sm:$0xff]
  %v7027 = vld [vmem:[%s4355 + $0x200] sm:$0xff]
  %v7028 = vld [vmem:[%s4355 + $0x208] sm:$0xff]
  %v7029 = vld [vmem:[%s4355 + $0x210] sm:$0xff]
  %v7030 = vld [vmem:[%s4355 + $0x218] sm:$0xff]
  %v7031 = vld [vmem:[%s4355 + $0x230] sm:$0xff]
  %v7032 = vld [vmem:[%s4355 + $0x238] sm:$0xff]
  %v7033 = vld [vmem:[%s4355 + $0x240] sm:$0xff]
  %v7034 = vld [vmem:[%s4355 + $0x248] sm:$0xff]
  %v7035 = vld [vmem:[%s4355 + $0x250] sm:$0xff]
  %v7036 = vld [vmem:[%s4355 + $0x258] sm:$0xff]
  %v7037 = vld [vmem:[%s4355 + $0x260] sm:$0xff]
  %v7038 = vld [vmem:[%s4355 + $0x268] sm:$0xff]
  %7039 = vst.msk [vmem:[#allocation3 + $0x10] sm:$0xff] %vm4254, %v6975
  %7040 = vst.msk [vmem:[#allocation3 + $0x28] sm:$0xff] %vm4254, %v6976
  %7041 = vst.msk [vmem:[#allocation3 + $0x40] sm:$0xff] %vm4254, %v6977
  %7042 = vst.msk [vmem:[#allocation3 + $0x58] sm:$0xff] %vm4254, %v6978
  %7043 = vst.msk [vmem:[#allocation3 + $0x70] sm:$0xff] %vm4254, %v6979
  %7044 = vst.msk [vmem:[#allocation3 + $0x88] sm:$0xff] %vm4254, %v6980
  %7045 = vst.msk [vmem:[#allocation3 + $0xa0] sm:$0xff] %vm4254, %v6981
  %7046 = vst.msk [vmem:[#allocation3 + $0xb8] sm:$0xff] %vm4254, %v6982
  %7047 = vst.msk [vmem:[#allocation3 + $0xd0] sm:$0xff] %vm4254, %v6983
  %7048 = vst.msk [vmem:[#allocation3 + $0xe8] sm:$0xff] %vm4254, %v6984
  %7049 = vst.msk [vmem:[#allocation3 + $0x100] sm:$0xff] %vm4254, %v6985
  %7050 = vst.msk [vmem:[#allocation3 + $0x118] sm:$0xff] %vm4254, %v6986
  %7051 = vst.msk [vmem:[#allocation3 + $0x130] sm:$0xff] %vm4254, %v6987
  %7052 = vst.msk [vmem:[#allocation3 + $0x148] sm:$0xff] %vm4254, %v6988
  %7053 = vst.msk [vmem:[#allocation3 + $0x160] sm:$0xff] %vm4254, %v6989
  %7054 = vst.msk [vmem:[#allocation3 + $0x178] sm:$0xff] %vm4254, %v6990
  %7055 = vst.msk [vmem:[#allocation3 + $0x190] sm:$0xff] %vm4254, %v6991
  %7056 = vst.msk [vmem:[#allocation3 + $0x1a8] sm:$0xff] %vm4254, %v6992
  %7057 = vst.msk [vmem:[#allocation3 + $0x1c0] sm:$0xff] %vm4254, %v6993
  %7058 = vst.msk [vmem:[#allocation3 + $0x1d8] sm:$0xff] %vm4254, %v6994
  %7059 = vst.msk [vmem:[#allocation3 + $0x1f0] sm:$0xff] %vm4254, %v6995
  %7060 = vst.msk [vmem:[#allocation3 + $0x208] sm:$0xff] %vm4254, %v6996
  %7061 = vst.msk [vmem:[#allocation3 + $0x220] sm:$0xff] %vm4254, %v6997
  %7062 = vst.msk [vmem:[#allocation3 + $0x238] sm:$0xff] %vm4254, %v6998
  %7063 = vst.msk [vmem:[#allocation3 + $0x250] sm:$0xff] %vm4254, %v6999
  %7064 = vst.msk [vmem:[#allocation3 + $0x268] sm:$0xff] %vm4254, %v7000
  %7065 = vst.msk [vmem:[#allocation3 + $0x280] sm:$0xff] %vm4254, %v7001
  %7066 = vst.msk [vmem:[#allocation3 + $0x298] sm:$0xff] %vm4254, %v7002
  %7067 = vst.msk [vmem:[#allocation3 + $0x2b0] sm:$0xff] %vm4254, %v7003
  %7068 = vst.msk [vmem:[#allocation3 + $0x2c8] sm:$0xff] %vm4254, %v7004
  %7069 = vst.msk [vmem:[#allocation3 + $0x2e0] sm:$0xff] %vm4254, %v7005
  %7070 = vst.msk [vmem:[#allocation3 + $0x2f8] sm:$0xff] %vm4254, %v7006
  %7071 = vst.msk [vmem:[#allocation3 + $0x310] sm:$0xff] %vm4254, %v7007
  %7072 = vst.msk [vmem:[#allocation3 + $0x328] sm:$0xff] %vm4254, %v7008
  %7073 = vst.msk [vmem:[#allocation3 + $0x340] sm:$0xff] %vm4254, %v7009
  %7074 = vst.msk [vmem:[#allocation3 + $0x358] sm:$0xff] %vm4254, %v7010
  %7075 = vst.msk [vmem:[#allocation3 + $0x370] sm:$0xff] %vm4254, %v7011
  %7076 = vst.msk [vmem:[#allocation3 + $0x388] sm:$0xff] %vm4254, %v7012
  %7077 = vst.msk [vmem:[#allocation3 + $0x3a0] sm:$0xff] %vm4254, %v7013
  %7078 = vst.msk [vmem:[#allocation3 + $0x3b8] sm:$0xff] %vm4254, %v7014
  %7079 = vst.msk [vmem:[#allocation3 + $0x3d0] sm:$0xff] %vm4254, %v7015
  %7080 = vst.msk [vmem:[#allocation3 + $0x3e8] sm:$0xff] %vm4254, %v7016
  %7081 = vst.msk [vmem:[#allocation3 + $0x400] sm:$0xff] %vm4254, %v7017
  %7082 = vst.msk [vmem:[#allocation3 + $0x418] sm:$0xff] %vm4254, %v7018
  %7083 = vst.msk [vmem:[#allocation3 + $0x430] sm:$0xff] %vm4254, %v7019
  %7084 = vst.msk [vmem:[#allocation3 + $0x448] sm:$0xff] %vm4254, %v7020
  %7085 = vst.msk [vmem:[#allocation3 + $0x460] sm:$0xff] %vm4254, %v7021
  %7086 = vst.msk [vmem:[#allocation3 + $0x478] sm:$0xff] %vm4254, %v7022
  %7087 = vst.msk [vmem:[#allocation3 + $0x490] sm:$0xff] %vm4254, %v7023
  %7088 = vst.msk [vmem:[#allocation3 + $0x4a8] sm:$0xff] %vm4254, %v7024
  %7089 = vst.msk [vmem:[#allocation3 + $0x4c0] sm:$0xff] %vm4254, %v7025
  %7090 = vst.msk [vmem:[#allocation3 + $0x4d8] sm:$0xff] %vm4254, %v7026
  %7091 = vst.msk [vmem:[#allocation3 + $0x4f0] sm:$0xff] %vm4254, %v7027
  %7092 = vst.msk [vmem:[#allocation3 + $0x508] sm:$0xff] %vm4254, %v7028
  %7093 = vst.msk [vmem:[#allocation3 + $0x520] sm:$0xff] %vm4254, %v7029
  %7094 = vst.msk [vmem:[#allocation3 + $0x538] sm:$0xff] %vm4254, %v7030
  %7095 = vst.msk [vmem:[#allocation3 + $0x550] sm:$0xff] %vm4254, %v7031
  %7096 = vst.msk [vmem:[#allocation3 + $0x568] sm:$0xff] %vm4254, %v7032
  %7097 = vst.msk [vmem:[#allocation3 + $0x580] sm:$0xff] %vm4254, %v7033
  %7098 = vst.msk [vmem:[#allocation3 + $0x598] sm:$0xff] %vm4254, %v7034
  %7099 = vst.msk [vmem:[#allocation3 + $0x5b0] sm:$0xff] %vm4254, %v7035
  %7100 = vst.msk [vmem:[#allocation3 + $0x5c8] sm:$0xff] %vm4254, %v7036
  %7101 = vst.msk [vmem:[#allocation3 + $0x5e0] sm:$0xff] %vm4254, %v7037
  %7102 = vst.msk [vmem:[#allocation3 + $0x5f8] sm:$0xff] %vm4254, %v7038
  %v7103 = vld [vmem:[#allocation3] sm:$0xff]
  %v7104 = vld [vmem:[#allocation3 + $0x8] sm:$0xff]
  %v7105 = vld [vmem:[#allocation3 + $0x10] sm:$0xff]
  %v7106 = vld [vmem:[#allocation3 + $0x18] sm:$0xff]
  %v7107 = vld [vmem:[#allocation3 + $0x20] sm:$0xff]
  %v7108 = vld [vmem:[#allocation3 + $0x28] sm:$0xff]
  %v7109 = vld [vmem:[#allocation3 + $0x30] sm:$0xff]
  %v7110 = vld [vmem:[#allocation3 + $0x38] sm:$0xff]
  %v7111 = vld [vmem:[#allocation3 + $0x40] sm:$0xff]
  %v7112 = vld [vmem:[#allocation3 + $0x48] sm:$0xff]
  %v7113 = vld [vmem:[#allocation3 + $0x50] sm:$0xff]
  %v7114 = vld [vmem:[#allocation3 + $0x58] sm:$0xff]
  %v7115 = vld [vmem:[#allocation3 + $0x60] sm:$0xff]
  %v7116 = vld [vmem:[#allocation3 + $0x68] sm:$0xff]
  %v7117 = vld [vmem:[#allocation3 + $0x70] sm:$0xff]
  %v7118 = vld [vmem:[#allocation3 + $0x78] sm:$0xff]
  %v7119 = vld [vmem:[#allocation3 + $0x80] sm:$0xff]
  %v7120 = vld [vmem:[#allocation3 + $0x88] sm:$0xff]
  %v7121 = vld [vmem:[#allocation3 + $0x90] sm:$0xff]
  %v7122 = vld [vmem:[#allocation3 + $0x98] sm:$0xff]
  %v7123 = vld [vmem:[#allocation3 + $0xa0] sm:$0xff]
  %v7124 = vld [vmem:[#allocation3 + $0xa8] sm:$0xff]
  %v7125 = vld [vmem:[#allocation3 + $0xb0] sm:$0xff]
  %v7126 = vld [vmem:[#allocation3 + $0xb8] sm:$0xff]
  %v7127 = vld [vmem:[#allocation3 + $0xc0] sm:$0xff]
  %v7128 = vld [vmem:[#allocation3 + $0xc8] sm:$0xff]
  %v7129 = vld [vmem:[#allocation3 + $0xd0] sm:$0xff]
  %v7130 = vld [vmem:[#allocation3 + $0xd8] sm:$0xff]
  %v7131 = vld [vmem:[#allocation3 + $0xe0] sm:$0xff]
  %v7132 = vld [vmem:[#allocation3 + $0xe8] sm:$0xff]
  %v7133 = vld [vmem:[#allocation3 + $0xf0] sm:$0xff]
  %v7134 = vld [vmem:[#allocation3 + $0xf8] sm:$0xff]
  %v7135 = vld [vmem:[#allocation3 + $0x100] sm:$0xff]
  %v7136 = vld [vmem:[#allocation3 + $0x108] sm:$0xff]
  %v7137 = vld [vmem:[#allocation3 + $0x110] sm:$0xff]
  %v7138 = vld [vmem:[#allocation3 + $0x118] sm:$0xff]
  %v7139 = vld [vmem:[#allocation3 + $0x120] sm:$0xff]
  %v7140 = vld [vmem:[#allocation3 + $0x128] sm:$0xff]
  %v7141 = vld [vmem:[#allocation3 + $0x130] sm:$0xff]
  %v7142 = vld [vmem:[#allocation3 + $0x138] sm:$0xff]
  %v7143 = vld [vmem:[#allocation3 + $0x140] sm:$0xff]
  %v7144 = vld [vmem:[#allocation3 + $0x148] sm:$0xff]
  %v7145 = vld [vmem:[#allocation3 + $0x150] sm:$0xff]
  %v7146 = vld [vmem:[#allocation3 + $0x158] sm:$0xff]
  %v7147 = vld [vmem:[#allocation3 + $0x160] sm:$0xff]
  %v7148 = vld [vmem:[#allocation3 + $0x168] sm:$0xff]
  %v7149 = vld [vmem:[#allocation3 + $0x170] sm:$0xff]
  %v7150 = vld [vmem:[#allocation3 + $0x178] sm:$0xff]
  %v7151 = vld [vmem:[#allocation3 + $0x180] sm:$0xff]
  %v7152 = vld [vmem:[#allocation3 + $0x188] sm:$0xff]
  %v7153 = vld [vmem:[#allocation3 + $0x190] sm:$0xff]
  %v7154 = vld [vmem:[#allocation3 + $0x198] sm:$0xff]
  %v7155 = vld [vmem:[#allocation3 + $0x1a0] sm:$0xff]
  %v7156 = vld [vmem:[#allocation3 + $0x1a8] sm:$0xff]
  %v7157 = vld [vmem:[#allocation3 + $0x1b0] sm:$0xff]
  %v7158 = vld [vmem:[#allocation3 + $0x1b8] sm:$0xff]
  %v7159 = vld [vmem:[#allocation3 + $0x1c0] sm:$0xff]
  %v7160 = vld [vmem:[#allocation3 + $0x1c8] sm:$0xff]
  %v7161 = vld [vmem:[#allocation3 + $0x1d0] sm:$0xff]
  %v7162 = vld [vmem:[#allocation3 + $0x1d8] sm:$0xff]
  %v7163 = vld [vmem:[#allocation3 + $0x1e0] sm:$0xff]
  %v7164 = vld [vmem:[#allocation3 + $0x1e8] sm:$0xff]
  %v7165 = vld [vmem:[#allocation3 + $0x1f0] sm:$0xff]
  %v7166 = vld [vmem:[#allocation3 + $0x1f8] sm:$0xff]
  %v7167 = vld [vmem:[#allocation3 + $0x200] sm:$0xff]
  %v7168 = vld [vmem:[#allocation3 + $0x208] sm:$0xff]
  %v7169 = vld [vmem:[#allocation3 + $0x210] sm:$0xff]
  %v7170 = vld [vmem:[#allocation3 + $0x218] sm:$0xff]
  %v7171 = vld [vmem:[#allocation3 + $0x220] sm:$0xff]
  %v7172 = vld [vmem:[#allocation3 + $0x228] sm:$0xff]
  %v7173 = vld [vmem:[#allocation3 + $0x230] sm:$0xff]
  %v7174 = vld [vmem:[#allocation3 + $0x238] sm:$0xff]
  %v7175 = vld [vmem:[#allocation3 + $0x240] sm:$0xff]
  %v7176 = vld [vmem:[#allocation3 + $0x248] sm:$0xff]
  %v7177 = vld [vmem:[#allocation3 + $0x250] sm:$0xff]
  %v7178 = vld [vmem:[#allocation3 + $0x258] sm:$0xff]
  %v7179 = vld [vmem:[#allocation3 + $0x260] sm:$0xff]
  %v7180 = vld [vmem:[#allocation3 + $0x268] sm:$0xff]
  %v7181 = vld [vmem:[#allocation3 + $0x270] sm:$0xff]
  %v7182 = vld [vmem:[#allocation3 + $0x278] sm:$0xff]
  %v7183 = vld [vmem:[#allocation3 + $0x280] sm:$0xff]
  %v7184 = vld [vmem:[#allocation3 + $0x288] sm:$0xff]
  %v7185 = vld [vmem:[#allocation3 + $0x290] sm:$0xff]
  %v7186 = vld [vmem:[#allocation3 + $0x298] sm:$0xff]
  %v7187 = vld [vmem:[#allocation3 + $0x2a0] sm:$0xff]
  %v7188 = vld [vmem:[#allocation3 + $0x2a8] sm:$0xff]
  %v7189 = vld [vmem:[#allocation3 + $0x2b0] sm:$0xff]
  %v7190 = vld [vmem:[#allocation3 + $0x2b8] sm:$0xff]
  %v7191 = vld [vmem:[#allocation3 + $0x2c0] sm:$0xff]
  %v7192 = vld [vmem:[#allocation3 + $0x2c8] sm:$0xff]
  %v7193 = vld [vmem:[#allocation3 + $0x2d0] sm:$0xff]
  %v7194 = vld [vmem:[#allocation3 + $0x2d8] sm:$0xff]
  %v7195 = vld [vmem:[#allocation3 + $0x2e0] sm:$0xff]
  %v7196 = vld [vmem:[#allocation3 + $0x2e8] sm:$0xff]
  %v7197 = vld [vmem:[#allocation3 + $0x2f0] sm:$0xff]
  %v7198 = vld [vmem:[#allocation3 + $0x2f8] sm:$0xff]
  %v7199 = vld [vmem:[#allocation3 + $0x300] sm:$0xff]
  %v7200 = vld [vmem:[#allocation3 + $0x308] sm:$0xff]
  %v7201 = vld [vmem:[#allocation3 + $0x310] sm:$0xff]
  %v7202 = vld [vmem:[#allocation3 + $0x318] sm:$0xff]
  %v7203 = vld [vmem:[#allocation3 + $0x320] sm:$0xff]
  %v7204 = vld [vmem:[#allocation3 + $0x328] sm:$0xff]
  %v7205 = vld [vmem:[#allocation3 + $0x330] sm:$0xff]
  %v7206 = vld [vmem:[#allocation3 + $0x338] sm:$0xff]
  %v7207 = vld [vmem:[#allocation3 + $0x340] sm:$0xff]
  %v7208 = vld [vmem:[#allocation3 + $0x348] sm:$0xff]
  %v7209 = vld [vmem:[#allocation3 + $0x350] sm:$0xff]
  %v7210 = vld [vmem:[#allocation3 + $0x358] sm:$0xff]
  %v7211 = vld [vmem:[#allocation3 + $0x360] sm:$0xff]
  %v7212 = vld [vmem:[#allocation3 + $0x368] sm:$0xff]
  %v7213 = vld [vmem:[#allocation3 + $0x370] sm:$0xff]
  %v7214 = vld [vmem:[#allocation3 + $0x378] sm:$0xff]
  %v7215 = vld [vmem:[#allocation3 + $0x380] sm:$0xff]
  %v7216 = vld [vmem:[#allocation3 + $0x388] sm:$0xff]
  %v7217 = vld [vmem:[#allocation3 + $0x390] sm:$0xff]
  %v7218 = vld [vmem:[#allocation3 + $0x398] sm:$0xff]
  %v7219 = vld [vmem:[#allocation3 + $0x3a0] sm:$0xff]
  %v7220 = vld [vmem:[#allocation3 + $0x3a8] sm:$0xff]
  %v7221 = vld [vmem:[#allocation3 + $0x3b0] sm:$0xff]
  %v7222 = vld [vmem:[#allocation3 + $0x3b8] sm:$0xff]
  %v7223 = vld [vmem:[#allocation3 + $0x3c0] sm:$0xff]
  %v7224 = vld [vmem:[#allocation3 + $0x3c8] sm:$0xff]
  %v7225 = vld [vmem:[#allocation3 + $0x3d0] sm:$0xff]
  %v7226 = vld [vmem:[#allocation3 + $0x3d8] sm:$0xff]
  %v7227 = vld [vmem:[#allocation3 + $0x3e0] sm:$0xff]
  %v7228 = vld [vmem:[#allocation3 + $0x3e8] sm:$0xff]
  %v7229 = vld [vmem:[#allocation3 + $0x3f0] sm:$0xff]
  %v7230 = vld [vmem:[#allocation3 + $0x3f8] sm:$0xff]
  %v7231 = vld [vmem:[#allocation3 + $0x400] sm:$0xff]
  %v7232 = vld [vmem:[#allocation3 + $0x408] sm:$0xff]
  %v7233 = vld [vmem:[#allocation3 + $0x410] sm:$0xff]
  %v7234 = vld [vmem:[#allocation3 + $0x418] sm:$0xff]
  %v7235 = vld [vmem:[#allocation3 + $0x420] sm:$0xff]
  %v7236 = vld [vmem:[#allocation3 + $0x428] sm:$0xff]
  %v7237 = vld [vmem:[#allocation3 + $0x430] sm:$0xff]
  %v7238 = vld [vmem:[#allocation3 + $0x438] sm:$0xff]
  %v7239 = vld [vmem:[#allocation3 + $0x440] sm:$0xff]
  %v7240 = vld [vmem:[#allocation3 + $0x448] sm:$0xff]
  %v7241 = vld [vmem:[#allocation3 + $0x450] sm:$0xff]
  %v7242 = vld [vmem:[#allocation3 + $0x458] sm:$0xff]
  %v7243 = vld [vmem:[#allocation3 + $0x460] sm:$0xff]
  %v7244 = vld [vmem:[#allocation3 + $0x468] sm:$0xff]
  %v7245 = vld [vmem:[#allocation3 + $0x470] sm:$0xff]
  %v7246 = vld [vmem:[#allocation3 + $0x478] sm:$0xff]
  %v7247 = vld [vmem:[#allocation3 + $0x480] sm:$0xff]
  %v7248 = vld [vmem:[#allocation3 + $0x488] sm:$0xff]
  %v7249 = vld [vmem:[#allocation3 + $0x490] sm:$0xff]
  %v7250 = vld [vmem:[#allocation3 + $0x498] sm:$0xff]
  %v7251 = vld [vmem:[#allocation3 + $0x4a0] sm:$0xff]
  %v7252 = vld [vmem:[#allocation3 + $0x4a8] sm:$0xff]
  %v7253 = vld [vmem:[#allocation3 + $0x4b0] sm:$0xff]
  %v7254 = vld [vmem:[#allocation3 + $0x4b8] sm:$0xff]
  %v7255 = vld [vmem:[#allocation3 + $0x4c0] sm:$0xff]
  %v7256 = vld [vmem:[#allocation3 + $0x4c8] sm:$0xff]
  %v7257 = vld [vmem:[#allocation3 + $0x4d0] sm:$0xff]
  %v7258 = vld [vmem:[#allocation3 + $0x4d8] sm:$0xff]
  %v7259 = vld [vmem:[#allocation3 + $0x4e0] sm:$0xff]
  %v7260 = vld [vmem:[#allocation3 + $0x4e8] sm:$0xff]
  %v7261 = vld [vmem:[#allocation3 + $0x4f0] sm:$0xff]
  %v7262 = vld [vmem:[#allocation3 + $0x4f8] sm:$0xff]
  %v7263 = vld [vmem:[#allocation3 + $0x500] sm:$0xff]
  %v7264 = vld [vmem:[#allocation3 + $0x508] sm:$0xff]
  %v7265 = vld [vmem:[#allocation3 + $0x510] sm:$0xff]
  %v7266 = vld [vmem:[#allocation3 + $0x518] sm:$0xff]
  %v7267 = vld [vmem:[#allocation3 + $0x520] sm:$0xff]
  %v7268 = vld [vmem:[#allocation3 + $0x528] sm:$0xff]
  %v7269 = vld [vmem:[#allocation3 + $0x530] sm:$0xff]
  %v7270 = vld [vmem:[#allocation3 + $0x538] sm:$0xff]
  %v7271 = vld [vmem:[#allocation3 + $0x540] sm:$0xff]
  %v7272 = vld [vmem:[#allocation3 + $0x548] sm:$0xff]
  %v7273 = vld [vmem:[#allocation3 + $0x550] sm:$0xff]
  %v7274 = vld [vmem:[#allocation3 + $0x558] sm:$0xff]
  %v7275 = vld [vmem:[#allocation3 + $0x560] sm:$0xff]
  %v7276 = vld [vmem:[#allocation3 + $0x568] sm:$0xff]
  %v7277 = vld [vmem:[#allocation3 + $0x570] sm:$0xff]
  %v7278 = vld [vmem:[#allocation3 + $0x578] sm:$0xff]
  %v7279 = vld [vmem:[#allocation3 + $0x580] sm:$0xff]
  %v7280 = vld [vmem:[#allocation3 + $0x588] sm:$0xff]
  %v7281 = vld [vmem:[#allocation3 + $0x590] sm:$0xff]
  %v7282 = vld [vmem:[#allocation3 + $0x598] sm:$0xff]
  %v7283 = vld [vmem:[#allocation3 + $0x5a0] sm:$0xff]
  %v7284 = vld [vmem:[#allocation3 + $0x5a8] sm:$0xff]
  %v7285 = vld [vmem:[#allocation3 + $0x5b0] sm:$0xff]
  %v7286 = vld [vmem:[#allocation3 + $0x5b8] sm:$0xff]
  %v7287 = vld [vmem:[#allocation3 + $0x5c0] sm:$0xff]
  %v7288 = vld [vmem:[#allocation3 + $0x5c8] sm:$0xff]
  %v7289 = vld [vmem:[#allocation3 + $0x5d0] sm:$0xff]
  %v7290 = vld [vmem:[#allocation3 + $0x5d8] sm:$0xff]
  %v7291 = vld [vmem:[#allocation3 + $0x5e0] sm:$0xff]
  %v7292 = vld [vmem:[#allocation3 + $0x5e8] sm:$0xff]
  %v7293 = vld [vmem:[#allocation3 + $0x5f0] sm:$0xff]
  %v7294 = vld [vmem:[#allocation3 + $0x5f8] sm:$0xff]
  %v7295 = vld [vmem:[%s3] sm:$0xf]
  %v7296 = vld [vmem:[%s3 + $0x4] sm:$0xf]
  %v7297 = vld [vmem:[%s3 + $0x8] sm:$0xf]
  %v7298 = vld [vmem:[%s3 + $0xc] sm:$0xf]
  %v7299 = vld [vmem:[%s3 + $0x10] sm:$0xf]
  %v7300 = vld [vmem:[%s3 + $0x14] sm:$0xf]
  %v7301 = vld [vmem:[%s3 + $0x18] sm:$0xf]
  %v7302 = vld [vmem:[%s3 + $0x1c] sm:$0xf]
  %v7303 = vld [vmem:[%s3 + $0x20] sm:$0xf]
  %v7304 = vld [vmem:[%s3 + $0x24] sm:$0xf]
  %v7305 = vld [vmem:[%s3 + $0x28] sm:$0xf]
  %v7306 = vld [vmem:[%s3 + $0x2c] sm:$0xf]
  %v7307 = vld [vmem:[%s3 + $0x30] sm:$0xf]
  %v7308 = vld [vmem:[%s3 + $0x34] sm:$0xf]
  %v7309 = vld [vmem:[%s3 + $0x38] sm:$0xf]
  %v7310 = vld [vmem:[%s3 + $0x3c] sm:$0xf]
  %v7311 = vld [vmem:[%s3 + $0x40] sm:$0xf]
  %v7312 = vld [vmem:[%s3 + $0x44] sm:$0xf]
  %v7313 = vld [vmem:[%s3 + $0x48] sm:$0xf]
  %v7314 = vld [vmem:[%s3 + $0x4c] sm:$0xf]
  %v7315 = vld [vmem:[%s3 + $0x50] sm:$0xf]
  %v7316 = vld [vmem:[%s3 + $0x54] sm:$0xf]
  %v7317 = vld [vmem:[%s3 + $0x58] sm:$0xf]
  %v7318 = vld [vmem:[%s3 + $0x5c] sm:$0xf]
  %v7319 = vld [vmem:[%s3 + $0x60] sm:$0xf]
  %v7320 = vld [vmem:[%s3 + $0x64] sm:$0xf]
  %v7321 = vld [vmem:[%s3 + $0x68] sm:$0xf]
  %v7322 = vld [vmem:[%s3 + $0x6c] sm:$0xf]
  %v7323 = vld [vmem:[%s3 + $0x70] sm:$0xf]
  %v7324 = vld [vmem:[%s3 + $0x74] sm:$0xf]
  %v7325 = vld [vmem:[%s3 + $0x78] sm:$0xf]
  %v7326 = vld [vmem:[%s3 + $0x7c] sm:$0xf]
  %v7327 = vld [vmem:[%s3 + $0x80] sm:$0xf]
  %v7328 = vld [vmem:[%s3 + $0x84] sm:$0xf]
  %v7329 = vld [vmem:[%s3 + $0x88] sm:$0xf]
  %v7330 = vld [vmem:[%s3 + $0x8c] sm:$0xf]
  %v7367 = vunpack.c.l.b16 %v7295
  %v7368 = vunpack.c.l.b16 %v7296
  %v7369 = vunpack.c.l.b16 %v7297
  %v7370 = vunpack.c.l.b16 %v7298
  %v7371 = vunpack.c.l.b16 %v7299
  %v7372 = vunpack.c.l.b16 %v7300
  %v7373 = vunpack.c.l.b16 %v7301
  %v7374 = vunpack.c.l.b16 %v7302
  %v7375 = vunpack.c.l.b16 %v7303
  %v7376 = vunpack.c.l.b16 %v7304
  %v7377 = vunpack.c.l.b16 %v7305
  %v7378 = vunpack.c.l.b16 %v7306
  %v7379 = vunpack.c.l.b16 %v7307
  %v7380 = vunpack.c.l.b16 %v7308
  %v7381 = vunpack.c.l.b16 %v7309
  %v7382 = vunpack.c.l.b16 %v7310
  %v7383 = vunpack.c.l.b16 %v7311
  %v7384 = vunpack.c.l.b16 %v7312
  %v7385 = vunpack.c.l.b16 %v7313
  %v7386 = vunpack.c.l.b16 %v7314
  %v7387 = vunpack.c.l.b16 %v7315
  %v7388 = vunpack.c.l.b16 %v7316
  %v7389 = vunpack.c.l.b16 %v7317
  %v7390 = vunpack.c.l.b16 %v7318
  %v7391 = vunpack.c.l.b16 %v7319
  %v7392 = vunpack.c.l.b16 %v7320
  %v7393 = vunpack.c.l.b16 %v7321
  %v7394 = vunpack.c.l.b16 %v7322
  %v7395 = vunpack.c.l.b16 %v7323
  %v7396 = vunpack.c.l.b16 %v7324
  %v7397 = vunpack.c.l.b16 %v7325
  %v7398 = vunpack.c.l.b16 %v7326
  %v7399 = vunpack.c.l.b16 %v7327
  %v7400 = vunpack.c.l.b16 %v7328
  %v7401 = vunpack.c.l.b16 %v7329
  %v7402 = vunpack.c.l.b16 %v7330
  %v7403 = vpack.c.b16 %v7368, %v7367
  %v7404 = vpack.c.b16 %v7370, %v7369
  %v7405 = vpack.c.b16 %v7372, %v7371
  %v7406 = vpack.c.b16 %v7374, %v7373
  %v7407 = vpack.c.b16 %v7376, %v7375
  %v7408 = vpack.c.b16 %v7378, %v7377
  %v7409 = vpack.c.b16 %v7380, %v7379
  %v7410 = vpack.c.b16 %v7382, %v7381
  %v7411 = vpack.c.b16 %v7384, %v7383
  %v7412 = vpack.c.b16 %v7386, %v7385
  %v7413 = vpack.c.b16 %v7388, %v7387
  %v7414 = vpack.c.b16 %v7390, %v7389
  %v7415 = vpack.c.b16 %v7392, %v7391
  %v7416 = vpack.c.b16 %v7394, %v7393
  %v7417 = vpack.c.b16 %v7396, %v7395
  %v7418 = vpack.c.b16 %v7398, %v7397
  %v7419 = vpack.c.b16 %v7400, %v7399
  %v7420 = vpack.c.b16 %v7402, %v7401
  %v7440 = vsel %vm4254, %v7105, 0
  %v7443 = vsel %vm4254, %v7108, 0
  %v7446 = vsel %vm4254, %v7111, 0
  %v7449 = vsel %vm4254, %v7114, 0
  %v7452 = vsel %vm4254, %v7117, 0
  %v7455 = vsel %vm4254, %v7120, 0
  %v7458 = vsel %vm4254, %v7123, 0
  %v7461 = vsel %vm4254, %v7126, 0
  %v7464 = vsel %vm4254, %v7129, 0
  %v7467 = vsel %vm4254, %v7132, 0
  %v7470 = vsel %vm4254, %v7135, 0
  %v7473 = vsel %vm4254, %v7138, 0
  %v7476 = vsel %vm4254, %v7141, 0
  %v7479 = vsel %vm4254, %v7144, 0
  %v7482 = vsel %vm4254, %v7147, 0
  %v7485 = vsel %vm4254, %v7150, 0
  %v7488 = vsel %vm4254, %v7153, 0
  %v7491 = vsel %vm4254, %v7156, 0
  %v7494 = vsel %vm4254, %v7159, 0
  %v7497 = vsel %vm4254, %v7162, 0
  %v7500 = vsel %vm4254, %v7165, 0
  %v7503 = vsel %vm4254, %v7168, 0
  %v7506 = vsel %vm4254, %v7171, 0
  %v7509 = vsel %vm4254, %v7174, 0
  %v7512 = vsel %vm4254, %v7177, 0
  %v7515 = vsel %vm4254, %v7180, 0
  %v7518 = vsel %vm4254, %v7183, 0
  %v7521 = vsel %vm4254, %v7186, 0
  %v7524 = vsel %vm4254, %v7189, 0
  %v7527 = vsel %vm4254, %v7192, 0
  %v7530 = vsel %vm4254, %v7195, 0
  %v7533 = vsel %vm4254, %v7198, 0
  %v7536 = vsel %vm4254, %v7201, 0
  %v7539 = vsel %vm4254, %v7204, 0
  %v7542 = vsel %vm4254, %v7207, 0
  %v7545 = vsel %vm4254, %v7210, 0
  %v7548 = vsel %vm4254, %v7213, 0
  %v7551 = vsel %vm4254, %v7216, 0
  %v7554 = vsel %vm4254, %v7219, 0
  %v7557 = vsel %vm4254, %v7222, 0
  %v7560 = vsel %vm4254, %v7225, 0
  %v7563 = vsel %vm4254, %v7228, 0
  %v7566 = vsel %vm4254, %v7231, 0
  %v7569 = vsel %vm4254, %v7234, 0
  %v7572 = vsel %vm4254, %v7237, 0
  %v7575 = vsel %vm4254, %v7240, 0
  %v7578 = vsel %vm4254, %v7243, 0
  %v7581 = vsel %vm4254, %v7246, 0
  %v7584 = vsel %vm4254, %v7249, 0
  %v7587 = vsel %vm4254, %v7252, 0
  %v7590 = vsel %vm4254, %v7255, 0
  %v7593 = vsel %vm4254, %v7258, 0
  %v7596 = vsel %vm4254, %v7261, 0
  %v7599 = vsel %vm4254, %v7264, 0
  %v7602 = vsel %vm4254, %v7267, 0
  %v7605 = vsel %vm4254, %v7270, 0
  %v7608 = vsel %vm4254, %v7273, 0
  %v7611 = vsel %vm4254, %v7276, 0
  %v7614 = vsel %vm4254, %v7279, 0
  %v7617 = vsel %vm4254, %v7282, 0
  %v7620 = vsel %vm4254, %v7285, 0
  %v7623 = vsel %vm4254, %v7288, 0
  %v7626 = vsel %vm4254, %v7291, 0
  %v7629 = vsel %vm4254, %v7294, 0
  %7631 = vmatprep.subr.bf16.mxu0 0
  %7632 = vmatpush1.bf16.msra.mxu0 %v7403
  %7633 = vmatprep.subr.bf16.mxu0 0
  %7634 = vmatpush1.bf16.msra.mxu0 %v7404
  %7635 = vmatprep.subr.bf16.mxu0 0
  %7636 = vmatpush1.bf16.msra.mxu0 %v7405
  %7637 = vmatprep.subr.bf16.mxu0 0
  %7638 = vmatpush1.bf16.msra.mxu0 %v7406
  %7639 = vmatprep.subr.bf16.mxu0 0
  %7640 = vmatpush1.bf16.msra.mxu0 %v7407
  %7641 = vmatprep.subr.bf16.mxu0 0
  %7642 = vmatpush1.bf16.msra.mxu0 %v7408
  %7643 = vmatprep.subr.bf16.mxu0 0
  %7644 = vmatpush1.bf16.msra.mxu0 %v7409
  %7645 = vmatprep.subr.bf16.mxu0 0
  %7646 = vmatpush1.bf16.msra.mxu0 %v7410
  %7647 = vmatprep.subr.bf16.mxu0 0
  %7648 = vmatpush1.bf16.msra.mxu0 %v7411
  %7649 = vmatprep.subr.bf16.mxu0 0
  %7650 = vmatpush1.bf16.msra.mxu0 %v7412
  %7651 = vmatprep.subr.bf16.mxu0 0
  %7652 = vmatpush1.bf16.msra.mxu0 %v7413
  %7653 = vmatprep.subr.bf16.mxu0 0
  %7654 = vmatpush1.bf16.msra.mxu0 %v7414
  %7655 = vmatprep.subr.bf16.mxu0 0
  %7656 = vmatpush1.bf16.msra.mxu0 %v7415
  %7657 = vmatprep.subr.bf16.mxu0 0
  %7658 = vmatpush1.bf16.msra.mxu0 %v7416
  %7659 = vmatprep.subr.bf16.mxu0 0
  %7660 = vmatpush1.bf16.msra.mxu0 %v7417
  %7661 = vmatprep.subr.bf16.mxu0 0
  %7662 = vmatpush1.bf16.msra.mxu0 %v7418
  %7663 = vmatprep.mubr.bf16.mxu0 %v7104
  %7664 = vmatmul.mubr.bf16.gmra.mrb[0].mxu0 %v7103
  %v7665 = vpop.f32.mrb[0].mxu0
  %v7666 = vadd.f32 0.0, %v7665
  %v7667 = vpop.f32.mrb[0].mxu0
  %v7668 = vpop.f32.mrb[0].mxu0
  %v7669 = vadd.f32 0.0, %v7668
  %v7670 = vpop.f32.mrb[0].mxu0
  %7671 = vmatprep.mubr.bf16.mxu0 %v7107
  %7672 = vmatmul.mubr.bf16.gmra.mrb[0].mxu0 %v7106
  %v7673 = vpop.f32.mrb[0].mxu0
  %v7674 = vadd.f32 0.0, %v7673
  %v7675 = vpop.f32.mrb[0].mxu0
  %v7676 = vpop.f32.mrb[0].mxu0
  %v7677 = vadd.f32 0.0, %v7676
  %v7678 = vpop.f32.mrb[0].mxu0
  %7679 = vmatprep.mubr.bf16.mxu0 %v7110
  %7680 = vmatmul.mubr.bf16.gmra.mrb[0].mxu0 %v7109
  %v7681 = vpop.f32.mrb[0].mxu0
  %v7682 = vadd.f32 0.0, %v7681
  %v7683 = vpop.f32.mrb[0].mxu0
  %v7684 = vpop.f32.mrb[0].mxu0
  %v7685 = vadd.f32 0.0, %v7684
  %v7686 = vpop.f32.mrb[0].mxu0
  %7687 = vmatprep.mubr.bf16.mxu0 %v7113
  %7688 = vmatmul.mubr.bf16.gmra.mrb[0].mxu0 %v7112
  %v7689 = vpop.f32.mrb[0].mxu0
  %v7690 = vadd.f32 0.0, %v7689
  %v7691 = vpop.f32.mrb[0].mxu0
  %v7692 = vpop.f32.mrb[0].mxu0
  %v7693 = vadd.f32 0.0, %v7692
  %v7694 = vpop.f32.mrb[0].mxu0
  %7695 = vmatprep.mubr.bf16.mxu0 %v7116
  %7696 = vmatmul.mubr.bf16.gmra.mrb[0].mxu0 %v7115
  %v7697 = vpop.f32.mrb[0].mxu0
  %v7698 = vadd.f32 0.0, %v7697
  %v7699 = vpop.f32.mrb[0].mxu0
  %v7700 = vpop.f32.mrb[0].mxu0
  %v7701 = vadd.f32 0.0, %v7700
  %v7702 = vpop.f32.mrb[0].mxu0
  %7703 = vmatprep.mubr.bf16.mxu0 %v7119
  %7704 = vmatmul.mubr.bf16.gmra.mrb[0].mxu0 %v7118
  %v7705 = vpop.f32.mrb[0].mxu0
  %v7706 = vadd.f32 0.0, %v7705
  %v7707 = vpop.f32.mrb[0].mxu0
  %v7708 = vpop.f32.mrb[0].mxu0
  %v7709 = vadd.f32 0.0, %v7708
  %v7710 = vpop.f32.mrb[0].mxu0
  %7711 = vmatprep.mubr.bf16.mxu0 %v7122
  %7712 = vmatmul.mubr.bf16.gmra.mrb[0].mxu0 %v7121
  %v7713 = vpop.f32.mrb[0].mxu0
  %v7714 = vadd.f32 0.0, %v7713
  %v7715 = vpop.f32.mrb[0].mxu0
  %v7716 = vpop.f32.mrb[0].mxu0
  %v7717 = vadd.f32 0.0, %v7716
  %v7718 = vpop.f32.mrb[0].mxu0
  %7719 = vmatprep.mubr.bf16.mxu0 %v7125
  %7720 = vmatmul.mubr.bf16.gmra.mrb[0].mxu0 %v7124
  %v7721 = vpop.f32.mrb[0].mxu0
  %v7722 = vadd.f32 0.0, %v7721
  %v7723 = vpop.f32.mrb[0].mxu0
  %v7724 = vpop.f32.mrb[0].mxu0
  %v7725 = vadd.f32 0.0, %v7724
  %v7726 = vpop.f32.mrb[0].mxu0
  %7727 = vmatprep.mubr.bf16.mxu0 %v7128
  %7728 = vmatmul.mubr.bf16.gmra.mrb[0].mxu0 %v7127
  %v7729 = vpop.f32.mrb[0].mxu0
  %v7730 = vadd.f32 0.0, %v7729
  %v7731 = vpop.f32.mrb[0].mxu0
  %v7732 = vpop.f32.mrb[0].mxu0
  %v7733 = vadd.f32 0.0, %v7732
  %v7734 = vpop.f32.mrb[0].mxu0
  %7735 = vmatprep.mubr.bf16.mxu0 %v7131
  %7736 = vmatmul.mubr.bf16.gmra.mrb[0].mxu0 %v7130
  %v7737 = vpop.f32.mrb[0].mxu0
  %v7738 = vadd.f32 0.0, %v7737
  %v7739 = vpop.f32.mrb[0].mxu0
  %v7740 = vpop.f32.mrb[0].mxu0
  %v7741 = vadd.f32 0.0, %v7740
  %v7742 = vpop.f32.mrb[0].mxu0
  %7743 = vmatprep.mubr.bf16.mxu0 %v7134
  %7744 = vmatmul.mubr.bf16.gmra.mrb[0].mxu0 %v7133
  %v7745 = vpop.f32.mrb[0].mxu0
  %v7746 = vadd.f32 0.0, %v7745
  %v7747 = vpop.f32.mrb[0].mxu0
  %v7748 = vpop.f32.mrb[0].mxu0
  %v7749 = vadd.f32 0.0, %v7748
  %v7750 = vpop.f32.mrb[0].mxu0
  %7751 = vmatprep.mubr.bf16.mxu0 %v7137
  %7752 = vmatmul.mubr.bf16.gmra.mrb[0].mxu0 %v7136
  %v7753 = vpop.f32.mrb[0].mxu0
  %v7754 = vadd.f32 0.0, %v7753
  %v7755 = vpop.f32.mrb[0].mxu0
  %v7756 = vpop.f32.mrb[0].mxu0
  %v7757 = vadd.f32 0.0, %v7756
  %v7758 = vpop.f32.mrb[0].mxu0
  %7759 = vmatprep.mubr.bf16.mxu0 %v7140
  %7760 = vmatmul.mubr.bf16.gmra.mrb[0].mxu0 %v7139
  %v7761 = vpop.f32.mrb[0].mxu0
  %v7762 = vadd.f32 0.0, %v7761
  %v7763 = vpop.f32.mrb[0].mxu0
  %v7764 = vpop.f32.mrb[0].mxu0
  %v7765 = vadd.f32 0.0, %v7764
  %v7766 = vpop.f32.mrb[0].mxu0
  %7767 = vmatprep.mubr.bf16.mxu0 %v7143
  %7768 = vmatmul.mubr.bf16.gmra.mrb[0].mxu0 %v7142
  %v7769 = vpop.f32.mrb[0].mxu0
  %v7770 = vadd.f32 0.0, %v7769
  %v7771 = vpop.f32.mrb[0].mxu0
  %v7772 = vpop.f32.mrb[0].mxu0
  %v7773 = vadd.f32 0.0, %v7772
  %v7774 = vpop.f32.mrb[0].mxu0
  %7775 = vmatprep.mubr.bf16.mxu0 %v7146
  %7776 = vmatmul.mubr.bf16.gmra.mrb[0].mxu0 %v7145
  %v7777 = vpop.f32.mrb[0].mxu0
  %v7778 = vadd.f32 0.0, %v7777
  %v7779 = vpop.f32.mrb[0].mxu0
  %v7780 = vpop.f32.mrb[0].mxu0
  %v7781 = vadd.f32 0.0, %v7780
  %v7782 = vpop.f32.mrb[0].mxu0
  %7783 = vmatprep.mubr.bf16.mxu0 %v7149
  %7784 = vmatmul.mubr.bf16.gmra.mrb[0].mxu0 %v7148
  %v7785 = vpop.f32.mrb[0].mxu0
  %v7786 = vadd.f32 0.0, %v7785
  %v7787 = vpop.f32.mrb[0].mxu0
  %v7788 = vpop.f32.mrb[0].mxu0
  %v7789 = vadd.f32 0.0, %v7788
  %v7790 = vpop.f32.mrb[0].mxu0
  %7791 = vmatprep.mubr.bf16.mxu0 %v7152
  %7792 = vmatmul.mubr.bf16.gmra.mrb[0].mxu0 %v7151
  %v7793 = vpop.f32.mrb[0].mxu0
  %v7794 = vadd.f32 0.0, %v7793
  %v7795 = vpop.f32.mrb[0].mxu0
  %v7796 = vpop.f32.mrb[0].mxu0
  %v7797 = vadd.f32 0.0, %v7796
  %v7798 = vpop.f32.mrb[0].mxu0
  %7799 = vmatprep.mubr.bf16.mxu0 %v7155
  %7800 = vmatmul.mubr.bf16.gmra.mrb[0].mxu0 %v7154
  %v7801 = vpop.f32.mrb[0].mxu0
  %v7802 = vadd.f32 0.0, %v7801
  %v7803 = vpop.f32.mrb[0].mxu0
  %v7804 = vpop.f32.mrb[0].mxu0
  %v7805 = vadd.f32 0.0, %v7804
  %v7806 = vpop.f32.mrb[0].mxu0
  %7807 = vmatprep.mubr.bf16.mxu0 %v7158
  %7808 = vmatmul.mubr.bf16.gmra.mrb[0].mxu0 %v7157
  %v7809 = vpop.f32.mrb[0].mxu0
  %v7810 = vadd.f32 0.0, %v7809
  %v7811 = vpop.f32.mrb[0].mxu0
  %v7812 = vpop.f32.mrb[0].mxu0
  %v7813 = vadd.f32 0.0, %v7812
  %v7814 = vpop.f32.mrb[0].mxu0
  %7815 = vmatprep.mubr.bf16.mxu0 %v7161
  %7816 = vmatmul.mubr.bf16.gmra.mrb[0].mxu0 %v7160
  %v7817 = vpop.f32.mrb[0].mxu0
  %v7818 = vadd.f32 0.0, %v7817
  %v7819 = vpop.f32.mrb[0].mxu0
  %v7820 = vpop.f32.mrb[0].mxu0
  %v7821 = vadd.f32 0.0, %v7820
  %v7822 = vpop.f32.mrb[0].mxu0
  %7823 = vmatprep.mubr.bf16.mxu0 %v7164
  %7824 = vmatmul.mubr.bf16.gmra.mrb[0].mxu0 %v7163
  %v7825 = vpop.f32.mrb[0].mxu0
  %v7826 = vadd.f32 0.0, %v7825
  %v7827 = vpop.f32.mrb[0].mxu0
  %v7828 = vpop.f32.mrb[0].mxu0
  %v7829 = vadd.f32 0.0, %v7828
  %v7830 = vpop.f32.mrb[0].mxu0
  %7831 = vmatprep.mubr.bf16.mxu0 %v7167
  %7832 = vmatmul.mubr.bf16.gmra.mrb[0].mxu0 %v7166
  %v7833 = vpop.f32.mrb[0].mxu0
  %v7834 = vadd.f32 0.0, %v7833
  %v7835 = vpop.f32.mrb[0].mxu0
  %v7836 = vpop.f32.mrb[0].mxu0
  %v7837 = vadd.f32 0.0, %v7836
  %v7838 = vpop.f32.mrb[0].mxu0
  %7839 = vmatprep.mubr.bf16.mxu0 %v7170
  %7840 = vmatmul.mubr.bf16.gmra.mrb[0].mxu0 %v7169
  %v7841 = vpop.f32.mrb[0].mxu0
  %v7842 = vadd.f32 0.0, %v7841
  %v7843 = vpop.f32.mrb[0].mxu0
  %v7844 = vpop.f32.mrb[0].mxu0
  %v7845 = vadd.f32 0.0, %v7844
  %v7846 = vpop.f32.mrb[0].mxu0
  %7847 = vmatprep.mubr.bf16.mxu0 %v7173
  %7848 = vmatmul.mubr.bf16.gmra.mrb[0].mxu0 %v7172
  %v7849 = vpop.f32.mrb[0].mxu0
  %v7850 = vadd.f32 0.0, %v7849
  %v7851 = vpop.f32.mrb[0].mxu0
  %v7852 = vpop.f32.mrb[0].mxu0
  %v7853 = vadd.f32 0.0, %v7852
  %v7854 = vpop.f32.mrb[0].mxu0
  %7855 = vmatprep.mubr.bf16.mxu0 %v7176
  %7856 = vmatmul.mubr.bf16.gmra.mrb[0].mxu0 %v7175
  %v7857 = vpop.f32.mrb[0].mxu0
  %v7858 = vadd.f32 0.0, %v7857
  %v7859 = vpop.f32.mrb[0].mxu0
  %v7860 = vpop.f32.mrb[0].mxu0
  %v7861 = vadd.f32 0.0, %v7860
  %v7862 = vpop.f32.mrb[0].mxu0
  %7863 = vmatprep.mubr.bf16.mxu0 %v7179
  %7864 = vmatmul.mubr.bf16.gmra.mrb[0].mxu0 %v7178
  %v7865 = vpop.f32.mrb[0].mxu0
  %v7866 = vadd.f32 0.0, %v7865
  %v7867 = vpop.f32.mrb[0].mxu0
  %v7868 = vpop.f32.mrb[0].mxu0
  %v7869 = vadd.f32 0.0, %v7868
  %v7870 = vpop.f32.mrb[0].mxu0
  %7871 = vmatprep.mubr.bf16.mxu0 %v7182
  %7872 = vmatmul.mubr.bf16.gmra.mrb[0].mxu0 %v7181
  %v7873 = vpop.f32.mrb[0].mxu0
  %v7874 = vadd.f32 0.0, %v7873
  %v7875 = vpop.f32.mrb[0].mxu0
  %v7876 = vpop.f32.mrb[0].mxu0
  %v7877 = vadd.f32 0.0, %v7876
  %v7878 = vpop.f32.mrb[0].mxu0
  %7879 = vmatprep.mubr.bf16.mxu0 %v7185
  %7880 = vmatmul.mubr.bf16.gmra.mrb[0].mxu0 %v7184
  %v7881 = vpop.f32.mrb[0].mxu0
  %v7882 = vadd.f32 0.0, %v7881
  %v7883 = vpop.f32.mrb[0].mxu0
  %v7884 = vpop.f32.mrb[0].mxu0
  %v7885 = vadd.f32 0.0, %v7884
  %v7886 = vpop.f32.mrb[0].mxu0
  %7887 = vmatprep.mubr.bf16.mxu0 %v7188
  %7888 = vmatmul.mubr.bf16.gmra.mrb[0].mxu0 %v7187
  %v7889 = vpop.f32.mrb[0].mxu0
  %v7890 = vadd.f32 0.0, %v7889
  %v7891 = vpop.f32.mrb[0].mxu0
  %v7892 = vpop.f32.mrb[0].mxu0
  %v7893 = vadd.f32 0.0, %v7892
  %v7894 = vpop.f32.mrb[0].mxu0
  %7895 = vmatprep.mubr.bf16.mxu0 %v7191
  %7896 = vmatmul.mubr.bf16.gmra.mrb[0].mxu0 %v7190
  %v7897 = vpop.f32.mrb[0].mxu0
  %v7898 = vadd.f32 0.0, %v7897
  %v7899 = vpop.f32.mrb[0].mxu0
  %v7900 = vpop.f32.mrb[0].mxu0
  %v7901 = vadd.f32 0.0, %v7900
  %v7902 = vpop.f32.mrb[0].mxu0
  %7903 = vmatprep.mubr.bf16.mxu0 %v7194
  %7904 = vmatmul.mubr.bf16.gmra.mrb[0].mxu0 %v7193
  %v7905 = vpop.f32.mrb[0].mxu0
  %v7906 = vadd.f32 0.0, %v7905
  %v7907 = vpop.f32.mrb[0].mxu0
  %v7908 = vpop.f32.mrb[0].mxu0
  %v7909 = vadd.f32 0.0, %v7908
  %v7910 = vpop.f32.mrb[0].mxu0
  %7911 = vmatprep.mubr.bf16.mxu0 %v7197
  %7912 = vmatmul.mubr.bf16.gmra.mrb[0].mxu0 %v7196
  %v7913 = vpop.f32.mrb[0].mxu0
  %v7914 = vadd.f32 0.0, %v7913
  %v7915 = vpop.f32.mrb[0].mxu0
  %v7916 = vpop.f32.mrb[0].mxu0
  %v7917 = vadd.f32 0.0, %v7916
  %v7918 = vpop.f32.mrb[0].mxu0
  %7919 = vmatprep.mubr.bf16.mxu0 %v7200
  %7920 = vmatmul.mubr.bf16.gmra.mrb[0].mxu0 %v7199
  %v7921 = vpop.f32.mrb[0].mxu0
  %v7922 = vadd.f32 0.0, %v7921
  %v7923 = vpop.f32.mrb[0].mxu0
  %v7924 = vpop.f32.mrb[0].mxu0
  %v7925 = vadd.f32 0.0, %v7924
  %v7926 = vpop.f32.mrb[0].mxu0
  %7927 = vmatprep.mubr.bf16.mxu0 %v7203
  %7928 = vmatmul.mubr.bf16.gmra.mrb[0].mxu0 %v7202
  %v7929 = vpop.f32.mrb[0].mxu0
  %v7930 = vadd.f32 0.0, %v7929
  %v7931 = vpop.f32.mrb[0].mxu0
  %v7932 = vpop.f32.mrb[0].mxu0
  %v7933 = vadd.f32 0.0, %v7932
  %v7934 = vpop.f32.mrb[0].mxu0
  %7935 = vmatprep.mubr.bf16.mxu0 %v7206
  %7936 = vmatmul.mubr.bf16.gmra.mrb[0].mxu0 %v7205
  %v7937 = vpop.f32.mrb[0].mxu0
  %v7938 = vadd.f32 0.0, %v7937
  %v7939 = vpop.f32.mrb[0].mxu0
  %v7940 = vpop.f32.mrb[0].mxu0
  %v7941 = vadd.f32 0.0, %v7940
  %v7942 = vpop.f32.mrb[0].mxu0
  %7943 = vmatprep.mubr.bf16.mxu0 %v7209
  %7944 = vmatmul.mubr.bf16.gmra.mrb[0].mxu0 %v7208
  %v7945 = vpop.f32.mrb[0].mxu0
  %v7946 = vadd.f32 0.0, %v7945
  %v7947 = vpop.f32.mrb[0].mxu0
  %v7948 = vpop.f32.mrb[0].mxu0
  %v7949 = vadd.f32 0.0, %v7948
  %v7950 = vpop.f32.mrb[0].mxu0
  %7951 = vmatprep.mubr.bf16.mxu0 %v7212
  %7952 = vmatmul.mubr.bf16.gmra.mrb[0].mxu0 %v7211
  %v7953 = vpop.f32.mrb[0].mxu0
  %v7954 = vadd.f32 0.0, %v7953
  %v7955 = vpop.f32.mrb[0].mxu0
  %v7956 = vpop.f32.mrb[0].mxu0
  %v7957 = vadd.f32 0.0, %v7956
  %v7958 = vpop.f32.mrb[0].mxu0
  %7959 = vmatprep.mubr.bf16.mxu0 %v7215
  %7960 = vmatmul.mubr.bf16.gmra.mrb[0].mxu0 %v7214
  %v7961 = vpop.f32.mrb[0].mxu0
  %v7962 = vadd.f32 0.0, %v7961
  %v7963 = vpop.f32.mrb[0].mxu0
  %v7964 = vpop.f32.mrb[0].mxu0
  %v7965 = vadd.f32 0.0, %v7964
  %v7966 = vpop.f32.mrb[0].mxu0
  %7967 = vmatprep.mubr.bf16.mxu0 %v7218
  %7968 = vmatmul.mubr.bf16.gmra.mrb[0].mxu0 %v7217
  %v7969 = vpop.f32.mrb[0].mxu0
  %v7970 = vadd.f32 0.0, %v7969
  %v7971 = vpop.f32.mrb[0].mxu0
  %v7972 = vpop.f32.mrb[0].mxu0
  %v7973 = vadd.f32 0.0, %v7972
  %v7974 = vpop.f32.mrb[0].mxu0
  %7975 = vmatprep.mubr.bf16.mxu0 %v7221
  %7976 = vmatmul.mubr.bf16.gmra.mrb[0].mxu0 %v7220
  %v7977 = vpop.f32.mrb[0].mxu0
  %v7978 = vadd.f32 0.0, %v7977
  %v7979 = vpop.f32.mrb[0].mxu0
  %v7980 = vpop.f32.mrb[0].mxu0
  %v7981 = vadd.f32 0.0, %v7980
  %v7982 = vpop.f32.mrb[0].mxu0
  %7983 = vmatprep.mubr.bf16.mxu0 %v7224
  %7984 = vmatmul.mubr.bf16.gmra.mrb[0].mxu0 %v7223
  %v7985 = vpop.f32.mrb[0].mxu0
  %v7986 = vadd.f32 0.0, %v7985
  %v7987 = vpop.f32.mrb[0].mxu0
  %v7988 = vpop.f32.mrb[0].mxu0
  %v7989 = vadd.f32 0.0, %v7988
  %v7990 = vpop.f32.mrb[0].mxu0
  %7991 = vmatprep.mubr.bf16.mxu0 %v7227
  %7992 = vmatmul.mubr.bf16.gmra.mrb[0].mxu0 %v7226
  %v7993 = vpop.f32.mrb[0].mxu0
  %v7994 = vadd.f32 0.0, %v7993
  %v7995 = vpop.f32.mrb[0].mxu0
  %v7996 = vpop.f32.mrb[0].mxu0
  %v7997 = vadd.f32 0.0, %v7996
  %v7998 = vpop.f32.mrb[0].mxu0
  %7999 = vmatprep.mubr.bf16.mxu0 %v7230
  %8000 = vmatmul.mubr.bf16.gmra.mrb[0].mxu0 %v7229
  %v8001 = vpop.f32.mrb[0].mxu0
  %v8002 = vadd.f32 0.0, %v8001
  %v8003 = vpop.f32.mrb[0].mxu0
  %v8004 = vpop.f32.mrb[0].mxu0
  %v8005 = vadd.f32 0.0, %v8004
  %v8006 = vpop.f32.mrb[0].mxu0
  %8007 = vmatprep.mubr.bf16.mxu0 %v7233
  %8008 = vmatmul.mubr.bf16.gmra.mrb[0].mxu0 %v7232
  %v8009 = vpop.f32.mrb[0].mxu0
  %v8010 = vadd.f32 0.0, %v8009
  %v8011 = vpop.f32.mrb[0].mxu0
  %v8012 = vpop.f32.mrb[0].mxu0
  %v8013 = vadd.f32 0.0, %v8012
  %v8014 = vpop.f32.mrb[0].mxu0
  %8015 = vmatprep.mubr.bf16.mxu0 %v7236
  %8016 = vmatmul.mubr.bf16.gmra.mrb[0].mxu0 %v7235
  %v8017 = vpop.f32.mrb[0].mxu0
  %v8018 = vadd.f32 0.0, %v8017
  %v8019 = vpop.f32.mrb[0].mxu0
  %v8020 = vpop.f32.mrb[0].mxu0
  %v8021 = vadd.f32 0.0, %v8020
  %v8022 = vpop.f32.mrb[0].mxu0
  %8023 = vmatprep.mubr.bf16.mxu0 %v7239
  %8024 = vmatmul.mubr.bf16.gmra.mrb[0].mxu0 %v7238
  %v8025 = vpop.f32.mrb[0].mxu0
  %v8026 = vadd.f32 0.0, %v8025
  %v8027 = vpop.f32.mrb[0].mxu0
  %v8028 = vpop.f32.mrb[0].mxu0
  %v8029 = vadd.f32 0.0, %v8028
  %v8030 = vpop.f32.mrb[0].mxu0
  %8031 = vmatprep.mubr.bf16.mxu0 %v7242
  %8032 = vmatmul.mubr.bf16.gmra.mrb[0].mxu0 %v7241
  %v8033 = vpop.f32.mrb[0].mxu0
  %v8034 = vadd.f32 0.0, %v8033
  %v8035 = vpop.f32.mrb[0].mxu0
  %v8036 = vpop.f32.mrb[0].mxu0
  %v8037 = vadd.f32 0.0, %v8036
  %v8038 = vpop.f32.mrb[0].mxu0
  %8039 = vmatprep.mubr.bf16.mxu0 %v7245
  %8040 = vmatmul.mubr.bf16.gmra.mrb[0].mxu0 %v7244
  %v8041 = vpop.f32.mrb[0].mxu0
  %v8042 = vadd.f32 0.0, %v8041
  %v8043 = vpop.f32.mrb[0].mxu0
  %v8044 = vpop.f32.mrb[0].mxu0
  %v8045 = vadd.f32 0.0, %v8044
  %v8046 = vpop.f32.mrb[0].mxu0
  %8047 = vmatprep.mubr.bf16.mxu0 %v7248
  %8048 = vmatmul.mubr.bf16.gmra.mrb[0].mxu0 %v7247
  %v8049 = vpop.f32.mrb[0].mxu0
  %v8050 = vadd.f32 0.0, %v8049
  %v8051 = vpop.f32.mrb[0].mxu0
  %v8052 = vpop.f32.mrb[0].mxu0
  %v8053 = vadd.f32 0.0, %v8052
  %v8054 = vpop.f32.mrb[0].mxu0
  %8055 = vmatprep.mubr.bf16.mxu0 %v7251
  %8056 = vmatmul.mubr.bf16.gmra.mrb[0].mxu0 %v7250
  %v8057 = vpop.f32.mrb[0].mxu0
  %v8058 = vadd.f32 0.0, %v8057
  %v8059 = vpop.f32.mrb[0].mxu0
  %v8060 = vpop.f32.mrb[0].mxu0
  %v8061 = vadd.f32 0.0, %v8060
  %v8062 = vpop.f32.mrb[0].mxu0
  %8063 = vmatprep.mubr.bf16.mxu0 %v7254
  %8064 = vmatmul.mubr.bf16.gmra.mrb[0].mxu0 %v7253
  %v8065 = vpop.f32.mrb[0].mxu0
  %v8066 = vadd.f32 0.0, %v8065
  %v8067 = vpop.f32.mrb[0].mxu0
  %v8068 = vpop.f32.mrb[0].mxu0
  %v8069 = vadd.f32 0.0, %v8068
  %v8070 = vpop.f32.mrb[0].mxu0
  %8071 = vmatprep.mubr.bf16.mxu0 %v7257
  %8072 = vmatmul.mubr.bf16.gmra.mrb[0].mxu0 %v7256
  %v8073 = vpop.f32.mrb[0].mxu0
  %v8074 = vadd.f32 0.0, %v8073
  %v8075 = vpop.f32.mrb[0].mxu0
  %v8076 = vpop.f32.mrb[0].mxu0
  %v8077 = vadd.f32 0.0, %v8076
  %v8078 = vpop.f32.mrb[0].mxu0
  %8079 = vmatprep.mubr.bf16.mxu0 %v7260
  %8080 = vmatmul.mubr.bf16.gmra.mrb[0].mxu0 %v7259
  %v8081 = vpop.f32.mrb[0].mxu0
  %v8082 = vadd.f32 0.0, %v8081
  %v8083 = vpop.f32.mrb[0].mxu0
  %v8084 = vpop.f32.mrb[0].mxu0
  %v8085 = vadd.f32 0.0, %v8084
  %v8086 = vpop.f32.mrb[0].mxu0
  %8087 = vmatprep.mubr.bf16.mxu0 %v7263
  %8088 = vmatmul.mubr.bf16.gmra.mrb[0].mxu0 %v7262
  %v8089 = vpop.f32.mrb[0].mxu0
  %v8090 = vadd.f32 0.0, %v8089
  %v8091 = vpop.f32.mrb[0].mxu0
  %v8092 = vpop.f32.mrb[0].mxu0
  %v8093 = vadd.f32 0.0, %v8092
  %v8094 = vpop.f32.mrb[0].mxu0
  %8095 = vmatprep.mubr.bf16.mxu0 %v7266
  %8096 = vmatmul.mubr.bf16.gmra.mrb[0].mxu0 %v7265
  %v8097 = vpop.f32.mrb[0].mxu0
  %v8098 = vadd.f32 0.0, %v8097
  %v8099 = vpop.f32.mrb[0].mxu0
  %v8100 = vpop.f32.mrb[0].mxu0
  %v8101 = vadd.f32 0.0, %v8100
  %v8102 = vpop.f32.mrb[0].mxu0
  %8103 = vmatprep.mubr.bf16.mxu0 %v7269
  %8104 = vmatmul.mubr.bf16.gmra.mrb[0].mxu0 %v7268
  %v8105 = vpop.f32.mrb[0].mxu0
  %v8106 = vadd.f32 0.0, %v8105
  %v8107 = vpop.f32.mrb[0].mxu0
  %v8108 = vpop.f32.mrb[0].mxu0
  %v8109 = vadd.f32 0.0, %v8108
  %v8110 = vpop.f32.mrb[0].mxu0
  %8111 = vmatprep.mubr.bf16.mxu0 %v7272
  %8112 = vmatmul.mubr.bf16.gmra.mrb[0].mxu0 %v7271
  %v8113 = vpop.f32.mrb[0].mxu0
  %v8114 = vadd.f32 0.0, %v8113
  %v8115 = vpop.f32.mrb[0].mxu0
  %v8116 = vpop.f32.mrb[0].mxu0
  %v8117 = vadd.f32 0.0, %v8116
  %v8118 = vpop.f32.mrb[0].mxu0
  %8119 = vmatprep.mubr.bf16.mxu0 %v7275
  %8120 = vmatmul.mubr.bf16.gmra.mrb[0].mxu0 %v7274
  %v8121 = vpop.f32.mrb[0].mxu0
  %v8122 = vadd.f32 0.0, %v8121
  %v8123 = vpop.f32.mrb[0].mxu0
  %v8124 = vpop.f32.mrb[0].mxu0
  %v8125 = vadd.f32 0.0, %v8124
  %v8126 = vpop.f32.mrb[0].mxu0
  %8127 = vmatprep.mubr.bf16.mxu0 %v7278
  %8128 = vmatmul.mubr.bf16.gmra.mrb[0].mxu0 %v7277
  %v8129 = vpop.f32.mrb[0].mxu0
  %v8130 = vadd.f32 0.0, %v8129
  %v8131 = vpop.f32.mrb[0].mxu0
  %v8132 = vpop.f32.mrb[0].mxu0
  %v8133 = vadd.f32 0.0, %v8132
  %v8134 = vpop.f32.mrb[0].mxu0
  %8135 = vmatprep.mubr.bf16.mxu0 %v7281
  %8136 = vmatmul.mubr.bf16.gmra.mrb[0].mxu0 %v7280
  %v8137 = vpop.f32.mrb[0].mxu0
  %v8138 = vadd.f32 0.0, %v8137
  %v8139 = vpop.f32.mrb[0].mxu0
  %v8140 = vpop.f32.mrb[0].mxu0
  %v8141 = vadd.f32 0.0, %v8140
  %v8142 = vpop.f32.mrb[0].mxu0
  %8143 = vmatprep.mubr.bf16.mxu0 %v7284
  %8144 = vmatmul.mubr.bf16.gmra.mrb[0].mxu0 %v7283
  %v8145 = vpop.f32.mrb[0].mxu0
  %v8146 = vadd.f32 0.0, %v8145
  %v8147 = vpop.f32.mrb[0].mxu0
  %v8148 = vpop.f32.mrb[0].mxu0
  %v8149 = vadd.f32 0.0, %v8148
  %v8150 = vpop.f32.mrb[0].mxu0
  %8151 = vmatprep.mubr.bf16.mxu0 %v7287
  %8152 = vmatmul.mubr.bf16.gmra.mrb[0].mxu0 %v7286
  %v8153 = vpop.f32.mrb[0].mxu0
  %v8154 = vadd.f32 0.0, %v8153
  %v8155 = vpop.f32.mrb[0].mxu0
  %v8156 = vpop.f32.mrb[0].mxu0
  %v8157 = vadd.f32 0.0, %v8156
  %v8158 = vpop.f32.mrb[0].mxu0
  %8159 = vmatprep.mubr.bf16.mxu0 %v7290
  %8160 = vmatmul.mubr.bf16.gmra.mrb[0].mxu0 %v7289
  %v8161 = vpop.f32.mrb[0].mxu0
  %v8162 = vadd.f32 0.0, %v8161
  %v8163 = vpop.f32.mrb[0].mxu0
  %v8164 = vpop.f32.mrb[0].mxu0
  %v8165 = vadd.f32 0.0, %v8164
  %v8166 = vpop.f32.mrb[0].mxu0
  %8167 = vmatprep.mubr.bf16.mxu0 %v7293
  %8168 = vmatmul.mubr.bf16.gmra.mrb[0].mxu0 %v7292
  %v8169 = vpop.f32.mrb[0].mxu0
  %v8170 = vadd.f32 0.0, %v8169
  %v8171 = vpop.f32.mrb[0].mxu0
  %v8172 = vpop.f32.mrb[0].mxu0
  %v8173 = vadd.f32 0.0, %v8172
  %v8174 = vpop.f32.mrb[0].mxu0
  %8175 = vdwg.mxu0
  %8176 = vmatprep.subr.bf16.mxu0 0
  %8177 = vmatpush1.bf16.msra.mxu0 %v7419
  %8178 = vmatprep.subr.bf16.mxu0 0
  %8179 = vmatpush1.bf16.msra.mxu0 %v7420
  %8180 = vmatprep.subr.bf16.mxu0 0
  %8181 = vmatpush1.bf16.msra.mxu0 0
  %8182 = vmatprep.subr.bf16.mxu0 0
  %8183 = vmatpush1.bf16.msra.mxu0 0
  %8184 = vmatprep.subr.bf16.mxu0 0
  %8185 = vmatpush1.bf16.msra.mxu0 0
  %8186 = vmatprep.subr.bf16.mxu0 0
  %8187 = vmatpush1.bf16.msra.mxu0 0
  %8188 = vmatprep.subr.bf16.mxu0 0
  %8189 = vmatpush1.bf16.msra.mxu0 0
  %8190 = vmatprep.subr.bf16.mxu0 0
  %8191 = vmatpush1.bf16.msra.mxu0 0
  %8192 = vmatprep.subr.bf16.mxu0 0
  %8193 = vmatpush1.bf16.msra.mxu0 0
  %8194 = vmatprep.subr.bf16.mxu0 0
  %8195 = vmatpush1.bf16.msra.mxu0 0
  %8196 = vmatprep.subr.bf16.mxu0 0
  %8197 = vmatpush1.bf16.msra.mxu0 0
  %8198 = vmatprep.subr.bf16.mxu0 0
  %8199 = vmatpush1.bf16.msra.mxu0 0
  %8200 = vmatprep.subr.bf16.mxu0 0
  %8201 = vmatpush1.bf16.msra.mxu0 0
  %8202 = vmatprep.subr.bf16.mxu0 0
  %8203 = vmatpush1.bf16.msra.mxu0 0
  %8204 = vmatprep.subr.bf16.mxu0 0
  %8205 = vmatpush1.bf16.msra.mxu0 0
  %8206 = vmatprep.subr.bf16.mxu0 0
  %8207 = vmatpush1.bf16.msra.mxu0 0
  %8208 = vmatprep.mubr.bf16.mxu0 0
  %8209 = vmatmul.mubr.bf16.gmra.mrb[0].mxu0 %v7440
  %v8210 = vpop.f32.mrb[0].mxu0
  %v8211 = vadd.f32 %v7666, %v8210
  %v8212 = vpop.f32.mrb[0].mxu0
  %v8213 = vpop.f32.mrb[0].mxu0
  %v8214 = vadd.f32 %v7669, %v8213
  %v8215 = vpop.f32.mrb[0].mxu0
  %8216 = vmatprep.mubr.bf16.mxu0 0
  %8217 = vmatmul.mubr.bf16.gmra.mrb[0].mxu0 %v7443
  %v8218 = vpop.f32.mrb[0].mxu0
  %v8219 = vadd.f32 %v7674, %v8218
  %v8220 = vpop.f32.mrb[0].mxu0
  %v8221 = vpop.f32.mrb[0].mxu0
  %v8222 = vadd.f32 %v7677, %v8221
  %v8223 = vpop.f32.mrb[0].mxu0
  %8224 = vmatprep.mubr.bf16.mxu0 0
  %8225 = vmatmul.mubr.bf16.gmra.mrb[0].mxu0 %v7446
  %v8226 = vpop.f32.mrb[0].mxu0
  %v8227 = vadd.f32 %v7682, %v8226
  %v8228 = vpop.f32.mrb[0].mxu0
  %v8229 = vpop.f32.mrb[0].mxu0
  %v8230 = vadd.f32 %v7685, %v8229
  %v8231 = vpop.f32.mrb[0].mxu0
  %8232 = vmatprep.mubr.bf16.mxu0 0
  %8233 = vmatmul.mubr.bf16.gmra.mrb[0].mxu0 %v7449
  %v8234 = vpop.f32.mrb[0].mxu0
  %v8235 = vadd.f32 %v7690, %v8234
  %v8236 = vpop.f32.mrb[0].mxu0
  %v8237 = vpop.f32.mrb[0].mxu0
  %v8238 = vadd.f32 %v7693, %v8237
  %v8239 = vpop.f32.mrb[0].mxu0
  %8240 = vmatprep.mubr.bf16.mxu0 0
  %8241 = vmatmul.mubr.bf16.gmra.mrb[0].mxu0 %v7452
  %v8242 = vpop.f32.mrb[0].mxu0
  %v8243 = vadd.f32 %v7698, %v8242
  %v8244 = vpop.f32.mrb[0].mxu0
  %v8245 = vpop.f32.mrb[0].mxu0
  %v8246 = vadd.f32 %v7701, %v8245
  %v8247 = vpop.f32.mrb[0].mxu0
  %8248 = vmatprep.mubr.bf16.mxu0 0
  %8249 = vmatmul.mubr.bf16.gmra.mrb[0].mxu0 %v7455
  %v8250 = vpop.f32.mrb[0].mxu0
  %v8251 = vadd.f32 %v7706, %v8250
  %v8252 = vpop.f32.mrb[0].mxu0
  %v8253 = vpop.f32.mrb[0].mxu0
  %v8254 = vadd.f32 %v7709, %v8253
  %v8255 = vpop.f32.mrb[0].mxu0
  %8256 = vmatprep.mubr.bf16.mxu0 0
  %8257 = vmatmul.mubr.bf16.gmra.mrb[0].mxu0 %v7458
  %v8258 = vpop.f32.mrb[0].mxu0
  %v8259 = vadd.f32 %v7714, %v8258
  %v8260 = vpop.f32.mrb[0].mxu0
  %v8261 = vpop.f32.mrb[0].mxu0
  %v8262 = vadd.f32 %v7717, %v8261
  %v8263 = vpop.f32.mrb[0].mxu0
  %8264 = vmatprep.mubr.bf16.mxu0 0
  %8265 = vmatmul.mubr.bf16.gmra.mrb[0].mxu0 %v7461
  %v8266 = vpop.f32.mrb[0].mxu0
  %v8267 = vadd.f32 %v7722, %v8266
  %v8268 = vpop.f32.mrb[0].mxu0
  %v8269 = vpop.f32.mrb[0].mxu0
  %v8270 = vadd.f32 %v7725, %v8269
  %v8271 = vpop.f32.mrb[0].mxu0
  %8272 = vmatprep.mubr.bf16.mxu0 0
  %8273 = vmatmul.mubr.bf16.gmra.mrb[0].mxu0 %v7464
  %v8274 = vpop.f32.mrb[0].mxu0
  %v8275 = vadd.f32 %v7730, %v8274
  %v8276 = vpop.f32.mrb[0].mxu0
  %v8277 = vpop.f32.mrb[0].mxu0
  %v8278 = vadd.f32 %v7733, %v8277
  %v8279 = vpop.f32.mrb[0].mxu0
  %8280 = vmatprep.mubr.bf16.mxu0 0
  %8281 = vmatmul.mubr.bf16.gmra.mrb[0].mxu0 %v7467
  %v8282 = vpop.f32.mrb[0].mxu0
  %v8283 = vadd.f32 %v7738, %v8282
  %v8284 = vpop.f32.mrb[0].mxu0
  %v8285 = vpop.f32.mrb[0].mxu0
  %v8286 = vadd.f32 %v7741, %v8285
  %v8287 = vpop.f32.mrb[0].mxu0
  %8288 = vmatprep.mubr.bf16.mxu0 0
  %8289 = vmatmul.mubr.bf16.gmra.mrb[0].mxu0 %v7470
  %v8290 = vpop.f32.mrb[0].mxu0
  %v8291 = vadd.f32 %v7746, %v8290
  %v8292 = vpop.f32.mrb[0].mxu0
  %v8293 = vpop.f32.mrb[0].mxu0
  %v8294 = vadd.f32 %v7749, %v8293
  %v8295 = vpop.f32.mrb[0].mxu0
  %8296 = vmatprep.mubr.bf16.mxu0 0
  %8297 = vmatmul.mubr.bf16.gmra.mrb[0].mxu0 %v7473
  %v8298 = vpop.f32.mrb[0].mxu0
  %v8299 = vadd.f32 %v7754, %v8298
  %v8300 = vpop.f32.mrb[0].mxu0
  %v8301 = vpop.f32.mrb[0].mxu0
  %v8302 = vadd.f32 %v7757, %v8301
  %v8303 = vpop.f32.mrb[0].mxu0
  %8304 = vmatprep.mubr.bf16.mxu0 0
  %8305 = vmatmul.mubr.bf16.gmra.mrb[0].mxu0 %v7476
  %v8306 = vpop.f32.mrb[0].mxu0
  %v8307 = vadd.f32 %v7762, %v8306
  %v8308 = vpop.f32.mrb[0].mxu0
  %v8309 = vpop.f32.mrb[0].mxu0
  %v8310 = vadd.f32 %v7765, %v8309
  %v8311 = vpop.f32.mrb[0].mxu0
  %8312 = vmatprep.mubr.bf16.mxu0 0
  %8313 = vmatmul.mubr.bf16.gmra.mrb[0].mxu0 %v7479
  %v8314 = vpop.f32.mrb[0].mxu0
  %v8315 = vadd.f32 %v7770, %v8314
  %v8316 = vpop.f32.mrb[0].mxu0
  %v8317 = vpop.f32.mrb[0].mxu0
  %v8318 = vadd.f32 %v7773, %v8317
  %v8319 = vpop.f32.mrb[0].mxu0
  %8320 = vmatprep.mubr.bf16.mxu0 0
  %8321 = vmatmul.mubr.bf16.gmra.mrb[0].mxu0 %v7482
  %v8322 = vpop.f32.mrb[0].mxu0
  %v8323 = vadd.f32 %v7778, %v8322
  %v8324 = vpop.f32.mrb[0].mxu0
  %v8325 = vpop.f32.mrb[0].mxu0
  %v8326 = vadd.f32 %v7781, %v8325
  %v8327 = vpop.f32.mrb[0].mxu0
  %8328 = vmatprep.mubr.bf16.mxu0 0
  %8329 = vmatmul.mubr.bf16.gmra.mrb[0].mxu0 %v7485
  %v8330 = vpop.f32.mrb[0].mxu0
  %v8331 = vadd.f32 %v7786, %v8330
  %v8332 = vpop.f32.mrb[0].mxu0
  %v8333 = vpop.f32.mrb[0].mxu0
  %v8334 = vadd.f32 %v7789, %v8333
  %v8335 = vpop.f32.mrb[0].mxu0
  %8336 = vmatprep.mubr.bf16.mxu0 0
  %8337 = vmatmul.mubr.bf16.gmra.mrb[0].mxu0 %v7488
  %v8338 = vpop.f32.mrb[0].mxu0
  %v8339 = vadd.f32 %v7794, %v8338
  %v8340 = vpop.f32.mrb[0].mxu0
  %v8341 = vpop.f32.mrb[0].mxu0
  %v8342 = vadd.f32 %v7797, %v8341
  %v8343 = vpop.f32.mrb[0].mxu0
  %8344 = vmatprep.mubr.bf16.mxu0 0
  %8345 = vmatmul.mubr.bf16.gmra.mrb[0].mxu0 %v7491
  %v8346 = vpop.f32.mrb[0].mxu0
  %v8347 = vadd.f32 %v7802, %v8346
  %v8348 = vpop.f32.mrb[0].mxu0
  %v8349 = vpop.f32.mrb[0].mxu0
  %v8350 = vadd.f32 %v7805, %v8349
  %v8351 = vpop.f32.mrb[0].mxu0
  %8352 = vmatprep.mubr.bf16.mxu0 0
  %8353 = vmatmul.mubr.bf16.gmra.mrb[0].mxu0 %v7494
  %v8354 = vpop.f32.mrb[0].mxu0
  %v8355 = vadd.f32 %v7810, %v8354
  %v8356 = vpop.f32.mrb[0].mxu0
  %v8357 = vpop.f32.mrb[0].mxu0
  %v8358 = vadd.f32 %v7813, %v8357
  %v8359 = vpop.f32.mrb[0].mxu0
  %8360 = vmatprep.mubr.bf16.mxu0 0
  %8361 = vmatmul.mubr.bf16.gmra.mrb[0].mxu0 %v7497
  %v8362 = vpop.f32.mrb[0].mxu0
  %v8363 = vadd.f32 %v7818, %v8362
  %v8364 = vpop.f32.mrb[0].mxu0
  %v8365 = vpop.f32.mrb[0].mxu0
  %v8366 = vadd.f32 %v7821, %v8365
  %v8367 = vpop.f32.mrb[0].mxu0
  %8368 = vmatprep.mubr.bf16.mxu0 0
  %8369 = vmatmul.mubr.bf16.gmra.mrb[0].mxu0 %v7500
  %v8370 = vpop.f32.mrb[0].mxu0
  %v8371 = vadd.f32 %v7826, %v8370
  %v8372 = vpop.f32.mrb[0].mxu0
  %v8373 = vpop.f32.mrb[0].mxu0
  %v8374 = vadd.f32 %v7829, %v8373
  %v8375 = vpop.f32.mrb[0].mxu0
  %8376 = vmatprep.mubr.bf16.mxu0 0
  %8377 = vmatmul.mubr.bf16.gmra.mrb[0].mxu0 %v7503
  %v8378 = vpop.f32.mrb[0].mxu0
  %v8379 = vadd.f32 %v7834, %v8378
  %v8380 = vpop.f32.mrb[0].mxu0
  %v8381 = vpop.f32.mrb[0].mxu0
  %v8382 = vadd.f32 %v7837, %v8381
  %v8383 = vpop.f32.mrb[0].mxu0
  %8384 = vmatprep.mubr.bf16.mxu0 0
  %8385 = vmatmul.mubr.bf16.gmra.mrb[0].mxu0 %v7506
  %v8386 = vpop.f32.mrb[0].mxu0
  %v8387 = vadd.f32 %v7842, %v8386
  %v8388 = vpop.f32.mrb[0].mxu0
  %v8389 = vpop.f32.mrb[0].mxu0
  %v8390 = vadd.f32 %v7845, %v8389
  %v8391 = vpop.f32.mrb[0].mxu0
  %8392 = vmatprep.mubr.bf16.mxu0 0
  %8393 = vmatmul.mubr.bf16.gmra.mrb[0].mxu0 %v7509
  %v8394 = vpop.f32.mrb[0].mxu0
  %v8395 = vadd.f32 %v7850, %v8394
  %v8396 = vpop.f32.mrb[0].mxu0
  %v8397 = vpop.f32.mrb[0].mxu0
  %v8398 = vadd.f32 %v7853, %v8397
  %v8399 = vpop.f32.mrb[0].mxu0
  %8400 = vmatprep.mubr.bf16.mxu0 0
  %8401 = vmatmul.mubr.bf16.gmra.mrb[0].mxu0 %v7512
  %v8402 = vpop.f32.mrb[0].mxu0
  %v8403 = vadd.f32 %v7858, %v8402
  %v8404 = vpop.f32.mrb[0].mxu0
  %v8405 = vpop.f32.mrb[0].mxu0
  %v8406 = vadd.f32 %v7861, %v8405
  %v8407 = vpop.f32.mrb[0].mxu0
  %8408 = vmatprep.mubr.bf16.mxu0 0
  %8409 = vmatmul.mubr.bf16.gmra.mrb[0].mxu0 %v7515
  %v8410 = vpop.f32.mrb[0].mxu0
  %v8411 = vadd.f32 %v7866, %v8410
  %v8412 = vpop.f32.mrb[0].mxu0
  %v8413 = vpop.f32.mrb[0].mxu0
  %v8414 = vadd.f32 %v7869, %v8413
  %v8415 = vpop.f32.mrb[0].mxu0
  %8416 = vmatprep.mubr.bf16.mxu0 0
  %8417 = vmatmul.mubr.bf16.gmra.mrb[0].mxu0 %v7518
  %v8418 = vpop.f32.mrb[0].mxu0
  %v8419 = vadd.f32 %v7874, %v8418
  %v8420 = vpop.f32.mrb[0].mxu0
  %v8421 = vpop.f32.mrb[0].mxu0
  %v8422 = vadd.f32 %v7877, %v8421
  %v8423 = vpop.f32.mrb[0].mxu0
  %8424 = vmatprep.mubr.bf16.mxu0 0
  %8425 = vmatmul.mubr.bf16.gmra.mrb[0].mxu0 %v7521
  %v8426 = vpop.f32.mrb[0].mxu0
  %v8427 = vadd.f32 %v7882, %v8426
  %v8428 = vpop.f32.mrb[0].mxu0
  %v8429 = vpop.f32.mrb[0].mxu0
  %v8430 = vadd.f32 %v7885, %v8429
  %v8431 = vpop.f32.mrb[0].mxu0
  %8432 = vmatprep.mubr.bf16.mxu0 0
  %8433 = vmatmul.mubr.bf16.gmra.mrb[0].mxu0 %v7524
  %v8434 = vpop.f32.mrb[0].mxu0
  %v8435 = vadd.f32 %v7890, %v8434
  %v8436 = vpop.f32.mrb[0].mxu0
  %v8437 = vpop.f32.mrb[0].mxu0
  %v8438 = vadd.f32 %v7893, %v8437
  %v8439 = vpop.f32.mrb[0].mxu0
  %8440 = vmatprep.mubr.bf16.mxu0 0
  %8441 = vmatmul.mubr.bf16.gmra.mrb[0].mxu0 %v7527
  %v8442 = vpop.f32.mrb[0].mxu0
  %v8443 = vadd.f32 %v7898, %v8442
  %v8444 = vpop.f32.mrb[0].mxu0
  %v8445 = vpop.f32.mrb[0].mxu0
  %v8446 = vadd.f32 %v7901, %v8445
  %v8447 = vpop.f32.mrb[0].mxu0
  %8448 = vmatprep.mubr.bf16.mxu0 0
  %8449 = vmatmul.mubr.bf16.gmra.mrb[0].mxu0 %v7530
  %v8450 = vpop.f32.mrb[0].mxu0
  %v8451 = vadd.f32 %v7906, %v8450
  %v8452 = vpop.f32.mrb[0].mxu0
  %v8453 = vpop.f32.mrb[0].mxu0
  %v8454 = vadd.f32 %v7909, %v8453
  %v8455 = vpop.f32.mrb[0].mxu0
  %8456 = vmatprep.mubr.bf16.mxu0 0
  %8457 = vmatmul.mubr.bf16.gmra.mrb[0].mxu0 %v7533
  %v8458 = vpop.f32.mrb[0].mxu0
  %v8459 = vadd.f32 %v7914, %v8458
  %v8460 = vpop.f32.mrb[0].mxu0
  %v8461 = vpop.f32.mrb[0].mxu0
  %v8462 = vadd.f32 %v7917, %v8461
  %v8463 = vpop.f32.mrb[0].mxu0
  %8464 = vmatprep.mubr.bf16.mxu0 0
  %8465 = vmatmul.mubr.bf16.gmra.mrb[0].mxu0 %v7536
  %v8466 = vpop.f32.mrb[0].mxu0
  %v8467 = vadd.f32 %v7922, %v8466
  %v8468 = vpop.f32.mrb[0].mxu0
  %v8469 = vpop.f32.mrb[0].mxu0
  %v8470 = vadd.f32 %v7925, %v8469
  %v8471 = vpop.f32.mrb[0].mxu0
  %8472 = vmatprep.mubr.bf16.mxu0 0
  %8473 = vmatmul.mubr.bf16.gmra.mrb[0].mxu0 %v7539
  %v8474 = vpop.f32.mrb[0].mxu0
  %v8475 = vadd.f32 %v7930, %v8474
  %v8476 = vpop.f32.mrb[0].mxu0
  %v8477 = vpop.f32.mrb[0].mxu0
  %v8478 = vadd.f32 %v7933, %v8477
  %v8479 = vpop.f32.mrb[0].mxu0
  %8480 = vmatprep.mubr.bf16.mxu0 0
  %8481 = vmatmul.mubr.bf16.gmra.mrb[0].mxu0 %v7542
  %v8482 = vpop.f32.mrb[0].mxu0
  %v8483 = vadd.f32 %v7938, %v8482
  %v8484 = vpop.f32.mrb[0].mxu0
  %v8485 = vpop.f32.mrb[0].mxu0
  %v8486 = vadd.f32 %v7941, %v8485
  %v8487 = vpop.f32.mrb[0].mxu0
  %8488 = vmatprep.mubr.bf16.mxu0 0
  %8489 = vmatmul.mubr.bf16.gmra.mrb[0].mxu0 %v7545
  %v8490 = vpop.f32.mrb[0].mxu0
  %v8491 = vadd.f32 %v7946, %v8490
  %v8492 = vpop.f32.mrb[0].mxu0
  %v8493 = vpop.f32.mrb[0].mxu0
  %v8494 = vadd.f32 %v7949, %v8493
  %v8495 = vpop.f32.mrb[0].mxu0
  %8496 = vmatprep.mubr.bf16.mxu0 0
  %8497 = vmatmul.mubr.bf16.gmra.mrb[0].mxu0 %v7548
  %v8498 = vpop.f32.mrb[0].mxu0
  %v8499 = vadd.f32 %v7954, %v8498
  %v8500 = vpop.f32.mrb[0].mxu0
  %v8501 = vpop.f32.mrb[0].mxu0
  %v8502 = vadd.f32 %v7957, %v8501
  %v8503 = vpop.f32.mrb[0].mxu0
  %8504 = vmatprep.mubr.bf16.mxu0 0
  %8505 = vmatmul.mubr.bf16.gmra.mrb[0].mxu0 %v7551
  %v8506 = vpop.f32.mrb[0].mxu0
  %v8507 = vadd.f32 %v7962, %v8506
  %v8508 = vpop.f32.mrb[0].mxu0
  %v8509 = vpop.f32.mrb[0].mxu0
  %v8510 = vadd.f32 %v7965, %v8509
  %v8511 = vpop.f32.mrb[0].mxu0
  %8512 = vmatprep.mubr.bf16.mxu0 0
  %8513 = vmatmul.mubr.bf16.gmra.mrb[0].mxu0 %v7554
  %v8514 = vpop.f32.mrb[0].mxu0
  %v8515 = vadd.f32 %v7970, %v8514
  %v8516 = vpop.f32.mrb[0].mxu0
  %v8517 = vpop.f32.mrb[0].mxu0
  %v8518 = vadd.f32 %v7973, %v8517
  %v8519 = vpop.f32.mrb[0].mxu0
  %8520 = vmatprep.mubr.bf16.mxu0 0
  %8521 = vmatmul.mubr.bf16.gmra.mrb[0].mxu0 %v7557
  %v8522 = vpop.f32.mrb[0].mxu0
  %v8523 = vadd.f32 %v7978, %v8522
  %v8524 = vpop.f32.mrb[0].mxu0
  %v8525 = vpop.f32.mrb[0].mxu0
  %v8526 = vadd.f32 %v7981, %v8525
  %v8527 = vpop.f32.mrb[0].mxu0
  %8528 = vmatprep.mubr.bf16.mxu0 0
  %8529 = vmatmul.mubr.bf16.gmra.mrb[0].mxu0 %v7560
  %v8530 = vpop.f32.mrb[0].mxu0
  %v8531 = vadd.f32 %v7986, %v8530
  %v8532 = vpop.f32.mrb[0].mxu0
  %v8533 = vpop.f32.mrb[0].mxu0
  %v8534 = vadd.f32 %v7989, %v8533
  %v8535 = vpop.f32.mrb[0].mxu0
  %8536 = vmatprep.mubr.bf16.mxu0 0
  %8537 = vmatmul.mubr.bf16.gmra.mrb[0].mxu0 %v7563
  %v8538 = vpop.f32.mrb[0].mxu0
  %v8539 = vadd.f32 %v7994, %v8538
  %v8540 = vpop.f32.mrb[0].mxu0
  %v8541 = vpop.f32.mrb[0].mxu0
  %v8542 = vadd.f32 %v7997, %v8541
  %v8543 = vpop.f32.mrb[0].mxu0
  %8544 = vmatprep.mubr.bf16.mxu0 0
  %8545 = vmatmul.mubr.bf16.gmra.mrb[0].mxu0 %v7566
  %v8546 = vpop.f32.mrb[0].mxu0
  %v8547 = vadd.f32 %v8002, %v8546
  %v8548 = vpop.f32.mrb[0].mxu0
  %v8549 = vpop.f32.mrb[0].mxu0
  %v8550 = vadd.f32 %v8005, %v8549
  %v8551 = vpop.f32.mrb[0].mxu0
  %8552 = vmatprep.mubr.bf16.mxu0 0
  %8553 = vmatmul.mubr.bf16.gmra.mrb[0].mxu0 %v7569
  %v8554 = vpop.f32.mrb[0].mxu0
  %v8555 = vadd.f32 %v8010, %v8554
  %v8556 = vpop.f32.mrb[0].mxu0
  %v8557 = vpop.f32.mrb[0].mxu0
  %v8558 = vadd.f32 %v8013, %v8557
  %v8559 = vpop.f32.mrb[0].mxu0
  %8560 = vmatprep.mubr.bf16.mxu0 0
  %8561 = vmatmul.mubr.bf16.gmra.mrb[0].mxu0 %v7572
  %v8562 = vpop.f32.mrb[0].mxu0
  %v8563 = vadd.f32 %v8018, %v8562
  %v8564 = vpop.f32.mrb[0].mxu0
  %v8565 = vpop.f32.mrb[0].mxu0
  %v8566 = vadd.f32 %v8021, %v8565
  %v8567 = vpop.f32.mrb[0].mxu0
  %8568 = vmatprep.mubr.bf16.mxu0 0
  %8569 = vmatmul.mubr.bf16.gmra.mrb[0].mxu0 %v7575
  %v8570 = vpop.f32.mrb[0].mxu0
  %v8571 = vadd.f32 %v8026, %v8570
  %v8572 = vpop.f32.mrb[0].mxu0
  %v8573 = vpop.f32.mrb[0].mxu0
  %v8574 = vadd.f32 %v8029, %v8573
  %v8575 = vpop.f32.mrb[0].mxu0
  %8576 = vmatprep.mubr.bf16.mxu0 0
  %8577 = vmatmul.mubr.bf16.gmra.mrb[0].mxu0 %v7578
  %v8578 = vpop.f32.mrb[0].mxu0
  %v8579 = vadd.f32 %v8034, %v8578
  %v8580 = vpop.f32.mrb[0].mxu0
  %v8581 = vpop.f32.mrb[0].mxu0
  %v8582 = vadd.f32 %v8037, %v8581
  %v8583 = vpop.f32.mrb[0].mxu0
  %8584 = vmatprep.mubr.bf16.mxu0 0
  %8585 = vmatmul.mubr.bf16.gmra.mrb[0].mxu0 %v7581
  %v8586 = vpop.f32.mrb[0].mxu0
  %v8587 = vadd.f32 %v8042, %v8586
  %v8588 = vpop.f32.mrb[0].mxu0
  %v8589 = vpop.f32.mrb[0].mxu0
  %v8590 = vadd.f32 %v8045, %v8589
  %v8591 = vpop.f32.mrb[0].mxu0
  %8592 = vmatprep.mubr.bf16.mxu0 0
  %8593 = vmatmul.mubr.bf16.gmra.mrb[0].mxu0 %v7584
  %v8594 = vpop.f32.mrb[0].mxu0
  %v8595 = vadd.f32 %v8050, %v8594
  %v8596 = vpop.f32.mrb[0].mxu0
  %v8597 = vpop.f32.mrb[0].mxu0
  %v8598 = vadd.f32 %v8053, %v8597
  %v8599 = vpop.f32.mrb[0].mxu0
  %8600 = vmatprep.mubr.bf16.mxu0 0
  %8601 = vmatmul.mubr.bf16.gmra.mrb[0].mxu0 %v7587
  %v8602 = vpop.f32.mrb[0].mxu0
  %v8603 = vadd.f32 %v8058, %v8602
  %v8604 = vpop.f32.mrb[0].mxu0
  %v8605 = vpop.f32.mrb[0].mxu0
  %v8606 = vadd.f32 %v8061, %v8605
  %v8607 = vpop.f32.mrb[0].mxu0
  %8608 = vmatprep.mubr.bf16.mxu0 0
  %8609 = vmatmul.mubr.bf16.gmra.mrb[0].mxu0 %v7590
  %v8610 = vpop.f32.mrb[0].mxu0
  %v8611 = vadd.f32 %v8066, %v8610
  %v8612 = vpop.f32.mrb[0].mxu0
  %v8613 = vpop.f32.mrb[0].mxu0
  %v8614 = vadd.f32 %v8069, %v8613
  %v8615 = vpop.f32.mrb[0].mxu0
  %8616 = vmatprep.mubr.bf16.mxu0 0
  %8617 = vmatmul.mubr.bf16.gmra.mrb[0].mxu0 %v7593
  %v8618 = vpop.f32.mrb[0].mxu0
  %v8619 = vadd.f32 %v8074, %v8618
  %v8620 = vpop.f32.mrb[0].mxu0
  %v8621 = vpop.f32.mrb[0].mxu0
  %v8622 = vadd.f32 %v8077, %v8621
  %v8623 = vpop.f32.mrb[0].mxu0
  %8624 = vmatprep.mubr.bf16.mxu0 0
  %8625 = vmatmul.mubr.bf16.gmra.mrb[0].mxu0 %v7596
  %v8626 = vpop.f32.mrb[0].mxu0
  %v8627 = vadd.f32 %v8082, %v8626
  %v8628 = vpop.f32.mrb[0].mxu0
  %v8629 = vpop.f32.mrb[0].mxu0
  %v8630 = vadd.f32 %v8085, %v8629
  %v8631 = vpop.f32.mrb[0].mxu0
  %8632 = vmatprep.mubr.bf16.mxu0 0
  %8633 = vmatmul.mubr.bf16.gmra.mrb[0].mxu0 %v7599
  %v8634 = vpop.f32.mrb[0].mxu0
  %v8635 = vadd.f32 %v8090, %v8634
  %v8636 = vpop.f32.mrb[0].mxu0
  %v8637 = vpop.f32.mrb[0].mxu0
  %v8638 = vadd.f32 %v8093, %v8637
  %v8639 = vpop.f32.mrb[0].mxu0
  %8640 = vmatprep.mubr.bf16.mxu0 0
  %8641 = vmatmul.mubr.bf16.gmra.mrb[0].mxu0 %v7602
  %v8642 = vpop.f32.mrb[0].mxu0
  %v8643 = vadd.f32 %v8098, %v8642
  %v8644 = vpop.f32.mrb[0].mxu0
  %v8645 = vpop.f32.mrb[0].mxu0
  %v8646 = vadd.f32 %v8101, %v8645
  %v8647 = vpop.f32.mrb[0].mxu0
  %8648 = vmatprep.mubr.bf16.mxu0 0
  %8649 = vmatmul.mubr.bf16.gmra.mrb[0].mxu0 %v7605
  %v8650 = vpop.f32.mrb[0].mxu0
  %v8651 = vadd.f32 %v8106, %v8650
  %v8652 = vpop.f32.mrb[0].mxu0
  %v8653 = vpop.f32.mrb[0].mxu0
  %v8654 = vadd.f32 %v8109, %v8653
  %v8655 = vpop.f32.mrb[0].mxu0
  %8656 = vmatprep.mubr.bf16.mxu0 0
  %8657 = vmatmul.mubr.bf16.gmra.mrb[0].mxu0 %v7608
  %v8658 = vpop.f32.mrb[0].mxu0
  %v8659 = vadd.f32 %v8114, %v8658
  %v8660 = vpop.f32.mrb[0].mxu0
  %v8661 = vpop.f32.mrb[0].mxu0
  %v8662 = vadd.f32 %v8117, %v8661
  %v8663 = vpop.f32.mrb[0].mxu0
  %8664 = vmatprep.mubr.bf16.mxu0 0
  %8665 = vmatmul.mubr.bf16.gmra.mrb[0].mxu0 %v7611
  %v8666 = vpop.f32.mrb[0].mxu0
  %v8667 = vadd.f32 %v8122, %v8666
  %v8668 = vpop.f32.mrb[0].mxu0
  %v8669 = vpop.f32.mrb[0].mxu0
  %v8670 = vadd.f32 %v8125, %v8669
  %v8671 = vpop.f32.mrb[0].mxu0
  %8672 = vmatprep.mubr.bf16.mxu0 0
  %8673 = vmatmul.mubr.bf16.gmra.mrb[0].mxu0 %v7614
  %v8674 = vpop.f32.mrb[0].mxu0
  %v8675 = vadd.f32 %v8130, %v8674
  %v8676 = vpop.f32.mrb[0].mxu0
  %v8677 = vpop.f32.mrb[0].mxu0
  %v8678 = vadd.f32 %v8133, %v8677
  %v8679 = vpop.f32.mrb[0].mxu0
  %8680 = vmatprep.mubr.bf16.mxu0 0
  %8681 = vmatmul.mubr.bf16.gmra.mrb[0].mxu0 %v7617
  %v8682 = vpop.f32.mrb[0].mxu0
  %v8683 = vadd.f32 %v8138, %v8682
  %v8684 = vpop.f32.mrb[0].mxu0
  %v8685 = vpop.f32.mrb[0].mxu0
  %v8686 = vadd.f32 %v8141, %v8685
  %v8687 = vpop.f32.mrb[0].mxu0
  %8688 = vmatprep.mubr.bf16.mxu0 0
  %8689 = vmatmul.mubr.bf16.gmra.mrb[0].mxu0 %v7620
  %v8690 = vpop.f32.mrb[0].mxu0
  %v8691 = vadd.f32 %v8146, %v8690
  %v8692 = vpop.f32.mrb[0].mxu0
  %v8693 = vpop.f32.mrb[0].mxu0
  %v8694 = vadd.f32 %v8149, %v8693
  %v8695 = vpop.f32.mrb[0].mxu0
  %8696 = vmatprep.mubr.bf16.mxu0 0
  %8697 = vmatmul.mubr.bf16.gmra.mrb[0].mxu0 %v7623
  %v8698 = vpop.f32.mrb[0].mxu0
  %v8699 = vadd.f32 %v8154, %v8698
  %v8700 = vpop.f32.mrb[0].mxu0
  %v8701 = vpop.f32.mrb[0].mxu0
  %v8702 = vadd.f32 %v8157, %v8701
  %v8703 = vpop.f32.mrb[0].mxu0
  %8704 = vmatprep.mubr.bf16.mxu0 0
  %8705 = vmatmul.mubr.bf16.gmra.mrb[0].mxu0 %v7626
  %v8706 = vpop.f32.mrb[0].mxu0
  %v8707 = vadd.f32 %v8162, %v8706
  %v8708 = vpop.f32.mrb[0].mxu0
  %v8709 = vpop.f32.mrb[0].mxu0
  %v8710 = vadd.f32 %v8165, %v8709
  %v8711 = vpop.f32.mrb[0].mxu0
  %8712 = vmatprep.mubr.bf16.mxu0 0
  %8713 = vmatmul.mubr.bf16.gmra.mrb[0].mxu0 %v7629
  %v8714 = vpop.f32.mrb[0].mxu0
  %v8715 = vadd.f32 %v8170, %v8714
  %v8716 = vpop.f32.mrb[0].mxu0
  %v8717 = vpop.f32.mrb[0].mxu0
  %v8718 = vadd.f32 %v8173, %v8717
  %v8719 = vpop.f32.mrb[0].mxu0
  %8720 = vdwg.mxu0
  %v8721 = vmax.f32 %v8211, %v8219
  %v8722 = vmax.f32 %v8214, %v8222
  %v8723 = vmax.f32 %v8227, %v8235
  %v8724 = vmax.f32 %v8230, %v8238
  %v8725 = vmax.f32 %v8243, %v8251
  %v8726 = vmax.f32 %v8246, %v8254
  %v8727 = vmax.f32 %v8259, %v8267
  %v8728 = vmax.f32 %v8262, %v8270
  %v8729 = vmax.f32 %v8275, %v8283
  %v8730 = vmax.f32 %v8278, %v8286
  %v8731 = vmax.f32 %v8291, %v8299
  %v8732 = vmax.f32 %v8294, %v8302
  %v8733 = vmax.f32 %v8307, %v8315
  %v8734 = vmax.f32 %v8310, %v8318
  %v8735 = vmax.f32 %v8323, %v8331
  %v8736 = vmax.f32 %v8326, %v8334
  %v8737 = vmax.f32 %v8339, %v8347
  %v8738 = vmax.f32 %v8342, %v8350
  %v8739 = vmax.f32 %v8355, %v8363
  %v8740 = vmax.f32 %v8358, %v8366
  %v8741 = vmax.f32 %v8371, %v8379
  %v8742 = vmax.f32 %v8374, %v8382
  %v8743 = vmax.f32 %v8387, %v8395
  %v8744 = vmax.f32 %v8390, %v8398
  %v8745 = vmax.f32 %v8403, %v8411
  %v8746 = vmax.f32 %v8406, %v8414
  %v8747 = vmax.f32 %v8419, %v8427
  %v8748 = vmax.f32 %v8422, %v8430
  %v8749 = vmax.f32 %v8435, %v8443
  %v8750 = vmax.f32 %v8438, %v8446
  %v8751 = vmax.f32 %v8451, %v8459
  %v8752 = vmax.f32 %v8454, %v8462
  %v8753 = vmax.f32 %v8467, %v8475
  %v8754 = vmax.f32 %v8470, %v8478
  %v8755 = vmax.f32 %v8483, %v8491
  %v8756 = vmax.f32 %v8486, %v8494
  %v8757 = vmax.f32 %v8499, %v8507
  %v8758 = vmax.f32 %v8502, %v8510
  %v8759 = vmax.f32 %v8515, %v8523
  %v8760 = vmax.f32 %v8518, %v8526
  %v8761 = vmax.f32 %v8531, %v8539
  %v8762 = vmax.f32 %v8534, %v8542
  %v8763 = vmax.f32 %v8547, %v8555
  %v8764 = vmax.f32 %v8550, %v8558
  %v8765 = vmax.f32 %v8563, %v8571
  %v8766 = vmax.f32 %v8566, %v8574
  %v8767 = vmax.f32 %v8579, %v8587
  %v8768 = vmax.f32 %v8582, %v8590
  %v8769 = vmax.f32 %v8595, %v8603
  %v8770 = vmax.f32 %v8598, %v8606
  %v8771 = vmax.f32 %v8611, %v8619
  %v8772 = vmax.f32 %v8614, %v8622
  %v8773 = vmax.f32 %v8627, %v8635
  %v8774 = vmax.f32 %v8630, %v8638
  %v8775 = vmax.f32 %v8643, %v8651
  %v8776 = vmax.f32 %v8646, %v8654
  %v8777 = vmax.f32 %v8659, %v8667
  %v8778 = vmax.f32 %v8662, %v8670
  %v8779 = vmax.f32 %v8675, %v8683
  %v8780 = vmax.f32 %v8678, %v8686
  %v8781 = vmax.f32 %v8691, %v8699
  %v8782 = vmax.f32 %v8694, %v8702
  %v8783 = vmax.f32 %v8707, %v8715
  %v8784 = vmax.f32 %v8710, %v8718
  %v8785 = vmax.f32 %v8721, %v8729
  %v8786 = vmax.f32 %v8722, %v8730
  %v8787 = vmax.f32 %v8723, %v8731
  %v8788 = vmax.f32 %v8724, %v8732
  %v8789 = vmax.f32 %v8725, %v8733
  %v8790 = vmax.f32 %v8726, %v8734
  %v8791 = vmax.f32 %v8727, %v8735
  %v8792 = vmax.f32 %v8728, %v8736
  %v8793 = vmax.f32 %v8737, %v8745
  %v8794 = vmax.f32 %v8738, %v8746
  %v8795 = vmax.f32 %v8739, %v8747
  %v8796 = vmax.f32 %v8740, %v8748
  %v8797 = vmax.f32 %v8741, %v8749
  %v8798 = vmax.f32 %v8742, %v8750
  %v8799 = vmax.f32 %v8743, %v8751
  %v8800 = vmax.f32 %v8744, %v8752
  %v8801 = vmax.f32 %v8753, %v8761
  %v8802 = vmax.f32 %v8754, %v8762
  %v8803 = vmax.f32 %v8755, %v8763
  %v8804 = vmax.f32 %v8756, %v8764
  %v8805 = vmax.f32 %v8757, %v8765
  %v8806 = vmax.f32 %v8758, %v8766
  %v8807 = vmax.f32 %v8759, %v8767
  %v8808 = vmax.f32 %v8760, %v8768
  %v8809 = vmax.f32 %v8769, %v8777
  %v8810 = vmax.f32 %v8770, %v8778
  %v8811 = vmax.f32 %v8771, %v8779
  %v8812 = vmax.f32 %v8772, %v8780
  %v8813 = vmax.f32 %v8773, %v8781
  %v8814 = vmax.f32 %v8774, %v8782
  %v8815 = vmax.f32 %v8775, %v8783
  %v8816 = vmax.f32 %v8776, %v8784
  %v8817 = vld [vmem:[%s4] sm:$0x1]
  %v8819 = vlaneseq
  %v8820 = vshrl.u32 %v8819, 7
  %v8821 = vsub.s32 0, %v8820
  %v8822 = vrot.slane %v8817, %v8821
  %v8824 = vadd.f32 %v8785, %v8822
  %v8825 = vadd.f32 %v8786, %v8822
  %v8826 = vadd.f32 %v8787, %v8822
  %v8827 = vadd.f32 %v8788, %v8822
  %v8828 = vadd.f32 %v8789, %v8822
  %v8829 = vadd.f32 %v8790, %v8822
  %v8830 = vadd.f32 %v8791, %v8822
  %v8831 = vadd.f32 %v8792, %v8822
  %v8832 = vadd.f32 %v8793, %v8822
  %v8833 = vadd.f32 %v8794, %v8822
  %v8834 = vadd.f32 %v8795, %v8822
  %v8835 = vadd.f32 %v8796, %v8822
  %v8836 = vadd.f32 %v8797, %v8822
  %v8837 = vadd.f32 %v8798, %v8822
  %v8838 = vadd.f32 %v8799, %v8822
  %v8839 = vadd.f32 %v8800, %v8822
  %v8840 = vadd.f32 %v8801, %v8822
  %v8841 = vadd.f32 %v8802, %v8822
  %v8842 = vadd.f32 %v8803, %v8822
  %v8843 = vadd.f32 %v8804, %v8822
  %v8844 = vadd.f32 %v8805, %v8822
  %v8845 = vadd.f32 %v8806, %v8822
  %v8846 = vadd.f32 %v8807, %v8822
  %v8847 = vadd.f32 %v8808, %v8822
  %v8848 = vadd.f32 %v8809, %v8822
  %v8849 = vadd.f32 %v8810, %v8822
  %v8850 = vadd.f32 %v8811, %v8822
  %v8851 = vadd.f32 %v8812, %v8822
  %v8852 = vadd.f32 %v8813, %v8822
  %v8853 = vadd.f32 %v8814, %v8822
  %v8854 = vadd.f32 %v8815, %v8822
  %v8855 = vadd.f32 %v8816, %v8822
  %v8856 = vmax.f32 %v8824, 0.0
  %v8857 = vmax.f32 %v8825, 0.0
  %v8858 = vmax.f32 %v8826, 0.0
  %v8859 = vmax.f32 %v8827, 0.0
  %v8860 = vmax.f32 %v8828, 0.0
  %v8861 = vmax.f32 %v8829, 0.0
  %v8862 = vmax.f32 %v8830, 0.0
  %v8863 = vmax.f32 %v8831, 0.0
  %v8864 = vmax.f32 %v8832, 0.0
  %v8865 = vmax.f32 %v8833, 0.0
  %v8866 = vmax.f32 %v8834, 0.0
  %v8867 = vmax.f32 %v8835, 0.0
  %v8868 = vmax.f32 %v8836, 0.0
  %v8869 = vmax.f32 %v8837, 0.0
  %v8870 = vmax.f32 %v8838, 0.0
  %v8871 = vmax.f32 %v8839, 0.0
  %v8872 = vmax.f32 %v8840, 0.0
  %v8873 = vmax.f32 %v8841, 0.0
  %v8874 = vmax.f32 %v8842, 0.0
  %v8875 = vmax.f32 %v8843, 0.0
  %v8876 = vmax.f32 %v8844, 0.0
  %v8877 = vmax.f32 %v8845, 0.0
  %v8878 = vmax.f32 %v8846, 0.0
  %v8879 = vmax.f32 %v8847, 0.0
  %v8880 = vmax.f32 %v8848, 0.0
  %v8881 = vmax.f32 %v8849, 0.0
  %v8882 = vmax.f32 %v8850, 0.0
  %v8883 = vmax.f32 %v8851, 0.0
  %v8884 = vmax.f32 %v8852, 0.0
  %v8885 = vmax.f32 %v8853, 0.0
  %v8886 = vmax.f32 %v8854, 0.0
  %v8887 = vmax.f32 %v8855, 0.0
  %v8888 = vpack.c.bf16 %v8857, %v8856
  %vm8889 = vcmask 523264
  %8890 = vst.msk [vmem:[#allocation4] sm:$0xff] %vm8889, %v8888
  %v8891 = vpack.c.bf16 %v8859, %v8858
  %8893 = vrot.lane.b32.xlu0 %v8891, 64
  %v8894 = vpop.permute.xlu0 %8893
  %vm8896 = vcmask 1048064
  %8897 = vst.msk [vmem:[#allocation4] sm:$0xff] %vm8896, %v8894
  %v8898 = vpack.c.bf16 %v8861, %v8860
  %8899 = vst.msk [vmem:[#allocation4 + $0x8] sm:$0xff] %vm8889, %v8898
  %v8900 = vpack.c.bf16 %v8863, %v8862
  %8902 = vrot.lane.b32.xlu0 %v8900, 64
  %v8903 = vpop.permute.xlu0 %8902
  %8905 = vst.msk [vmem:[#allocation4 + $0x8] sm:$0xff] %vm8896, %v8903
  %v8906 = vpack.c.bf16 %v8865, %v8864
  %8907 = vst.msk [vmem:[#allocation4 + $0x10] sm:$0xff] %vm8889, %v8906
  %v8908 = vpack.c.bf16 %v8867, %v8866
  %8910 = vrot.lane.b32.xlu0 %v8908, 64
  %v8911 = vpop.permute.xlu0 %8910
  %8913 = vst.msk [vmem:[#allocation4 + $0x10] sm:$0xff] %vm8896, %v8911
  %v8914 = vpack.c.bf16 %v8869, %v8868
  %8915 = vst.msk [vmem:[#allocation4 + $0x18] sm:$0xff] %vm8889, %v8914
  %v8916 = vpack.c.bf16 %v8871, %v8870
  %8918 = vrot.lane.b32.xlu0 %v8916, 64
  %v8919 = vpop.permute.xlu0 %8918
  %8921 = vst.msk [vmem:[#allocation4 + $0x18] sm:$0xff] %vm8896, %v8919
  %v8922 = vpack.c.bf16 %v8873, %v8872
  %8923 = vst.msk [vmem:[#allocation4 + $0x20] sm:$0xff] %vm8889, %v8922
  %v8924 = vpack.c.bf16 %v8875, %v8874
  %8926 = vrot.lane.b32.xlu0 %v8924, 64
  %v8927 = vpop.permute.xlu0 %8926
  %8929 = vst.msk [vmem:[#allocation4 + $0x20] sm:$0xff] %vm8896, %v8927
  %v8930 = vpack.c.bf16 %v8877, %v8876
  %8931 = vst.msk [vmem:[#allocation4 + $0x28] sm:$0xff] %vm8889, %v8930
  %v8932 = vpack.c.bf16 %v8879, %v8878
  %8934 = vrot.lane.b32.xlu0 %v8932, 64
  %v8935 = vpop.permute.xlu0 %8934
  %8937 = vst.msk [vmem:[#allocation4 + $0x28] sm:$0xff] %vm8896, %v8935
  %v8938 = vpack.c.bf16 %v8881, %v8880
  %8939 = vst.msk [vmem:[#allocation4 + $0x30] sm:$0xff] %vm8889, %v8938
  %v8940 = vpack.c.bf16 %v8883, %v8882
  %8942 = vrot.lane.b32.xlu0 %v8940, 64
  %v8943 = vpop.permute.xlu0 %8942
  %8945 = vst.msk [vmem:[#allocation4 + $0x30] sm:$0xff] %vm8896, %v8943
  %v8946 = vpack.c.bf16 %v8885, %v8884
  %8947 = vst.msk [vmem:[#allocation4 + $0x38] sm:$0xff] %vm8889, %v8946
  %v8948 = vpack.c.bf16 %v8887, %v8886
  %8950 = vrot.lane.b32.xlu0 %v8948, 64
  %v8951 = vpop.permute.xlu0 %8950
  %8953 = vst.msk [vmem:[#allocation4 + $0x38] sm:$0xff] %vm8896, %v8951
  %v8954 = vld [vmem:[#allocation4] sm:$0xff]
  %v8955 = vld [vmem:[#allocation4 + $0x8] sm:$0xff]
  %v8956 = vld [vmem:[#allocation4 + $0x10] sm:$0xff]
  %v8957 = vld [vmem:[#allocation4 + $0x18] sm:$0xff]
  %v8958 = vld [vmem:[#allocation4 + $0x20] sm:$0xff]
  %v8959 = vld [vmem:[#allocation4 + $0x28] sm:$0xff]
  %v8960 = vld [vmem:[#allocation4 + $0x30] sm:$0xff]
  %v8961 = vld [vmem:[#allocation4 + $0x38] sm:$0xff]
  %v8962 = vld [vmem:[%s5] sm:$0xf]
  %v8963 = vld [vmem:[%s5 + $0x4] sm:$0xf]
  %v8964 = vld [vmem:[%s5 + $0x8] sm:$0xf]
  %v8965 = vld [vmem:[%s5 + $0xc] sm:$0xf]
  %v8966 = vld [vmem:[%s5 + $0x10] sm:$0xf]
  %v8967 = vld [vmem:[%s5 + $0x14] sm:$0xf]
  %v8968 = vld [vmem:[%s5 + $0x18] sm:$0xf]
  %v8969 = vld [vmem:[%s5 + $0x1c] sm:$0xf]
  %v8970 = vld [vmem:[%s5 + $0x20] sm:$0xf]
  %v8971 = vld [vmem:[%s5 + $0x24] sm:$0xf]
  %v8972 = vld [vmem:[%s5 + $0x28] sm:$0xf]
  %v8973 = vld [vmem:[%s5 + $0x2c] sm:$0xf]
  %v8974 = vld [vmem:[%s5 + $0x30] sm:$0xf]
  %v8975 = vld [vmem:[%s5 + $0x34] sm:$0xf]
  %v8976 = vld [vmem:[%s5 + $0x38] sm:$0xf]
  %v8977 = vld [vmem:[%s5 + $0x3c] sm:$0xf]
  %v8978 = vld [vmem:[%s5 + $0x40] sm:$0xf]
  %v8979 = vld [vmem:[%s5 + $0x44] sm:$0xf]
  %v8980 = vld [vmem:[%s5 + $0x48] sm:$0xf]
  %v8981 = vld [vmem:[%s5 + $0x4c] sm:$0xf]
  %v8982 = vld [vmem:[%s5 + $0x50] sm:$0xf]
  %v8983 = vld [vmem:[%s5 + $0x54] sm:$0xf]
  %v8984 = vld [vmem:[%s5 + $0x58] sm:$0xf]
  %v8985 = vld [vmem:[%s5 + $0x5c] sm:$0xf]
  %v8986 = vld [vmem:[%s5 + $0x60] sm:$0xf]
  %v8987 = vld [vmem:[%s5 + $0x64] sm:$0xf]
  %v8988 = vld [vmem:[%s5 + $0x68] sm:$0xf]
  %v8989 = vld [vmem:[%s5 + $0x6c] sm:$0xf]
  %v8990 = vld [vmem:[%s5 + $0x70] sm:$0xf]
  %v8991 = vld [vmem:[%s5 + $0x74] sm:$0xf]
  %v8992 = vld [vmem:[%s5 + $0x78] sm:$0xf]
  %v8993 = vld [vmem:[%s5 + $0x7c] sm:$0xf]
  %v8994 = vld [vmem:[%s5 + $0x80] sm:$0xf]
  %v8995 = vld [vmem:[%s5 + $0x84] sm:$0xf]
  %v8996 = vld [vmem:[%s5 + $0x88] sm:$0xf]
  %v8997 = vld [vmem:[%s5 + $0x8c] sm:$0xf]
  %v8998 = vld [vmem:[%s5 + $0x90] sm:$0xf]
  %v8999 = vld [vmem:[%s5 + $0x94] sm:$0xf]
  %v9000 = vld [vmem:[%s5 + $0x98] sm:$0xf]
  %v9001 = vld [vmem:[%s5 + $0x9c] sm:$0xf]
  %v9002 = vld [vmem:[%s5 + $0xa0] sm:$0xf]
  %v9003 = vld [vmem:[%s5 + $0xa4] sm:$0xf]
  %v9004 = vld [vmem:[%s5 + $0xa8] sm:$0xf]
  %v9005 = vld [vmem:[%s5 + $0xac] sm:$0xf]
  %v9006 = vld [vmem:[%s5 + $0xb0] sm:$0xf]
  %v9007 = vld [vmem:[%s5 + $0xb4] sm:$0xf]
  %v9008 = vld [vmem:[%s5 + $0xb8] sm:$0xf]
  %v9009 = vld [vmem:[%s5 + $0xbc] sm:$0xf]
  %v9010 = vld [vmem:[%s5 + $0xc0] sm:$0xf]
  %v9011 = vld [vmem:[%s5 + $0xc4] sm:$0xf]
  %v9012 = vld [vmem:[%s5 + $0xc8] sm:$0xf]
  %v9013 = vld [vmem:[%s5 + $0xcc] sm:$0xf]
  %v9014 = vld [vmem:[%s5 + $0xd0] sm:$0xf]
  %v9015 = vld [vmem:[%s5 + $0xd4] sm:$0xf]
  %v9016 = vld [vmem:[%s5 + $0xd8] sm:$0xf]
  %v9017 = vld [vmem:[%s5 + $0xdc] sm:$0xf]
  %v9018 = vld [vmem:[%s5 + $0xe0] sm:$0xf]
  %v9019 = vld [vmem:[%s5 + $0xe4] sm:$0xf]
  %v9020 = vld [vmem:[%s5 + $0xe8] sm:$0xf]
  %v9021 = vld [vmem:[%s5 + $0xec] sm:$0xf]
  %v9022 = vld [vmem:[%s5 + $0xf0] sm:$0xf]
  %v9023 = vld [vmem:[%s5 + $0xf4] sm:$0xf]
  %v9024 = vld [vmem:[%s5 + $0xf8] sm:$0xf]
  %v9025 = vld [vmem:[%s5 + $0xfc] sm:$0xf]
  %v9026 = vld [vmem:[%s5 + $0x100] sm:$0xf]
  %v9027 = vld [vmem:[%s5 + $0x104] sm:$0xf]
  %v9028 = vld [vmem:[%s5 + $0x108] sm:$0xf]
  %v9029 = vld [vmem:[%s5 + $0x10c] sm:$0xf]
  %v9030 = vld [vmem:[%s5 + $0x110] sm:$0xf]
  %v9031 = vld [vmem:[%s5 + $0x114] sm:$0xf]
  %v9032 = vld [vmem:[%s5 + $0x118] sm:$0xf]
  %v9033 = vld [vmem:[%s5 + $0x11c] sm:$0xf]
  %v9034 = vld [vmem:[%s5 + $0x120] sm:$0xf]
  %v9035 = vld [vmem:[%s5 + $0x124] sm:$0xf]
  %v9036 = vld [vmem:[%s5 + $0x128] sm:$0xf]
  %v9037 = vld [vmem:[%s5 + $0x12c] sm:$0xf]
  %v9038 = vld [vmem:[%s5 + $0x130] sm:$0xf]
  %v9039 = vld [vmem:[%s5 + $0x134] sm:$0xf]
  %v9040 = vld [vmem:[%s5 + $0x138] sm:$0xf]
  %v9041 = vld [vmem:[%s5 + $0x13c] sm:$0xf]
  %v9042 = vld [vmem:[%s5 + $0x140] sm:$0xf]
  %v9043 = vld [vmem:[%s5 + $0x144] sm:$0xf]
  %v9044 = vld [vmem:[%s5 + $0x148] sm:$0xf]
  %v9045 = vld [vmem:[%s5 + $0x14c] sm:$0xf]
  %v9046 = vld [vmem:[%s5 + $0x150] sm:$0xf]
  %v9047 = vld [vmem:[%s5 + $0x154] sm:$0xf]
  %v9048 = vld [vmem:[%s5 + $0x158] sm:$0xf]
  %v9049 = vld [vmem:[%s5 + $0x15c] sm:$0xf]
  %v9050 = vld [vmem:[%s5 + $0x160] sm:$0xf]
  %v9051 = vld [vmem:[%s5 + $0x164] sm:$0xf]
  %v9052 = vld [vmem:[%s5 + $0x168] sm:$0xf]
  %v9053 = vld [vmem:[%s5 + $0x16c] sm:$0xf]
  %v9054 = vld [vmem:[%s5 + $0x170] sm:$0xf]
  %v9055 = vld [vmem:[%s5 + $0x174] sm:$0xf]
  %v9056 = vld [vmem:[%s5 + $0x178] sm:$0xf]
  %v9057 = vld [vmem:[%s5 + $0x17c] sm:$0xf]
  %v9058 = vld [vmem:[%s5 + $0x180] sm:$0xf]
  %v9059 = vld [vmem:[%s5 + $0x184] sm:$0xf]
  %v9060 = vld [vmem:[%s5 + $0x188] sm:$0xf]
  %v9061 = vld [vmem:[%s5 + $0x18c] sm:$0xf]
  %v9062 = vld [vmem:[%s5 + $0x190] sm:$0xf]
  %v9063 = vld [vmem:[%s5 + $0x194] sm:$0xf]
  %v9064 = vld [vmem:[%s5 + $0x198] sm:$0xf]
  %v9065 = vld [vmem:[%s5 + $0x19c] sm:$0xf]
  %v9066 = vld [vmem:[%s5 + $0x1a0] sm:$0xf]
  %v9067 = vld [vmem:[%s5 + $0x1a4] sm:$0xf]
  %v9068 = vld [vmem:[%s5 + $0x1a8] sm:$0xf]
  %v9069 = vld [vmem:[%s5 + $0x1ac] sm:$0xf]
  %v9070 = vld [vmem:[%s5 + $0x1b0] sm:$0xf]
  %v9071 = vld [vmem:[%s5 + $0x1b4] sm:$0xf]
  %v9072 = vld [vmem:[%s5 + $0x1b8] sm:$0xf]
  %v9073 = vld [vmem:[%s5 + $0x1bc] sm:$0xf]
  %v9074 = vld [vmem:[%s5 + $0x1c0] sm:$0xf]
  %v9075 = vld [vmem:[%s5 + $0x1c4] sm:$0xf]
  %v9076 = vld [vmem:[%s5 + $0x1c8] sm:$0xf]
  %v9077 = vld [vmem:[%s5 + $0x1cc] sm:$0xf]
  %v9078 = vld [vmem:[%s5 + $0x1d0] sm:$0xf]
  %v9079 = vld [vmem:[%s5 + $0x1d4] sm:$0xf]
  %v9080 = vld [vmem:[%s5 + $0x1d8] sm:$0xf]
  %v9081 = vld [vmem:[%s5 + $0x1dc] sm:$0xf]
  %v9082 = vld [vmem:[%s5 + $0x1e0] sm:$0xf]
  %v9083 = vld [vmem:[%s5 + $0x1e4] sm:$0xf]
  %v9084 = vld [vmem:[%s5 + $0x1e8] sm:$0xf]
  %v9085 = vld [vmem:[%s5 + $0x1ec] sm:$0xf]
  %v9086 = vld [vmem:[%s5 + $0x1f0] sm:$0xf]
  %v9087 = vld [vmem:[%s5 + $0x1f4] sm:$0xf]
  %v9088 = vld [vmem:[%s5 + $0x1f8] sm:$0xf]
  %v9089 = vld [vmem:[%s5 + $0x1fc] sm:$0xf]
  %v9090 = vld [vmem:[%s6] sm:$0x1]
  %v9092 = vlaneseq
  %v9093 = vshrl.u32 %v9092, 7
  %v9094 = vsub.s32 0, %v9093
  %v9095 = vrot.slane %v9090, %v9094
  %v9225 = vunpack.c.l.b16 %v8962
  %v9226 = vunpack.c.l.b16 %v8963
  %v9227 = vunpack.c.l.b16 %v8964
  %v9228 = vunpack.c.l.b16 %v8965
  %v9229 = vunpack.c.l.b16 %v8966
  %v9230 = vunpack.c.l.b16 %v8967
  %v9231 = vunpack.c.l.b16 %v8968
  %v9232 = vunpack.c.l.b16 %v8969
  %v9233 = vunpack.c.l.b16 %v8970
  %v9234 = vunpack.c.l.b16 %v8971
  %v9235 = vunpack.c.l.b16 %v8972
  %v9236 = vunpack.c.l.b16 %v8973
  %v9237 = vunpack.c.l.b16 %v8974
  %v9238 = vunpack.c.l.b16 %v8975
  %v9239 = vunpack.c.l.b16 %v8976
  %v9240 = vunpack.c.l.b16 %v8977
  %v9241 = vunpack.c.l.b16 %v8978
  %v9242 = vunpack.c.l.b16 %v8979
  %v9243 = vunpack.c.l.b16 %v8980
  %v9244 = vunpack.c.l.b16 %v8981
  %v9245 = vunpack.c.l.b16 %v8982
  %v9246 = vunpack.c.l.b16 %v8983
  %v9247 = vunpack.c.l.b16 %v8984
  %v9248 = vunpack.c.l.b16 %v8985
  %v9249 = vunpack.c.l.b16 %v8986
  %v9250 = vunpack.c.l.b16 %v8987
  %v9251 = vunpack.c.l.b16 %v8988
  %v9252 = vunpack.c.l.b16 %v8989
  %v9253 = vunpack.c.l.b16 %v8990
  %v9254 = vunpack.c.l.b16 %v8991
  %v9255 = vunpack.c.l.b16 %v8992
  %v9256 = vunpack.c.l.b16 %v8993
  %v9257 = vunpack.c.l.b16 %v8994
  %v9258 = vunpack.c.l.b16 %v8995
  %v9259 = vunpack.c.l.b16 %v8996
  %v9260 = vunpack.c.l.b16 %v8997
  %v9261 = vunpack.c.l.b16 %v8998
  %v9262 = vunpack.c.l.b16 %v8999
  %v9263 = vunpack.c.l.b16 %v9000
  %v9264 = vunpack.c.l.b16 %v9001
  %v9265 = vunpack.c.l.b16 %v9002
  %v9266 = vunpack.c.l.b16 %v9003
  %v9267 = vunpack.c.l.b16 %v9004
  %v9268 = vunpack.c.l.b16 %v9005
  %v9269 = vunpack.c.l.b16 %v9006
  %v9270 = vunpack.c.l.b16 %v9007
  %v9271 = vunpack.c.l.b16 %v9008
  %v9272 = vunpack.c.l.b16 %v9009
  %v9273 = vunpack.c.l.b16 %v9010
  %v9274 = vunpack.c.l.b16 %v9011
  %v9275 = vunpack.c.l.b16 %v9012
  %v9276 = vunpack.c.l.b16 %v9013
  %v9277 = vunpack.c.l.b16 %v9014
  %v9278 = vunpack.c.l.b16 %v9015
  %v9279 = vunpack.c.l.b16 %v9016
  %v9280 = vunpack.c.l.b16 %v9017
  %v9281 = vunpack.c.l.b16 %v9018
  %v9282 = vunpack.c.l.b16 %v9019
  %v9283 = vunpack.c.l.b16 %v9020
  %v9284 = vunpack.c.l.b16 %v9021
  %v9285 = vunpack.c.l.b16 %v9022
  %v9286 = vunpack.c.l.b16 %v9023
  %v9287 = vunpack.c.l.b16 %v9024
  %v9288 = vunpack.c.l.b16 %v9025
  %v9289 = vunpack.c.l.b16 %v9026
  %v9290 = vunpack.c.l.b16 %v9027
  %v9291 = vunpack.c.l.b16 %v9028
  %v9292 = vunpack.c.l.b16 %v9029
  %v9293 = vunpack.c.l.b16 %v9030
  %v9294 = vunpack.c.l.b16 %v9031
  %v9295 = vunpack.c.l.b16 %v9032
  %v9296 = vunpack.c.l.b16 %v9033
  %v9297 = vunpack.c.l.b16 %v9034
  %v9298 = vunpack.c.l.b16 %v9035
  %v9299 = vunpack.c.l.b16 %v9036
  %v9300 = vunpack.c.l.b16 %v9037
  %v9301 = vunpack.c.l.b16 %v9038
  %v9302 = vunpack.c.l.b16 %v9039
  %v9303 = vunpack.c.l.b16 %v9040
  %v9304 = vunpack.c.l.b16 %v9041
  %v9305 = vunpack.c.l.b16 %v9042
  %v9306 = vunpack.c.l.b16 %v9043
  %v9307 = vunpack.c.l.b16 %v9044
  %v9308 = vunpack.c.l.b16 %v9045
  %v9309 = vunpack.c.l.b16 %v9046
  %v9310 = vunpack.c.l.b16 %v9047
  %v9311 = vunpack.c.l.b16 %v9048
  %v9312 = vunpack.c.l.b16 %v9049
  %v9313 = vunpack.c.l.b16 %v9050
  %v9314 = vunpack.c.l.b16 %v9051
  %v9315 = vunpack.c.l.b16 %v9052
  %v9316 = vunpack.c.l.b16 %v9053
  %v9317 = vunpack.c.l.b16 %v9054
  %v9318 = vunpack.c.l.b16 %v9055
  %v9319 = vunpack.c.l.b16 %v9056
  %v9320 = vunpack.c.l.b16 %v9057
  %v9321 = vunpack.c.l.b16 %v9058
  %v9322 = vunpack.c.l.b16 %v9059
  %v9323 = vunpack.c.l.b16 %v9060
  %v9324 = vunpack.c.l.b16 %v9061
  %v9325 = vunpack.c.l.b16 %v9062
  %v9326 = vunpack.c.l.b16 %v9063
  %v9327 = vunpack.c.l.b16 %v9064
  %v9328 = vunpack.c.l.b16 %v9065
  %v9329 = vunpack.c.l.b16 %v9066
  %v9330 = vunpack.c.l.b16 %v9067
  %v9331 = vunpack.c.l.b16 %v9068
  %v9332 = vunpack.c.l.b16 %v9069
  %v9333 = vunpack.c.l.b16 %v9070
  %v9334 = vunpack.c.l.b16 %v9071
  %v9335 = vunpack.c.l.b16 %v9072
  %v9336 = vunpack.c.l.b16 %v9073
  %v9337 = vunpack.c.l.b16 %v9074
  %v9338 = vunpack.c.l.b16 %v9075
  %v9339 = vunpack.c.l.b16 %v9076
  %v9340 = vunpack.c.l.b16 %v9077
  %v9341 = vunpack.c.l.b16 %v9078
  %v9342 = vunpack.c.l.b16 %v9079
  %v9343 = vunpack.c.l.b16 %v9080
  %v9344 = vunpack.c.l.b16 %v9081
  %v9345 = vunpack.c.l.b16 %v9082
  %v9346 = vunpack.c.l.b16 %v9083
  %v9347 = vunpack.c.l.b16 %v9084
  %v9348 = vunpack.c.l.b16 %v9085
  %v9349 = vunpack.c.l.b16 %v9086
  %v9350 = vunpack.c.l.b16 %v9087
  %v9351 = vunpack.c.l.b16 %v9088
  %v9352 = vunpack.c.l.b16 %v9089
  %v9353 = vpack.c.b16 %v9226, %v9225
  %v9354 = vpack.c.b16 %v9228, %v9227
  %v9355 = vpack.c.b16 %v9230, %v9229
  %v9356 = vpack.c.b16 %v9232, %v9231
  %v9357 = vpack.c.b16 %v9234, %v9233
  %v9358 = vpack.c.b16 %v9236, %v9235
  %v9359 = vpack.c.b16 %v9238, %v9237
  %v9360 = vpack.c.b16 %v9240, %v9239
  %v9361 = vpack.c.b16 %v9242, %v9241
  %v9362 = vpack.c.b16 %v9244, %v9243
  %v9363 = vpack.c.b16 %v9246, %v9245
  %v9364 = vpack.c.b16 %v9248, %v9247
  %v9365 = vpack.c.b16 %v9250, %v9249
  %v9366 = vpack.c.b16 %v9252, %v9251
  %v9367 = vpack.c.b16 %v9254, %v9253
  %v9368 = vpack.c.b16 %v9256, %v9255
  %v9369 = vpack.c.b16 %v9258, %v9257
  %v9370 = vpack.c.b16 %v9260, %v9259
  %v9371 = vpack.c.b16 %v9262, %v9261
  %v9372 = vpack.c.b16 %v9264, %v9263
  %v9373 = vpack.c.b16 %v9266, %v9265
  %v9374 = vpack.c.b16 %v9268, %v9267
  %v9375 = vpack.c.b16 %v9270, %v9269
  %v9376 = vpack.c.b16 %v9272, %v9271
  %v9377 = vpack.c.b16 %v9274, %v9273
  %v9378 = vpack.c.b16 %v9276, %v9275
  %v9379 = vpack.c.b16 %v9278, %v9277
  %v9380 = vpack.c.b16 %v9280, %v9279
  %v9381 = vpack.c.b16 %v9282, %v9281
  %v9382 = vpack.c.b16 %v9284, %v9283
  %v9383 = vpack.c.b16 %v9286, %v9285
  %v9384 = vpack.c.b16 %v9288, %v9287
  %v9385 = vpack.c.b16 %v9290, %v9289
  %v9386 = vpack.c.b16 %v9292, %v9291
  %v9387 = vpack.c.b16 %v9294, %v9293
  %v9388 = vpack.c.b16 %v9296, %v9295
  %v9389 = vpack.c.b16 %v9298, %v9297
  %v9390 = vpack.c.b16 %v9300, %v9299
  %v9391 = vpack.c.b16 %v9302, %v9301
  %v9392 = vpack.c.b16 %v9304, %v9303
  %v9393 = vpack.c.b16 %v9306, %v9305
  %v9394 = vpack.c.b16 %v9308, %v9307
  %v9395 = vpack.c.b16 %v9310, %v9309
  %v9396 = vpack.c.b16 %v9312, %v9311
  %v9397 = vpack.c.b16 %v9314, %v9313
  %v9398 = vpack.c.b16 %v9316, %v9315
  %v9399 = vpack.c.b16 %v9318, %v9317
  %v9400 = vpack.c.b16 %v9320, %v9319
  %v9401 = vpack.c.b16 %v9322, %v9321
  %v9402 = vpack.c.b16 %v9324, %v9323
  %v9403 = vpack.c.b16 %v9326, %v9325
  %v9404 = vpack.c.b16 %v9328, %v9327
  %v9405 = vpack.c.b16 %v9330, %v9329
  %v9406 = vpack.c.b16 %v9332, %v9331
  %v9407 = vpack.c.b16 %v9334, %v9333
  %v9408 = vpack.c.b16 %v9336, %v9335
  %v9409 = vpack.c.b16 %v9338, %v9337
  %v9410 = vpack.c.b16 %v9340, %v9339
  %v9411 = vpack.c.b16 %v9342, %v9341
  %v9412 = vpack.c.b16 %v9344, %v9343
  %v9413 = vpack.c.b16 %v9346, %v9345
  %v9414 = vpack.c.b16 %v9348, %v9347
  %v9415 = vpack.c.b16 %v9350, %v9349
  %v9416 = vpack.c.b16 %v9352, %v9351
  %9481 = vmatprep.subr.bf16.mxu0 0
  %9482 = vmatpush1.bf16.msra.mxu0 %v9353
  %9483 = vmatprep.subr.bf16.mxu0 0
  %9484 = vmatpush1.bf16.msra.mxu0 %v9354
  %9485 = vmatprep.subr.bf16.mxu0 0
  %9486 = vmatpush1.bf16.msra.mxu0 %v9355
  %9487 = vmatprep.subr.bf16.mxu0 0
  %9488 = vmatpush1.bf16.msra.mxu0 %v9356
  %9489 = vmatprep.subr.bf16.mxu0 0
  %9490 = vmatpush1.bf16.msra.mxu0 %v9357
  %9491 = vmatprep.subr.bf16.mxu0 0
  %9492 = vmatpush1.bf16.msra.mxu0 %v9358
  %9493 = vmatprep.subr.bf16.mxu0 0
  %9494 = vmatpush1.bf16.msra.mxu0 %v9359
  %9495 = vmatprep.subr.bf16.mxu0 0
  %9496 = vmatpush1.bf16.msra.mxu0 %v9360
  %9497 = vmatprep.subr.bf16.mxu0 0
  %9498 = vmatpush1.bf16.msra.mxu0 %v9361
  %9499 = vmatprep.subr.bf16.mxu0 0
  %9500 = vmatpush1.bf16.msra.mxu0 %v9362
  %9501 = vmatprep.subr.bf16.mxu0 0
  %9502 = vmatpush1.bf16.msra.mxu0 %v9363
  %9503 = vmatprep.subr.bf16.mxu0 0
  %9504 = vmatpush1.bf16.msra.mxu0 %v9364
  %9505 = vmatprep.subr.bf16.mxu0 0
  %9506 = vmatpush1.bf16.msra.mxu0 %v9365
  %9507 = vmatprep.subr.bf16.mxu0 0
  %9508 = vmatpush1.bf16.msra.mxu0 %v9366
  %9509 = vmatprep.subr.bf16.mxu0 0
  %9510 = vmatpush1.bf16.msra.mxu0 %v9367
  %9511 = vmatprep.subr.bf16.mxu0 0
  %9512 = vmatpush1.bf16.msra.mxu0 %v9368
  %9513 = vmatprep.mubr.bf16.mxu0 %v8955
  %9514 = vmatmul.mubr.bf16.gmra.mrb[0].mxu0 %v8954
  %v9515 = vpop.f32.mrb[0].mxu0
  %v9516 = vadd.f32 %v9095, %v9515
  %v9517 = vpop.f32.mrb[0].mxu0
  %v9518 = vpop.f32.mrb[0].mxu0
  %v9519 = vadd.f32 %v9095, %v9518
  %v9520 = vpop.f32.mrb[0].mxu0
  %9521 = vdwg.mxu0
  %9522 = vmatprep.subr.bf16.mxu0 0
  %9523 = vmatpush1.bf16.msra.mxu0 %v9369
  %9524 = vmatprep.subr.bf16.mxu0 0
  %9525 = vmatpush1.bf16.msra.mxu0 %v9370
  %9526 = vmatprep.subr.bf16.mxu0 0
  %9527 = vmatpush1.bf16.msra.mxu0 %v9371
  %9528 = vmatprep.subr.bf16.mxu0 0
  %9529 = vmatpush1.bf16.msra.mxu0 %v9372
  %9530 = vmatprep.subr.bf16.mxu0 0
  %9531 = vmatpush1.bf16.msra.mxu0 %v9373
  %9532 = vmatprep.subr.bf16.mxu0 0
  %9533 = vmatpush1.bf16.msra.mxu0 %v9374
  %9534 = vmatprep.subr.bf16.mxu0 0
  %9535 = vmatpush1.bf16.msra.mxu0 %v9375
  %9536 = vmatprep.subr.bf16.mxu0 0
  %9537 = vmatpush1.bf16.msra.mxu0 %v9376
  %9538 = vmatprep.subr.bf16.mxu0 0
  %9539 = vmatpush1.bf16.msra.mxu0 %v9377
  %9540 = vmatprep.subr.bf16.mxu0 0
  %9541 = vmatpush1.bf16.msra.mxu0 %v9378
  %9542 = vmatprep.subr.bf16.mxu0 0
  %9543 = vmatpush1.bf16.msra.mxu0 %v9379
  %9544 = vmatprep.subr.bf16.mxu0 0
  %9545 = vmatpush1.bf16.msra.mxu0 %v9380
  %9546 = vmatprep.subr.bf16.mxu0 0
  %9547 = vmatpush1.bf16.msra.mxu0 %v9381
  %9548 = vmatprep.subr.bf16.mxu0 0
  %9549 = vmatpush1.bf16.msra.mxu0 %v9382
  %9550 = vmatprep.subr.bf16.mxu0 0
  %9551 = vmatpush1.bf16.msra.mxu0 %v9383
  %9552 = vmatprep.subr.bf16.mxu0 0
  %9553 = vmatpush1.bf16.msra.mxu0 %v9384
  %9554 = vmatprep.mubr.bf16.mxu0 %v8957
  %9555 = vmatmul.mubr.bf16.gmra.mrb[0].mxu0 %v8956
  %v9556 = vpop.f32.mrb[0].mxu0
  %v9557 = vadd.f32 %v9516, %v9556
  %v9558 = vpop.f32.mrb[0].mxu0
  %v9559 = vpop.f32.mrb[0].mxu0
  %v9560 = vadd.f32 %v9519, %v9559
  %v9561 = vpop.f32.mrb[0].mxu0
  %9562 = vdwg.mxu0
  %9563 = vmatprep.subr.bf16.mxu0 0
  %9564 = vmatpush1.bf16.msra.mxu0 %v9385
  %9565 = vmatprep.subr.bf16.mxu0 0
  %9566 = vmatpush1.bf16.msra.mxu0 %v9386
  %9567 = vmatprep.subr.bf16.mxu0 0
  %9568 = vmatpush1.bf16.msra.mxu0 %v9387
  %9569 = vmatprep.subr.bf16.mxu0 0
  %9570 = vmatpush1.bf16.msra.mxu0 %v9388
  %9571 = vmatprep.subr.bf16.mxu0 0
  %9572 = vmatpush1.bf16.msra.mxu0 %v9389
  %9573 = vmatprep.subr.bf16.mxu0 0
  %9574 = vmatpush1.bf16.msra.mxu0 %v9390
  %9575 = vmatprep.subr.bf16.mxu0 0
  %9576 = vmatpush1.bf16.msra.mxu0 %v9391
  %9577 = vmatprep.subr.bf16.mxu0 0
  %9578 = vmatpush1.bf16.msra.mxu0 %v9392
  %9579 = vmatprep.subr.bf16.mxu0 0
  %9580 = vmatpush1.bf16.msra.mxu0 %v9393
  %9581 = vmatprep.subr.bf16.mxu0 0
  %9582 = vmatpush1.bf16.msra.mxu0 %v9394
  %9583 = vmatprep.subr.bf16.mxu0 0
  %9584 = vmatpush1.bf16.msra.mxu0 %v9395
  %9585 = vmatprep.subr.bf16.mxu0 0
  %9586 = vmatpush1.bf16.msra.mxu0 %v9396
  %9587 = vmatprep.subr.bf16.mxu0 0
  %9588 = vmatpush1.bf16.msra.mxu0 %v9397
  %9589 = vmatprep.subr.bf16.mxu0 0
  %9590 = vmatpush1.bf16.msra.mxu0 %v9398
  %9591 = vmatprep.subr.bf16.mxu0 0
  %9592 = vmatpush1.bf16.msra.mxu0 %v9399
  %9593 = vmatprep.subr.bf16.mxu0 0
  %9594 = vmatpush1.bf16.msra.mxu0 %v9400
  %9595 = vmatprep.mubr.bf16.mxu0 %v8959
  %9596 = vmatmul.mubr.bf16.gmra.mrb[0].mxu0 %v8958
  %v9597 = vpop.f32.mrb[0].mxu0
  %v9598 = vadd.f32 %v9557, %v9597
  %v9599 = vpop.f32.mrb[0].mxu0
  %v9600 = vpop.f32.mrb[0].mxu0
  %v9601 = vadd.f32 %v9560, %v9600
  %v9602 = vpop.f32.mrb[0].mxu0
  %9603 = vdwg.mxu0
  %9604 = vmatprep.subr.bf16.mxu0 0
  %9605 = vmatpush1.bf16.msra.mxu0 %v9401
  %9606 = vmatprep.subr.bf16.mxu0 0
  %9607 = vmatpush1.bf16.msra.mxu0 %v9402
  %9608 = vmatprep.subr.bf16.mxu0 0
  %9609 = vmatpush1.bf16.msra.mxu0 %v9403
  %9610 = vmatprep.subr.bf16.mxu0 0
  %9611 = vmatpush1.bf16.msra.mxu0 %v9404
  %9612 = vmatprep.subr.bf16.mxu0 0
  %9613 = vmatpush1.bf16.msra.mxu0 %v9405
  %9614 = vmatprep.subr.bf16.mxu0 0
  %9615 = vmatpush1.bf16.msra.mxu0 %v9406
  %9616 = vmatprep.subr.bf16.mxu0 0
  %9617 = vmatpush1.bf16.msra.mxu0 %v9407
  %9618 = vmatprep.subr.bf16.mxu0 0
  %9619 = vmatpush1.bf16.msra.mxu0 %v9408
  %9620 = vmatprep.subr.bf16.mxu0 0
  %9621 = vmatpush1.bf16.msra.mxu0 %v9409
  %9622 = vmatprep.subr.bf16.mxu0 0
  %9623 = vmatpush1.bf16.msra.mxu0 %v9410
  %9624 = vmatprep.subr.bf16.mxu0 0
  %9625 = vmatpush1.bf16.msra.mxu0 %v9411
  %9626 = vmatprep.subr.bf16.mxu0 0
  %9627 = vmatpush1.bf16.msra.mxu0 %v9412
  %9628 = vmatprep.subr.bf16.mxu0 0
  %9629 = vmatpush1.bf16.msra.mxu0 %v9413
  %9630 = vmatprep.subr.bf16.mxu0 0
  %9631 = vmatpush1.bf16.msra.mxu0 %v9414
  %9632 = vmatprep.subr.bf16.mxu0 0
  %9633 = vmatpush1.bf16.msra.mxu0 %v9415
  %9634 = vmatprep.subr.bf16.mxu0 0
  %9635 = vmatpush1.bf16.msra.mxu0 %v9416
  %9636 = vmatprep.mubr.bf16.mxu0 %v8961
  %9637 = vmatmul.mubr.bf16.gmra.mrb[0].mxu0 %v8960
  %v9638 = vpop.f32.mrb[0].mxu0
  %v9639 = vadd.f32 %v9598, %v9638
  %v9640 = vpop.f32.mrb[0].mxu0
  %v9641 = vpop.f32.mrb[0].mxu0
  %v9642 = vadd.f32 %v9601, %v9641
  %v9643 = vpop.f32.mrb[0].mxu0
  %9644 = vdwg.mxu0
  %v9645 = vmax.f32 %v9639, 0.0
  %v9646 = vmax.f32 %v9642, 0.0
  %v9647 = vpack.c.bf16 %v9646, %v9645
  %v9648 = vld [vmem:[%s7] sm:$0xf]
  %v9649 = vld [vmem:[%s7 + $0x4] sm:$0xf]
  %v9650 = vld [vmem:[%s7 + $0x8] sm:$0xf]
  %v9651 = vld [vmem:[%s7 + $0xc] sm:$0xf]
  %v9652 = vld [vmem:[%s7 + $0x10] sm:$0xf]
  %v9653 = vld [vmem:[%s7 + $0x14] sm:$0xf]
  %v9654 = vld [vmem:[%s7 + $0x18] sm:$0xf]
  %v9655 = vld [vmem:[%s7 + $0x1c] sm:$0xf]
  %v9656 = vld [vmem:[%s7 + $0x20] sm:$0xf]
  %v9657 = vld [vmem:[%s7 + $0x24] sm:$0xf]
  %v9658 = vld [vmem:[%s7 + $0x28] sm:$0xf]
  %v9659 = vld [vmem:[%s7 + $0x2c] sm:$0xf]
  %v9660 = vld [vmem:[%s7 + $0x30] sm:$0xf]
  %v9661 = vld [vmem:[%s7 + $0x34] sm:$0xf]
  %v9662 = vld [vmem:[%s7 + $0x38] sm:$0xf]
  %v9663 = vld [vmem:[%s7 + $0x3c] sm:$0xf]
  %v9664 = vld [vmem:[%s8] sm:$0x1]
  %v9666 = vlaneseq
  %v9667 = vshrl.u32 %v9666, 7
  %v9668 = vsub.s32 0, %v9667
  %v9669 = vrot.slane %v9664, %v9668
  %v9687 = vunpack.c.l.b16 %v9648
  %v9688 = vunpack.c.l.b16 %v9649
  %v9689 = vunpack.c.l.b16 %v9650
  %v9690 = vunpack.c.l.b16 %v9651
  %v9691 = vunpack.c.l.b16 %v9652
  %v9692 = vunpack.c.l.b16 %v9653
  %v9693 = vunpack.c.l.b16 %v9654
  %v9694 = vunpack.c.l.b16 %v9655
  %v9695 = vunpack.c.l.b16 %v9656
  %v9696 = vunpack.c.l.b16 %v9657
  %v9697 = vunpack.c.l.b16 %v9658
  %v9698 = vunpack.c.l.b16 %v9659
  %v9699 = vunpack.c.l.b16 %v9660
  %v9700 = vunpack.c.l.b16 %v9661
  %v9701 = vunpack.c.l.b16 %v9662
  %v9702 = vunpack.c.l.b16 %v9663
  %v9703 = vpack.c.b16 %v9688, %v9687
  %v9704 = vpack.c.b16 %v9690, %v9689
  %v9705 = vpack.c.b16 %v9692, %v9691
  %v9706 = vpack.c.b16 %v9694, %v9693
  %v9707 = vpack.c.b16 %v9696, %v9695
  %v9708 = vpack.c.b16 %v9698, %v9697
  %v9709 = vpack.c.b16 %v9700, %v9699
  %v9710 = vpack.c.b16 %v9702, %v9701
  %9719 = vmatprep.subr.bf16.mxu0 0
  %9720 = vmatpush1.bf16.msra.mxu0 %v9703
  %9721 = vmatprep.subr.bf16.mxu0 0
  %9722 = vmatpush1.bf16.msra.mxu0 %v9704
  %9723 = vmatprep.subr.bf16.mxu0 0
  %9724 = vmatpush1.bf16.msra.mxu0 %v9705
  %9725 = vmatprep.subr.bf16.mxu0 0
  %9726 = vmatpush1.bf16.msra.mxu0 %v9706
  %9727 = vmatprep.subr.bf16.mxu0 0
  %9728 = vmatpush1.bf16.msra.mxu0 %v9707
  %9729 = vmatprep.subr.bf16.mxu0 0
  %9730 = vmatpush1.bf16.msra.mxu0 %v9708
  %9731 = vmatprep.subr.bf16.mxu0 0
  %9732 = vmatpush1.bf16.msra.mxu0 %v9709
  %9733 = vmatprep.subr.bf16.mxu0 0
  %9734 = vmatpush1.bf16.msra.mxu0 %v9710
  %9735 = vmatprep.subr.bf16.mxu0 0
  %9736 = vmatpush1.bf16.msra.mxu0 0
  %9737 = vmatprep.subr.bf16.mxu0 0
  %9738 = vmatpush1.bf16.msra.mxu0 0
  %9739 = vmatprep.subr.bf16.mxu0 0
  %9740 = vmatpush1.bf16.msra.mxu0 0
  %9741 = vmatprep.subr.bf16.mxu0 0
  %9742 = vmatpush1.bf16.msra.mxu0 0
  %9743 = vmatprep.subr.bf16.mxu0 0
  %9744 = vmatpush1.bf16.msra.mxu0 0
  %9745 = vmatprep.subr.bf16.mxu0 0
  %9746 = vmatpush1.bf16.msra.mxu0 0
  %9747 = vmatprep.subr.bf16.mxu0 0
  %9748 = vmatpush1.bf16.msra.mxu0 0
  %9749 = vmatprep.subr.bf16.mxu0 0
  %9750 = vmatpush1.bf16.msra.mxu0 0
  %9751 = vmatprep.mubr.bf16.mxu0 0
  %9752 = vmatmul.mubr.bf16.gmra.mrb[0].mxu0 %v9647
  %v9753 = vpop.f32.mrb[0].mxu0
  %v9754 = vadd.f32 %v9669, %v9753
  %v9755 = vpop.f32.mrb[0].mxu0
  %v9756 = vpop.f32.mrb[0].mxu0
  %v9757 = vadd.f32 %v9669, %v9756
  %v9758 = vpop.f32.mrb[0].mxu0
  %9759 = vdwg.mxu0
  %9760 = vmax.xlane.f32.xlu0 %v9754
  %v9761 = vpop.xlane.xlu0 %9760
  %9762 = vmax.xlane.f32.xlu0 %v9757
  %v9763 = vpop.xlane.xlu0 %9762
  %v9764 = vsub.f32 %v9754, %v9761
  %v9765 = vsub.f32 %v9757, %v9763
  %v9766 = vmul.f32 %v9764, 1.442695
  %v9767 = vpow.pop %v9766
  %v9768 = vmul.f32 %v9765, 1.442695
  %v9769 = vpow.pop %v9768
  %9770 = vadd.xlane.f32.xlu0 %v9767
  %v9771 = vpop.xlane.xlu0 %9770
  %9772 = vadd.xlane.f32.xlu0 %v9769
  %v9773 = vpop.xlane.xlu0 %9772
  %v9774 = vlog2.pop %v9771
  %v9775 = vmul.f32 %v9774, 0.6931472
  %v9776 = vlog2.pop %v9773
  %v9777 = vmul.f32 %v9776, 0.6931472
  %v9778 = vsub.f32 %v9764, %v9775
  %v9779 = vsub.f32 %v9765, %v9777
  %9780 = vst [vmem:[%s9] sm:$0xff] %v9778
  %9781 = vst [vmem:[%s9 + $0x8] sm:$0xff] %v9779
  // Predicated region
  $region38: #{net_conv_forward.1} parent=0 // pred_check
    _
  $region39: #{net_conv_forward.1} parent=0 // pred_check_branch
    %9783 = sbr.rel (0) target = $region41
  $region40: #{net_conv_forward.1} parent=0 // pred_region
    _
  $region41: #{net_conv_forward.1} parent=0 // pred_fallthru
    _
  // Predicated region
  $region42: #{net_conv_forward.1} parent=0 // pred_check
    _
  $region43: #{net_conv_forward.1} parent=0 // pred_check_branch
    %9785 = sbr.rel (0) target = $region45
  $region44: #{net_conv_forward.1} parent=0 // pred_region
    _
  $region45: #{net_conv_forward.1} parent=0 // pred_fallthru
    _

</llo_original>
